<compile_context>
chip_gen: v7x
topology: tpu7x:2x2x1
jax: 0.10.0
libtpu: 0.0.40
codegen_flags: <defaults>
</compile_context>

<pallas_src>
import functools

import numpy as np
import jax
import jax.numpy as jnp
from jax.experimental import pallas as pl
from jax.experimental.pallas import tpu as pltpu


# ---------------------------------------------------------------------------
# im2col map for a 3x3 conv (padding=1) on a 3x3 "face":
# _IM2COL[p, t, px] = 1 if output position p uses input pixel px at tap t.
_IM2COL = np.zeros((9, 9, 9), np.float32)
for _i in range(3):
    for _j in range(3):
        for _a in range(3):
            for _b in range(3):
                _r, _c = _i + _a - 1, _j + _b - 1
                if 0 <= _r < 3 and 0 <= _c < 3:
                    _IM2COL[_i * 3 + _j, _a * 3 + _b, _r * 3 + _c] = 1.0


# ----------------------------- in-kernel helpers ----------------------------

def _layernorm(x, g, b, eps):
    """PyTorch LayerNorm over the last dim (biased variance), f32 math."""
    mu = jnp.mean(x, axis=-1, keepdims=True)
    var = jnp.mean((x - mu) ** 2, axis=-1, keepdims=True)
    return (x - mu) * jax.lax.rsqrt(var + eps) * g + b


def _mha(q, k, v, wo, bo, mask, H):
    """Multi-head attention on per-batch 2-D tiles.

    q:(Nq,D), k,v:(Nk,D) in f32.  `mask` is an optional additive (Nq,Nk) mask
    (decoder causality); batches never mix because the kernel grid carries the
    batch axis.  K is transposed once; per-head outputs are concatenated so the
    output projection is one full-depth (Nq,D)@(D,D) matmul instead of H
    shallow dh-deep passes.  Matmuls in bf16 with f32 accumulation; softmax is
    exact (matches torch numerics up to bf16 operand rounding).
    """
    D = q.shape[-1]
    dh = D // H
    scale = 1.0 / float(dh) ** 0.5
    qb = (q * scale).astype(jnp.bfloat16)
    kTb = k.T.astype(jnp.bfloat16)          # one transpose per attention site
    vb = v.astype(jnp.bfloat16)
    heads = []
    for h in range(H):
        cs = slice(h * dh, (h + 1) * dh)
        s = jnp.dot(qb[:, cs], kTb[cs, :], preferred_element_type=jnp.float32)
        if mask is not None:
            s = s + mask
        s = s - jnp.max(s, axis=-1, keepdims=True)
        p = jnp.exp(s)
        p = p / jnp.sum(p, axis=-1, keepdims=True)     # exact softmax
        heads.append(jnp.dot(p.astype(jnp.bfloat16), vb[:, cs],
                             preferred_element_type=jnp.float32))
    o = jnp.concatenate(heads, axis=-1)                # (Nq, D)
    return jnp.dot(o.astype(jnp.bfloat16), wo, preferred_element_type=jnp.float32) + bo


# ------------------------------- Pallas kernels -----------------------------

def _encoder_stack_kernel(x9_ref, wf_ref, bf_ref, wc_ref, bc_ref, fpb_ref, spos_ref,
                          wqkv_ref, bqkv_ref, wo_ref, bo_ref,
                          n1w_ref, n1b_ref, w1_ref, b1_ref, w2_ref, b2_ref,
                          n2w_ref, n2b_ref, fnw_ref, fnb_ref,
                          o_ref, *, H, S, D, eps):
    """Grid = (batch, layer).  One step == one encoder layer for one batch
    element; activations are resident in the (1, S, D) output block across the
    layer axis.  Layer 0 additionally runs the fused cube-state front end."""
    l = pl.program_id(1)
    L = pl.num_programs(1)

    @pl.when(l == 0)
    def _():
        # ---- fused cube front end ----
        # x9: (6*S, 9) stickers for this batch element, rows ordered (face, s).
        x9 = x9_ref[0].astype(jnp.bfloat16)
        face = jnp.dot(x9, wf_ref[...], preferred_element_type=jnp.float32) + bf_ref[...]
        # conv(3x3, pad=1) pre-activations for all 9 output positions at once
        pre = jnp.dot(x9, wc_ref[...], preferred_element_type=jnp.float32)   # (6S, 9*D)
        conv = jnp.zeros_like(face)
        for p in range(9):               # ReLU before the spatial mean (as in torch)
            conv = conv + jnp.maximum(pre[:, p * D:(p + 1) * D] + bc_ref[...], 0.0)
        fused = (face + conv * (1.0 / 9.0)) * 0.5
        # mean over the 6 faces: 6 contiguous static slices (no dense gavg matmul)
        enh = jnp.zeros((S, D), jnp.float32)
        for f in range(6):
            enh = enh + fused[f * S:(f + 1) * S, :]
        # fpb = 0.5 * mean_f(face_pos_linear(face_pos_emb)): exact collapse because the
        # face-pos projection is added linearly before the face mean (no nonlinearity).
        o_ref[0] = enh * (1.0 / 6.0) + fpb_ref[...] + spos_ref[...]

    x = o_ref[0]                                              # (S, D) f32, resident

    # --- self attention (fused QKV projection, per-batch => no mask needed) ---
    qkv = jnp.dot(x.astype(jnp.bfloat16), wqkv_ref[0],
                  preferred_element_type=jnp.float32) + bqkv_ref[0]
    attn = _mha(qkv[:, :D], qkv[:, D:2 * D], qkv[:, 2 * D:],
                wo_ref[0], bo_ref[0], None, H)
    x = _layernorm(x + attn, n1w_ref[0], n1b_ref[0], eps)

    # --- feed forward ---
    hmid = jnp.maximum(jnp.dot(x.astype(jnp.bfloat16), w1_ref[0],
                               preferred_element_type=jnp.float32) + b1_ref[0], 0.0)
    hmid = jnp.dot(hmid.astype(jnp.bfloat16), w2_ref[0],
                   preferred_element_type=jnp.float32) + b2_ref[0]
    y = _layernorm(x + hmid, n2w_ref[0], n2b_ref[0], eps)

    @pl.when(l < L - 1)
    def _():
        o_ref[0] = y

    @pl.when(l == L - 1)
    def _():
        o_ref[0] = _layernorm(y, fnw_ref[...], fnb_ref[...], eps)   # final encoder norm


def _decoder_stack_kernel(y0_ref, mem_ref,
                          swqkv_ref, sbqkv_ref, swo_ref, sbo_ref, n1w_ref, n1b_ref,
                          cwq_ref, cbq_ref, cwkv_ref, cbkv_ref, cwo_ref, cbo_ref,
                          n2w_ref, n2b_ref, w1_ref, b1_ref, w2_ref, b2_ref,
                          n3w_ref, n3b_ref, fnw_ref, fnb_ref, hw_ref, hb_ref,
                          logits_ref, act_ref, *, H, D, eps):
    """Grid = (batch, layer).  One step == one decoder layer for one batch
    element (self-attn + cross-attn + FFN); activations live in the `act_ref`
    VMEM scratch across layers.  The last layer also applies the final decoder
    norm and the fused, lane-dense fc_out head."""
    l = pl.program_id(1)
    L = pl.num_programs(1)

    @pl.when(l == 0)
    def _():
        act_ref[...] = y0_ref[0]

    x = act_ref[...]                                   # (T, D) f32, resident
    T = x.shape[0]
    mem = mem_ref[0]                                   # (S, D) f32, fetched once per batch

    # causal mask generated in-kernel (no dense HBM mask input)
    ri = jax.lax.broadcasted_iota(jnp.int32, (T, T), 0)
    ci = jax.lax.broadcasted_iota(jnp.int32, (T, T), 1)
    causal = jnp.where(ci <= ri, 0.0, -1e30).astype(jnp.float32)

    # --- masked self attention (fused QKV projection) ---
    qkv = jnp.dot(x.astype(jnp.bfloat16), swqkv_ref[0],
                  preferred_element_type=jnp.float32) + sbqkv_ref[0]
    sa = _mha(qkv[:, :D], qkv[:, D:2 * D], qkv[:, 2 * D:],
              swo_ref[0], sbo_ref[0], causal, H)
    x = _layernorm(x + sa, n1w_ref[0], n1b_ref[0], eps)

    # --- cross attention (K,V from encoder memory, fused KV projection) ---
    q = jnp.dot(x.astype(jnp.bfloat16), cwq_ref[0],
                preferred_element_type=jnp.float32) + cbq_ref[0]
    kv = jnp.dot(mem.astype(jnp.bfloat16), cwkv_ref[0],
                 preferred_element_type=jnp.float32) + cbkv_ref[0]
    ca = _mha(q, kv[:, :D], kv[:, D:], cwo_ref[0], cbo_ref[0], None, H)
    x = _layernorm(x + ca, n2w_ref[0], n2b_ref[0], eps)

    # --- feed forward ---
    hmid = jnp.maximum(jnp.dot(x.astype(jnp.bfloat16), w1_ref[0],
                               preferred_element_type=jnp.float32) + b1_ref[0], 0.0)
    hmid = jnp.dot(hmid.astype(jnp.bfloat16), w2_ref[0],
                   preferred_element_type=jnp.float32) + b2_ref[0]
    y = _layernorm(x + hmid, n3w_ref[0], n3b_ref[0], eps)

    @pl.when(l < L - 1)
    def _():
        act_ref[...] = y

    @pl.when(l == L - 1)
    def _():
        yfin = _layernorm(y, fnw_ref[...], fnb_ref[...], eps)       # final decoder norm
        # fused fc_out head; output last dim padded to a multiple of 128 (lane-dense store)
        logits_ref[0] = jnp.dot(yfin.astype(jnp.bfloat16), hw_ref[...],
                                preferred_element_type=jnp.float32) + hb_ref[...]


# ------------------------------ pallas_call wrappers -------------------------

def _mosaic_params():
    # batch axis feeds both TensorCores on v7x ("parallel"); the layer axis
    # revisits the resident activation block so it must stay sequential.
    return pltpu.CompilerParams(
        dimension_semantics=("parallel", "arbitrary"),
        vmem_limit_bytes=32 * 1024 * 1024)


def _run_encoder_stack(x9, conv_pre_w, fpos_bias, spos, params, *, B, S, D, H, L):
    enc = params["enc"]
    front = [params["face_feature_w"], params["face_feature_b"], conv_pre_w,
             params["conv_b"], fpos_bias, spos]
    stacked = [enc[k] for k in ("wqkv", "bqkv", "wo", "bo", "n1w", "n1b",
                                "w1", "b1", "w2", "b2", "n2w", "n2b")]
    fixed = [enc["fnw"], enc["fnb"]]
    in_specs = ([pl.BlockSpec((1, 6 * S, 9), lambda b, l: (b, 0, 0))]
                + [pl.BlockSpec(a.shape, lambda b, l: (0, 0)) for a in front]
                + [pl.BlockSpec((1,) + a.shape[1:], lambda b, l: (l, 0, 0)) for a in stacked]
                + [pl.BlockSpec(a.shape, lambda b, l: (0, 0)) for a in fixed])
    return pl.pallas_call(
        functools.partial(_encoder_stack_kernel, H=H, S=S, D=D, eps=1e-5),
        out_shape=jax.ShapeDtypeStruct((B, S, D), jnp.float32),
        grid=(B, L),
        in_specs=in_specs,
        out_specs=pl.BlockSpec((1, S, D), lambda b, l: (b, 0, 0)),
        compiler_params=_mosaic_params(),
    )(x9, *front, *stacked, *fixed)


def _run_decoder_stack(y0, mem, params, *, B, T, D, H, L, num_moves):
    dec = params["dec"]
    S = mem.shape[1]
    mpad = ((num_moves + 127) // 128) * 128            # lane-dense head output
    hw = jnp.pad(params["fc_out_w"], ((0, 0), (0, mpad - num_moves)))
    hb = jnp.pad(params["fc_out_b"], ((0, 0), (0, mpad - num_moves)))
    stacked = [dec[k] for k in ("s_wqkv", "s_bqkv", "s_wo", "s_bo", "n1w", "n1b",
                                "c_wq", "c_bq", "c_wkv", "c_bkv", "c_wo", "c_bo",
                                "n2w", "n2b", "w1", "b1", "w2", "b2", "n3w", "n3b")]
    fixed = [dec["fnw"], dec["fnb"], hw, hb]
    in_specs = ([pl.BlockSpec((1, T, D), lambda b, l: (b, 0, 0)),
                 pl.BlockSpec((1, S, D), lambda b, l: (b, 0, 0))]
                + [pl.BlockSpec((1,) + a.shape[1:], lambda b, l: (l, 0, 0)) for a in stacked]
                + [pl.BlockSpec(a.shape, lambda b, l: (0, 0)) for a in fixed])
    logits = pl.pallas_call(
        functools.partial(_decoder_stack_kernel, H=H, D=D, eps=1e-5),
        out_shape=jax.ShapeDtypeStruct((B, T, mpad), jnp.float32),
        grid=(B, L),
        in_specs=in_specs,
        out_specs=pl.BlockSpec((1, T, mpad), lambda b, l: (b, 0, 0)),
        scratch_shapes=[pltpu.VMEM((T, D), jnp.float32)],
        compiler_params=_mosaic_params(),
    )(y0, mem, *stacked, *fixed)
    return logits[..., :num_moves]


# ----------------------------------- glue ------------------------------------

def rubik_forward(params, src, tgt_input, cfg):
    B, S, _ = src.shape
    T = tgt_input.shape[1]
    D, H, L = cfg["d_model"], cfg["nhead"], cfg["num_layers"]
    M = cfg["num_moves"]

    # --- cube-state front-end inputs ------------------------------------------
    # Reorder stickers face-major within each batch element so the in-kernel face
    # mean is 6 contiguous static slices.
    x9 = (src[..., :54].astype(jnp.float32)
          .reshape(B, S, 6, 9).transpose(0, 2, 1, 3).reshape(B, 6 * S, 9))
    # fold the 3x3/pad=1 im2col map into the conv weight: (9 pixels, 9 pos * D)
    conv_pre_w = jnp.einsum("ptx,tc->xpc", jnp.asarray(_IM2COL),
                            params["conv_w"]).reshape(9, 9 * D).astype(jnp.bfloat16)
    # face positional projection collapses exactly to 0.5 * its face mean (it is
    # added linearly before the face mean with no nonlinearity in between).
    fpos = (jnp.dot(params["face_pos_emb"], params["face_pos_lin_w"])
            + params["face_pos_lin_b"])
    fpos_bias = jnp.mean(fpos, axis=0, keepdims=True) * 0.5           # (1, D)
    spos = params["src_pos_emb"][:S]                                  # (S, D)

    # --- encoder stack (front end fused at layer 0) -----------------------------
    memory = _run_encoder_stack(x9, conv_pre_w, fpos_bias, spos, params,
                                B=B, S=S, D=D, H=H, L=L)              # (B, S, D)

    # --- target embeddings (tiny gathers stay in XLA glue) ----------------------
    y0 = (params["tgt_emb"][tgt_input]
          + params["tgt_pos_emb"][:T][None, :, :]).astype(jnp.float32)  # (B, T, D)

    # --- decoder stack + fc_out head (fused) ------------------------------------
    logits = _run_decoder_stack(y0, memory, params, B=B, T=T, D=D, H=H, L=L,
                                num_moves=M)                           # (B, T, M)
    return logits


# ---------------------------- parameter creation -----------------------------

def init_params(key, cfg):
    D = cfg["d_model"]
    L = cfg["num_layers"]
    dff = 4 * D
    pos_dim = 16
    bf16 = jnp.bfloat16
    keys = iter(jax.random.split(key, 64))

    def nrm(shape, dtype=jnp.float32, s=0.02):
        return (s * jax.random.normal(next(keys), shape)).astype(dtype)

    def zeros(shape):
        return jnp.zeros(shape, jnp.float32)

    def ones(shape):
        return jnp.ones(shape, jnp.float32)

    # Matmul weights stored bf16 (MXU-native, half the DMA); biases / LayerNorm
    # params / embeddings stay f32.  wqkv = concat(Wq, Wk, Wv) along the output
    # dim (= in_proj_weight.T for a PyTorch checkpoint); c_wkv likewise.
    enc = dict(
        wqkv=nrm((L, D, 3 * D), bf16), bqkv=zeros((L, 1, 3 * D)),
        wo=nrm((L, D, D), bf16), bo=zeros((L, 1, D)),
        n1w=ones((L, 1, D)), n1b=zeros((L, 1, D)),
        w1=nrm((L, D, dff), bf16), b1=zeros((L, 1, dff)),
        w2=nrm((L, dff, D), bf16), b2=zeros((L, 1, D)),
        n2w=ones((L, 1, D)), n2b=zeros((L, 1, D)),
        fnw=ones((1, D)), fnb=zeros((1, D)),
    )
    dec = dict(
        s_wqkv=nrm((L, D, 3 * D), bf16), s_bqkv=zeros((L, 1, 3 * D)),
        s_wo=nrm((L, D, D), bf16), s_bo=zeros((L, 1, D)),
        n1w=ones((L, 1, D)), n1b=zeros((L, 1, D)),
        c_wq=nrm((L, D, D), bf16), c_bq=zeros((L, 1, D)),
        c_wkv=nrm((L, D, 2 * D), bf16), c_bkv=zeros((L, 1, 2 * D)),
        c_wo=nrm((L, D, D), bf16), c_bo=zeros((L, 1, D)),
        n2w=ones((L, 1, D)), n2b=zeros((L, 1, D)),
        w1=nrm((L, D, dff), bf16), b1=zeros((L, 1, dff)),
        w2=nrm((L, dff, D), bf16), b2=zeros((L, 1, D)),
        n3w=ones((L, 1, D)), n3b=zeros((L, 1, D)),
        fnw=ones((1, D)), fnb=zeros((1, D)),
    )

    tgt_emb = nrm((cfg["num_moves"], D)).at[19].set(0.0)   # padding_idx=19

    return dict(
        face_pos_emb=nrm((6, pos_dim)),                     # Embedding(6, 16)
        face_pos_lin_w=nrm((pos_dim, D)), face_pos_lin_b=zeros((1, D)),
        face_feature_w=nrm((9, D), bf16), face_feature_b=zeros((1, D)),
        # Conv2d(1, D, 3, pad=1) weight stored as (9 taps, D) = W.reshape(D, 9).T
        conv_w=nrm((9, D)), conv_b=zeros((1, D)),
        src_pos_emb=nrm((cfg["max_seq_len"], D)),
        tgt_emb=tgt_emb,
        tgt_pos_emb=nrm((cfg["max_seq_len"], D)),
        enc=enc, dec=dec,
        fc_out_w=nrm((D, cfg["num_moves"]), bf16), fc_out_b=zeros((1, cfg["num_moves"])),
    )
    # note: self.src_linear exists in __init__ but is unused in forward -> omitted.


# ----------------------------------- main ------------------------------------

if __name__ == "__main__":
    cfg = dict(input_dim=55, d_model=32, nhead=4, num_layers=2,
               num_moves=21, max_seq_len=50)
    B, S, T = 2, 8, 7

    key = jax.random.PRNGKey(0)
    kp, ks, kt = jax.random.split(key, 3)
    params = init_params(kp, cfg)

    # src: sticker colours (0..5) for 54 stickers + 1 extra feature column
    src = jax.random.randint(ks, (B, S, cfg["input_dim"]), 0, 6).astype(jnp.float32)
    # tgt_input: move indices, shape (B, tgt_seq_len - 1)
    tgt_input = jax.random.randint(kt, (B, T), 0, cfg["num_moves"])

    fwd = jax.jit(functools.partial(rubik_forward, cfg=cfg))
    logits = fwd(params, src, tgt_input)
    jax.block_until_ready(logits)
    assert logits.shape == (B, T, cfg["num_moves"]), logits.shape
    assert bool(jnp.all(jnp.isfinite(logits)))
    print("KERNEL_OK")
</pallas_src>

<mosaic_0001>
module attributes {stable_mosaic.version = 11 : i64} {
  func.func @_encoder_stack_kernel(%arg0: i32, %arg1: i32, %arg2: memref<1x48x9xf32, #tpu.memory_space<vmem>>, %arg3: memref<9x32xbf16, #tpu.memory_space<vmem>>, %arg4: memref<1x32xf32, #tpu.memory_space<vmem>>, %arg5: memref<9x288xbf16, #tpu.memory_space<vmem>>, %arg6: memref<1x32xf32, #tpu.memory_space<vmem>>, %arg7: memref<1x32xf32, #tpu.memory_space<vmem>>, %arg8: memref<8x32xf32, #tpu.memory_space<vmem>>, %arg9: memref<1x32x96xbf16, #tpu.memory_space<vmem>>, %arg10: memref<1x1x96xf32, #tpu.memory_space<vmem>>, %arg11: memref<1x32x32xbf16, #tpu.memory_space<vmem>>, %arg12: memref<1x1x32xf32, #tpu.memory_space<vmem>>, %arg13: memref<1x1x32xf32, #tpu.memory_space<vmem>>, %arg14: memref<1x1x32xf32, #tpu.memory_space<vmem>>, %arg15: memref<1x32x128xbf16, #tpu.memory_space<vmem>>, %arg16: memref<1x1x128xf32, #tpu.memory_space<vmem>>, %arg17: memref<1x128x32xbf16, #tpu.memory_space<vmem>>, %arg18: memref<1x1x32xf32, #tpu.memory_space<vmem>>, %arg19: memref<1x1x32xf32, #tpu.memory_space<vmem>>, %arg20: memref<1x1x32xf32, #tpu.memory_space<vmem>>, %arg21: memref<1x32xf32, #tpu.memory_space<vmem>>, %arg22: memref<1x32xf32, #tpu.memory_space<vmem>>, %arg23: memref<1x8x32xf32, #tpu.memory_space<vmem>>) attributes {dimension_semantics = [#tpu.dimension_semantics<parallel>, #tpu.dimension_semantics<arbitrary>], iteration_bounds = array<i64: 2, 2>, scalar_prefetch = 0 : i64, scratch_operands = 0 : i64, tpu.core_type = #tpu.core_type<tc>, window_params = [{transform_indices = @transform_0, window_bounds = array<i64: 1, 48, 9>}, {pipeline_mode = #tpu.pipeline_mode<synchronous>, transform_indices = @transform_1, window_bounds = array<i64: 9, 32>}, {pipeline_mode = #tpu.pipeline_mode<synchronous>, transform_indices = @transform_2, window_bounds = array<i64: 1, 32>}, {pipeline_mode = #tpu.pipeline_mode<synchronous>, transform_indices = @transform_3, window_bounds = array<i64: 9, 288>}, {pipeline_mode = #tpu.pipeline_mode<synchronous>, transform_indices = @transform_4, window_bounds = array<i64: 1, 32>}, {pipeline_mode = #tpu.pipeline_mode<synchronous>, transform_indices = @transform_5, window_bounds = array<i64: 1, 32>}, {pipeline_mode = #tpu.pipeline_mode<synchronous>, transform_indices = @transform_6, window_bounds = array<i64: 8, 32>}, {transform_indices = @transform_7, window_bounds = array<i64: 1, 32, 96>}, {transform_indices = @transform_8, window_bounds = array<i64: 1, 1, 96>}, {transform_indices = @transform_9, window_bounds = array<i64: 1, 32, 32>}, {transform_indices = @transform_10, window_bounds = array<i64: 1, 1, 32>}, {transform_indices = @transform_11, window_bounds = array<i64: 1, 1, 32>}, {transform_indices = @transform_12, window_bounds = array<i64: 1, 1, 32>}, {transform_indices = @transform_13, window_bounds = array<i64: 1, 32, 128>}, {transform_indices = @transform_14, window_bounds = array<i64: 1, 1, 128>}, {transform_indices = @transform_15, window_bounds = array<i64: 1, 128, 32>}, {transform_indices = @transform_16, window_bounds = array<i64: 1, 1, 32>}, {transform_indices = @transform_17, window_bounds = array<i64: 1, 1, 32>}, {transform_indices = @transform_18, window_bounds = array<i64: 1, 1, 32>}, {pipeline_mode = #tpu.pipeline_mode<synchronous>, transform_indices = @transform_19, window_bounds = array<i64: 1, 32>}, {pipeline_mode = #tpu.pipeline_mode<synchronous>, transform_indices = @transform_20, window_bounds = array<i64: 1, 32>}, {transform_indices = @transform_21, window_bounds = array<i64: 1, 8, 32>}]} {
    %c0_i32 = arith.constant 0 : i32
    %0 = arith.cmpi eq, %arg1, %c0_i32 : i32
    %1 = arith.extui %0 : i1 to i32
    %c0_i32_0 = arith.constant 0 : i32
    %2 = arith.cmpi ne, %1, %c0_i32_0 : i32
    scf.if %2 {
      %c0_73 = arith.constant 0 : index
      %c0_74 = arith.constant 0 : index
      %c0_75 = arith.constant 0 : index
      %169 = vector.load %arg2[%c0_73, %c0_74, %c0_75] : memref<1x48x9xf32, #tpu.memory_space<vmem>>, vector<1x48x9xf32>
      %170 = vector.shape_cast %169 : vector<1x48x9xf32> to vector<48x9xf32>
      %171 = arith.truncf %170 : vector<48x9xf32> to vector<48x9xbf16>
      %c0_76 = arith.constant 0 : index
      %c0_77 = arith.constant 0 : index
      %172 = vector.load %arg3[%c0_76, %c0_77] : memref<9x32xbf16, #tpu.memory_space<vmem>>, vector<9x32xbf16>
      %cst_78 = arith.constant dense<0.000000e+00> : vector<48x32xf32>
      %173 = tpu.matmul %171, %172, %cst_78 {dimension_numbers = #tpu.dot_dimension_numbers<[1], [0], [0], [1], [0, 0, 1, 1], [], []>} : vector<48x9xbf16>, vector<9x32xbf16>, vector<48x32xf32> -> vector<48x32xf32>
      %c0_79 = arith.constant 0 : index
      %c0_80 = arith.constant 0 : index
      %174 = vector.load %arg4[%c0_79, %c0_80] : memref<1x32xf32, #tpu.memory_space<vmem>>, vector<1x32xf32>
      %175 = vector.broadcast %174 : vector<1x32xf32> to vector<48x32xf32>
      %176 = arith.addf %173, %175 : vector<48x32xf32>
      %c0_81 = arith.constant 0 : index
      %c0_82 = arith.constant 0 : index
      %177 = vector.load %arg5[%c0_81, %c0_82] : memref<9x288xbf16, #tpu.memory_space<vmem>>, vector<9x288xbf16>
      %cst_83 = arith.constant dense<0.000000e+00> : vector<48x288xf32>
      %178 = tpu.matmul %171, %177, %cst_83 {dimension_numbers = #tpu.dot_dimension_numbers<[1], [0], [0], [1], [0, 0, 1, 1], [], []>} : vector<48x9xbf16>, vector<9x288xbf16>, vector<48x288xf32> -> vector<48x288xf32>
      %cst_84 = arith.constant 0.000000e+00 : f32
      %179 = vector.broadcast %cst_84 : f32 to vector<48x32xf32>
      %180 = vector.extract_strided_slice %178 {offsets = [0, 0], sizes = [48, 32], strides = [1, 1]} : vector<48x288xf32> to vector<48x32xf32>
      %c0_85 = arith.constant 0 : index
      %c0_86 = arith.constant 0 : index
      %181 = vector.load %arg6[%c0_85, %c0_86] : memref<1x32xf32, #tpu.memory_space<vmem>>, vector<1x32xf32>
      %182 = vector.broadcast %181 : vector<1x32xf32> to vector<48x32xf32>
      %183 = arith.addf %180, %182 : vector<48x32xf32>
      %cst_87 = arith.constant 0.000000e+00 : f32
      %184 = vector.broadcast %cst_87 : f32 to vector<48x32xf32>
      %185 = arith.maximumf %183, %184 : vector<48x32xf32>
      %186 = arith.addf %179, %185 : vector<48x32xf32>
      %187 = vector.extract_strided_slice %178 {offsets = [0, 32], sizes = [48, 32], strides = [1, 1]} : vector<48x288xf32> to vector<48x32xf32>
      %c0_88 = arith.constant 0 : index
      %c0_89 = arith.constant 0 : index
      %188 = vector.load %arg6[%c0_88, %c0_89] : memref<1x32xf32, #tpu.memory_space<vmem>>, vector<1x32xf32>
      %189 = vector.broadcast %188 : vector<1x32xf32> to vector<48x32xf32>
      %190 = arith.addf %187, %189 : vector<48x32xf32>
      %cst_90 = arith.constant 0.000000e+00 : f32
      %191 = vector.broadcast %cst_90 : f32 to vector<48x32xf32>
      %192 = arith.maximumf %190, %191 : vector<48x32xf32>
      %193 = arith.addf %186, %192 : vector<48x32xf32>
      %194 = vector.extract_strided_slice %178 {offsets = [0, 64], sizes = [48, 32], strides = [1, 1]} : vector<48x288xf32> to vector<48x32xf32>
      %c0_91 = arith.constant 0 : index
      %c0_92 = arith.constant 0 : index
      %195 = vector.load %arg6[%c0_91, %c0_92] : memref<1x32xf32, #tpu.memory_space<vmem>>, vector<1x32xf32>
      %196 = vector.broadcast %195 : vector<1x32xf32> to vector<48x32xf32>
      %197 = arith.addf %194, %196 : vector<48x32xf32>
      %cst_93 = arith.constant 0.000000e+00 : f32
      %198 = vector.broadcast %cst_93 : f32 to vector<48x32xf32>
      %199 = arith.maximumf %197, %198 : vector<48x32xf32>
      %200 = arith.addf %193, %199 : vector<48x32xf32>
      %201 = vector.extract_strided_slice %178 {offsets = [0, 96], sizes = [48, 32], strides = [1, 1]} : vector<48x288xf32> to vector<48x32xf32>
      %c0_94 = arith.constant 0 : index
      %c0_95 = arith.constant 0 : index
      %202 = vector.load %arg6[%c0_94, %c0_95] : memref<1x32xf32, #tpu.memory_space<vmem>>, vector<1x32xf32>
      %203 = vector.broadcast %202 : vector<1x32xf32> to vector<48x32xf32>
      %204 = arith.addf %201, %203 : vector<48x32xf32>
      %cst_96 = arith.constant 0.000000e+00 : f32
      %205 = vector.broadcast %cst_96 : f32 to vector<48x32xf32>
      %206 = arith.maximumf %204, %205 : vector<48x32xf32>
      %207 = arith.addf %200, %206 : vector<48x32xf32>
      %208 = vector.extract_strided_slice %178 {offsets = [0, 128], sizes = [48, 32], strides = [1, 1]} : vector<48x288xf32> to vector<48x32xf32>
      %c0_97 = arith.constant 0 : index
      %c0_98 = arith.constant 0 : index
      %209 = vector.load %arg6[%c0_97, %c0_98] : memref<1x32xf32, #tpu.memory_space<vmem>>, vector<1x32xf32>
      %210 = vector.broadcast %209 : vector<1x32xf32> to vector<48x32xf32>
      %211 = arith.addf %208, %210 : vector<48x32xf32>
      %cst_99 = arith.constant 0.000000e+00 : f32
      %212 = vector.broadcast %cst_99 : f32 to vector<48x32xf32>
      %213 = arith.maximumf %211, %212 : vector<48x32xf32>
      %214 = arith.addf %207, %213 : vector<48x32xf32>
      %215 = vector.extract_strided_slice %178 {offsets = [0, 160], sizes = [48, 32], strides = [1, 1]} : vector<48x288xf32> to vector<48x32xf32>
      %c0_100 = arith.constant 0 : index
      %c0_101 = arith.constant 0 : index
      %216 = vector.load %arg6[%c0_100, %c0_101] : memref<1x32xf32, #tpu.memory_space<vmem>>, vector<1x32xf32>
      %217 = vector.broadcast %216 : vector<1x32xf32> to vector<48x32xf32>
      %218 = arith.addf %215, %217 : vector<48x32xf32>
      %cst_102 = arith.constant 0.000000e+00 : f32
      %219 = vector.broadcast %cst_102 : f32 to vector<48x32xf32>
      %220 = arith.maximumf %218, %219 : vector<48x32xf32>
      %221 = arith.addf %214, %220 : vector<48x32xf32>
      %222 = vector.extract_strided_slice %178 {offsets = [0, 192], sizes = [48, 32], strides = [1, 1]} : vector<48x288xf32> to vector<48x32xf32>
      %c0_103 = arith.constant 0 : index
      %c0_104 = arith.constant 0 : index
      %223 = vector.load %arg6[%c0_103, %c0_104] : memref<1x32xf32, #tpu.memory_space<vmem>>, vector<1x32xf32>
      %224 = vector.broadcast %223 : vector<1x32xf32> to vector<48x32xf32>
      %225 = arith.addf %222, %224 : vector<48x32xf32>
      %cst_105 = arith.constant 0.000000e+00 : f32
      %226 = vector.broadcast %cst_105 : f32 to vector<48x32xf32>
      %227 = arith.maximumf %225, %226 : vector<48x32xf32>
      %228 = arith.addf %221, %227 : vector<48x32xf32>
      %229 = vector.extract_strided_slice %178 {offsets = [0, 224], sizes = [48, 32], strides = [1, 1]} : vector<48x288xf32> to vector<48x32xf32>
      %c0_106 = arith.constant 0 : index
      %c0_107 = arith.constant 0 : index
      %230 = vector.load %arg6[%c0_106, %c0_107] : memref<1x32xf32, #tpu.memory_space<vmem>>, vector<1x32xf32>
      %231 = vector.broadcast %230 : vector<1x32xf32> to vector<48x32xf32>
      %232 = arith.addf %229, %231 : vector<48x32xf32>
      %cst_108 = arith.constant 0.000000e+00 : f32
      %233 = vector.broadcast %cst_108 : f32 to vector<48x32xf32>
      %234 = arith.maximumf %232, %233 : vector<48x32xf32>
      %235 = arith.addf %228, %234 : vector<48x32xf32>
      %236 = vector.extract_strided_slice %178 {offsets = [0, 256], sizes = [48, 32], strides = [1, 1]} : vector<48x288xf32> to vector<48x32xf32>
      %c0_109 = arith.constant 0 : index
      %c0_110 = arith.constant 0 : index
      %237 = vector.load %arg6[%c0_109, %c0_110] : memref<1x32xf32, #tpu.memory_space<vmem>>, vector<1x32xf32>
      %238 = vector.broadcast %237 : vector<1x32xf32> to vector<48x32xf32>
      %239 = arith.addf %236, %238 : vector<48x32xf32>
      %cst_111 = arith.constant 0.000000e+00 : f32
      %240 = vector.broadcast %cst_111 : f32 to vector<48x32xf32>
      %241 = arith.maximumf %239, %240 : vector<48x32xf32>
      %242 = arith.addf %235, %241 : vector<48x32xf32>
      %cst_112 = arith.constant 0.111111112 : f32
      %243 = vector.broadcast %cst_112 : f32 to vector<48x32xf32>
      %244 = arith.mulf %242, %243 : vector<48x32xf32>
      %245 = arith.addf %176, %244 : vector<48x32xf32>
      %cst_113 = arith.constant 5.000000e-01 : f32
      %246 = vector.broadcast %cst_113 : f32 to vector<48x32xf32>
      %247 = arith.mulf %245, %246 : vector<48x32xf32>
      %cst_114 = arith.constant 0.000000e+00 : f32
      %248 = vector.broadcast %cst_114 : f32 to vector<8x32xf32>
      %249 = vector.extract_strided_slice %247 {offsets = [0, 0], sizes = [8, 32], strides = [1, 1]} : vector<48x32xf32> to vector<8x32xf32>
      %250 = arith.addf %248, %249 : vector<8x32xf32>
      %251 = vector.extract_strided_slice %247 {offsets = [8, 0], sizes = [8, 32], strides = [1, 1]} : vector<48x32xf32> to vector<8x32xf32>
      %252 = arith.addf %250, %251 : vector<8x32xf32>
      %253 = vector.extract_strided_slice %247 {offsets = [16, 0], sizes = [8, 32], strides = [1, 1]} : vector<48x32xf32> to vector<8x32xf32>
      %254 = arith.addf %252, %253 : vector<8x32xf32>
      %255 = vector.extract_strided_slice %247 {offsets = [24, 0], sizes = [8, 32], strides = [1, 1]} : vector<48x32xf32> to vector<8x32xf32>
      %256 = arith.addf %254, %255 : vector<8x32xf32>
      %257 = vector.extract_strided_slice %247 {offsets = [32, 0], sizes = [8, 32], strides = [1, 1]} : vector<48x32xf32> to vector<8x32xf32>
      %258 = arith.addf %256, %257 : vector<8x32xf32>
      %259 = vector.extract_strided_slice %247 {offsets = [40, 0], sizes = [8, 32], strides = [1, 1]} : vector<48x32xf32> to vector<8x32xf32>
      %260 = arith.addf %258, %259 : vector<8x32xf32>
      %cst_115 = arith.constant 0.166666672 : f32
      %261 = vector.broadcast %cst_115 : f32 to vector<8x32xf32>
      %262 = arith.mulf %260, %261 : vector<8x32xf32>
      %c0_116 = arith.constant 0 : index
      %c0_117 = arith.constant 0 : index
      %263 = vector.load %arg7[%c0_116, %c0_117] : memref<1x32xf32, #tpu.memory_space<vmem>>, vector<1x32xf32>
      %264 = vector.broadcast %263 : vector<1x32xf32> to vector<8x32xf32>
      %265 = arith.addf %262, %264 : vector<8x32xf32>
      %c0_118 = arith.constant 0 : index
      %c0_119 = arith.constant 0 : index
      %266 = vector.load %arg8[%c0_118, %c0_119] : memref<8x32xf32, #tpu.memory_space<vmem>>, vector<8x32xf32>
      %267 = arith.addf %265, %266 : vector<8x32xf32>
      %c0_120 = arith.constant 0 : index
      %c0_121 = arith.constant 0 : index
      %c0_122 = arith.constant 0 : index
      %268 = vector.load %arg23[%c0_120, %c0_121, %c0_122] : memref<1x8x32xf32, #tpu.memory_space<vmem>>, vector<1x8x32xf32>
      %269 = vector.shape_cast %268 : vector<1x8x32xf32> to vector<8x32xf32>
      %270 = vector.shape_cast %267 : vector<8x32xf32> to vector<1x8x32xf32>
      tpu.vector_store %arg23[%c0_120, %c0_121, %c0_122], %270 {strides = array<i32>} : memref<1x8x32xf32, #tpu.memory_space<vmem>>, vector<1x8x32xf32>,
    } else {
    }
    %c0 = arith.constant 0 : index
    %c0_1 = arith.constant 0 : index
    %c0_2 = arith.constant 0 : index
    %3 = vector.load %arg23[%c0, %c0_1, %c0_2] : memref<1x8x32xf32, #tpu.memory_space<vmem>>, vector<1x8x32xf32>
    %4 = vector.shape_cast %3 : vector<1x8x32xf32> to vector<8x32xf32>
    %5 = arith.truncf %4 : vector<8x32xf32> to vector<8x32xbf16>
    %c0_3 = arith.constant 0 : index
    %c0_4 = arith.constant 0 : index
    %c0_5 = arith.constant 0 : index
    %6 = vector.load %arg9[%c0_3, %c0_4, %c0_5] : memref<1x32x96xbf16, #tpu.memory_space<vmem>>, vector<1x32x96xbf16>
    %7 = vector.shape_cast %6 : vector<1x32x96xbf16> to vector<32x96xbf16>
    %cst = arith.constant dense<0.000000e+00> : vector<8x96xf32>
    %8 = tpu.matmul %5, %7, %cst {dimension_numbers = #tpu.dot_dimension_numbers<[1], [0], [0], [1], [0, 0, 1, 1], [], []>} : vector<8x32xbf16>, vector<32x96xbf16>, vector<8x96xf32> -> vector<8x96xf32>
    %c0_6 = arith.constant 0 : index
    %c0_7 = arith.constant 0 : index
    %c0_8 = arith.constant 0 : index
    %9 = vector.load %arg10[%c0_6, %c0_7, %c0_8] : memref<1x1x96xf32, #tpu.memory_space<vmem>>, vector<1x1x96xf32>
    %10 = vector.shape_cast %9 : vector<1x1x96xf32> to vector<1x96xf32>
    %11 = vector.broadcast %10 : vector<1x96xf32> to vector<8x96xf32>
    %12 = arith.addf %8, %11 : vector<8x96xf32>
    %13 = vector.extract_strided_slice %12 {offsets = [0, 0], sizes = [8, 32], strides = [1, 1]} : vector<8x96xf32> to vector<8x32xf32>
    %14 = vector.extract_strided_slice %12 {offsets = [0, 32], sizes = [8, 32], strides = [1, 1]} : vector<8x96xf32> to vector<8x32xf32>
    %15 = vector.extract_strided_slice %12 {offsets = [0, 64], sizes = [8, 32], strides = [1, 1]} : vector<8x96xf32> to vector<8x32xf32>
    %c0_9 = arith.constant 0 : index
    %c0_10 = arith.constant 0 : index
    %c0_11 = arith.constant 0 : index
    %16 = vector.load %arg11[%c0_9, %c0_10, %c0_11] : memref<1x32x32xbf16, #tpu.memory_space<vmem>>, vector<1x32x32xbf16>
    %17 = vector.shape_cast %16 : vector<1x32x32xbf16> to vector<32x32xbf16>
    %c0_12 = arith.constant 0 : index
    %c0_13 = arith.constant 0 : index
    %c0_14 = arith.constant 0 : index
    %18 = vector.load %arg12[%c0_12, %c0_13, %c0_14] : memref<1x1x32xf32, #tpu.memory_space<vmem>>, vector<1x1x32xf32>
    %19 = vector.shape_cast %18 : vector<1x1x32xf32> to vector<1x32xf32>
    %cst_15 = arith.constant 0.353553385 : f32
    %20 = vector.broadcast %cst_15 : f32 to vector<8x32xf32>
    %21 = arith.mulf %13, %20 : vector<8x32xf32>
    %22 = arith.truncf %21 : vector<8x32xf32> to vector<8x32xbf16>
    %23 = tpu.transpose %14, [1, 0] : vector<8x32xf32> -> vector<32x8xf32>
    %24 = arith.truncf %23 : vector<32x8xf32> to vector<32x8xbf16>
    %25 = arith.truncf %15 : vector<8x32xf32> to vector<8x32xbf16>
    %26 = vector.extract_strided_slice %22 {offsets = [0, 0], sizes = [8, 8], strides = [1, 1]} : vector<8x32xbf16> to vector<8x8xbf16>
    %27 = vector.extract_strided_slice %24 {offsets = [0, 0], sizes = [8, 8], strides = [1, 1]} : vector<32x8xbf16> to vector<8x8xbf16>
    %cst_16 = arith.constant dense<0.000000e+00> : vector<8x8xf32>
    %28 = tpu.matmul %26, %27, %cst_16 {dimension_numbers = #tpu.dot_dimension_numbers<[1], [0], [0], [1], [0, 0, 1, 1], [], []>} : vector<8x8xbf16>, vector<8x8xbf16>, vector<8x8xf32> -> vector<8x8xf32>
    %cst_17 = arith.constant dense<0xFF800000> : vector<8xf32>
    %29 = vector.multi_reduction <maximumf>, %28, %cst_17 [1] : vector<8x8xf32> to vector<8xf32>
    %30 = vector.shape_cast %29 : vector<8xf32> to vector<8x1xf32>
    %31 = vector.broadcast %30 : vector<8x1xf32> to vector<8x8xf32>
    %32 = arith.subf %28, %31 : vector<8x8xf32>
    %33 = math.exp %32 : vector<8x8xf32>
    %cst_18 = arith.constant dense<0.000000e+00> : vector<8xf32>
    %34 = vector.multi_reduction <add>, %33, %cst_18 [1] : vector<8x8xf32> to vector<8xf32>
    %35 = vector.shape_cast %34 : vector<8xf32> to vector<8x1xf32>
    %36 = vector.broadcast %35 : vector<8x1xf32> to vector<8x8xf32>
    %37 = arith.divf %33, %36 : vector<8x8xf32>
    %38 = arith.truncf %37 : vector<8x8xf32> to vector<8x8xbf16>
    %39 = vector.extract_strided_slice %25 {offsets = [0, 0], sizes = [8, 8], strides = [1, 1]} : vector<8x32xbf16> to vector<8x8xbf16>
    %cst_19 = arith.constant dense<0.000000e+00> : vector<8x8xf32>
    %40 = tpu.matmul %38, %39, %cst_19 {dimension_numbers = #tpu.dot_dimension_numbers<[1], [0], [0], [1], [0, 0, 1, 1], [], []>} : vector<8x8xbf16>, vector<8x8xbf16>, vector<8x8xf32> -> vector<8x8xf32>
    %41 = vector.extract_strided_slice %22 {offsets = [0, 8], sizes = [8, 8], strides = [1, 1]} : vector<8x32xbf16> to vector<8x8xbf16>
    %42 = vector.extract_strided_slice %24 {offsets = [8, 0], sizes = [8, 8], strides = [1, 1]} : vector<32x8xbf16> to vector<8x8xbf16>
    %cst_20 = arith.constant dense<0.000000e+00> : vector<8x8xf32>
    %43 = tpu.matmul %41, %42, %cst_20 {dimension_numbers = #tpu.dot_dimension_numbers<[1], [0], [0], [1], [0, 0, 1, 1], [], []>} : vector<8x8xbf16>, vector<8x8xbf16>, vector<8x8xf32> -> vector<8x8xf32>
    %cst_21 = arith.constant dense<0xFF800000> : vector<8xf32>
    %44 = vector.multi_reduction <maximumf>, %43, %cst_21 [1] : vector<8x8xf32> to vector<8xf32>
    %45 = vector.shape_cast %44 : vector<8xf32> to vector<8x1xf32>
    %46 = vector.broadcast %45 : vector<8x1xf32> to vector<8x8xf32>
    %47 = arith.subf %43, %46 : vector<8x8xf32>
    %48 = math.exp %47 : vector<8x8xf32>
    %cst_22 = arith.constant dense<0.000000e+00> : vector<8xf32>
    %49 = vector.multi_reduction <add>, %48, %cst_22 [1] : vector<8x8xf32> to vector<8xf32>
    %50 = vector.shape_cast %49 : vector<8xf32> to vector<8x1xf32>
    %51 = vector.broadcast %50 : vector<8x1xf32> to vector<8x8xf32>
    %52 = arith.divf %48, %51 : vector<8x8xf32>
    %53 = arith.truncf %52 : vector<8x8xf32> to vector<8x8xbf16>
    %54 = vector.extract_strided_slice %25 {offsets = [0, 8], sizes = [8, 8], strides = [1, 1]} : vector<8x32xbf16> to vector<8x8xbf16>
    %cst_23 = arith.constant dense<0.000000e+00> : vector<8x8xf32>
    %55 = tpu.matmul %53, %54, %cst_23 {dimension_numbers = #tpu.dot_dimension_numbers<[1], [0], [0], [1], [0, 0, 1, 1], [], []>} : vector<8x8xbf16>, vector<8x8xbf16>, vector<8x8xf32> -> vector<8x8xf32>
    %56 = vector.extract_strided_slice %22 {offsets = [0, 16], sizes = [8, 8], strides = [1, 1]} : vector<8x32xbf16> to vector<8x8xbf16>
    %57 = vector.extract_strided_slice %24 {offsets = [16, 0], sizes = [8, 8], strides = [1, 1]} : vector<32x8xbf16> to vector<8x8xbf16>
    %cst_24 = arith.constant dense<0.000000e+00> : vector<8x8xf32>
    %58 = tpu.matmul %56, %57, %cst_24 {dimension_numbers = #tpu.dot_dimension_numbers<[1], [0], [0], [1], [0, 0, 1, 1], [], []>} : vector<8x8xbf16>, vector<8x8xbf16>, vector<8x8xf32> -> vector<8x8xf32>
    %cst_25 = arith.constant dense<0xFF800000> : vector<8xf32>
    %59 = vector.multi_reduction <maximumf>, %58, %cst_25 [1] : vector<8x8xf32> to vector<8xf32>
    %60 = vector.shape_cast %59 : vector<8xf32> to vector<8x1xf32>
    %61 = vector.broadcast %60 : vector<8x1xf32> to vector<8x8xf32>
    %62 = arith.subf %58, %61 : vector<8x8xf32>
    %63 = math.exp %62 : vector<8x8xf32>
    %cst_26 = arith.constant dense<0.000000e+00> : vector<8xf32>
    %64 = vector.multi_reduction <add>, %63, %cst_26 [1] : vector<8x8xf32> to vector<8xf32>
    %65 = vector.shape_cast %64 : vector<8xf32> to vector<8x1xf32>
    %66 = vector.broadcast %65 : vector<8x1xf32> to vector<8x8xf32>
    %67 = arith.divf %63, %66 : vector<8x8xf32>
    %68 = arith.truncf %67 : vector<8x8xf32> to vector<8x8xbf16>
    %69 = vector.extract_strided_slice %25 {offsets = [0, 16], sizes = [8, 8], strides = [1, 1]} : vector<8x32xbf16> to vector<8x8xbf16>
    %cst_27 = arith.constant dense<0.000000e+00> : vector<8x8xf32>
    %70 = tpu.matmul %68, %69, %cst_27 {dimension_numbers = #tpu.dot_dimension_numbers<[1], [0], [0], [1], [0, 0, 1, 1], [], []>} : vector<8x8xbf16>, vector<8x8xbf16>, vector<8x8xf32> -> vector<8x8xf32>
    %71 = vector.extract_strided_slice %22 {offsets = [0, 24], sizes = [8, 8], strides = [1, 1]} : vector<8x32xbf16> to vector<8x8xbf16>
    %72 = vector.extract_strided_slice %24 {offsets = [24, 0], sizes = [8, 8], strides = [1, 1]} : vector<32x8xbf16> to vector<8x8xbf16>
    %cst_28 = arith.constant dense<0.000000e+00> : vector<8x8xf32>
    %73 = tpu.matmul %71, %72, %cst_28 {dimension_numbers = #tpu.dot_dimension_numbers<[1], [0], [0], [1], [0, 0, 1, 1], [], []>} : vector<8x8xbf16>, vector<8x8xbf16>, vector<8x8xf32> -> vector<8x8xf32>
    %cst_29 = arith.constant dense<0xFF800000> : vector<8xf32>
    %74 = vector.multi_reduction <maximumf>, %73, %cst_29 [1] : vector<8x8xf32> to vector<8xf32>
    %75 = vector.shape_cast %74 : vector<8xf32> to vector<8x1xf32>
    %76 = vector.broadcast %75 : vector<8x1xf32> to vector<8x8xf32>
    %77 = arith.subf %73, %76 : vector<8x8xf32>
    %78 = math.exp %77 : vector<8x8xf32>
    %cst_30 = arith.constant dense<0.000000e+00> : vector<8xf32>
    %79 = vector.multi_reduction <add>, %78, %cst_30 [1] : vector<8x8xf32> to vector<8xf32>
    %80 = vector.shape_cast %79 : vector<8xf32> to vector<8x1xf32>
    %81 = vector.broadcast %80 : vector<8x1xf32> to vector<8x8xf32>
    %82 = arith.divf %78, %81 : vector<8x8xf32>
    %83 = arith.truncf %82 : vector<8x8xf32> to vector<8x8xbf16>
    %84 = vector.extract_strided_slice %25 {offsets = [0, 24], sizes = [8, 8], strides = [1, 1]} : vector<8x32xbf16> to vector<8x8xbf16>
    %cst_31 = arith.constant dense<0.000000e+00> : vector<8x8xf32>
    %85 = tpu.matmul %83, %84, %cst_31 {dimension_numbers = #tpu.dot_dimension_numbers<[1], [0], [0], [1], [0, 0, 1, 1], [], []>} : vector<8x8xbf16>, vector<8x8xbf16>, vector<8x8xf32> -> vector<8x8xf32>
    %86 = tpu.concatenate %40, %55, %70, %85 in 1 : vector<8x8xf32>, vector<8x8xf32>, vector<8x8xf32>, vector<8x8xf32> -> vector<8x32xf32>
    %87 = arith.truncf %86 : vector<8x32xf32> to vector<8x32xbf16>
    %cst_32 = arith.constant dense<0.000000e+00> : vector<8x32xf32>
    %88 = tpu.matmul %87, %17, %cst_32 {dimension_numbers = #tpu.dot_dimension_numbers<[1], [0], [0], [1], [0, 0, 1, 1], [], []>} : vector<8x32xbf16>, vector<32x32xbf16>, vector<8x32xf32> -> vector<8x32xf32>
    %89 = vector.broadcast %19 : vector<1x32xf32> to vector<8x32xf32>
    %90 = arith.addf %88, %89 : vector<8x32xf32>
    %91 = arith.addf %4, %90 : vector<8x32xf32>
    %c0_33 = arith.constant 0 : index
    %c0_34 = arith.constant 0 : index
    %c0_35 = arith.constant 0 : index
    %92 = vector.load %arg13[%c0_33, %c0_34, %c0_35] : memref<1x1x32xf32, #tpu.memory_space<vmem>>, vector<1x1x32xf32>
    %93 = vector.shape_cast %92 : vector<1x1x32xf32> to vector<1x32xf32>
    %c0_36 = arith.constant 0 : index
    %c0_37 = arith.constant 0 : index
    %c0_38 = arith.constant 0 : index
    %94 = vector.load %arg14[%c0_36, %c0_37, %c0_38] : memref<1x1x32xf32, #tpu.memory_space<vmem>>, vector<1x1x32xf32>
    %95 = vector.shape_cast %94 : vector<1x1x32xf32> to vector<1x32xf32>
    %cst_39 = arith.constant dense<0.000000e+00> : vector<8xf32>
    %96 = vector.multi_reduction <add>, %91, %cst_39 [1] : vector<8x32xf32> to vector<8xf32>
    %97 = vector.shape_cast %96 : vector<8xf32> to vector<8x1xf32>
    %cst_40 = arith.constant 3.200000e+01 : f32
    %98 = vector.broadcast %cst_40 : f32 to vector<8x1xf32>
    %99 = arith.divf %97, %98 : vector<8x1xf32>
    %100 = vector.broadcast %99 : vector<8x1xf32> to vector<8x32xf32>
    %101 = arith.subf %91, %100 : vector<8x32xf32>
    %102 = arith.mulf %101, %101 : vector<8x32xf32>
    %cst_41 = arith.constant dense<0.000000e+00> : vector<8xf32>
    %103 = vector.multi_reduction <add>, %102, %cst_41 [1] : vector<8x32xf32> to vector<8xf32>
    %104 = vector.shape_cast %103 : vector<8xf32> to vector<8x1xf32>
    %cst_42 = arith.constant 3.200000e+01 : f32
    %105 = vector.broadcast %cst_42 : f32 to vector<8x1xf32>
    %106 = arith.divf %104, %105 : vector<8x1xf32>
    %107 = vector.broadcast %99 : vector<8x1xf32> to vector<8x32xf32>
    %108 = arith.subf %91, %107 : vector<8x32xf32>
    %cst_43 = arith.constant 9.99999974E-6 : f32
    %109 = vector.broadcast %cst_43 : f32 to vector<8x1xf32>
    %110 = arith.addf %106, %109 : vector<8x1xf32>
    %111 = math.rsqrt %110 : vector<8x1xf32>
    %112 = vector.broadcast %111 : vector<8x1xf32> to vector<8x32xf32>
    %113 = arith.mulf %108, %112 : vector<8x32xf32>
    %114 = vector.broadcast %93 : vector<1x32xf32> to vector<8x32xf32>
    %115 = arith.mulf %113, %114 : vector<8x32xf32>
    %116 = vector.broadcast %95 : vector<1x32xf32> to vector<8x32xf32>
    %117 = arith.addf %115, %116 : vector<8x32xf32>
    %118 = arith.truncf %117 : vector<8x32xf32> to vector<8x32xbf16>
    %c0_44 = arith.constant 0 : index
    %c0_45 = arith.constant 0 : index
    %c0_46 = arith.constant 0 : index
    %119 = vector.load %arg15[%c0_44, %c0_45, %c0_46] : memref<1x32x128xbf16, #tpu.memory_space<vmem>>, vector<1x32x128xbf16>
    %120 = vector.shape_cast %119 : vector<1x32x128xbf16> to vector<32x128xbf16>
    %cst_47 = arith.constant dense<0.000000e+00> : vector<8x128xf32>
    %121 = tpu.matmul %118, %120, %cst_47 {dimension_numbers = #tpu.dot_dimension_numbers<[1], [0], [0], [1], [0, 0, 1, 1], [], []>} : vector<8x32xbf16>, vector<32x128xbf16>, vector<8x128xf32> -> vector<8x128xf32>
    %c0_48 = arith.constant 0 : index
    %c0_49 = arith.constant 0 : index
    %c0_50 = arith.constant 0 : index
    %122 = vector.load %arg16[%c0_48, %c0_49, %c0_50] : memref<1x1x128xf32, #tpu.memory_space<vmem>>, vector<1x1x128xf32>
    %123 = vector.shape_cast %122 : vector<1x1x128xf32> to vector<1x128xf32>
    %124 = vector.broadcast %123 : vector<1x128xf32> to vector<8x128xf32>
    %125 = arith.addf %121, %124 : vector<8x128xf32>
    %cst_51 = arith.constant 0.000000e+00 : f32
    %126 = vector.broadcast %cst_51 : f32 to vector<8x128xf32>
    %127 = arith.maximumf %125, %126 : vector<8x128xf32>
    %128 = arith.truncf %127 : vector<8x128xf32> to vector<8x128xbf16>
    %c0_52 = arith.constant 0 : index
    %c0_53 = arith.constant 0 : index
    %c0_54 = arith.constant 0 : index
    %129 = vector.load %arg17[%c0_52, %c0_53, %c0_54] : memref<1x128x32xbf16, #tpu.memory_space<vmem>>, vector<1x128x32xbf16>
    %130 = vector.shape_cast %129 : vector<1x128x32xbf16> to vector<128x32xbf16>
    %cst_55 = arith.constant dense<0.000000e+00> : vector<8x32xf32>
    %131 = tpu.matmul %128, %130, %cst_55 {dimension_numbers = #tpu.dot_dimension_numbers<[1], [0], [0], [1], [0, 0, 1, 1], [], []>} : vector<8x128xbf16>, vector<128x32xbf16>, vector<8x32xf32> -> vector<8x32xf32>
    %c0_56 = arith.constant 0 : index
    %c0_57 = arith.constant 0 : index
    %c0_58 = arith.constant 0 : index
    %132 = vector.load %arg18[%c0_56, %c0_57, %c0_58] : memref<1x1x32xf32, #tpu.memory_space<vmem>>, vector<1x1x32xf32>
    %133 = vector.shape_cast %132 : vector<1x1x32xf32> to vector<1x32xf32>
    %134 = vector.broadcast %133 : vector<1x32xf32> to vector<8x32xf32>
    %135 = arith.addf %131, %134 : vector<8x32xf32>
    %136 = arith.addf %117, %135 : vector<8x32xf32>
    %c0_59 = arith.constant 0 : index
    %c0_60 = arith.constant 0 : index
    %c0_61 = arith.constant 0 : index
    %137 = vector.load %arg19[%c0_59, %c0_60, %c0_61] : memref<1x1x32xf32, #tpu.memory_space<vmem>>, vector<1x1x32xf32>
    %138 = vector.shape_cast %137 : vector<1x1x32xf32> to vector<1x32xf32>
    %c0_62 = arith.constant 0 : index
    %c0_63 = arith.constant 0 : index
    %c0_64 = arith.constant 0 : index
    %139 = vector.load %arg20[%c0_62, %c0_63, %c0_64] : memref<1x1x32xf32, #tpu.memory_space<vmem>>, vector<1x1x32xf32>
    %140 = vector.shape_cast %139 : vector<1x1x32xf32> to vector<1x32xf32>
    %cst_65 = arith.constant dense<0.000000e+00> : vector<8xf32>
    %141 = vector.multi_reduction <add>, %136, %cst_65 [1] : vector<8x32xf32> to vector<8xf32>
    %142 = vector.shape_cast %141 : vector<8xf32> to vector<8x1xf32>
    %cst_66 = arith.constant 3.200000e+01 : f32
    %143 = vector.broadcast %cst_66 : f32 to vector<8x1xf32>
    %144 = arith.divf %142, %143 : vector<8x1xf32>
    %145 = vector.broadcast %144 : vector<8x1xf32> to vector<8x32xf32>
    %146 = arith.subf %136, %145 : vector<8x32xf32>
    %147 = arith.mulf %146, %146 : vector<8x32xf32>
    %cst_67 = arith.constant dense<0.000000e+00> : vector<8xf32>
    %148 = vector.multi_reduction <add>, %147, %cst_67 [1] : vector<8x32xf32> to vector<8xf32>
    %149 = vector.shape_cast %148 : vector<8xf32> to vector<8x1xf32>
    %cst_68 = arith.constant 3.200000e+01 : f32
    %150 = vector.broadcast %cst_68 : f32 to vector<8x1xf32>
    %151 = arith.divf %149, %150 : vector<8x1xf32>
    %152 = vector.broadcast %144 : vector<8x1xf32> to vector<8x32xf32>
    %153 = arith.subf %136, %152 : vector<8x32xf32>
    %cst_69 = arith.constant 9.99999974E-6 : f32
    %154 = vector.broadcast %cst_69 : f32 to vector<8x1xf32>
    %155 = arith.addf %151, %154 : vector<8x1xf32>
    %156 = math.rsqrt %155 : vector<8x1xf32>
    %157 = vector.broadcast %156 : vector<8x1xf32> to vector<8x32xf32>
    %158 = arith.mulf %153, %157 : vector<8x32xf32>
    %159 = vector.broadcast %138 : vector<1x32xf32> to vector<8x32xf32>
    %160 = arith.mulf %158, %159 : vector<8x32xf32>
    %161 = vector.broadcast %140 : vector<1x32xf32> to vector<8x32xf32>
    %162 = arith.addf %160, %161 : vector<8x32xf32>
    %c1_i32 = arith.constant 1 : i32
    %163 = arith.cmpi slt, %arg1, %c1_i32 : i32
    %164 = arith.extui %163 : i1 to i32
    %c0_i32_70 = arith.constant 0 : i32
    %165 = arith.cmpi ne, %164, %c0_i32_70 : i32
    scf.if %165 {
      %c0_73 = arith.constant 0 : index
      %c0_74 = arith.constant 0 : index
      %c0_75 = arith.constant 0 : index
      %169 = vector.load %arg23[%c0_73, %c0_74, %c0_75] : memref<1x8x32xf32, #tpu.memory_space<vmem>>, vector<1x8x32xf32>
      %170 = vector.shape_cast %169 : vector<1x8x32xf32> to vector<8x32xf32>
      %171 = vector.shape_cast %162 : vector<8x32xf32> to vector<1x8x32xf32>
      tpu.vector_store %arg23[%c0_73, %c0_74, %c0_75], %171 {strides = array<i32>} : memref<1x8x32xf32, #tpu.memory_space<vmem>>, vector<1x8x32xf32>,
    } else {
    }
    %c1_i32_71 = arith.constant 1 : i32
    %166 = arith.cmpi eq, %arg1, %c1_i32_71 : i32
    %167 = arith.extui %166 : i1 to i32
    %c0_i32_72 = arith.constant 0 : i32
    %168 = arith.cmpi ne, %167, %c0_i32_72 : i32
    scf.if %168 {
      %c0_73 = arith.constant 0 : index
      %c0_74 = arith.constant 0 : index
      %169 = vector.load %arg21[%c0_73, %c0_74] : memref<1x32xf32, #tpu.memory_space<vmem>>, vector<1x32xf32>
      %c0_75 = arith.constant 0 : index
      %c0_76 = arith.constant 0 : index
      %170 = vector.load %arg22[%c0_75, %c0_76] : memref<1x32xf32, #tpu.memory_space<vmem>>, vector<1x32xf32>
      %cst_77 = arith.constant dense<0.000000e+00> : vector<8xf32>
      %171 = vector.multi_reduction <add>, %162, %cst_77 [1] : vector<8x32xf32> to vector<8xf32>
      %172 = vector.shape_cast %171 : vector<8xf32> to vector<8x1xf32>
      %cst_78 = arith.constant 3.200000e+01 : f32
      %173 = vector.broadcast %cst_78 : f32 to vector<8x1xf32>
      %174 = arith.divf %172, %173 : vector<8x1xf32>
      %175 = vector.broadcast %174 : vector<8x1xf32> to vector<8x32xf32>
      %176 = arith.subf %162, %175 : vector<8x32xf32>
      %177 = arith.mulf %176, %176 : vector<8x32xf32>
      %cst_79 = arith.constant dense<0.000000e+00> : vector<8xf32>
      %178 = vector.multi_reduction <add>, %177, %cst_79 [1] : vector<8x32xf32> to vector<8xf32>
      %179 = vector.shape_cast %178 : vector<8xf32> to vector<8x1xf32>
      %cst_80 = arith.constant 3.200000e+01 : f32
      %180 = vector.broadcast %cst_80 : f32 to vector<8x1xf32>
      %181 = arith.divf %179, %180 : vector<8x1xf32>
      %182 = vector.broadcast %174 : vector<8x1xf32> to vector<8x32xf32>
      %183 = arith.subf %162, %182 : vector<8x32xf32>
      %cst_81 = arith.constant 9.99999974E-6 : f32
      %184 = vector.broadcast %cst_81 : f32 to vector<8x1xf32>
      %185 = arith.addf %181, %184 : vector<8x1xf32>
      %186 = math.rsqrt %185 : vector<8x1xf32>
      %187 = vector.broadcast %186 : vector<8x1xf32> to vector<8x32xf32>
      %188 = arith.mulf %183, %187 : vector<8x32xf32>
      %189 = vector.broadcast %169 : vector<1x32xf32> to vector<8x32xf32>
      %190 = arith.mulf %188, %189 : vector<8x32xf32>
      %191 = vector.broadcast %170 : vector<1x32xf32> to vector<8x32xf32>
      %192 = arith.addf %190, %191 : vector<8x32xf32>
      %c0_82 = arith.constant 0 : index
      %c0_83 = arith.constant 0 : index
      %c0_84 = arith.constant 0 : index
      %193 = vector.load %arg23[%c0_82, %c0_83, %c0_84] : memref<1x8x32xf32, #tpu.memory_space<vmem>>, vector<1x8x32xf32>
      %194 = vector.shape_cast %193 : vector<1x8x32xf32> to vector<8x32xf32>
      %195 = vector.shape_cast %192 : vector<8x32xf32> to vector<1x8x32xf32>
      tpu.vector_store %arg23[%c0_82, %c0_83, %c0_84], %195 {strides = array<i32>} : memref<1x8x32xf32, #tpu.memory_space<vmem>>, vector<1x8x32xf32>,
    } else {
    }
    return
  }
  func.func @transform_0(%arg0: i32, %arg1: i32) -> (i32, i32, i32) {
    %c0_i32 = arith.constant 0 : i32
    %c0_i32_0 = arith.constant 0 : i32
    %c0_i32_1 = arith.constant 0 : i32
    return %arg0, %c0_i32, %c0_i32_0 : i32, i32, i32
  }
  func.func @transform_1(%arg0: i32, %arg1: i32) -> (i32, i32) {
    %c0_i32 = arith.constant 0 : i32
    %c0_i32_0 = arith.constant 0 : i32
    %c0_i32_1 = arith.constant 0 : i32
    return %c0_i32, %c0_i32_0 : i32, i32
  }
  func.func @transform_2(%arg0: i32, %arg1: i32) -> (i32, i32) {
    %c0_i32 = arith.constant 0 : i32
    %c0_i32_0 = arith.constant 0 : i32
    %c0_i32_1 = arith.constant 0 : i32
    return %c0_i32, %c0_i32_0 : i32, i32
  }
  func.func @transform_3(%arg0: i32, %arg1: i32) -> (i32, i32) {
    %c0_i32 = arith.constant 0 : i32
    %c0_i32_0 = arith.constant 0 : i32
    %c0_i32_1 = arith.constant 0 : i32
    return %c0_i32, %c0_i32_0 : i32, i32
  }
  func.func @transform_4(%arg0: i32, %arg1: i32) -> (i32, i32) {
    %c0_i32 = arith.constant 0 : i32
    %c0_i32_0 = arith.constant 0 : i32
    %c0_i32_1 = arith.constant 0 : i32
    return %c0_i32, %c0_i32_0 : i32, i32
  }
  func.func @transform_5(%arg0: i32, %arg1: i32) -> (i32, i32) {
    %c0_i32 = arith.constant 0 : i32
    %c0_i32_0 = arith.constant 0 : i32
    %c0_i32_1 = arith.constant 0 : i32
    return %c0_i32, %c0_i32_0 : i32, i32
  }
  func.func @transform_6(%arg0: i32, %arg1: i32) -> (i32, i32) {
    %c0_i32 = arith.constant 0 : i32
    %c0_i32_0 = arith.constant 0 : i32
    %c0_i32_1 = arith.constant 0 : i32
    return %c0_i32, %c0_i32_0 : i32, i32
  }
  func.func @transform_7(%arg0: i32, %arg1: i32) -> (i32, i32, i32) {
    %c0_i32 = arith.constant 0 : i32
    %c0_i32_0 = arith.constant 0 : i32
    %c0_i32_1 = arith.constant 0 : i32
    return %arg1, %c0_i32, %c0_i32_0 : i32, i32, i32
  }
  func.func @transform_8(%arg0: i32, %arg1: i32) -> (i32, i32, i32) {
    %c0_i32 = arith.constant 0 : i32
    %c0_i32_0 = arith.constant 0 : i32
    %c0_i32_1 = arith.constant 0 : i32
    return %arg1, %c0_i32, %c0_i32_0 : i32, i32, i32
  }
  func.func @transform_9(%arg0: i32, %arg1: i32) -> (i32, i32, i32) {
    %c0_i32 = arith.constant 0 : i32
    %c0_i32_0 = arith.constant 0 : i32
    %c0_i32_1 = arith.constant 0 : i32
    return %arg1, %c0_i32, %c0_i32_0 : i32, i32, i32
  }
  func.func @transform_10(%arg0: i32, %arg1: i32) -> (i32, i32, i32) {
    %c0_i32 = arith.constant 0 : i32
    %c0_i32_0 = arith.constant 0 : i32
    %c0_i32_1 = arith.constant 0 : i32
    return %arg1, %c0_i32, %c0_i32_0 : i32, i32, i32
  }
  func.func @transform_11(%arg0: i32, %arg1: i32) -> (i32, i32, i32) {
    %c0_i32 = arith.constant 0 : i32
    %c0_i32_0 = arith.constant 0 : i32
    %c0_i32_1 = arith.constant 0 : i32
    return %arg1, %c0_i32, %c0_i32_0 : i32, i32, i32
  }
  func.func @transform_12(%arg0: i32, %arg1: i32) -> (i32, i32, i32) {
    %c0_i32 = arith.constant 0 : i32
    %c0_i32_0 = arith.constant 0 : i32
    %c0_i32_1 = arith.constant 0 : i32
    return %arg1, %c0_i32, %c0_i32_0 : i32, i32, i32
  }
  func.func @transform_13(%arg0: i32, %arg1: i32) -> (i32, i32, i32) {
    %c0_i32 = arith.constant 0 : i32
    %c0_i32_0 = arith.constant 0 : i32
    %c0_i32_1 = arith.constant 0 : i32
    return %arg1, %c0_i32, %c0_i32_0 : i32, i32, i32
  }
  func.func @transform_14(%arg0: i32, %arg1: i32) -> (i32, i32, i32) {
    %c0_i32 = arith.constant 0 : i32
    %c0_i32_0 = arith.constant 0 : i32
    %c0_i32_1 = arith.constant 0 : i32
    return %arg1, %c0_i32, %c0_i32_0 : i32, i32, i32
  }
  func.func @transform_15(%arg0: i32, %arg1: i32) -> (i32, i32, i32) {
    %c0_i32 = arith.constant 0 : i32
    %c0_i32_0 = arith.constant 0 : i32
    %c0_i32_1 = arith.constant 0 : i32
    return %arg1, %c0_i32, %c0_i32_0 : i32, i32, i32
  }
  func.func @transform_16(%arg0: i32, %arg1: i32) -> (i32, i32, i32) {
    %c0_i32 = arith.constant 0 : i32
    %c0_i32_0 = arith.constant 0 : i32
    %c0_i32_1 = arith.constant 0 : i32
    return %arg1, %c0_i32, %c0_i32_0 : i32, i32, i32
  }
  func.func @transform_17(%arg0: i32, %arg1: i32) -> (i32, i32, i32) {
    %c0_i32 = arith.constant 0 : i32
    %c0_i32_0 = arith.constant 0 : i32
    %c0_i32_1 = arith.constant 0 : i32
    return %arg1, %c0_i32, %c0_i32_0 : i32, i32, i32
  }
  func.func @transform_18(%arg0: i32, %arg1: i32) -> (i32, i32, i32) {
    %c0_i32 = arith.constant 0 : i32
    %c0_i32_0 = arith.constant 0 : i32
    %c0_i32_1 = arith.constant 0 : i32
    return %arg1, %c0_i32, %c0_i32_0 : i32, i32, i32
  }
  func.func @transform_19(%arg0: i32, %arg1: i32) -> (i32, i32) {
    %c0_i32 = arith.constant 0 : i32
    %c0_i32_0 = arith.constant 0 : i32
    %c0_i32_1 = arith.constant 0 : i32
    return %c0_i32, %c0_i32_0 : i32, i32
  }
  func.func @transform_20(%arg0: i32, %arg1: i32) -> (i32, i32) {
    %c0_i32 = arith.constant 0 : i32
    %c0_i32_0 = arith.constant 0 : i32
    %c0_i32_1 = arith.constant 0 : i32
    return %c0_i32, %c0_i32_0 : i32, i32
  }
  func.func @transform_21(%arg0: i32, %arg1: i32) -> (i32, i32, i32) {
    %c0_i32 = arith.constant 0 : i32
    %c0_i32_0 = arith.constant 0 : i32
    %c0_i32_1 = arith.constant 0 : i32
    return %arg0, %c0_i32, %c0_i32_0 : i32, i32, i32
  }
}

module attributes {stable_mosaic.version = 11 : i64} {
  func.func @_decoder_stack_kernel(%arg0: i32, %arg1: i32, %arg2: memref<1x7x32xf32, #tpu.memory_space<vmem>>, %arg3: memref<1x8x32xf32, #tpu.memory_space<vmem>>, %arg4: memref<1x32x96xbf16, #tpu.memory_space<vmem>>, %arg5: memref<1x1x96xf32, #tpu.memory_space<vmem>>, %arg6: memref<1x32x32xbf16, #tpu.memory_space<vmem>>, %arg7: memref<1x1x32xf32, #tpu.memory_space<vmem>>, %arg8: memref<1x1x32xf32, #tpu.memory_space<vmem>>, %arg9: memref<1x1x32xf32, #tpu.memory_space<vmem>>, %arg10: memref<1x32x32xbf16, #tpu.memory_space<vmem>>, %arg11: memref<1x1x32xf32, #tpu.memory_space<vmem>>, %arg12: memref<1x32x64xbf16, #tpu.memory_space<vmem>>, %arg13: memref<1x1x64xf32, #tpu.memory_space<vmem>>, %arg14: memref<1x32x32xbf16, #tpu.memory_space<vmem>>, %arg15: memref<1x1x32xf32, #tpu.memory_space<vmem>>, %arg16: memref<1x1x32xf32, #tpu.memory_space<vmem>>, %arg17: memref<1x1x32xf32, #tpu.memory_space<vmem>>, %arg18: memref<1x32x128xbf16, #tpu.memory_space<vmem>>, %arg19: memref<1x1x128xf32, #tpu.memory_space<vmem>>, %arg20: memref<1x128x32xbf16, #tpu.memory_space<vmem>>, %arg21: memref<1x1x32xf32, #tpu.memory_space<vmem>>, %arg22: memref<1x1x32xf32, #tpu.memory_space<vmem>>, %arg23: memref<1x1x32xf32, #tpu.memory_space<vmem>>, %arg24: memref<1x32xf32, #tpu.memory_space<vmem>>, %arg25: memref<1x32xf32, #tpu.memory_space<vmem>>, %arg26: memref<32x128xbf16, #tpu.memory_space<vmem>>, %arg27: memref<1x128xf32, #tpu.memory_space<vmem>>, %arg28: memref<1x7x128xf32, #tpu.memory_space<vmem>>, %arg29: memref<7x32xf32, #tpu.memory_space<vmem>>) attributes {dimension_semantics = [#tpu.dimension_semantics<parallel>, #tpu.dimension_semantics<arbitrary>], iteration_bounds = array<i64: 2, 2>, scalar_prefetch = 0 : i64, scratch_operands = 1 : i64, tpu.core_type = #tpu.core_type<tc>, window_params = [{transform_indices = @transform_0, window_bounds = array<i64: 1, 7, 32>}, {transform_indices = @transform_1, window_bounds = array<i64: 1, 8, 32>}, {transform_indices = @transform_2, window_bounds = array<i64: 1, 32, 96>}, {transform_indices = @transform_3, window_bounds = array<i64: 1, 1, 96>}, {transform_indices = @transform_4, window_bounds = array<i64: 1, 32, 32>}, {transform_indices = @transform_5, window_bounds = array<i64: 1, 1, 32>}, {transform_indices = @transform_6, window_bounds = array<i64: 1, 1, 32>}, {transform_indices = @transform_7, window_bounds = array<i64: 1, 1, 32>}, {transform_indices = @transform_8, window_bounds = array<i64: 1, 32, 32>}, {transform_indices = @transform_9, window_bounds = array<i64: 1, 1, 32>}, {transform_indices = @transform_10, window_bounds = array<i64: 1, 32, 64>}, {transform_indices = @transform_11, window_bounds = array<i64: 1, 1, 64>}, {transform_indices = @transform_12, window_bounds = array<i64: 1, 32, 32>}, {transform_indices = @transform_13, window_bounds = array<i64: 1, 1, 32>}, {transform_indices = @transform_14, window_bounds = array<i64: 1, 1, 32>}, {transform_indices = @transform_15, window_bounds = array<i64: 1, 1, 32>}, {transform_indices = @transform_16, window_bounds = array<i64: 1, 32, 128>}, {transform_indices = @transform_17, window_bounds = array<i64: 1, 1, 128>}, {transform_indices = @transform_18, window_bounds = array<i64: 1, 128, 32>}, {transform_indices = @transform_19, window_bounds = array<i64: 1, 1, 32>}, {transform_indices = @transform_20, window_bounds = array<i64: 1, 1, 32>}, {transform_indices = @transform_21, window_bounds = array<i64: 1, 1, 32>}, {pipeline_mode = #tpu.pipeline_mode<synchronous>, transform_indices = @transform_22, window_bounds = array<i64: 1, 32>}, {pipeline_mode = #tpu.pipeline_mode<synchronous>, transform_indices = @transform_23, window_bounds = array<i64: 1, 32>}, {pipeline_mode = #tpu.pipeline_mode<synchronous>, transform_indices = @transform_24, window_bounds = array<i64: 32, 128>}, {pipeline_mode = #tpu.pipeline_mode<synchronous>, transform_indices = @transform_25, window_bounds = array<i64: 1, 128>}, {transform_indices = @transform_26, window_bounds = array<i64: 1, 7, 128>}]} {
    %c0_i32 = arith.constant 0 : i32
    %0 = arith.cmpi eq, %arg1, %c0_i32 : i32
    %1 = arith.extui %0 : i1 to i32
    %c0_i32_0 = arith.constant 0 : i32
    %2 = arith.cmpi ne, %1, %c0_i32_0 : i32
    scf.if %2 {
      %c0_126 = arith.constant 0 : index
      %c0_127 = arith.constant 0 : index
      %c0_128 = arith.constant 0 : index
      %300 = vector.load %arg2[%c0_126, %c0_127, %c0_128] : memref<1x7x32xf32, #tpu.memory_space<vmem>>, vector<1x7x32xf32>
      %301 = vector.shape_cast %300 : vector<1x7x32xf32> to vector<7x32xf32>
      %c0_129 = arith.constant 0 : index
      %c0_130 = arith.constant 0 : index
      %302 = vector.load %arg29[%c0_129, %c0_130] : memref<7x32xf32, #tpu.memory_space<vmem>>, vector<7x32xf32>
      tpu.vector_store %arg29[%c0_129, %c0_130], %301 {strides = array<i32>} : memref<7x32xf32, #tpu.memory_space<vmem>>, vector<7x32xf32>,
    } else {
    }
    %c0 = arith.constant 0 : index
    %c0_1 = arith.constant 0 : index
    %3 = vector.load %arg29[%c0, %c0_1] : memref<7x32xf32, #tpu.memory_space<vmem>>, vector<7x32xf32>
    %c0_2 = arith.constant 0 : index
    %c0_3 = arith.constant 0 : index
    %c0_4 = arith.constant 0 : index
    %4 = vector.load %arg3[%c0_2, %c0_3, %c0_4] : memref<1x8x32xf32, #tpu.memory_space<vmem>>, vector<1x8x32xf32>
    %5 = vector.shape_cast %4 : vector<1x8x32xf32> to vector<8x32xf32>
    %6 = tpu.iota {dimensions = array<i32: 0>} : vector<7x7xi32>
    %7 = tpu.iota {dimensions = array<i32: 1>} : vector<7x7xi32>
    %8 = arith.cmpi sle, %7, %6 : vector<7x7xi32>
    %cst = arith.constant 0.000000e+00 : f32
    %cst_5 = arith.constant -1.000000e+30 : f32
    %9 = vector.broadcast %cst : f32 to vector<7x7xf32>
    %10 = vector.broadcast %cst_5 : f32 to vector<7x7xf32>
    %11 = arith.select %8, %9, %10 : vector<7x7xi1>, vector<7x7xf32>
    %12 = arith.truncf %3 : vector<7x32xf32> to vector<7x32xbf16>
    %c0_6 = arith.constant 0 : index
    %c0_7 = arith.constant 0 : index
    %c0_8 = arith.constant 0 : index
    %13 = vector.load %arg4[%c0_6, %c0_7, %c0_8] : memref<1x32x96xbf16, #tpu.memory_space<vmem>>, vector<1x32x96xbf16>
    %14 = vector.shape_cast %13 : vector<1x32x96xbf16> to vector<32x96xbf16>
    %cst_9 = arith.constant dense<0.000000e+00> : vector<7x96xf32>
    %15 = tpu.matmul %12, %14, %cst_9 {dimension_numbers = #tpu.dot_dimension_numbers<[1], [0], [0], [1], [0, 0, 1, 1], [], []>} : vector<7x32xbf16>, vector<32x96xbf16>, vector<7x96xf32> -> vector<7x96xf32>
    %c0_10 = arith.constant 0 : index
    %c0_11 = arith.constant 0 : index
    %c0_12 = arith.constant 0 : index
    %16 = vector.load %arg5[%c0_10, %c0_11, %c0_12] : memref<1x1x96xf32, #tpu.memory_space<vmem>>, vector<1x1x96xf32>
    %17 = vector.shape_cast %16 : vector<1x1x96xf32> to vector<1x96xf32>
    %18 = vector.broadcast %17 : vector<1x96xf32> to vector<7x96xf32>
    %19 = arith.addf %15, %18 : vector<7x96xf32>
    %20 = vector.extract_strided_slice %19 {offsets = [0, 0], sizes = [7, 32], strides = [1, 1]} : vector<7x96xf32> to vector<7x32xf32>
    %21 = vector.extract_strided_slice %19 {offsets = [0, 32], sizes = [7, 32], strides = [1, 1]} : vector<7x96xf32> to vector<7x32xf32>
    %22 = vector.extract_strided_slice %19 {offsets = [0, 64], sizes = [7, 32], strides = [1, 1]} : vector<7x96xf32> to vector<7x32xf32>
    %c0_13 = arith.constant 0 : index
    %c0_14 = arith.constant 0 : index
    %c0_15 = arith.constant 0 : index
    %23 = vector.load %arg6[%c0_13, %c0_14, %c0_15] : memref<1x32x32xbf16, #tpu.memory_space<vmem>>, vector<1x32x32xbf16>
    %24 = vector.shape_cast %23 : vector<1x32x32xbf16> to vector<32x32xbf16>
    %c0_16 = arith.constant 0 : index
    %c0_17 = arith.constant 0 : index
    %c0_18 = arith.constant 0 : index
    %25 = vector.load %arg7[%c0_16, %c0_17, %c0_18] : memref<1x1x32xf32, #tpu.memory_space<vmem>>, vector<1x1x32xf32>
    %26 = vector.shape_cast %25 : vector<1x1x32xf32> to vector<1x32xf32>
    %cst_19 = arith.constant 0.353553385 : f32
    %27 = vector.broadcast %cst_19 : f32 to vector<7x32xf32>
    %28 = arith.mulf %20, %27 : vector<7x32xf32>
    %29 = arith.truncf %28 : vector<7x32xf32> to vector<7x32xbf16>
    %30 = tpu.transpose %21, [1, 0] : vector<7x32xf32> -> vector<32x7xf32>
    %31 = arith.truncf %30 : vector<32x7xf32> to vector<32x7xbf16>
    %32 = arith.truncf %22 : vector<7x32xf32> to vector<7x32xbf16>
    %33 = vector.extract_strided_slice %29 {offsets = [0, 0], sizes = [7, 8], strides = [1, 1]} : vector<7x32xbf16> to vector<7x8xbf16>
    %34 = vector.extract_strided_slice %31 {offsets = [0, 0], sizes = [8, 7], strides = [1, 1]} : vector<32x7xbf16> to vector<8x7xbf16>
    %cst_20 = arith.constant dense<0.000000e+00> : vector<7x7xf32>
    %35 = tpu.matmul %33, %34, %cst_20 {dimension_numbers = #tpu.dot_dimension_numbers<[1], [0], [0], [1], [0, 0, 1, 1], [], []>} : vector<7x8xbf16>, vector<8x7xbf16>, vector<7x7xf32> -> vector<7x7xf32>
    %36 = arith.addf %35, %11 : vector<7x7xf32>
    %cst_21 = arith.constant dense<0xFF800000> : vector<7xf32>
    %37 = vector.multi_reduction <maximumf>, %36, %cst_21 [1] : vector<7x7xf32> to vector<7xf32>
    %38 = vector.shape_cast %37 : vector<7xf32> to vector<7x1xf32>
    %39 = vector.broadcast %38 : vector<7x1xf32> to vector<7x7xf32>
    %40 = arith.subf %36, %39 : vector<7x7xf32>
    %41 = math.exp %40 : vector<7x7xf32>
    %cst_22 = arith.constant dense<0.000000e+00> : vector<7xf32>
    %42 = vector.multi_reduction <add>, %41, %cst_22 [1] : vector<7x7xf32> to vector<7xf32>
    %43 = vector.shape_cast %42 : vector<7xf32> to vector<7x1xf32>
    %44 = vector.broadcast %43 : vector<7x1xf32> to vector<7x7xf32>
    %45 = arith.divf %41, %44 : vector<7x7xf32>
    %46 = arith.truncf %45 : vector<7x7xf32> to vector<7x7xbf16>
    %47 = vector.extract_strided_slice %32 {offsets = [0, 0], sizes = [7, 8], strides = [1, 1]} : vector<7x32xbf16> to vector<7x8xbf16>
    %cst_23 = arith.constant dense<0.000000e+00> : vector<7x8xf32>
    %48 = tpu.matmul %46, %47, %cst_23 {dimension_numbers = #tpu.dot_dimension_numbers<[1], [0], [0], [1], [0, 0, 1, 1], [], []>} : vector<7x7xbf16>, vector<7x8xbf16>, vector<7x8xf32> -> vector<7x8xf32>
    %49 = vector.extract_strided_slice %29 {offsets = [0, 8], sizes = [7, 8], strides = [1, 1]} : vector<7x32xbf16> to vector<7x8xbf16>
    %50 = vector.extract_strided_slice %31 {offsets = [8, 0], sizes = [8, 7], strides = [1, 1]} : vector<32x7xbf16> to vector<8x7xbf16>
    %cst_24 = arith.constant dense<0.000000e+00> : vector<7x7xf32>
    %51 = tpu.matmul %49, %50, %cst_24 {dimension_numbers = #tpu.dot_dimension_numbers<[1], [0], [0], [1], [0, 0, 1, 1], [], []>} : vector<7x8xbf16>, vector<8x7xbf16>, vector<7x7xf32> -> vector<7x7xf32>
    %52 = arith.addf %51, %11 : vector<7x7xf32>
    %cst_25 = arith.constant dense<0xFF800000> : vector<7xf32>
    %53 = vector.multi_reduction <maximumf>, %52, %cst_25 [1] : vector<7x7xf32> to vector<7xf32>
    %54 = vector.shape_cast %53 : vector<7xf32> to vector<7x1xf32>
    %55 = vector.broadcast %54 : vector<7x1xf32> to vector<7x7xf32>
    %56 = arith.subf %52, %55 : vector<7x7xf32>
    %57 = math.exp %56 : vector<7x7xf32>
    %cst_26 = arith.constant dense<0.000000e+00> : vector<7xf32>
    %58 = vector.multi_reduction <add>, %57, %cst_26 [1] : vector<7x7xf32> to vector<7xf32>
    %59 = vector.shape_cast %58 : vector<7xf32> to vector<7x1xf32>
    %60 = vector.broadcast %59 : vector<7x1xf32> to vector<7x7xf32>
    %61 = arith.divf %57, %60 : vector<7x7xf32>
    %62 = arith.truncf %61 : vector<7x7xf32> to vector<7x7xbf16>
    %63 = vector.extract_strided_slice %32 {offsets = [0, 8], sizes = [7, 8], strides = [1, 1]} : vector<7x32xbf16> to vector<7x8xbf16>
    %cst_27 = arith.constant dense<0.000000e+00> : vector<7x8xf32>
    %64 = tpu.matmul %62, %63, %cst_27 {dimension_numbers = #tpu.dot_dimension_numbers<[1], [0], [0], [1], [0, 0, 1, 1], [], []>} : vector<7x7xbf16>, vector<7x8xbf16>, vector<7x8xf32> -> vector<7x8xf32>
    %65 = vector.extract_strided_slice %29 {offsets = [0, 16], sizes = [7, 8], strides = [1, 1]} : vector<7x32xbf16> to vector<7x8xbf16>
    %66 = vector.extract_strided_slice %31 {offsets = [16, 0], sizes = [8, 7], strides = [1, 1]} : vector<32x7xbf16> to vector<8x7xbf16>
    %cst_28 = arith.constant dense<0.000000e+00> : vector<7x7xf32>
    %67 = tpu.matmul %65, %66, %cst_28 {dimension_numbers = #tpu.dot_dimension_numbers<[1], [0], [0], [1], [0, 0, 1, 1], [], []>} : vector<7x8xbf16>, vector<8x7xbf16>, vector<7x7xf32> -> vector<7x7xf32>
    %68 = arith.addf %67, %11 : vector<7x7xf32>
    %cst_29 = arith.constant dense<0xFF800000> : vector<7xf32>
    %69 = vector.multi_reduction <maximumf>, %68, %cst_29 [1] : vector<7x7xf32> to vector<7xf32>
    %70 = vector.shape_cast %69 : vector<7xf32> to vector<7x1xf32>
    %71 = vector.broadcast %70 : vector<7x1xf32> to vector<7x7xf32>
    %72 = arith.subf %68, %71 : vector<7x7xf32>
    %73 = math.exp %72 : vector<7x7xf32>
    %cst_30 = arith.constant dense<0.000000e+00> : vector<7xf32>
    %74 = vector.multi_reduction <add>, %73, %cst_30 [1] : vector<7x7xf32> to vector<7xf32>
    %75 = vector.shape_cast %74 : vector<7xf32> to vector<7x1xf32>
    %76 = vector.broadcast %75 : vector<7x1xf32> to vector<7x7xf32>
    %77 = arith.divf %73, %76 : vector<7x7xf32>
    %78 = arith.truncf %77 : vector<7x7xf32> to vector<7x7xbf16>
    %79 = vector.extract_strided_slice %32 {offsets = [0, 16], sizes = [7, 8], strides = [1, 1]} : vector<7x32xbf16> to vector<7x8xbf16>
    %cst_31 = arith.constant dense<0.000000e+00> : vector<7x8xf32>
    %80 = tpu.matmul %78, %79, %cst_31 {dimension_numbers = #tpu.dot_dimension_numbers<[1], [0], [0], [1], [0, 0, 1, 1], [], []>} : vector<7x7xbf16>, vector<7x8xbf16>, vector<7x8xf32> -> vector<7x8xf32>
    %81 = vector.extract_strided_slice %29 {offsets = [0, 24], sizes = [7, 8], strides = [1, 1]} : vector<7x32xbf16> to vector<7x8xbf16>
    %82 = vector.extract_strided_slice %31 {offsets = [24, 0], sizes = [8, 7], strides = [1, 1]} : vector<32x7xbf16> to vector<8x7xbf16>
    %cst_32 = arith.constant dense<0.000000e+00> : vector<7x7xf32>
    %83 = tpu.matmul %81, %82, %cst_32 {dimension_numbers = #tpu.dot_dimension_numbers<[1], [0], [0], [1], [0, 0, 1, 1], [], []>} : vector<7x8xbf16>, vector<8x7xbf16>, vector<7x7xf32> -> vector<7x7xf32>
    %84 = arith.addf %83, %11 : vector<7x7xf32>
    %cst_33 = arith.constant dense<0xFF800000> : vector<7xf32>
    %85 = vector.multi_reduction <maximumf>, %84, %cst_33 [1] : vector<7x7xf32> to vector<7xf32>
    %86 = vector.shape_cast %85 : vector<7xf32> to vector<7x1xf32>
    %87 = vector.broadcast %86 : vector<7x1xf32> to vector<7x7xf32>
    %88 = arith.subf %84, %87 : vector<7x7xf32>
    %89 = math.exp %88 : vector<7x7xf32>
    %cst_34 = arith.constant dense<0.000000e+00> : vector<7xf32>
    %90 = vector.multi_reduction <add>, %89, %cst_34 [1] : vector<7x7xf32> to vector<7xf32>
    %91 = vector.shape_cast %90 : vector<7xf32> to vector<7x1xf32>
    %92 = vector.broadcast %91 : vector<7x1xf32> to vector<7x7xf32>
    %93 = arith.divf %89, %92 : vector<7x7xf32>
    %94 = arith.truncf %93 : vector<7x7xf32> to vector<7x7xbf16>
    %95 = vector.extract_strided_slice %32 {offsets = [0, 24], sizes = [7, 8], strides = [1, 1]} : vector<7x32xbf16> to vector<7x8xbf16>
    %cst_35 = arith.constant dense<0.000000e+00> : vector<7x8xf32>
    %96 = tpu.matmul %94, %95, %cst_35 {dimension_numbers = #tpu.dot_dimension_numbers<[1], [0], [0], [1], [0, 0, 1, 1], [], []>} : vector<7x7xbf16>, vector<7x8xbf16>, vector<7x8xf32> -> vector<7x8xf32>
    %97 = tpu.concatenate %48, %64, %80, %96 in 1 : vector<7x8xf32>, vector<7x8xf32>, vector<7x8xf32>, vector<7x8xf32> -> vector<7x32xf32>
    %98 = arith.truncf %97 : vector<7x32xf32> to vector<7x32xbf16>
    %cst_36 = arith.constant dense<0.000000e+00> : vector<7x32xf32>
    %99 = tpu.matmul %98, %24, %cst_36 {dimension_numbers = #tpu.dot_dimension_numbers<[1], [0], [0], [1], [0, 0, 1, 1], [], []>} : vector<7x32xbf16>, vector<32x32xbf16>, vector<7x32xf32> -> vector<7x32xf32>
    %100 = vector.broadcast %26 : vector<1x32xf32> to vector<7x32xf32>
    %101 = arith.addf %99, %100 : vector<7x32xf32>
    %102 = arith.addf %3, %101 : vector<7x32xf32>
    %c0_37 = arith.constant 0 : index
    %c0_38 = arith.constant 0 : index
    %c0_39 = arith.constant 0 : index
    %103 = vector.load %arg8[%c0_37, %c0_38, %c0_39] : memref<1x1x32xf32, #tpu.memory_space<vmem>>, vector<1x1x32xf32>
    %104 = vector.shape_cast %103 : vector<1x1x32xf32> to vector<1x32xf32>
    %c0_40 = arith.constant 0 : index
    %c0_41 = arith.constant 0 : index
    %c0_42 = arith.constant 0 : index
    %105 = vector.load %arg9[%c0_40, %c0_41, %c0_42] : memref<1x1x32xf32, #tpu.memory_space<vmem>>, vector<1x1x32xf32>
    %106 = vector.shape_cast %105 : vector<1x1x32xf32> to vector<1x32xf32>
    %cst_43 = arith.constant dense<0.000000e+00> : vector<7xf32>
    %107 = vector.multi_reduction <add>, %102, %cst_43 [1] : vector<7x32xf32> to vector<7xf32>
    %108 = vector.shape_cast %107 : vector<7xf32> to vector<7x1xf32>
    %cst_44 = arith.constant 3.200000e+01 : f32
    %109 = vector.broadcast %cst_44 : f32 to vector<7x1xf32>
    %110 = arith.divf %108, %109 : vector<7x1xf32>
    %111 = vector.broadcast %110 : vector<7x1xf32> to vector<7x32xf32>
    %112 = arith.subf %102, %111 : vector<7x32xf32>
    %113 = arith.mulf %112, %112 : vector<7x32xf32>
    %cst_45 = arith.constant dense<0.000000e+00> : vector<7xf32>
    %114 = vector.multi_reduction <add>, %113, %cst_45 [1] : vector<7x32xf32> to vector<7xf32>
    %115 = vector.shape_cast %114 : vector<7xf32> to vector<7x1xf32>
    %cst_46 = arith.constant 3.200000e+01 : f32
    %116 = vector.broadcast %cst_46 : f32 to vector<7x1xf32>
    %117 = arith.divf %115, %116 : vector<7x1xf32>
    %118 = vector.broadcast %110 : vector<7x1xf32> to vector<7x32xf32>
    %119 = arith.subf %102, %118 : vector<7x32xf32>
    %cst_47 = arith.constant 9.99999974E-6 : f32
    %120 = vector.broadcast %cst_47 : f32 to vector<7x1xf32>
    %121 = arith.addf %117, %120 : vector<7x1xf32>
    %122 = math.rsqrt %121 : vector<7x1xf32>
    %123 = vector.broadcast %122 : vector<7x1xf32> to vector<7x32xf32>
    %124 = arith.mulf %119, %123 : vector<7x32xf32>
    %125 = vector.broadcast %104 : vector<1x32xf32> to vector<7x32xf32>
    %126 = arith.mulf %124, %125 : vector<7x32xf32>
    %127 = vector.broadcast %106 : vector<1x32xf32> to vector<7x32xf32>
    %128 = arith.addf %126, %127 : vector<7x32xf32>
    %129 = arith.truncf %128 : vector<7x32xf32> to vector<7x32xbf16>
    %c0_48 = arith.constant 0 : index
    %c0_49 = arith.constant 0 : index
    %c0_50 = arith.constant 0 : index
    %130 = vector.load %arg10[%c0_48, %c0_49, %c0_50] : memref<1x32x32xbf16, #tpu.memory_space<vmem>>, vector<1x32x32xbf16>
    %131 = vector.shape_cast %130 : vector<1x32x32xbf16> to vector<32x32xbf16>
    %cst_51 = arith.constant dense<0.000000e+00> : vector<7x32xf32>
    %132 = tpu.matmul %129, %131, %cst_51 {dimension_numbers = #tpu.dot_dimension_numbers<[1], [0], [0], [1], [0, 0, 1, 1], [], []>} : vector<7x32xbf16>, vector<32x32xbf16>, vector<7x32xf32> -> vector<7x32xf32>
    %c0_52 = arith.constant 0 : index
    %c0_53 = arith.constant 0 : index
    %c0_54 = arith.constant 0 : index
    %133 = vector.load %arg11[%c0_52, %c0_53, %c0_54] : memref<1x1x32xf32, #tpu.memory_space<vmem>>, vector<1x1x32xf32>
    %134 = vector.shape_cast %133 : vector<1x1x32xf32> to vector<1x32xf32>
    %135 = vector.broadcast %134 : vector<1x32xf32> to vector<7x32xf32>
    %136 = arith.addf %132, %135 : vector<7x32xf32>
    %137 = arith.truncf %5 : vector<8x32xf32> to vector<8x32xbf16>
    %c0_55 = arith.constant 0 : index
    %c0_56 = arith.constant 0 : index
    %c0_57 = arith.constant 0 : index
    %138 = vector.load %arg12[%c0_55, %c0_56, %c0_57] : memref<1x32x64xbf16, #tpu.memory_space<vmem>>, vector<1x32x64xbf16>
    %139 = vector.shape_cast %138 : vector<1x32x64xbf16> to vector<32x64xbf16>
    %cst_58 = arith.constant dense<0.000000e+00> : vector<8x64xf32>
    %140 = tpu.matmul %137, %139, %cst_58 {dimension_numbers = #tpu.dot_dimension_numbers<[1], [0], [0], [1], [0, 0, 1, 1], [], []>} : vector<8x32xbf16>, vector<32x64xbf16>, vector<8x64xf32> -> vector<8x64xf32>
    %c0_59 = arith.constant 0 : index
    %c0_60 = arith.constant 0 : index
    %c0_61 = arith.constant 0 : index
    %141 = vector.load %arg13[%c0_59, %c0_60, %c0_61] : memref<1x1x64xf32, #tpu.memory_space<vmem>>, vector<1x1x64xf32>
    %142 = vector.shape_cast %141 : vector<1x1x64xf32> to vector<1x64xf32>
    %143 = vector.broadcast %142 : vector<1x64xf32> to vector<8x64xf32>
    %144 = arith.addf %140, %143 : vector<8x64xf32>
    %145 = vector.extract_strided_slice %144 {offsets = [0, 0], sizes = [8, 32], strides = [1, 1]} : vector<8x64xf32> to vector<8x32xf32>
    %146 = vector.extract_strided_slice %144 {offsets = [0, 32], sizes = [8, 32], strides = [1, 1]} : vector<8x64xf32> to vector<8x32xf32>
    %c0_62 = arith.constant 0 : index
    %c0_63 = arith.constant 0 : index
    %c0_64 = arith.constant 0 : index
    %147 = vector.load %arg14[%c0_62, %c0_63, %c0_64] : memref<1x32x32xbf16, #tpu.memory_space<vmem>>, vector<1x32x32xbf16>
    %148 = vector.shape_cast %147 : vector<1x32x32xbf16> to vector<32x32xbf16>
    %c0_65 = arith.constant 0 : index
    %c0_66 = arith.constant 0 : index
    %c0_67 = arith.constant 0 : index
    %149 = vector.load %arg15[%c0_65, %c0_66, %c0_67] : memref<1x1x32xf32, #tpu.memory_space<vmem>>, vector<1x1x32xf32>
    %150 = vector.shape_cast %149 : vector<1x1x32xf32> to vector<1x32xf32>
    %cst_68 = arith.constant 0.353553385 : f32
    %151 = vector.broadcast %cst_68 : f32 to vector<7x32xf32>
    %152 = arith.mulf %136, %151 : vector<7x32xf32>
    %153 = arith.truncf %152 : vector<7x32xf32> to vector<7x32xbf16>
    %154 = tpu.transpose %145, [1, 0] : vector<8x32xf32> -> vector<32x8xf32>
    %155 = arith.truncf %154 : vector<32x8xf32> to vector<32x8xbf16>
    %156 = arith.truncf %146 : vector<8x32xf32> to vector<8x32xbf16>
    %157 = vector.extract_strided_slice %153 {offsets = [0, 0], sizes = [7, 8], strides = [1, 1]} : vector<7x32xbf16> to vector<7x8xbf16>
    %158 = vector.extract_strided_slice %155 {offsets = [0, 0], sizes = [8, 8], strides = [1, 1]} : vector<32x8xbf16> to vector<8x8xbf16>
    %cst_69 = arith.constant dense<0.000000e+00> : vector<7x8xf32>
    %159 = tpu.matmul %157, %158, %cst_69 {dimension_numbers = #tpu.dot_dimension_numbers<[1], [0], [0], [1], [0, 0, 1, 1], [], []>} : vector<7x8xbf16>, vector<8x8xbf16>, vector<7x8xf32> -> vector<7x8xf32>
    %cst_70 = arith.constant dense<0xFF800000> : vector<7xf32>
    %160 = vector.multi_reduction <maximumf>, %159, %cst_70 [1] : vector<7x8xf32> to vector<7xf32>
    %161 = vector.shape_cast %160 : vector<7xf32> to vector<7x1xf32>
    %162 = vector.broadcast %161 : vector<7x1xf32> to vector<7x8xf32>
    %163 = arith.subf %159, %162 : vector<7x8xf32>
    %164 = math.exp %163 : vector<7x8xf32>
    %cst_71 = arith.constant dense<0.000000e+00> : vector<7xf32>
    %165 = vector.multi_reduction <add>, %164, %cst_71 [1] : vector<7x8xf32> to vector<7xf32>
    %166 = vector.shape_cast %165 : vector<7xf32> to vector<7x1xf32>
    %167 = vector.broadcast %166 : vector<7x1xf32> to vector<7x8xf32>
    %168 = arith.divf %164, %167 : vector<7x8xf32>
    %169 = arith.truncf %168 : vector<7x8xf32> to vector<7x8xbf16>
    %170 = vector.extract_strided_slice %156 {offsets = [0, 0], sizes = [8, 8], strides = [1, 1]} : vector<8x32xbf16> to vector<8x8xbf16>
    %cst_72 = arith.constant dense<0.000000e+00> : vector<7x8xf32>
    %171 = tpu.matmul %169, %170, %cst_72 {dimension_numbers = #tpu.dot_dimension_numbers<[1], [0], [0], [1], [0, 0, 1, 1], [], []>} : vector<7x8xbf16>, vector<8x8xbf16>, vector<7x8xf32> -> vector<7x8xf32>
    %172 = vector.extract_strided_slice %153 {offsets = [0, 8], sizes = [7, 8], strides = [1, 1]} : vector<7x32xbf16> to vector<7x8xbf16>
    %173 = vector.extract_strided_slice %155 {offsets = [8, 0], sizes = [8, 8], strides = [1, 1]} : vector<32x8xbf16> to vector<8x8xbf16>
    %cst_73 = arith.constant dense<0.000000e+00> : vector<7x8xf32>
    %174 = tpu.matmul %172, %173, %cst_73 {dimension_numbers = #tpu.dot_dimension_numbers<[1], [0], [0], [1], [0, 0, 1, 1], [], []>} : vector<7x8xbf16>, vector<8x8xbf16>, vector<7x8xf32> -> vector<7x8xf32>
    %cst_74 = arith.constant dense<0xFF800000> : vector<7xf32>
    %175 = vector.multi_reduction <maximumf>, %174, %cst_74 [1] : vector<7x8xf32> to vector<7xf32>
    %176 = vector.shape_cast %175 : vector<7xf32> to vector<7x1xf32>
    %177 = vector.broadcast %176 : vector<7x1xf32> to vector<7x8xf32>
    %178 = arith.subf %174, %177 : vector<7x8xf32>
    %179 = math.exp %178 : vector<7x8xf32>
    %cst_75 = arith.constant dense<0.000000e+00> : vector<7xf32>
    %180 = vector.multi_reduction <add>, %179, %cst_75 [1] : vector<7x8xf32> to vector<7xf32>
    %181 = vector.shape_cast %180 : vector<7xf32> to vector<7x1xf32>
    %182 = vector.broadcast %181 : vector<7x1xf32> to vector<7x8xf32>
    %183 = arith.divf %179, %182 : vector<7x8xf32>
    %184 = arith.truncf %183 : vector<7x8xf32> to vector<7x8xbf16>
    %185 = vector.extract_strided_slice %156 {offsets = [0, 8], sizes = [8, 8], strides = [1, 1]} : vector<8x32xbf16> to vector<8x8xbf16>
    %cst_76 = arith.constant dense<0.000000e+00> : vector<7x8xf32>
    %186 = tpu.matmul %184, %185, %cst_76 {dimension_numbers = #tpu.dot_dimension_numbers<[1], [0], [0], [1], [0, 0, 1, 1], [], []>} : vector<7x8xbf16>, vector<8x8xbf16>, vector<7x8xf32> -> vector<7x8xf32>
    %187 = vector.extract_strided_slice %153 {offsets = [0, 16], sizes = [7, 8], strides = [1, 1]} : vector<7x32xbf16> to vector<7x8xbf16>
    %188 = vector.extract_strided_slice %155 {offsets = [16, 0], sizes = [8, 8], strides = [1, 1]} : vector<32x8xbf16> to vector<8x8xbf16>
    %cst_77 = arith.constant dense<0.000000e+00> : vector<7x8xf32>
    %189 = tpu.matmul %187, %188, %cst_77 {dimension_numbers = #tpu.dot_dimension_numbers<[1], [0], [0], [1], [0, 0, 1, 1], [], []>} : vector<7x8xbf16>, vector<8x8xbf16>, vector<7x8xf32> -> vector<7x8xf32>
    %cst_78 = arith.constant dense<0xFF800000> : vector<7xf32>
    %190 = vector.multi_reduction <maximumf>, %189, %cst_78 [1] : vector<7x8xf32> to vector<7xf32>
    %191 = vector.shape_cast %190 : vector<7xf32> to vector<7x1xf32>
    %192 = vector.broadcast %191 : vector<7x1xf32> to vector<7x8xf32>
    %193 = arith.subf %189, %192 : vector<7x8xf32>
    %194 = math.exp %193 : vector<7x8xf32>
    %cst_79 = arith.constant dense<0.000000e+00> : vector<7xf32>
    %195 = vector.multi_reduction <add>, %194, %cst_79 [1] : vector<7x8xf32> to vector<7xf32>
    %196 = vector.shape_cast %195 : vector<7xf32> to vector<7x1xf32>
    %197 = vector.broadcast %196 : vector<7x1xf32> to vector<7x8xf32>
    %198 = arith.divf %194, %197 : vector<7x8xf32>
    %199 = arith.truncf %198 : vector<7x8xf32> to vector<7x8xbf16>
    %200 = vector.extract_strided_slice %156 {offsets = [0, 16], sizes = [8, 8], strides = [1, 1]} : vector<8x32xbf16> to vector<8x8xbf16>
    %cst_80 = arith.constant dense<0.000000e+00> : vector<7x8xf32>
    %201 = tpu.matmul %199, %200, %cst_80 {dimension_numbers = #tpu.dot_dimension_numbers<[1], [0], [0], [1], [0, 0, 1, 1], [], []>} : vector<7x8xbf16>, vector<8x8xbf16>, vector<7x8xf32> -> vector<7x8xf32>
    %202 = vector.extract_strided_slice %153 {offsets = [0, 24], sizes = [7, 8], strides = [1, 1]} : vector<7x32xbf16> to vector<7x8xbf16>
    %203 = vector.extract_strided_slice %155 {offsets = [24, 0], sizes = [8, 8], strides = [1, 1]} : vector<32x8xbf16> to vector<8x8xbf16>
    %cst_81 = arith.constant dense<0.000000e+00> : vector<7x8xf32>
    %204 = tpu.matmul %202, %203, %cst_81 {dimension_numbers = #tpu.dot_dimension_numbers<[1], [0], [0], [1], [0, 0, 1, 1], [], []>} : vector<7x8xbf16>, vector<8x8xbf16>, vector<7x8xf32> -> vector<7x8xf32>
    %cst_82 = arith.constant dense<0xFF800000> : vector<7xf32>
    %205 = vector.multi_reduction <maximumf>, %204, %cst_82 [1] : vector<7x8xf32> to vector<7xf32>
    %206 = vector.shape_cast %205 : vector<7xf32> to vector<7x1xf32>
    %207 = vector.broadcast %206 : vector<7x1xf32> to vector<7x8xf32>
    %208 = arith.subf %204, %207 : vector<7x8xf32>
    %209 = math.exp %208 : vector<7x8xf32>
    %cst_83 = arith.constant dense<0.000000e+00> : vector<7xf32>
    %210 = vector.multi_reduction <add>, %209, %cst_83 [1] : vector<7x8xf32> to vector<7xf32>
    %211 = vector.shape_cast %210 : vector<7xf32> to vector<7x1xf32>
    %212 = vector.broadcast %211 : vector<7x1xf32> to vector<7x8xf32>
    %213 = arith.divf %209, %212 : vector<7x8xf32>
    %214 = arith.truncf %213 : vector<7x8xf32> to vector<7x8xbf16>
    %215 = vector.extract_strided_slice %156 {offsets = [0, 24], sizes = [8, 8], strides = [1, 1]} : vector<8x32xbf16> to vector<8x8xbf16>
    %cst_84 = arith.constant dense<0.000000e+00> : vector<7x8xf32>
    %216 = tpu.matmul %214, %215, %cst_84 {dimension_numbers = #tpu.dot_dimension_numbers<[1], [0], [0], [1], [0, 0, 1, 1], [], []>} : vector<7x8xbf16>, vector<8x8xbf16>, vector<7x8xf32> -> vector<7x8xf32>
    %217 = tpu.concatenate %171, %186, %201, %216 in 1 : vector<7x8xf32>, vector<7x8xf32>, vector<7x8xf32>, vector<7x8xf32> -> vector<7x32xf32>
    %218 = arith.truncf %217 : vector<7x32xf32> to vector<7x32xbf16>
    %cst_85 = arith.constant dense<0.000000e+00> : vector<7x32xf32>
    %219 = tpu.matmul %218, %148, %cst_85 {dimension_numbers = #tpu.dot_dimension_numbers<[1], [0], [0], [1], [0, 0, 1, 1], [], []>} : vector<7x32xbf16>, vector<32x32xbf16>, vector<7x32xf32> -> vector<7x32xf32>
    %220 = vector.broadcast %150 : vector<1x32xf32> to vector<7x32xf32>
    %221 = arith.addf %219, %220 : vector<7x32xf32>
    %222 = arith.addf %128, %221 : vector<7x32xf32>
    %c0_86 = arith.constant 0 : index
    %c0_87 = arith.constant 0 : index
    %c0_88 = arith.constant 0 : index
    %223 = vector.load %arg16[%c0_86, %c0_87, %c0_88] : memref<1x1x32xf32, #tpu.memory_space<vmem>>, vector<1x1x32xf32>
    %224 = vector.shape_cast %223 : vector<1x1x32xf32> to vector<1x32xf32>
    %c0_89 = arith.constant 0 : index
    %c0_90 = arith.constant 0 : index
    %c0_91 = arith.constant 0 : index
    %225 = vector.load %arg17[%c0_89, %c0_90, %c0_91] : memref<1x1x32xf32, #tpu.memory_space<vmem>>, vector<1x1x32xf32>
    %226 = vector.shape_cast %225 : vector<1x1x32xf32> to vector<1x32xf32>
    %cst_92 = arith.constant dense<0.000000e+00> : vector<7xf32>
    %227 = vector.multi_reduction <add>, %222, %cst_92 [1] : vector<7x32xf32> to vector<7xf32>
    %228 = vector.shape_cast %227 : vector<7xf32> to vector<7x1xf32>
    %cst_93 = arith.constant 3.200000e+01 : f32
    %229 = vector.broadcast %cst_93 : f32 to vector<7x1xf32>
    %230 = arith.divf %228, %229 : vector<7x1xf32>
    %231 = vector.broadcast %230 : vector<7x1xf32> to vector<7x32xf32>
    %232 = arith.subf %222, %231 : vector<7x32xf32>
    %233 = arith.mulf %232, %232 : vector<7x32xf32>
    %cst_94 = arith.constant dense<0.000000e+00> : vector<7xf32>
    %234 = vector.multi_reduction <add>, %233, %cst_94 [1] : vector<7x32xf32> to vector<7xf32>
    %235 = vector.shape_cast %234 : vector<7xf32> to vector<7x1xf32>
    %cst_95 = arith.constant 3.200000e+01 : f32
    %236 = vector.broadcast %cst_95 : f32 to vector<7x1xf32>
    %237 = arith.divf %235, %236 : vector<7x1xf32>
    %238 = vector.broadcast %230 : vector<7x1xf32> to vector<7x32xf32>
    %239 = arith.subf %222, %238 : vector<7x32xf32>
    %cst_96 = arith.constant 9.99999974E-6 : f32
    %240 = vector.broadcast %cst_96 : f32 to vector<7x1xf32>
    %241 = arith.addf %237, %240 : vector<7x1xf32>
    %242 = math.rsqrt %241 : vector<7x1xf32>
    %243 = vector.broadcast %242 : vector<7x1xf32> to vector<7x32xf32>
    %244 = arith.mulf %239, %243 : vector<7x32xf32>
    %245 = vector.broadcast %224 : vector<1x32xf32> to vector<7x32xf32>
    %246 = arith.mulf %244, %245 : vector<7x32xf32>
    %247 = vector.broadcast %226 : vector<1x32xf32> to vector<7x32xf32>
    %248 = arith.addf %246, %247 : vector<7x32xf32>
    %249 = arith.truncf %248 : vector<7x32xf32> to vector<7x32xbf16>
    %c0_97 = arith.constant 0 : index
    %c0_98 = arith.constant 0 : index
    %c0_99 = arith.constant 0 : index
    %250 = vector.load %arg18[%c0_97, %c0_98, %c0_99] : memref<1x32x128xbf16, #tpu.memory_space<vmem>>, vector<1x32x128xbf16>
    %251 = vector.shape_cast %250 : vector<1x32x128xbf16> to vector<32x128xbf16>
    %cst_100 = arith.constant dense<0.000000e+00> : vector<7x128xf32>
    %252 = tpu.matmul %249, %251, %cst_100 {dimension_numbers = #tpu.dot_dimension_numbers<[1], [0], [0], [1], [0, 0, 1, 1], [], []>} : vector<7x32xbf16>, vector<32x128xbf16>, vector<7x128xf32> -> vector<7x128xf32>
    %c0_101 = arith.constant 0 : index
    %c0_102 = arith.constant 0 : index
    %c0_103 = arith.constant 0 : index
    %253 = vector.load %arg19[%c0_101, %c0_102, %c0_103] : memref<1x1x128xf32, #tpu.memory_space<vmem>>, vector<1x1x128xf32>
    %254 = vector.shape_cast %253 : vector<1x1x128xf32> to vector<1x128xf32>
    %255 = vector.broadcast %254 : vector<1x128xf32> to vector<7x128xf32>
    %256 = arith.addf %252, %255 : vector<7x128xf32>
    %cst_104 = arith.constant 0.000000e+00 : f32
    %257 = vector.broadcast %cst_104 : f32 to vector<7x128xf32>
    %258 = arith.maximumf %256, %257 : vector<7x128xf32>
    %259 = arith.truncf %258 : vector<7x128xf32> to vector<7x128xbf16>
    %c0_105 = arith.constant 0 : index
    %c0_106 = arith.constant 0 : index
    %c0_107 = arith.constant 0 : index
    %260 = vector.load %arg20[%c0_105, %c0_106, %c0_107] : memref<1x128x32xbf16, #tpu.memory_space<vmem>>, vector<1x128x32xbf16>
    %261 = vector.shape_cast %260 : vector<1x128x32xbf16> to vector<128x32xbf16>
    %cst_108 = arith.constant dense<0.000000e+00> : vector<7x32xf32>
    %262 = tpu.matmul %259, %261, %cst_108 {dimension_numbers = #tpu.dot_dimension_numbers<[1], [0], [0], [1], [0, 0, 1, 1], [], []>} : vector<7x128xbf16>, vector<128x32xbf16>, vector<7x32xf32> -> vector<7x32xf32>
    %c0_109 = arith.constant 0 : index
    %c0_110 = arith.constant 0 : index
    %c0_111 = arith.constant 0 : index
    %263 = vector.load %arg21[%c0_109, %c0_110, %c0_111] : memref<1x1x32xf32, #tpu.memory_space<vmem>>, vector<1x1x32xf32>
    %264 = vector.shape_cast %263 : vector<1x1x32xf32> to vector<1x32xf32>
    %265 = vector.broadcast %264 : vector<1x32xf32> to vector<7x32xf32>
    %266 = arith.addf %262, %265 : vector<7x32xf32>
    %267 = arith.addf %248, %266 : vector<7x32xf32>
    %c0_112 = arith.constant 0 : index
    %c0_113 = arith.constant 0 : index
    %c0_114 = arith.constant 0 : index
    %268 = vector.load %arg22[%c0_112, %c0_113, %c0_114] : memref<1x1x32xf32, #tpu.memory_space<vmem>>, vector<1x1x32xf32>
    %269 = vector.shape_cast %268 : vector<1x1x32xf32> to vector<1x32xf32>
    %c0_115 = arith.constant 0 : index
    %c0_116 = arith.constant 0 : index
    %c0_117 = arith.constant 0 : index
    %270 = vector.load %arg23[%c0_115, %c0_116, %c0_117] : memref<1x1x32xf32, #tpu.memory_space<vmem>>, vector<1x1x32xf32>
    %271 = vector.shape_cast %270 : vector<1x1x32xf32> to vector<1x32xf32>
    %cst_118 = arith.constant dense<0.000000e+00> : vector<7xf32>
    %272 = vector.multi_reduction <add>, %267, %cst_118 [1] : vector<7x32xf32> to vector<7xf32>
    %273 = vector.shape_cast %272 : vector<7xf32> to vector<7x1xf32>
    %cst_119 = arith.constant 3.200000e+01 : f32
    %274 = vector.broadcast %cst_119 : f32 to vector<7x1xf32>
    %275 = arith.divf %273, %274 : vector<7x1xf32>
    %276 = vector.broadcast %275 : vector<7x1xf32> to vector<7x32xf32>
    %277 = arith.subf %267, %276 : vector<7x32xf32>
    %278 = arith.mulf %277, %277 : vector<7x32xf32>
    %cst_120 = arith.constant dense<0.000000e+00> : vector<7xf32>
    %279 = vector.multi_reduction <add>, %278, %cst_120 [1] : vector<7x32xf32> to vector<7xf32>
    %280 = vector.shape_cast %279 : vector<7xf32> to vector<7x1xf32>
    %cst_121 = arith.constant 3.200000e+01 : f32
    %281 = vector.broadcast %cst_121 : f32 to vector<7x1xf32>
    %282 = arith.divf %280, %281 : vector<7x1xf32>
    %283 = vector.broadcast %275 : vector<7x1xf32> to vector<7x32xf32>
    %284 = arith.subf %267, %283 : vector<7x32xf32>
    %cst_122 = arith.constant 9.99999974E-6 : f32
    %285 = vector.broadcast %cst_122 : f32 to vector<7x1xf32>
    %286 = arith.addf %282, %285 : vector<7x1xf32>
    %287 = math.rsqrt %286 : vector<7x1xf32>
    %288 = vector.broadcast %287 : vector<7x1xf32> to vector<7x32xf32>
    %289 = arith.mulf %284, %288 : vector<7x32xf32>
    %290 = vector.broadcast %269 : vector<1x32xf32> to vector<7x32xf32>
    %291 = arith.mulf %289, %290 : vector<7x32xf32>
    %292 = vector.broadcast %271 : vector<1x32xf32> to vector<7x32xf32>
    %293 = arith.addf %291, %292 : vector<7x32xf32>
    %c1_i32 = arith.constant 1 : i32
    %294 = arith.cmpi slt, %arg1, %c1_i32 : i32
    %295 = arith.extui %294 : i1 to i32
    %c0_i32_123 = arith.constant 0 : i32
    %296 = arith.cmpi ne, %295, %c0_i32_123 : i32
    scf.if %296 {
      %c0_126 = arith.constant 0 : index
      %c0_127 = arith.constant 0 : index
      %300 = vector.load %arg29[%c0_126, %c0_127] : memref<7x32xf32, #tpu.memory_space<vmem>>, vector<7x32xf32>
      tpu.vector_store %arg29[%c0_126, %c0_127], %293 {strides = array<i32>} : memref<7x32xf32, #tpu.memory_space<vmem>>, vector<7x32xf32>,
    } else {
    }
    %c1_i32_124 = arith.constant 1 : i32
    %297 = arith.cmpi eq, %arg1, %c1_i32_124 : i32
    %298 = arith.extui %297 : i1 to i32
    %c0_i32_125 = arith.constant 0 : i32
    %299 = arith.cmpi ne, %298, %c0_i32_125 : i32
    scf.if %299 {
      %c0_126 = arith.constant 0 : index
      %c0_127 = arith.constant 0 : index
      %300 = vector.load %arg24[%c0_126, %c0_127] : memref<1x32xf32, #tpu.memory_space<vmem>>, vector<1x32xf32>
      %c0_128 = arith.constant 0 : index
      %c0_129 = arith.constant 0 : index
      %301 = vector.load %arg25[%c0_128, %c0_129] : memref<1x32xf32, #tpu.memory_space<vmem>>, vector<1x32xf32>
      %cst_130 = arith.constant dense<0.000000e+00> : vector<7xf32>
      %302 = vector.multi_reduction <add>, %293, %cst_130 [1] : vector<7x32xf32> to vector<7xf32>
      %303 = vector.shape_cast %302 : vector<7xf32> to vector<7x1xf32>
      %cst_131 = arith.constant 3.200000e+01 : f32
      %304 = vector.broadcast %cst_131 : f32 to vector<7x1xf32>
      %305 = arith.divf %303, %304 : vector<7x1xf32>
      %306 = vector.broadcast %305 : vector<7x1xf32> to vector<7x32xf32>
      %307 = arith.subf %293, %306 : vector<7x32xf32>
      %308 = arith.mulf %307, %307 : vector<7x32xf32>
      %cst_132 = arith.constant dense<0.000000e+00> : vector<7xf32>
      %309 = vector.multi_reduction <add>, %308, %cst_132 [1] : vector<7x32xf32> to vector<7xf32>
      %310 = vector.shape_cast %309 : vector<7xf32> to vector<7x1xf32>
      %cst_133 = arith.constant 3.200000e+01 : f32
      %311 = vector.broadcast %cst_133 : f32 to vector<7x1xf32>
      %312 = arith.divf %310, %311 : vector<7x1xf32>
      %313 = vector.broadcast %305 : vector<7x1xf32> to vector<7x32xf32>
      %314 = arith.subf %293, %313 : vector<7x32xf32>
      %cst_134 = arith.constant 9.99999974E-6 : f32
      %315 = vector.broadcast %cst_134 : f32 to vector<7x1xf32>
      %316 = arith.addf %312, %315 : vector<7x1xf32>
      %317 = math.rsqrt %316 : vector<7x1xf32>
      %318 = vector.broadcast %317 : vector<7x1xf32> to vector<7x32xf32>
      %319 = arith.mulf %314, %318 : vector<7x32xf32>
      %320 = vector.broadcast %300 : vector<1x32xf32> to vector<7x32xf32>
      %321 = arith.mulf %319, %320 : vector<7x32xf32>
      %322 = vector.broadcast %301 : vector<1x32xf32> to vector<7x32xf32>
      %323 = arith.addf %321, %322 : vector<7x32xf32>
      %324 = arith.truncf %323 : vector<7x32xf32> to vector<7x32xbf16>
      %c0_135 = arith.constant 0 : index
      %c0_136 = arith.constant 0 : index
      %325 = vector.load %arg26[%c0_135, %c0_136] : memref<32x128xbf16, #tpu.memory_space<vmem>>, vector<32x128xbf16>
      %cst_137 = arith.constant dense<0.000000e+00> : vector<7x128xf32>
      %326 = tpu.matmul %324, %325, %cst_137 {dimension_numbers = #tpu.dot_dimension_numbers<[1], [0], [0], [1], [0, 0, 1, 1], [], []>} : vector<7x32xbf16>, vector<32x128xbf16>, vector<7x128xf32> -> vector<7x128xf32>
      %c0_138 = arith.constant 0 : index
      %c0_139 = arith.constant 0 : index
      %327 = vector.load %arg27[%c0_138, %c0_139] : memref<1x128xf32, #tpu.memory_space<vmem>>, vector<1x128xf32>
      %328 = vector.broadcast %327 : vector<1x128xf32> to vector<7x128xf32>
      %329 = arith.addf %326, %328 : vector<7x128xf32>
      %c0_140 = arith.constant 0 : index
      %c0_141 = arith.constant 0 : index
      %c0_142 = arith.constant 0 : index
      %330 = vector.load %arg28[%c0_140, %c0_141, %c0_142] : memref<1x7x128xf32, #tpu.memory_space<vmem>>, vector<1x7x128xf32>
      %331 = vector.shape_cast %330 : vector<1x7x128xf32> to vector<7x128xf32>
      %332 = vector.shape_cast %329 : vector<7x128xf32> to vector<1x7x128xf32>
      tpu.vector_store %arg28[%c0_140, %c0_141, %c0_142], %332 {strides = array<i32>} : memref<1x7x128xf32, #tpu.memory_space<vmem>>, vector<1x7x128xf32>,
    } else {
    }
    return
  }
  func.func @transform_0(%arg0: i32, %arg1: i32) -> (i32, i32, i32) {
    %c0_i32 = arith.constant 0 : i32
    %c0_i32_0 = arith.constant 0 : i32
    %c0_i32_1 = arith.constant 0 : i32
    return %arg0, %c0_i32, %c0_i32_0 : i32, i32, i32
  }
  func.func @transform_1(%arg0: i32, %arg1: i32) -> (i32, i32, i32) {
    %c0_i32 = arith.constant 0 : i32
    %c0_i32_0 = arith.constant 0 : i32
    %c0_i32_1 = arith.constant 0 : i32
    return %arg0, %c0_i32, %c0_i32_0 : i32, i32, i32
  }
  func.func @transform_2(%arg0: i32, %arg1: i32) -> (i32, i32, i32) {
    %c0_i32 = arith.constant 0 : i32
    %c0_i32_0 = arith.constant 0 : i32
    %c0_i32_1 = arith.constant 0 : i32
    return %arg1, %c0_i32, %c0_i32_0 : i32, i32, i32
  }
  func.func @transform_3(%arg0: i32, %arg1: i32) -> (i32, i32, i32) {
    %c0_i32 = arith.constant 0 : i32
    %c0_i32_0 = arith.constant 0 : i32
    %c0_i32_1 = arith.constant 0 : i32
    return %arg1, %c0_i32, %c0_i32_0 : i32, i32, i32
  }
  func.func @transform_4(%arg0: i32, %arg1: i32) -> (i32, i32, i32) {
    %c0_i32 = arith.constant 0 : i32
    %c0_i32_0 = arith.constant 0 : i32
    %c0_i32_1 = arith.constant 0 : i32
    return %arg1, %c0_i32, %c0_i32_0 : i32, i32, i32
  }
  func.func @transform_5(%arg0: i32, %arg1: i32) -> (i32, i32, i32) {
    %c0_i32 = arith.constant 0 : i32
    %c0_i32_0 = arith.constant 0 : i32
    %c0_i32_1 = arith.constant 0 : i32
    return %arg1, %c0_i32, %c0_i32_0 : i32, i32, i32
  }
  func.func @transform_6(%arg0: i32, %arg1: i32) -> (i32, i32, i32) {
    %c0_i32 = arith.constant 0 : i32
    %c0_i32_0 = arith.constant 0 : i32
    %c0_i32_1 = arith.constant 0 : i32
    return %arg1, %c0_i32, %c0_i32_0 : i32, i32, i32
  }
  func.func @transform_7(%arg0: i32, %arg1: i32) -> (i32, i32, i32) {
    %c0_i32 = arith.constant 0 : i32
    %c0_i32_0 = arith.constant 0 : i32
    %c0_i32_1 = arith.constant 0 : i32
    return %arg1, %c0_i32, %c0_i32_0 : i32, i32, i32
  }
  func.func @transform_8(%arg0: i32, %arg1: i32) -> (i32, i32, i32) {
    %c0_i32 = arith.constant 0 : i32
    %c0_i32_0 = arith.constant 0 : i32
    %c0_i32_1 = arith.constant 0 : i32
    return %arg1, %c0_i32, %c0_i32_0 : i32, i32, i32
  }
  func.func @transform_9(%arg0: i32, %arg1: i32) -> (i32, i32, i32) {
    %c0_i32 = arith.constant 0 : i32
    %c0_i32_0 = arith.constant 0 : i32
    %c0_i32_1 = arith.constant 0 : i32
    return %arg1, %c0_i32, %c0_i32_0 : i32, i32, i32
  }
  func.func @transform_10(%arg0: i32, %arg1: i32) -> (i32, i32, i32) {
    %c0_i32 = arith.constant 0 : i32
    %c0_i32_0 = arith.constant 0 : i32
    %c0_i32_1 = arith.constant 0 : i32
    return %arg1, %c0_i32, %c0_i32_0 : i32, i32, i32
  }
  func.func @transform_11(%arg0: i32, %arg1: i32) -> (i32, i32, i32) {
    %c0_i32 = arith.constant 0 : i32
    %c0_i32_0 = arith.constant 0 : i32
    %c0_i32_1 = arith.constant 0 : i32
    return %arg1, %c0_i32, %c0_i32_0 : i32, i32, i32
  }
  func.func @transform_12(%arg0: i32, %arg1: i32) -> (i32, i32, i32) {
    %c0_i32 = arith.constant 0 : i32
    %c0_i32_0 = arith.constant 0 : i32
    %c0_i32_1 = arith.constant 0 : i32
    return %arg1, %c0_i32, %c0_i32_0 : i32, i32, i32
  }
  func.func @transform_13(%arg0: i32, %arg1: i32) -> (i32, i32, i32) {
    %c0_i32 = arith.constant 0 : i32
    %c0_i32_0 = arith.constant 0 : i32
    %c0_i32_1 = arith.constant 0 : i32
    return %arg1, %c0_i32, %c0_i32_0 : i32, i32, i32
  }
  func.func @transform_14(%arg0: i32, %arg1: i32) -> (i32, i32, i32) {
    %c0_i32 = arith.constant 0 : i32
    %c0_i32_0 = arith.constant 0 : i32
    %c0_i32_1 = arith.constant 0 : i32
    return %arg1, %c0_i32, %c0_i32_0 : i32, i32, i32
  }
  func.func @transform_15(%arg0: i32, %arg1: i32) -> (i32, i32, i32) {
    %c0_i32 = arith.constant 0 : i32
    %c0_i32_0 = arith.constant 0 : i32
    %c0_i32_1 = arith.constant 0 : i32
    return %arg1, %c0_i32, %c0_i32_0 : i32, i32, i32
  }
  func.func @transform_16(%arg0: i32, %arg1: i32) -> (i32, i32, i32) {
    %c0_i32 = arith.constant 0 : i32
    %c0_i32_0 = arith.constant 0 : i32
    %c0_i32_1 = arith.constant 0 : i32
    return %arg1, %c0_i32, %c0_i32_0 : i32, i32, i32
  }
  func.func @transform_17(%arg0: i32, %arg1: i32) -> (i32, i32, i32) {
    %c0_i32 = arith.constant 0 : i32
    %c0_i32_0 = arith.constant 0 : i32
    %c0_i32_1 = arith.constant 0 : i32
    return %arg1, %c0_i32, %c0_i32_0 : i32, i32, i32
  }
  func.func @transform_18(%arg0: i32, %arg1: i32) -> (i32, i32, i32) {
    %c0_i32 = arith.constant 0 : i32
    %c0_i32_0 = arith.constant 0 : i32
    %c0_i32_1 = arith.constant 0 : i32
    return %arg1, %c0_i32, %c0_i32_0 : i32, i32, i32
  }
  func.func @transform_19(%arg0: i32, %arg1: i32) -> (i32, i32, i32) {
    %c0_i32 = arith.constant 0 : i32
    %c0_i32_0 = arith.constant 0 : i32
    %c0_i32_1 = arith.constant 0 : i32
    return %arg1, %c0_i32, %c0_i32_0 : i32, i32, i32
  }
  func.func @transform_20(%arg0: i32, %arg1: i32) -> (i32, i32, i32) {
    %c0_i32 = arith.constant 0 : i32
    %c0_i32_0 = arith.constant 0 : i32
    %c0_i32_1 = arith.constant 0 : i32
    return %arg1, %c0_i32, %c0_i32_0 : i32, i32, i32
  }
  func.func @transform_21(%arg0: i32, %arg1: i32) -> (i32, i32, i32) {
    %c0_i32 = arith.constant 0 : i32
    %c0_i32_0 = arith.constant 0 : i32
    %c0_i32_1 = arith.constant 0 : i32
    return %arg1, %c0_i32, %c0_i32_0 : i32, i32, i32
  }
  func.func @transform_22(%arg0: i32, %arg1: i32) -> (i32, i32) {
    %c0_i32 = arith.constant 0 : i32
    %c0_i32_0 = arith.constant 0 : i32
    %c0_i32_1 = arith.constant 0 : i32
    return %c0_i32, %c0_i32_0 : i32, i32
  }
  func.func @transform_23(%arg0: i32, %arg1: i32) -> (i32, i32) {
    %c0_i32 = arith.constant 0 : i32
    %c0_i32_0 = arith.constant 0 : i32
    %c0_i32_1 = arith.constant 0 : i32
    return %c0_i32, %c0_i32_0 : i32, i32
  }
  func.func @transform_24(%arg0: i32, %arg1: i32) -> (i32, i32) {
    %c0_i32 = arith.constant 0 : i32
    %c0_i32_0 = arith.constant 0 : i32
    %c0_i32_1 = arith.constant 0 : i32
    return %c0_i32, %c0_i32_0 : i32, i32
  }
  func.func @transform_25(%arg0: i32, %arg1: i32) -> (i32, i32) {
    %c0_i32 = arith.constant 0 : i32
    %c0_i32_0 = arith.constant 0 : i32
    %c0_i32_1 = arith.constant 0 : i32
    return %c0_i32, %c0_i32_0 : i32, i32
  }
  func.func @transform_26(%arg0: i32, %arg1: i32) -> (i32, i32, i32) {
    %c0_i32 = arith.constant 0 : i32
    %c0_i32_0 = arith.constant 0 : i32
    %c0_i32_1 = arith.constant 0 : i32
    return %arg0, %c0_i32, %c0_i32_0 : i32, i32, i32
  }
}

</mosaic_0001>

<llo_original>
// kernel: rubik_forward.2
$region0: #{rubik_forward.2}
  #allocation0 [shape = 'u32[]', space=smem, size = 0x4, offset = 0x4, fixed_abs, tag = 'smem constant byte address 0x4 - core index']
  #allocation1 [shape = 'u32[144,128]{1,0:T(1,128)}', space=vmem, size = 0x12000, scoped, tag = 'internal scratch']
  %s0 = inlined_call_operand.vmem [shape: f32[2,48,9], index: 0, kind: input, shape index: {}]
  %s1 = inlined_call_operand.vmem [shape: bf16[9,32], index: 1, kind: input, shape index: {}]
  %s2 = inlined_call_operand.vmem [shape: f32[1,32], index: 2, kind: input, shape index: {}]
  %s3 = inlined_call_operand.vmem [shape: bf16[9,288], index: 3, kind: input, shape index: {}]
  %s4 = inlined_call_operand.vmem [shape: f32[1,32], index: 4, kind: input, shape index: {}]
  %s5 = inlined_call_operand.vmem [shape: f32[1,32], index: 5, kind: input, shape index: {}]
  %s6 = inlined_call_operand.vmem [shape: f32[8,32], index: 6, kind: input, shape index: {}]
  %s7 = inlined_call_operand.vmem [shape: bf16[2,32,96], index: 7, kind: input, shape index: {}]
  %s8 = inlined_call_operand.vmem [shape: f32[2,1,96], index: 8, kind: input, shape index: {}]
  %s9 = inlined_call_operand.vmem [shape: bf16[2,32,32], index: 9, kind: input, shape index: {}]
  %s10 = inlined_call_operand.vmem [shape: f32[2,1,32], index: 10, kind: input, shape index: {}]
  %s11 = inlined_call_operand.vmem [shape: f32[2,1,32], index: 11, kind: input, shape index: {}]
  %s12 = inlined_call_operand.vmem [shape: f32[2,1,32], index: 12, kind: input, shape index: {}]
  %s13 = inlined_call_operand.vmem [shape: bf16[2,32,128], index: 13, kind: input, shape index: {}]
  %s14 = inlined_call_operand.vmem [shape: f32[2,1,128], index: 14, kind: input, shape index: {}]
  %s15 = inlined_call_operand.vmem [shape: bf16[2,128,32], index: 15, kind: input, shape index: {}]
  %s16 = inlined_call_operand.vmem [shape: f32[2,1,32], index: 16, kind: input, shape index: {}]
  %s17 = inlined_call_operand.vmem [shape: f32[2,1,32], index: 17, kind: input, shape index: {}]
  %s18 = inlined_call_operand.vmem [shape: f32[2,1,32], index: 18, kind: input, shape index: {}]
  %s19 = inlined_call_operand.vmem [shape: f32[1,32], index: 19, kind: input, shape index: {}]
  %s20 = inlined_call_operand.vmem [shape: f32[1,32], index: 20, kind: input, shape index: {}]
  %s21 = inlined_call_operand.vmem [shape: f32[2,8,32], index: 21, kind: output, shape index: {}]
  %s22 = sld [smem:[#allocation0]]
  $region129: #{rubik_forward.2} parent=0
    _
  %s24 = ssub.s32 1, %s22
  %s25 = scalar_select 0, %s24, %s22
  loop: start=0, step=1, limit=6
  $region2: #{rubik_forward.2} parent=0 // loop_pre_header
    _
  $region3: #{rubik_forward.2} parent=0 // loop_header
    %s27 = sphi 0, %s31
    %p28 = scmp.ge.s32.totalorder %s27, 6
    %s34 = sphi 0, %s46
    %s35 = sphi 0, %s42
    %s36 = sphi 0, %s34
    %s37 = sphi 0, %s35
    %s38 = sphi 0, %s36
    %s39 = sphi 0, %s37
    %s49 = sphi 0, %s51
    %s52 = sphi 0, %s49
    %s53 = sphi 0, %s52
    %s69 = sphi 0, %s53
    %s73 = sphi 0, %s73
    %s75 = sphi 0, %s73
    %s76 = sphi 0, %s75
    %s90 = sphi 0, %s76
    %s94 = sphi 0, %s94
    %s96 = sphi 0, %s94
    %s97 = sphi 0, %s96
    %s111 = sphi 0, %s97
    %s115 = sphi 0, %s115
    %s117 = sphi 0, %s115
    %s118 = sphi 0, %s117
    %s132 = sphi 0, %s118
    %s136 = sphi 0, %s136
    %s138 = sphi 0, %s136
    %s139 = sphi 0, %s138
    %s153 = sphi 0, %s139
    %s157 = sphi 0, %s157
    %s159 = sphi 0, %s157
    %s160 = sphi 0, %s159
    %s174 = sphi 0, %s160
    %s178 = sphi 0, %s178
    %s180 = sphi 0, %s178
    %s181 = sphi 0, %s180
    %s195 = sphi 0, %s181
    %s201 = sphi 0, %s203
    %s204 = sphi 0, %s201
    %s205 = sphi 0, %s204
    %s221 = sphi 0, %s205
    %s227 = sphi 0, %s229
    %s230 = sphi 0, %s227
    %s231 = sphi 0, %s230
    %s247 = sphi 0, %s231
    %s253 = sphi 0, %s255
    %s256 = sphi 0, %s253
    %s257 = sphi 0, %s256
    %s273 = sphi 0, %s257
    %s279 = sphi 0, %s281
    %s282 = sphi 0, %s279
    %s283 = sphi 0, %s282
    %s299 = sphi 0, %s283
    %s305 = sphi 0, %s307
    %s308 = sphi 0, %s305
    %s309 = sphi 0, %s308
    %s325 = sphi 0, %s309
    %s331 = sphi 0, %s333
    %s334 = sphi 0, %s331
    %s335 = sphi 0, %s334
    %s351 = sphi 0, %s335
    %s357 = sphi 0, %s359
    %s360 = sphi 0, %s357
    %s361 = sphi 0, %s360
    %s377 = sphi 0, %s361
    %s383 = sphi 0, %s385
    %s386 = sphi 0, %s383
    %s387 = sphi 0, %s386
    %s403 = sphi 0, %s387
    %s409 = sphi 0, %s411
    %s412 = sphi 0, %s409
    %s413 = sphi 0, %s412
    %s429 = sphi 0, %s413
    %s435 = sphi 0, %s437
    %s438 = sphi 0, %s435
    %s439 = sphi 0, %s438
    %s455 = sphi 0, %s439
    %s461 = sphi 0, %s463
    %s464 = sphi 0, %s461
    %s465 = sphi 0, %s464
    %s481 = sphi 0, %s465
    %s487 = sphi 0, %s489
    %s490 = sphi 0, %s487
    %s491 = sphi 0, %s490
    %s507 = sphi 0, %s491
    %s511 = sphi 0, %s511
    %s513 = sphi 0, %s511
    %s514 = sphi 0, %s513
    %s528 = sphi 0, %s514
    %s532 = sphi 0, %s532
    %s534 = sphi 0, %s532
    %s535 = sphi 0, %s534
    %s549 = sphi 0, %s535
    %s555 = sphi 0, %s557
    %s558 = sphi 0, %s555
    %s559 = sphi 0, %s558
    %s575 = sphi 0, %s559
  $region4: #{rubik_forward.2} parent=0 // loop_header_branch
    %30 = sbr.rel (%p28) target = $region8
  $region5: #{rubik_forward.2} parent=0 // loop_body
    %s32 = ssub.s32 %s27, 1
    %s33 = ssub.s32 %s27, 2
    %s40 = sadd.s32 1, %s35
    %p41 = scmp.ge.s32.totalorder %s40, 2
    %s42 = scalar_select %p41, 0, %s40
    %s43 = sadd.s32 1, %s34
    %s44 = scalar_select %p41, %s43, %s34
    %p45 = scmp.ge.s32.totalorder %s44, 2
    %s46 = scalar_select %p45, 0, %s44
    %s47 = ssub.s32 %s34, %s46
    %p48 = scmp.eq.s32.totalorder %s47, 0
    %s50 = sadd.s32 %s49, 1
    %s51 = scalar_select %p48, %s49, %s50
    %p54 = pneg %p48
    %p55 = scmp.eq.s32.totalorder %s27, 3
    %p56 = por %p54, %p55
    %p57 = scmp.ne.s32.totalorder %s49, %s52
    %p58 = scmp.eq.s32.totalorder %s27, 0
    %p59 = por %p57, %p58
    %p60 = scmp.ne.s32.totalorder %s49, %s52
    %p61 = scmp.eq.s32.totalorder %s32, 3
    %p62 = por %p60, %p61
    %p63 = scmp.ne.s32.totalorder %s52, %s53
    %p64 = scmp.eq.s32.totalorder %s32, 0
    %p65 = por %p63, %p64
    %p66 = scmp.ne.s32.totalorder %s52, %s53
    %p67 = scmp.eq.s32.totalorder %s33, 3
    %p68 = por %p66, %p67
    %p70 = scmp.ne.s32.totalorder %s53, %s69
    %p71 = scmp.eq.s32.totalorder %s33, 0
    %p72 = por %p70, %p71
    %s74 = sadd.s32 %s73, 1
    %p77 = scmp.eq.s32.totalorder %s27, 3
    %p78 = scmp.ne.s32.totalorder %s73, %s75
    %p79 = scmp.eq.s32.totalorder %s27, 0
    %p80 = por %p78, %p79
    %p81 = scmp.ne.s32.totalorder %s73, %s75
    %p82 = scmp.eq.s32.totalorder %s32, 3
    %p83 = por %p81, %p82
    %p84 = scmp.ne.s32.totalorder %s75, %s76
    %p85 = scmp.eq.s32.totalorder %s32, 0
    %p86 = por %p84, %p85
    %p87 = scmp.ne.s32.totalorder %s75, %s76
    %p88 = scmp.eq.s32.totalorder %s33, 3
    %p89 = por %p87, %p88
    %p91 = scmp.ne.s32.totalorder %s76, %s90
    %p92 = scmp.eq.s32.totalorder %s33, 0
    %p93 = por %p91, %p92
    %s95 = sadd.s32 %s94, 1
    %p98 = scmp.eq.s32.totalorder %s27, 3
    %p99 = scmp.ne.s32.totalorder %s94, %s96
    %p100 = scmp.eq.s32.totalorder %s27, 0
    %p101 = por %p99, %p100
    %p102 = scmp.ne.s32.totalorder %s94, %s96
    %p103 = scmp.eq.s32.totalorder %s32, 3
    %p104 = por %p102, %p103
    %p105 = scmp.ne.s32.totalorder %s96, %s97
    %p106 = scmp.eq.s32.totalorder %s32, 0
    %p107 = por %p105, %p106
    %p108 = scmp.ne.s32.totalorder %s96, %s97
    %p109 = scmp.eq.s32.totalorder %s33, 3
    %p110 = por %p108, %p109
    %p112 = scmp.ne.s32.totalorder %s97, %s111
    %p113 = scmp.eq.s32.totalorder %s33, 0
    %p114 = por %p112, %p113
    %s116 = sadd.s32 %s115, 1
    %p119 = scmp.eq.s32.totalorder %s27, 3
    %p120 = scmp.ne.s32.totalorder %s115, %s117
    %p121 = scmp.eq.s32.totalorder %s27, 0
    %p122 = por %p120, %p121
    %p123 = scmp.ne.s32.totalorder %s115, %s117
    %p124 = scmp.eq.s32.totalorder %s32, 3
    %p125 = por %p123, %p124
    %p126 = scmp.ne.s32.totalorder %s117, %s118
    %p127 = scmp.eq.s32.totalorder %s32, 0
    %p128 = por %p126, %p127
    %p129 = scmp.ne.s32.totalorder %s117, %s118
    %p130 = scmp.eq.s32.totalorder %s33, 3
    %p131 = por %p129, %p130
    %p133 = scmp.ne.s32.totalorder %s118, %s132
    %p134 = scmp.eq.s32.totalorder %s33, 0
    %p135 = por %p133, %p134
    %s137 = sadd.s32 %s136, 1
    %p140 = scmp.eq.s32.totalorder %s27, 3
    %p141 = scmp.ne.s32.totalorder %s136, %s138
    %p142 = scmp.eq.s32.totalorder %s27, 0
    %p143 = por %p141, %p142
    %p144 = scmp.ne.s32.totalorder %s136, %s138
    %p145 = scmp.eq.s32.totalorder %s32, 3
    %p146 = por %p144, %p145
    %p147 = scmp.ne.s32.totalorder %s138, %s139
    %p148 = scmp.eq.s32.totalorder %s32, 0
    %p149 = por %p147, %p148
    %p150 = scmp.ne.s32.totalorder %s138, %s139
    %p151 = scmp.eq.s32.totalorder %s33, 3
    %p152 = por %p150, %p151
    %p154 = scmp.ne.s32.totalorder %s139, %s153
    %p155 = scmp.eq.s32.totalorder %s33, 0
    %p156 = por %p154, %p155
    %s158 = sadd.s32 %s157, 1
    %p161 = scmp.eq.s32.totalorder %s27, 3
    %p162 = scmp.ne.s32.totalorder %s157, %s159
    %p163 = scmp.eq.s32.totalorder %s27, 0
    %p164 = por %p162, %p163
    %p165 = scmp.ne.s32.totalorder %s157, %s159
    %p166 = scmp.eq.s32.totalorder %s32, 3
    %p167 = por %p165, %p166
    %p168 = scmp.ne.s32.totalorder %s159, %s160
    %p169 = scmp.eq.s32.totalorder %s32, 0
    %p170 = por %p168, %p169
    %p171 = scmp.ne.s32.totalorder %s159, %s160
    %p172 = scmp.eq.s32.totalorder %s33, 3
    %p173 = por %p171, %p172
    %p175 = scmp.ne.s32.totalorder %s160, %s174
    %p176 = scmp.eq.s32.totalorder %s33, 0
    %p177 = por %p175, %p176
    %s179 = sadd.s32 %s178, 1
    %p182 = scmp.eq.s32.totalorder %s27, 3
    %p183 = scmp.ne.s32.totalorder %s178, %s180
    %p184 = scmp.eq.s32.totalorder %s27, 0
    %p185 = por %p183, %p184
    %p186 = scmp.ne.s32.totalorder %s178, %s180
    %p187 = scmp.eq.s32.totalorder %s32, 3
    %p188 = por %p186, %p187
    %p189 = scmp.ne.s32.totalorder %s180, %s181
    %p190 = scmp.eq.s32.totalorder %s32, 0
    %p191 = por %p189, %p190
    %p192 = scmp.ne.s32.totalorder %s180, %s181
    %p193 = scmp.eq.s32.totalorder %s33, 3
    %p194 = por %p192, %p193
    %p196 = scmp.ne.s32.totalorder %s181, %s195
    %p197 = scmp.eq.s32.totalorder %s33, 0
    %p198 = por %p196, %p197
    %s199 = ssub.s32 %s35, %s42
    %p200 = scmp.eq.s32.totalorder %s199, 0
    %s202 = sadd.s32 %s201, 1
    %s203 = scalar_select %p200, %s201, %s202
    %p206 = pneg %p200
    %p207 = scmp.eq.s32.totalorder %s27, 3
    %p208 = por %p206, %p207
    %p209 = scmp.ne.s32.totalorder %s201, %s204
    %p210 = scmp.eq.s32.totalorder %s27, 0
    %p211 = por %p209, %p210
    %p212 = scmp.ne.s32.totalorder %s201, %s204
    %p213 = scmp.eq.s32.totalorder %s32, 3
    %p214 = por %p212, %p213
    %p215 = scmp.ne.s32.totalorder %s204, %s205
    %p216 = scmp.eq.s32.totalorder %s32, 0
    %p217 = por %p215, %p216
    %p218 = scmp.ne.s32.totalorder %s204, %s205
    %p219 = scmp.eq.s32.totalorder %s33, 3
    %p220 = por %p218, %p219
    %p222 = scmp.ne.s32.totalorder %s205, %s221
    %p223 = scmp.eq.s32.totalorder %s33, 0
    %p224 = por %p222, %p223
    %s225 = ssub.s32 %s35, %s42
    %p226 = scmp.eq.s32.totalorder %s225, 0
    %s228 = sadd.s32 %s227, 1
    %s229 = scalar_select %p226, %s227, %s228
    %p232 = pneg %p226
    %p233 = scmp.eq.s32.totalorder %s27, 3
    %p234 = por %p232, %p233
    %p235 = scmp.ne.s32.totalorder %s227, %s230
    %p236 = scmp.eq.s32.totalorder %s27, 0
    %p237 = por %p235, %p236
    %p238 = scmp.ne.s32.totalorder %s227, %s230
    %p239 = scmp.eq.s32.totalorder %s32, 3
    %p240 = por %p238, %p239
    %p241 = scmp.ne.s32.totalorder %s230, %s231
    %p242 = scmp.eq.s32.totalorder %s32, 0
    %p243 = por %p241, %p242
    %p244 = scmp.ne.s32.totalorder %s230, %s231
    %p245 = scmp.eq.s32.totalorder %s33, 3
    %p246 = por %p244, %p245
    %p248 = scmp.ne.s32.totalorder %s231, %s247
    %p249 = scmp.eq.s32.totalorder %s33, 0
    %p250 = por %p248, %p249
    %s251 = ssub.s32 %s35, %s42
    %p252 = scmp.eq.s32.totalorder %s251, 0
    %s254 = sadd.s32 %s253, 1
    %s255 = scalar_select %p252, %s253, %s254
    %p258 = pneg %p252
    %p259 = scmp.eq.s32.totalorder %s27, 3
    %p260 = por %p258, %p259
    %p261 = scmp.ne.s32.totalorder %s253, %s256
    %p262 = scmp.eq.s32.totalorder %s27, 0
    %p263 = por %p261, %p262
    %p264 = scmp.ne.s32.totalorder %s253, %s256
    %p265 = scmp.eq.s32.totalorder %s32, 3
    %p266 = por %p264, %p265
    %p267 = scmp.ne.s32.totalorder %s256, %s257
    %p268 = scmp.eq.s32.totalorder %s32, 0
    %p269 = por %p267, %p268
    %p270 = scmp.ne.s32.totalorder %s256, %s257
    %p271 = scmp.eq.s32.totalorder %s33, 3
    %p272 = por %p270, %p271
    %p274 = scmp.ne.s32.totalorder %s257, %s273
    %p275 = scmp.eq.s32.totalorder %s33, 0
    %p276 = por %p274, %p275
    %s277 = ssub.s32 %s35, %s42
    %p278 = scmp.eq.s32.totalorder %s277, 0
    %s280 = sadd.s32 %s279, 1
    %s281 = scalar_select %p278, %s279, %s280
    %p284 = pneg %p278
    %p285 = scmp.eq.s32.totalorder %s27, 3
    %p286 = por %p284, %p285
    %p287 = scmp.ne.s32.totalorder %s279, %s282
    %p288 = scmp.eq.s32.totalorder %s27, 0
    %p289 = por %p287, %p288
    %p290 = scmp.ne.s32.totalorder %s279, %s282
    %p291 = scmp.eq.s32.totalorder %s32, 3
    %p292 = por %p290, %p291
    %p293 = scmp.ne.s32.totalorder %s282, %s283
    %p294 = scmp.eq.s32.totalorder %s32, 0
    %p295 = por %p293, %p294
    %p296 = scmp.ne.s32.totalorder %s282, %s283
    %p297 = scmp.eq.s32.totalorder %s33, 3
    %p298 = por %p296, %p297
    %p300 = scmp.ne.s32.totalorder %s283, %s299
    %p301 = scmp.eq.s32.totalorder %s33, 0
    %p302 = por %p300, %p301
    %s303 = ssub.s32 %s35, %s42
    %p304 = scmp.eq.s32.totalorder %s303, 0
    %s306 = sadd.s32 %s305, 1
    %s307 = scalar_select %p304, %s305, %s306
    %p310 = pneg %p304
    %p311 = scmp.eq.s32.totalorder %s27, 3
    %p312 = por %p310, %p311
    %p313 = scmp.ne.s32.totalorder %s305, %s308
    %p314 = scmp.eq.s32.totalorder %s27, 0
    %p315 = por %p313, %p314
    %p316 = scmp.ne.s32.totalorder %s305, %s308
    %p317 = scmp.eq.s32.totalorder %s32, 3
    %p318 = por %p316, %p317
    %p319 = scmp.ne.s32.totalorder %s308, %s309
    %p320 = scmp.eq.s32.totalorder %s32, 0
    %p321 = por %p319, %p320
    %p322 = scmp.ne.s32.totalorder %s308, %s309
    %p323 = scmp.eq.s32.totalorder %s33, 3
    %p324 = por %p322, %p323
    %p326 = scmp.ne.s32.totalorder %s309, %s325
    %p327 = scmp.eq.s32.totalorder %s33, 0
    %p328 = por %p326, %p327
    %s329 = ssub.s32 %s35, %s42
    %p330 = scmp.eq.s32.totalorder %s329, 0
    %s332 = sadd.s32 %s331, 1
    %s333 = scalar_select %p330, %s331, %s332
    %p336 = pneg %p330
    %p337 = scmp.eq.s32.totalorder %s27, 3
    %p338 = por %p336, %p337
    %p339 = scmp.ne.s32.totalorder %s331, %s334
    %p340 = scmp.eq.s32.totalorder %s27, 0
    %p341 = por %p339, %p340
    %p342 = scmp.ne.s32.totalorder %s331, %s334
    %p343 = scmp.eq.s32.totalorder %s32, 3
    %p344 = por %p342, %p343
    %p345 = scmp.ne.s32.totalorder %s334, %s335
    %p346 = scmp.eq.s32.totalorder %s32, 0
    %p347 = por %p345, %p346
    %p348 = scmp.ne.s32.totalorder %s334, %s335
    %p349 = scmp.eq.s32.totalorder %s33, 3
    %p350 = por %p348, %p349
    %p352 = scmp.ne.s32.totalorder %s335, %s351
    %p353 = scmp.eq.s32.totalorder %s33, 0
    %p354 = por %p352, %p353
    %s355 = ssub.s32 %s35, %s42
    %p356 = scmp.eq.s32.totalorder %s355, 0
    %s358 = sadd.s32 %s357, 1
    %s359 = scalar_select %p356, %s357, %s358
    %p362 = pneg %p356
    %p363 = scmp.eq.s32.totalorder %s27, 3
    %p364 = por %p362, %p363
    %p365 = scmp.ne.s32.totalorder %s357, %s360
    %p366 = scmp.eq.s32.totalorder %s27, 0
    %p367 = por %p365, %p366
    %p368 = scmp.ne.s32.totalorder %s357, %s360
    %p369 = scmp.eq.s32.totalorder %s32, 3
    %p370 = por %p368, %p369
    %p371 = scmp.ne.s32.totalorder %s360, %s361
    %p372 = scmp.eq.s32.totalorder %s32, 0
    %p373 = por %p371, %p372
    %p374 = scmp.ne.s32.totalorder %s360, %s361
    %p375 = scmp.eq.s32.totalorder %s33, 3
    %p376 = por %p374, %p375
    %p378 = scmp.ne.s32.totalorder %s361, %s377
    %p379 = scmp.eq.s32.totalorder %s33, 0
    %p380 = por %p378, %p379
    %s381 = ssub.s32 %s35, %s42
    %p382 = scmp.eq.s32.totalorder %s381, 0
    %s384 = sadd.s32 %s383, 1
    %s385 = scalar_select %p382, %s383, %s384
    %p388 = pneg %p382
    %p389 = scmp.eq.s32.totalorder %s27, 3
    %p390 = por %p388, %p389
    %p391 = scmp.ne.s32.totalorder %s383, %s386
    %p392 = scmp.eq.s32.totalorder %s27, 0
    %p393 = por %p391, %p392
    %p394 = scmp.ne.s32.totalorder %s383, %s386
    %p395 = scmp.eq.s32.totalorder %s32, 3
    %p396 = por %p394, %p395
    %p397 = scmp.ne.s32.totalorder %s386, %s387
    %p398 = scmp.eq.s32.totalorder %s32, 0
    %p399 = por %p397, %p398
    %p400 = scmp.ne.s32.totalorder %s386, %s387
    %p401 = scmp.eq.s32.totalorder %s33, 3
    %p402 = por %p400, %p401
    %p404 = scmp.ne.s32.totalorder %s387, %s403
    %p405 = scmp.eq.s32.totalorder %s33, 0
    %p406 = por %p404, %p405
    %s407 = ssub.s32 %s35, %s42
    %p408 = scmp.eq.s32.totalorder %s407, 0
    %s410 = sadd.s32 %s409, 1
    %s411 = scalar_select %p408, %s409, %s410
    %p414 = pneg %p408
    %p415 = scmp.eq.s32.totalorder %s27, 3
    %p416 = por %p414, %p415
    %p417 = scmp.ne.s32.totalorder %s409, %s412
    %p418 = scmp.eq.s32.totalorder %s27, 0
    %p419 = por %p417, %p418
    %p420 = scmp.ne.s32.totalorder %s409, %s412
    %p421 = scmp.eq.s32.totalorder %s32, 3
    %p422 = por %p420, %p421
    %p423 = scmp.ne.s32.totalorder %s412, %s413
    %p424 = scmp.eq.s32.totalorder %s32, 0
    %p425 = por %p423, %p424
    %p426 = scmp.ne.s32.totalorder %s412, %s413
    %p427 = scmp.eq.s32.totalorder %s33, 3
    %p428 = por %p426, %p427
    %p430 = scmp.ne.s32.totalorder %s413, %s429
    %p431 = scmp.eq.s32.totalorder %s33, 0
    %p432 = por %p430, %p431
    %s433 = ssub.s32 %s35, %s42
    %p434 = scmp.eq.s32.totalorder %s433, 0
    %s436 = sadd.s32 %s435, 1
    %s437 = scalar_select %p434, %s435, %s436
    %p440 = pneg %p434
    %p441 = scmp.eq.s32.totalorder %s27, 3
    %p442 = por %p440, %p441
    %p443 = scmp.ne.s32.totalorder %s435, %s438
    %p444 = scmp.eq.s32.totalorder %s27, 0
    %p445 = por %p443, %p444
    %p446 = scmp.ne.s32.totalorder %s435, %s438
    %p447 = scmp.eq.s32.totalorder %s32, 3
    %p448 = por %p446, %p447
    %p449 = scmp.ne.s32.totalorder %s438, %s439
    %p450 = scmp.eq.s32.totalorder %s32, 0
    %p451 = por %p449, %p450
    %p452 = scmp.ne.s32.totalorder %s438, %s439
    %p453 = scmp.eq.s32.totalorder %s33, 3
    %p454 = por %p452, %p453
    %p456 = scmp.ne.s32.totalorder %s439, %s455
    %p457 = scmp.eq.s32.totalorder %s33, 0
    %p458 = por %p456, %p457
    %s459 = ssub.s32 %s35, %s42
    %p460 = scmp.eq.s32.totalorder %s459, 0
    %s462 = sadd.s32 %s461, 1
    %s463 = scalar_select %p460, %s461, %s462
    %p466 = pneg %p460
    %p467 = scmp.eq.s32.totalorder %s27, 3
    %p468 = por %p466, %p467
    %p469 = scmp.ne.s32.totalorder %s461, %s464
    %p470 = scmp.eq.s32.totalorder %s27, 0
    %p471 = por %p469, %p470
    %p472 = scmp.ne.s32.totalorder %s461, %s464
    %p473 = scmp.eq.s32.totalorder %s32, 3
    %p474 = por %p472, %p473
    %p475 = scmp.ne.s32.totalorder %s464, %s465
    %p476 = scmp.eq.s32.totalorder %s32, 0
    %p477 = por %p475, %p476
    %p478 = scmp.ne.s32.totalorder %s464, %s465
    %p479 = scmp.eq.s32.totalorder %s33, 3
    %p480 = por %p478, %p479
    %p482 = scmp.ne.s32.totalorder %s465, %s481
    %p483 = scmp.eq.s32.totalorder %s33, 0
    %p484 = por %p482, %p483
    %s485 = ssub.s32 %s35, %s42
    %p486 = scmp.eq.s32.totalorder %s485, 0
    %s488 = sadd.s32 %s487, 1
    %s489 = scalar_select %p486, %s487, %s488
    %p492 = pneg %p486
    %p493 = scmp.eq.s32.totalorder %s27, 3
    %p494 = por %p492, %p493
    %p495 = scmp.ne.s32.totalorder %s487, %s490
    %p496 = scmp.eq.s32.totalorder %s27, 0
    %p497 = por %p495, %p496
    %p498 = scmp.ne.s32.totalorder %s487, %s490
    %p499 = scmp.eq.s32.totalorder %s32, 3
    %p500 = por %p498, %p499
    %p501 = scmp.ne.s32.totalorder %s490, %s491
    %p502 = scmp.eq.s32.totalorder %s32, 0
    %p503 = por %p501, %p502
    %p504 = scmp.ne.s32.totalorder %s490, %s491
    %p505 = scmp.eq.s32.totalorder %s33, 3
    %p506 = por %p504, %p505
    %p508 = scmp.ne.s32.totalorder %s491, %s507
    %p509 = scmp.eq.s32.totalorder %s33, 0
    %p510 = por %p508, %p509
    %s512 = sadd.s32 %s511, 1
    %p515 = scmp.eq.s32.totalorder %s27, 3
    %p516 = scmp.ne.s32.totalorder %s511, %s513
    %p517 = scmp.eq.s32.totalorder %s27, 0
    %p518 = por %p516, %p517
    %p519 = scmp.ne.s32.totalorder %s511, %s513
    %p520 = scmp.eq.s32.totalorder %s32, 3
    %p521 = por %p519, %p520
    %p522 = scmp.ne.s32.totalorder %s513, %s514
    %p523 = scmp.eq.s32.totalorder %s32, 0
    %p524 = por %p522, %p523
    %p525 = scmp.ne.s32.totalorder %s513, %s514
    %p526 = scmp.eq.s32.totalorder %s33, 3
    %p527 = por %p525, %p526
    %p529 = scmp.ne.s32.totalorder %s514, %s528
    %p530 = scmp.eq.s32.totalorder %s33, 0
    %p531 = por %p529, %p530
    %s533 = sadd.s32 %s532, 1
    %p536 = scmp.eq.s32.totalorder %s27, 3
    %p537 = scmp.ne.s32.totalorder %s532, %s534
    %p538 = scmp.eq.s32.totalorder %s27, 0
    %p539 = por %p537, %p538
    %p540 = scmp.ne.s32.totalorder %s532, %s534
    %p541 = scmp.eq.s32.totalorder %s32, 3
    %p542 = por %p540, %p541
    %p543 = scmp.ne.s32.totalorder %s534, %s535
    %p544 = scmp.eq.s32.totalorder %s32, 0
    %p545 = por %p543, %p544
    %p546 = scmp.ne.s32.totalorder %s534, %s535
    %p547 = scmp.eq.s32.totalorder %s33, 3
    %p548 = por %p546, %p547
    %p550 = scmp.ne.s32.totalorder %s535, %s549
    %p551 = scmp.eq.s32.totalorder %s33, 0
    %p552 = por %p550, %p551
    %s553 = ssub.s32 %s34, %s46
    %p554 = scmp.eq.s32.totalorder %s553, 0
    %s556 = sadd.s32 %s555, 1
    %s557 = scalar_select %p554, %s555, %s556
    %p560 = pneg %p554
    %p561 = scmp.eq.s32.totalorder %s27, 3
    %p562 = por %p560, %p561
    %p563 = scmp.ne.s32.totalorder %s555, %s558
    %p564 = scmp.eq.s32.totalorder %s27, 0
    %p565 = por %p563, %p564
    %p566 = scmp.ne.s32.totalorder %s555, %s558
    %p567 = scmp.eq.s32.totalorder %s32, 3
    %p568 = por %p566, %p567
    %p569 = scmp.ne.s32.totalorder %s558, %s559
    %p570 = scmp.eq.s32.totalorder %s32, 0
    %p571 = por %p569, %p570
    %p572 = scmp.ne.s32.totalorder %s558, %s559
    %p573 = scmp.eq.s32.totalorder %s33, 3
    %p574 = por %p572, %p573
    %p576 = scmp.ne.s32.totalorder %s559, %s575
    %p577 = scmp.eq.s32.totalorder %s33, 0
    %p578 = por %p576, %p577
    %p579 = scmp.le.s32.totalorder 1, %s27
    %p580 = scmp.lt.s32.totalorder %s27, 5
    %p581 = pnand %p579, %p580
    %p582 = pneg %p581
    // Predicated region
    $region9: #{rubik_forward.2} parent=5 // pred_check
      _
    $region10: #{rubik_forward.2} parent=5 // pred_check_branch
      %584 = sbr.rel (%p581) target = $region12
    $region11: #{rubik_forward.2} parent=5 // pred_region
      %s585 = ssub.s32 %s27, 1
      // Predicated region
      $region13: #{rubik_forward.2} parent=11 // pred_check
        %p586 = pneg %p86
      $region14: #{rubik_forward.2} parent=11 // pred_check_branch
        %588 = sbr.rel (%p586) target = $region16
      $region15: #{rubik_forward.2} parent=11 // pred_region
        _
      $region16: #{rubik_forward.2} parent=11 // pred_fallthru
        _
      // Predicated region
      $region17: #{rubik_forward.2} parent=11 // pred_check
        %p589 = pneg %p107
      $region18: #{rubik_forward.2} parent=11 // pred_check_branch
        %591 = sbr.rel (%p589) target = $region20
      $region19: #{rubik_forward.2} parent=11 // pred_region
        _
      $region20: #{rubik_forward.2} parent=11 // pred_fallthru
        _
      // Predicated region
      $region21: #{rubik_forward.2} parent=11 // pred_check
        %p592 = pneg %p128
      $region22: #{rubik_forward.2} parent=11 // pred_check_branch
        %594 = sbr.rel (%p592) target = $region24
      $region23: #{rubik_forward.2} parent=11 // pred_region
        _
      $region24: #{rubik_forward.2} parent=11 // pred_fallthru
        _
      // Predicated region
      $region25: #{rubik_forward.2} parent=11 // pred_check
        %p595 = pneg %p149
      $region26: #{rubik_forward.2} parent=11 // pred_check_branch
        %597 = sbr.rel (%p595) target = $region28
      $region27: #{rubik_forward.2} parent=11 // pred_region
        _
      $region28: #{rubik_forward.2} parent=11 // pred_fallthru
        _
      // Predicated region
      $region29: #{rubik_forward.2} parent=11 // pred_check
        %p598 = pneg %p170
      $region30: #{rubik_forward.2} parent=11 // pred_check_branch
        %600 = sbr.rel (%p598) target = $region32
      $region31: #{rubik_forward.2} parent=11 // pred_region
        _
      $region32: #{rubik_forward.2} parent=11 // pred_fallthru
        _
      // Predicated region
      $region33: #{rubik_forward.2} parent=11 // pred_check
        %p601 = pneg %p191
      $region34: #{rubik_forward.2} parent=11 // pred_check_branch
        %603 = sbr.rel (%p601) target = $region36
      $region35: #{rubik_forward.2} parent=11 // pred_region
        _
      $region36: #{rubik_forward.2} parent=11 // pred_fallthru
        _
      // Predicated region
      $region37: #{rubik_forward.2} parent=11 // pred_check
        %p604 = pneg %p524
      $region38: #{rubik_forward.2} parent=11 // pred_check_branch
        %606 = sbr.rel (%p604) target = $region40
      $region39: #{rubik_forward.2} parent=11 // pred_region
        _
      $region40: #{rubik_forward.2} parent=11 // pred_fallthru
        _
      // Predicated region
      $region41: #{rubik_forward.2} parent=11 // pred_check
        %p607 = pneg %p545
      $region42: #{rubik_forward.2} parent=11 // pred_check_branch
        %609 = sbr.rel (%p607) target = $region44
      $region43: #{rubik_forward.2} parent=11 // pred_region
        _
      $region44: #{rubik_forward.2} parent=11 // pred_fallthru
        _
    $region12: #{rubik_forward.2} parent=5 // pred_fallthru
      _
    %p610 = scmp.lt.s32.totalorder %s27, 4
    // Predicated region
    $region45: #{rubik_forward.2} parent=5 // pred_check
      %p611 = pneg %p610
    $region46: #{rubik_forward.2} parent=5 // pred_check_branch
      %613 = sbr.rel (%p611) target = $region48
    $region47: #{rubik_forward.2} parent=5 // pred_region
      // Predicated region
      $region49: #{rubik_forward.2} parent=47 // pred_check
        %p614 = pneg %p59
      $region50: #{rubik_forward.2} parent=47 // pred_check_branch
        %616 = sbr.rel (%p614) target = $region52
      $region51: #{rubik_forward.2} parent=47 // pred_region
        %p617 = scmp.lt.s32.totalorder %s34, 1
        %s618 = scalar_select %p617, %s34, 1
        %s619 = smul.addr %s618, 6
        %s620 = smul.addr %s619, 8
        %s621 = scalar_lea.vmem %s0, %s620
      $region52: #{rubik_forward.2} parent=47 // pred_fallthru
        _
      // Predicated region
      $region53: #{rubik_forward.2} parent=47 // pred_check
        %p622 = pneg %p211
      $region54: #{rubik_forward.2} parent=47 // pred_check_branch
        %624 = sbr.rel (%p622) target = $region56
      $region55: #{rubik_forward.2} parent=47 // pred_region
        %p625 = scmp.lt.s32.totalorder %s35, 1
        %s626 = scalar_select %p625, %s35, 1
        %s627 = smul.addr %s626, 4
        %s628 = smul.addr %s627, 4
        %s629 = scalar_lea.vmem %s7, %s628
      $region56: #{rubik_forward.2} parent=47 // pred_fallthru
        _
      // Predicated region
      $region57: #{rubik_forward.2} parent=47 // pred_check
        %p630 = pneg %p237
      $region58: #{rubik_forward.2} parent=47 // pred_check_branch
        %632 = sbr.rel (%p630) target = $region60
      $region59: #{rubik_forward.2} parent=47 // pred_region
        %p633 = scmp.lt.s32.totalorder %s35, 1
        %s634 = scalar_select %p633, %s35, 1
        %s635 = scalar_lea.vmem %s8, %s634
      $region60: #{rubik_forward.2} parent=47 // pred_fallthru
        _
      // Predicated region
      $region61: #{rubik_forward.2} parent=47 // pred_check
        %p636 = pneg %p263
      $region62: #{rubik_forward.2} parent=47 // pred_check_branch
        %638 = sbr.rel (%p636) target = $region64
      $region63: #{rubik_forward.2} parent=47 // pred_region
        %p639 = scmp.lt.s32.totalorder %s35, 1
        %s640 = scalar_select %p639, %s35, 1
        %s641 = smul.addr %s640, 4
        %s642 = smul.addr %s641, 4
        %s643 = scalar_lea.vmem %s9, %s642
      $region64: #{rubik_forward.2} parent=47 // pred_fallthru
        _
      // Predicated region
      $region65: #{rubik_forward.2} parent=47 // pred_check
        %p644 = pneg %p289
      $region66: #{rubik_forward.2} parent=47 // pred_check_branch
        %646 = sbr.rel (%p644) target = $region68
      $region67: #{rubik_forward.2} parent=47 // pred_region
        %p647 = scmp.lt.s32.totalorder %s35, 1
        %s648 = scalar_select %p647, %s35, 1
        %s649 = scalar_lea.vmem %s10, %s648
      $region68: #{rubik_forward.2} parent=47 // pred_fallthru
        _
      // Predicated region
      $region69: #{rubik_forward.2} parent=47 // pred_check
        %p650 = pneg %p315
      $region70: #{rubik_forward.2} parent=47 // pred_check_branch
        %652 = sbr.rel (%p650) target = $region72
      $region71: #{rubik_forward.2} parent=47 // pred_region
        %p653 = scmp.lt.s32.totalorder %s35, 1
        %s654 = scalar_select %p653, %s35, 1
        %s655 = scalar_lea.vmem %s11, %s654
      $region72: #{rubik_forward.2} parent=47 // pred_fallthru
        _
      // Predicated region
      $region73: #{rubik_forward.2} parent=47 // pred_check
        %p656 = pneg %p341
      $region74: #{rubik_forward.2} parent=47 // pred_check_branch
        %658 = sbr.rel (%p656) target = $region76
      $region75: #{rubik_forward.2} parent=47 // pred_region
        %p659 = scmp.lt.s32.totalorder %s35, 1
        %s660 = scalar_select %p659, %s35, 1
        %s661 = scalar_lea.vmem %s12, %s660
      $region76: #{rubik_forward.2} parent=47 // pred_fallthru
        _
      // Predicated region
      $region77: #{rubik_forward.2} parent=47 // pred_check
        %p662 = pneg %p367
      $region78: #{rubik_forward.2} parent=47 // pred_check_branch
        %664 = sbr.rel (%p662) target = $region80
      $region79: #{rubik_forward.2} parent=47 // pred_region
        %p665 = scmp.lt.s32.totalorder %s35, 1
        %s666 = scalar_select %p665, %s35, 1
        %s667 = smul.addr %s666, 4
        %s668 = smul.addr %s667, 4
        %s669 = scalar_lea.vmem %s13, %s668
      $region80: #{rubik_forward.2} parent=47 // pred_fallthru
        _
      // Predicated region
      $region81: #{rubik_forward.2} parent=47 // pred_check
        %p670 = pneg %p393
      $region82: #{rubik_forward.2} parent=47 // pred_check_branch
        %672 = sbr.rel (%p670) target = $region84
      $region83: #{rubik_forward.2} parent=47 // pred_region
        %p673 = scmp.lt.s32.totalorder %s35, 1
        %s674 = scalar_select %p673, %s35, 1
        %s675 = scalar_lea.vmem %s14, %s674
      $region84: #{rubik_forward.2} parent=47 // pred_fallthru
        _
      // Predicated region
      $region85: #{rubik_forward.2} parent=47 // pred_check
        %p676 = pneg %p419
      $region86: #{rubik_forward.2} parent=47 // pred_check_branch
        %678 = sbr.rel (%p676) target = $region88
      $region87: #{rubik_forward.2} parent=47 // pred_region
        %p679 = scmp.lt.s32.totalorder %s35, 1
        %s680 = scalar_select %p679, %s35, 1
        %s681 = smul.addr %s680, 16
        %s682 = smul.addr %s681, 4
        %s683 = scalar_lea.vmem %s15, %s682
      $region88: #{rubik_forward.2} parent=47 // pred_fallthru
        _
      // Predicated region
      $region89: #{rubik_forward.2} parent=47 // pred_check
        %p684 = pneg %p445
      $region90: #{rubik_forward.2} parent=47 // pred_check_branch
        %686 = sbr.rel (%p684) target = $region92
      $region91: #{rubik_forward.2} parent=47 // pred_region
        %p687 = scmp.lt.s32.totalorder %s35, 1
        %s688 = scalar_select %p687, %s35, 1
        %s689 = scalar_lea.vmem %s16, %s688
      $region92: #{rubik_forward.2} parent=47 // pred_fallthru
        _
      // Predicated region
      $region93: #{rubik_forward.2} parent=47 // pred_check
        %p690 = pneg %p471
      $region94: #{rubik_forward.2} parent=47 // pred_check_branch
        %692 = sbr.rel (%p690) target = $region96
      $region95: #{rubik_forward.2} parent=47 // pred_region
        %p693 = scmp.lt.s32.totalorder %s35, 1
        %s694 = scalar_select %p693, %s35, 1
        %s695 = scalar_lea.vmem %s17, %s694
      $region96: #{rubik_forward.2} parent=47 // pred_fallthru
        _
      // Predicated region
      $region97: #{rubik_forward.2} parent=47 // pred_check
        %p696 = pneg %p497
      $region98: #{rubik_forward.2} parent=47 // pred_check_branch
        %698 = sbr.rel (%p696) target = $region100
      $region99: #{rubik_forward.2} parent=47 // pred_region
        %p699 = scmp.lt.s32.totalorder %s35, 1
        %s700 = scalar_select %p699, %s35, 1
        %s701 = scalar_lea.vmem %s18, %s700
      $region100: #{rubik_forward.2} parent=47 // pred_fallthru
        _
    $region48: #{rubik_forward.2} parent=5 // pred_fallthru
      _
    %p702 = scmp.le.s32.totalorder 1, %s27
    %p703 = scmp.lt.s32.totalorder %s27, 5
    %p704 = pnand %p702, %p703
    %p705 = pneg %p704
    // Predicated region
    $region101: #{rubik_forward.2} parent=5 // pred_check
      _
    $region102: #{rubik_forward.2} parent=5 // pred_check_branch
      %707 = sbr.rel (%p704) target = $region104
    $region103: #{rubik_forward.2} parent=5 // pred_region
      %s708 = ssub.s32 %s27, 1
      %p709 = scmp.lt.s32.totalorder %s36, 1
      %s710 = scalar_select %p709, %s36, 1
      %s711 = smul.addr %s710, 6
      %s712 = smul.addr %s711, 8
      %s713 = scalar_lea.vmem %s0, %s712
      %p714 = pneg %p65
      %p715 = pneg %p62
      %p716 = pneg %p86
      %p717 = pneg %p83
      %p718 = pneg %p107
      %p719 = pneg %p104
      %p720 = pneg %p128
      %p721 = pneg %p125
      %p722 = pneg %p149
      %p723 = pneg %p146
      %p724 = pneg %p170
      %p725 = pneg %p167
      %p726 = pneg %p191
      %p727 = pneg %p188
      %p728 = scmp.lt.s32.totalorder %s37, 1
      %s729 = scalar_select %p728, %s37, 1
      %s730 = smul.addr %s729, 4
      %s731 = smul.addr %s730, 4
      %s732 = scalar_lea.vmem %s7, %s731
      %p733 = pneg %p217
      %p734 = pneg %p214
      %p735 = scmp.lt.s32.totalorder %s37, 1
      %s736 = scalar_select %p735, %s37, 1
      %s737 = scalar_lea.vmem %s8, %s736
      %p738 = pneg %p243
      %p739 = pneg %p240
      %p740 = scmp.lt.s32.totalorder %s37, 1
      %s741 = scalar_select %p740, %s37, 1
      %s742 = smul.addr %s741, 4
      %s743 = smul.addr %s742, 4
      %s744 = scalar_lea.vmem %s9, %s743
      %p745 = pneg %p269
      %p746 = pneg %p266
      %p747 = scmp.lt.s32.totalorder %s37, 1
      %s748 = scalar_select %p747, %s37, 1
      %s749 = scalar_lea.vmem %s10, %s748
      %p750 = pneg %p295
      %p751 = pneg %p292
      %p752 = scmp.lt.s32.totalorder %s37, 1
      %s753 = scalar_select %p752, %s37, 1
      %s754 = scalar_lea.vmem %s11, %s753
      %p755 = pneg %p321
      %p756 = pneg %p318
      %p757 = scmp.lt.s32.totalorder %s37, 1
      %s758 = scalar_select %p757, %s37, 1
      %s759 = scalar_lea.vmem %s12, %s758
      %p760 = pneg %p347
      %p761 = pneg %p344
      %p762 = scmp.lt.s32.totalorder %s37, 1
      %s763 = scalar_select %p762, %s37, 1
      %s764 = smul.addr %s763, 4
      %s765 = smul.addr %s764, 4
      %s766 = scalar_lea.vmem %s13, %s765
      %p767 = pneg %p373
      %p768 = pneg %p370
      %p769 = scmp.lt.s32.totalorder %s37, 1
      %s770 = scalar_select %p769, %s37, 1
      %s771 = scalar_lea.vmem %s14, %s770
      %p772 = pneg %p399
      %p773 = pneg %p396
      %p774 = scmp.lt.s32.totalorder %s37, 1
      %s775 = scalar_select %p774, %s37, 1
      %s776 = smul.addr %s775, 16
      %s777 = smul.addr %s776, 4
      %s778 = scalar_lea.vmem %s15, %s777
      %p779 = pneg %p425
      %p780 = pneg %p422
      %p781 = scmp.lt.s32.totalorder %s37, 1
      %s782 = scalar_select %p781, %s37, 1
      %s783 = scalar_lea.vmem %s16, %s782
      %p784 = pneg %p451
      %p785 = pneg %p448
      %p786 = scmp.lt.s32.totalorder %s37, 1
      %s787 = scalar_select %p786, %s37, 1
      %s788 = scalar_lea.vmem %s17, %s787
      %p789 = pneg %p477
      %p790 = pneg %p474
      %p791 = scmp.lt.s32.totalorder %s37, 1
      %s792 = scalar_select %p791, %s37, 1
      %s793 = scalar_lea.vmem %s18, %s792
      %p794 = pneg %p503
      %p795 = pneg %p500
      %p796 = pneg %p524
      %p797 = pneg %p521
      %p798 = pneg %p545
      %p799 = pneg %p542
      %p800 = pneg %p571
      %p801 = pneg %p568
      %p802 = scmp.lt.s32.totalorder %s36, 1
      %s803 = scalar_select %p802, %s36, 1
      %s804 = smul.addr %s803, 8
      %s805 = scalar_lea.vmem %s21, %s804
      %p806 = scmp.lt.s32.totalorder %s36, 1
      %s807 = scalar_select %p806, %s36, 1
      %s808 = smul.addr %s807, 6
      %s809 = smul.addr %s808, 8
      %s810 = scalar_lea.vmem %s0, %s809
      %p811 = scmp.lt.s32.totalorder %s37, 1
      %s812 = scalar_select %p811, %s37, 1
      %s813 = smul.addr %s812, 4
      %s814 = smul.addr %s813, 4
      %s815 = scalar_lea.vmem %s7, %s814
      %p816 = scmp.lt.s32.totalorder %s37, 1
      %s817 = scalar_select %p816, %s37, 1
      %s818 = scalar_lea.vmem %s8, %s817
      %p819 = scmp.lt.s32.totalorder %s37, 1
      %s820 = scalar_select %p819, %s37, 1
      %s821 = smul.addr %s820, 4
      %s822 = smul.addr %s821, 4
      %s823 = scalar_lea.vmem %s9, %s822
      %p824 = scmp.lt.s32.totalorder %s37, 1
      %s825 = scalar_select %p824, %s37, 1
      %s826 = scalar_lea.vmem %s10, %s825
      %p827 = scmp.lt.s32.totalorder %s37, 1
      %s828 = scalar_select %p827, %s37, 1
      %s829 = scalar_lea.vmem %s11, %s828
      %p830 = scmp.lt.s32.totalorder %s37, 1
      %s831 = scalar_select %p830, %s37, 1
      %s832 = scalar_lea.vmem %s12, %s831
      %p833 = scmp.lt.s32.totalorder %s37, 1
      %s834 = scalar_select %p833, %s37, 1
      %s835 = smul.addr %s834, 4
      %s836 = smul.addr %s835, 4
      %s837 = scalar_lea.vmem %s13, %s836
      %p838 = scmp.lt.s32.totalorder %s37, 1
      %s839 = scalar_select %p838, %s37, 1
      %s840 = scalar_lea.vmem %s14, %s839
      %p841 = scmp.lt.s32.totalorder %s37, 1
      %s842 = scalar_select %p841, %s37, 1
      %s843 = smul.addr %s842, 16
      %s844 = smul.addr %s843, 4
      %s845 = scalar_lea.vmem %s15, %s844
      %p846 = scmp.lt.s32.totalorder %s37, 1
      %s847 = scalar_select %p846, %s37, 1
      %s848 = scalar_lea.vmem %s16, %s847
      %p849 = scmp.lt.s32.totalorder %s37, 1
      %s850 = scalar_select %p849, %s37, 1
      %s851 = scalar_lea.vmem %s17, %s850
      %p852 = scmp.lt.s32.totalorder %s37, 1
      %s853 = scalar_select %p852, %s37, 1
      %s854 = scalar_lea.vmem %s18, %s853
      %p855 = scmp.lt.s32.totalorder %s36, 1
      %s856 = scalar_select %p855, %s36, 1
      %s857 = smul.addr %s856, 8
      %s858 = scalar_lea.vmem %s21, %s857
      %p860 = scmp.eq.s32.totalorder %s37, 0
      // Predicated region
      $region105: #{rubik_forward.2} parent=103 // pred_check
        %p861 = pneg %p860
      $region106: #{rubik_forward.2} parent=103 // pred_check_branch
        %863 = sbr.rel (%p861) target = $region108
      $region107: #{rubik_forward.2} parent=103 // pred_region
        %v864 = vld [vmem:[%s810] sm:$0xff]
        %v865 = vld [vmem:[%s810 + $0x8] sm:$0xff]
        %v866 = vld [vmem:[%s810 + $0x10] sm:$0xff]
        %v867 = vld [vmem:[%s810 + $0x18] sm:$0xff]
        %v868 = vld [vmem:[%s810 + $0x20] sm:$0xff]
        %v869 = vld [vmem:[%s810 + $0x28] sm:$0xff]
        %v870 = vpack.c.bf16 %v865, %v864
        %v871 = vpack.c.bf16 %v867, %v866
        %v872 = vpack.c.bf16 %v869, %v868
        %v873 = vld [vmem:[%s1] sm:$0xf]
        %v874 = vld [vmem:[%s1 + $0x4] sm:$0x1]
        %v875 = vld [vmem:[%s2] sm:$0x1]
        %v877 = vlaneseq
        %v878 = vshrl.u32 %v877, 7
        %v879 = vsub.s32 0, %v878
        %v880 = vrot.slane %v875, %v879
        %v884 = vunpack.c.l.b16 %v873
        %v885 = vunpack.c.l.b16 %v874
        %v886 = vpack.c.b16 %v885, %v884
        %vm887 = vcmask 72704
        %v889 = vsel %vm887, %v870, 0
        %v892 = vsel %vm887, %v871, 0
        %v895 = vsel %vm887, %v872, 0
        %vm897 = vcmask 1043456
        %vm898 = vcmask 1044480
        %v899 = vsel %vm897, 4294967295, 65535
        %v900 = vsel %vm898, %v899, 0
        %v902 = vand.u32 %v886, %v900
        %904 = vmatprep.subr.bf16.mxu0 0
        %905 = vmatpush1.bf16.msra.mxu0 %v902
        %906 = vmatprep.subr.bf16.mxu0 0
        %907 = vmatpush1.bf16.msra.mxu0 0
        %908 = vmatprep.subr.bf16.mxu0 0
        %909 = vmatpush1.bf16.msra.mxu0 0
        %910 = vmatprep.subr.bf16.mxu0 0
        %911 = vmatpush1.bf16.msra.mxu0 0
        %912 = vmatprep.subr.bf16.mxu0 0
        %913 = vmatpush1.bf16.msra.mxu0 0
        %914 = vmatprep.subr.bf16.mxu0 0
        %915 = vmatpush1.bf16.msra.mxu0 0
        %916 = vmatprep.subr.bf16.mxu0 0
        %917 = vmatpush1.bf16.msra.mxu0 0
        %918 = vmatprep.subr.bf16.mxu0 0
        %919 = vmatpush1.bf16.msra.mxu0 0
        %920 = vmatprep.subr.bf16.mxu0 0
        %921 = vmatpush1.bf16.msra.mxu0 0
        %922 = vmatprep.subr.bf16.mxu0 0
        %923 = vmatpush1.bf16.msra.mxu0 0
        %924 = vmatprep.subr.bf16.mxu0 0
        %925 = vmatpush1.bf16.msra.mxu0 0
        %926 = vmatprep.subr.bf16.mxu0 0
        %927 = vmatpush1.bf16.msra.mxu0 0
        %928 = vmatprep.subr.bf16.mxu0 0
        %929 = vmatpush1.bf16.msra.mxu0 0
        %930 = vmatprep.subr.bf16.mxu0 0
        %931 = vmatpush1.bf16.msra.mxu0 0
        %932 = vmatprep.subr.bf16.mxu0 0
        %933 = vmatpush1.bf16.msra.mxu0 0
        %934 = vmatprep.subr.bf16.mxu0 0
        %935 = vmatpush1.bf16.msra.mxu0 0
        %936 = vmatprep.mubr.bf16.mxu0 0
        %937 = vmatmul.mubr.bf16.gmra.mrb[0].mxu0 %v889
        %v938 = vpop.f32.mrb[0].mxu0
        %v939 = vadd.f32 %v880, %v938
        %v940 = vpop.f32.mrb[0].mxu0
        %v941 = vpop.f32.mrb[0].mxu0
        %v942 = vadd.f32 %v880, %v941
        %v943 = vpop.f32.mrb[0].mxu0
        %944 = vmatprep.mubr.bf16.mxu0 0
        %945 = vmatmul.mubr.bf16.gmra.mrb[0].mxu0 %v892
        %v946 = vpop.f32.mrb[0].mxu0
        %v947 = vadd.f32 %v880, %v946
        %v948 = vpop.f32.mrb[0].mxu0
        %v949 = vpop.f32.mrb[0].mxu0
        %v950 = vadd.f32 %v880, %v949
        %v951 = vpop.f32.mrb[0].mxu0
        %952 = vmatprep.mubr.bf16.mxu0 0
        %953 = vmatmul.mubr.bf16.gmra.mrb[0].mxu0 %v895
        %v954 = vpop.f32.mrb[0].mxu0
        %v955 = vadd.f32 %v880, %v954
        %v956 = vpop.f32.mrb[0].mxu0
        %v957 = vpop.f32.mrb[0].mxu0
        %v958 = vadd.f32 %v880, %v957
        %v959 = vpop.f32.mrb[0].mxu0
        %960 = vdwg.mxu0
        %v961 = vld [vmem:[%s3] sm:$0xff]
        %v962 = vld [vmem:[%s3 + $0x8] sm:$0xf]
        %v963 = vld [vmem:[%s3 + $0xc] sm:$0x11]
        %v964 = vld [vmem:[%s3 + $0x14] sm:$0x1]
        %v969 = vunpack.c.l.b16 %v961
        %v970 = vunpack.c.h.b16 %v961
        %v971 = vunpack.c.l.b16 %v962
        %v972 = vunpack.c.l.b16 %v963
        %v973 = vunpack.c.h.b16 %v963
        %v974 = vunpack.c.l.b16 %v964
        %v975 = vpack.c.b16 %v972, %v969
        %v976 = vpack.c.b16 %v973, %v970
        %v977 = vpack.c.b16 %v974, %v971
        %v979 = vand.u32 %v975, %v900
        %v982 = vand.u32 %v976, %v900
        %v985 = vand.u32 %v977, %v900
        %987 = vmatprep.subr.bf16.mxu0 %v982
        %988 = vmatpush1.bf16.msra.mxu0 %v979
        %989 = vmatprep.subr.bf16.mxu0 0
        %990 = vmatpush1.bf16.msra.mxu0 0
        %991 = vmatprep.subr.bf16.mxu0 0
        %992 = vmatpush1.bf16.msra.mxu0 0
        %993 = vmatprep.subr.bf16.mxu0 0
        %994 = vmatpush1.bf16.msra.mxu0 0
        %995 = vmatprep.subr.bf16.mxu0 0
        %996 = vmatpush1.bf16.msra.mxu0 0
        %997 = vmatprep.subr.bf16.mxu0 0
        %998 = vmatpush1.bf16.msra.mxu0 0
        %999 = vmatprep.subr.bf16.mxu0 0
        %1000 = vmatpush1.bf16.msra.mxu0 0
        %1001 = vmatprep.subr.bf16.mxu0 0
        %1002 = vmatpush1.bf16.msra.mxu0 0
        %1003 = vmatprep.subr.bf16.mxu0 0
        %1004 = vmatpush1.bf16.msra.mxu0 0
        %1005 = vmatprep.subr.bf16.mxu0 0
        %1006 = vmatpush1.bf16.msra.mxu0 0
        %1007 = vmatprep.subr.bf16.mxu0 0
        %1008 = vmatpush1.bf16.msra.mxu0 0
        %1009 = vmatprep.subr.bf16.mxu0 0
        %1010 = vmatpush1.bf16.msra.mxu0 0
        %1011 = vmatprep.subr.bf16.mxu0 0
        %1012 = vmatpush1.bf16.msra.mxu0 0
        %1013 = vmatprep.subr.bf16.mxu0 0
        %1014 = vmatpush1.bf16.msra.mxu0 0
        %1015 = vmatprep.subr.bf16.mxu0 0
        %1016 = vmatpush1.bf16.msra.mxu0 0
        %1017 = vmatprep.subr.bf16.mxu0 0
        %1018 = vmatpush1.bf16.msra.mxu0 0
        %1019 = vmatprep.mubr.bf16.mxu0 0
        %1020 = vmatmul.mubr.bf16.gmra.mrb[0].mxu0 %v889
        %v1021 = vpop.f32.mrb[0].mxu0
        %v1022 = vadd.f32 0.0, %v1021
        %v1023 = vpop.f32.mrb[0].mxu0
        %v1024 = vadd.f32 0.0, %v1023
        %v1025 = vpop.f32.mrb[0].mxu0
        %v1026 = vadd.f32 0.0, %v1025
        %v1027 = vpop.f32.mrb[0].mxu0
        %v1028 = vadd.f32 0.0, %v1027
        %1029 = vmatprep.mubr.bf16.mxu0 0
        %1030 = vmatmul.mubr.bf16.gmra.mrb[0].mxu0 %v892
        %v1031 = vpop.f32.mrb[0].mxu0
        %v1032 = vadd.f32 0.0, %v1031
        %v1033 = vpop.f32.mrb[0].mxu0
        %v1034 = vadd.f32 0.0, %v1033
        %v1035 = vpop.f32.mrb[0].mxu0
        %v1036 = vadd.f32 0.0, %v1035
        %v1037 = vpop.f32.mrb[0].mxu0
        %v1038 = vadd.f32 0.0, %v1037
        %1039 = vmatprep.mubr.bf16.mxu0 0
        %1040 = vmatmul.mubr.bf16.gmra.mrb[0].mxu0 %v895
        %v1041 = vpop.f32.mrb[0].mxu0
        %v1042 = vadd.f32 0.0, %v1041
        %v1043 = vpop.f32.mrb[0].mxu0
        %v1044 = vadd.f32 0.0, %v1043
        %v1045 = vpop.f32.mrb[0].mxu0
        %v1046 = vadd.f32 0.0, %v1045
        %v1047 = vpop.f32.mrb[0].mxu0
        %v1048 = vadd.f32 0.0, %v1047
        %1049 = vdwg.mxu0
        %1050 = vmatprep.subr.bf16.mxu0 0
        %1051 = vmatpush1.bf16.msra.mxu0 %v985
        %1052 = vmatprep.subr.bf16.mxu0 0
        %1053 = vmatpush1.bf16.msra.mxu0 0
        %1054 = vmatprep.subr.bf16.mxu0 0
        %1055 = vmatpush1.bf16.msra.mxu0 0
        %1056 = vmatprep.subr.bf16.mxu0 0
        %1057 = vmatpush1.bf16.msra.mxu0 0
        %1058 = vmatprep.subr.bf16.mxu0 0
        %1059 = vmatpush1.bf16.msra.mxu0 0
        %1060 = vmatprep.subr.bf16.mxu0 0
        %1061 = vmatpush1.bf16.msra.mxu0 0
        %1062 = vmatprep.subr.bf16.mxu0 0
        %1063 = vmatpush1.bf16.msra.mxu0 0
        %1064 = vmatprep.subr.bf16.mxu0 0
        %1065 = vmatpush1.bf16.msra.mxu0 0
        %1066 = vmatprep.subr.bf16.mxu0 0
        %1067 = vmatpush1.bf16.msra.mxu0 0
        %1068 = vmatprep.subr.bf16.mxu0 0
        %1069 = vmatpush1.bf16.msra.mxu0 0
        %1070 = vmatprep.subr.bf16.mxu0 0
        %1071 = vmatpush1.bf16.msra.mxu0 0
        %1072 = vmatprep.subr.bf16.mxu0 0
        %1073 = vmatpush1.bf16.msra.mxu0 0
        %1074 = vmatprep.subr.bf16.mxu0 0
        %1075 = vmatpush1.bf16.msra.mxu0 0
        %1076 = vmatprep.subr.bf16.mxu0 0
        %1077 = vmatpush1.bf16.msra.mxu0 0
        %1078 = vmatprep.subr.bf16.mxu0 0
        %1079 = vmatpush1.bf16.msra.mxu0 0
        %1080 = vmatprep.subr.bf16.mxu0 0
        %1081 = vmatpush1.bf16.msra.mxu0 0
        %1082 = vmatprep.mubr.bf16.mxu0 0
        %1083 = vmatmul.mubr.bf16.gmra.mrb[0].mxu0 %v889
        %v1084 = vpop.f32.mrb[0].mxu0
        %v1085 = vadd.f32 0.0, %v1084
        %v1086 = vpop.f32.mrb[0].mxu0
        %v1087 = vpop.f32.mrb[0].mxu0
        %v1088 = vadd.f32 0.0, %v1087
        %v1089 = vpop.f32.mrb[0].mxu0
        %1090 = vmatprep.mubr.bf16.mxu0 0
        %1091 = vmatmul.mubr.bf16.gmra.mrb[0].mxu0 %v892
        %v1092 = vpop.f32.mrb[0].mxu0
        %v1093 = vadd.f32 0.0, %v1092
        %v1094 = vpop.f32.mrb[0].mxu0
        %v1095 = vpop.f32.mrb[0].mxu0
        %v1096 = vadd.f32 0.0, %v1095
        %v1097 = vpop.f32.mrb[0].mxu0
        %1098 = vmatprep.mubr.bf16.mxu0 0
        %1099 = vmatmul.mubr.bf16.gmra.mrb[0].mxu0 %v895
        %v1100 = vpop.f32.mrb[0].mxu0
        %v1101 = vadd.f32 0.0, %v1100
        %v1102 = vpop.f32.mrb[0].mxu0
        %v1103 = vpop.f32.mrb[0].mxu0
        %v1104 = vadd.f32 0.0, %v1103
        %v1105 = vpop.f32.mrb[0].mxu0
        %1106 = vdwg.mxu0
        %v1107 = vld [vmem:[%s4] sm:$0x1]
        %v1109 = vlaneseq
        %v1110 = vshrl.u32 %v1109, 7
        %v1111 = vsub.s32 0, %v1110
        %v1112 = vrot.slane %v1107, %v1111
        %v1114 = vadd.f32 %v1022, %v1112
        %v1115 = vadd.f32 %v1026, %v1112
        %v1116 = vadd.f32 %v1032, %v1112
        %v1117 = vadd.f32 %v1036, %v1112
        %v1118 = vadd.f32 %v1042, %v1112
        %v1119 = vadd.f32 %v1046, %v1112
        %v1120 = vmax.f32 %v1114, 0.0
        %v1121 = vmax.f32 %v1115, 0.0
        %v1122 = vmax.f32 %v1116, 0.0
        %v1123 = vmax.f32 %v1117, 0.0
        %v1124 = vmax.f32 %v1118, 0.0
        %v1125 = vmax.f32 %v1119, 0.0
        %v1126 = vadd.f32 %v1120, 0.0
        %v1127 = vadd.f32 %v1121, 0.0
        %v1128 = vadd.f32 %v1122, 0.0
        %v1129 = vadd.f32 %v1123, 0.0
        %v1130 = vadd.f32 %v1124, 0.0
        %v1131 = vadd.f32 %v1125, 0.0
        %1132 = vrot.lane.b32.xlu0 %v1112, 32
        %v1133 = vpop.permute.xlu0 %1132
        %v1135 = vadd.f32 %v1022, %v1133
        %v1136 = vadd.f32 %v1026, %v1133
        %v1137 = vadd.f32 %v1032, %v1133
        %v1138 = vadd.f32 %v1036, %v1133
        %v1139 = vadd.f32 %v1042, %v1133
        %v1140 = vadd.f32 %v1046, %v1133
        %v1141 = vmax.f32 %v1135, 0.0
        %v1142 = vmax.f32 %v1136, 0.0
        %v1143 = vmax.f32 %v1137, 0.0
        %v1144 = vmax.f32 %v1138, 0.0
        %v1145 = vmax.f32 %v1139, 0.0
        %v1146 = vmax.f32 %v1140, 0.0
        %1153 = vrot.lane.b32.xlu0 %v1141, 96
        %v1154 = vpop.permute.xlu0 %1153
        %1155 = vrot.lane.b32.xlu0 %v1142, 96
        %v1156 = vpop.permute.xlu0 %1155
        %1157 = vrot.lane.b32.xlu0 %v1143, 96
        %v1158 = vpop.permute.xlu0 %1157
        %1159 = vrot.lane.b32.xlu0 %v1144, 96
        %v1160 = vpop.permute.xlu0 %1159
        %1161 = vrot.lane.b32.xlu0 %v1145, 96
        %v1162 = vpop.permute.xlu0 %1161
        %1163 = vrot.lane.b32.xlu0 %v1146, 96
        %v1164 = vpop.permute.xlu0 %1163
        %v1171 = vadd.f32 %v1126, %v1154
        %v1172 = vadd.f32 %v1127, %v1156
        %v1173 = vadd.f32 %v1128, %v1158
        %v1174 = vadd.f32 %v1129, %v1160
        %v1175 = vadd.f32 %v1130, %v1162
        %v1176 = vadd.f32 %v1131, %v1164
        %1177 = vrot.lane.b32.xlu0 %v1112, 64
        %v1178 = vpop.permute.xlu0 %1177
        %v1180 = vadd.f32 %v1022, %v1178
        %v1181 = vadd.f32 %v1026, %v1178
        %v1182 = vadd.f32 %v1032, %v1178
        %v1183 = vadd.f32 %v1036, %v1178
        %v1184 = vadd.f32 %v1042, %v1178
        %v1185 = vadd.f32 %v1046, %v1178
        %v1186 = vmax.f32 %v1180, 0.0
        %v1187 = vmax.f32 %v1181, 0.0
        %v1188 = vmax.f32 %v1182, 0.0
        %v1189 = vmax.f32 %v1183, 0.0
        %v1190 = vmax.f32 %v1184, 0.0
        %v1191 = vmax.f32 %v1185, 0.0
        %1198 = vrot.lane.b32.xlu0 %v1186, 64
        %v1199 = vpop.permute.xlu0 %1198
        %1200 = vrot.lane.b32.xlu0 %v1187, 64
        %v1201 = vpop.permute.xlu0 %1200
        %1202 = vrot.lane.b32.xlu0 %v1188, 64
        %v1203 = vpop.permute.xlu0 %1202
        %1204 = vrot.lane.b32.xlu0 %v1189, 64
        %v1205 = vpop.permute.xlu0 %1204
        %1206 = vrot.lane.b32.xlu0 %v1190, 64
        %v1207 = vpop.permute.xlu0 %1206
        %1208 = vrot.lane.b32.xlu0 %v1191, 64
        %v1209 = vpop.permute.xlu0 %1208
        %v1216 = vadd.f32 %v1171, %v1199
        %v1217 = vadd.f32 %v1172, %v1201
        %v1218 = vadd.f32 %v1173, %v1203
        %v1219 = vadd.f32 %v1174, %v1205
        %v1220 = vadd.f32 %v1175, %v1207
        %v1221 = vadd.f32 %v1176, %v1209
        %1222 = vrot.lane.b32.xlu0 %v1112, 96
        %v1223 = vpop.permute.xlu0 %1222
        %v1225 = vadd.f32 %v1022, %v1223
        %v1226 = vadd.f32 %v1026, %v1223
        %v1227 = vadd.f32 %v1032, %v1223
        %v1228 = vadd.f32 %v1036, %v1223
        %v1229 = vadd.f32 %v1042, %v1223
        %v1230 = vadd.f32 %v1046, %v1223
        %v1231 = vmax.f32 %v1225, 0.0
        %v1232 = vmax.f32 %v1226, 0.0
        %v1233 = vmax.f32 %v1227, 0.0
        %v1234 = vmax.f32 %v1228, 0.0
        %v1235 = vmax.f32 %v1229, 0.0
        %v1236 = vmax.f32 %v1230, 0.0
        %1243 = vrot.lane.b32.xlu0 %v1231, 32
        %v1244 = vpop.permute.xlu0 %1243
        %1245 = vrot.lane.b32.xlu0 %v1232, 32
        %v1246 = vpop.permute.xlu0 %1245
        %1247 = vrot.lane.b32.xlu0 %v1233, 32
        %v1248 = vpop.permute.xlu0 %1247
        %1249 = vrot.lane.b32.xlu0 %v1234, 32
        %v1250 = vpop.permute.xlu0 %1249
        %1251 = vrot.lane.b32.xlu0 %v1235, 32
        %v1252 = vpop.permute.xlu0 %1251
        %1253 = vrot.lane.b32.xlu0 %v1236, 32
        %v1254 = vpop.permute.xlu0 %1253
        %v1261 = vadd.f32 %v1216, %v1244
        %v1262 = vadd.f32 %v1217, %v1246
        %v1263 = vadd.f32 %v1218, %v1248
        %v1264 = vadd.f32 %v1219, %v1250
        %v1265 = vadd.f32 %v1220, %v1252
        %v1266 = vadd.f32 %v1221, %v1254
        %v1267 = vadd.f32 %v1024, %v1112
        %v1268 = vadd.f32 %v1028, %v1112
        %v1269 = vadd.f32 %v1034, %v1112
        %v1270 = vadd.f32 %v1038, %v1112
        %v1271 = vadd.f32 %v1044, %v1112
        %v1272 = vadd.f32 %v1048, %v1112
        %v1273 = vmax.f32 %v1267, 0.0
        %v1274 = vmax.f32 %v1268, 0.0
        %v1275 = vmax.f32 %v1269, 0.0
        %v1276 = vmax.f32 %v1270, 0.0
        %v1277 = vmax.f32 %v1271, 0.0
        %v1278 = vmax.f32 %v1272, 0.0
        %v1279 = vadd.f32 %v1261, %v1273
        %v1280 = vadd.f32 %v1262, %v1274
        %v1281 = vadd.f32 %v1263, %v1275
        %v1282 = vadd.f32 %v1264, %v1276
        %v1283 = vadd.f32 %v1265, %v1277
        %v1284 = vadd.f32 %v1266, %v1278
        %v1285 = vadd.f32 %v1024, %v1133
        %v1286 = vadd.f32 %v1028, %v1133
        %v1287 = vadd.f32 %v1034, %v1133
        %v1288 = vadd.f32 %v1038, %v1133
        %v1289 = vadd.f32 %v1044, %v1133
        %v1290 = vadd.f32 %v1048, %v1133
        %v1291 = vmax.f32 %v1285, 0.0
        %v1292 = vmax.f32 %v1286, 0.0
        %v1293 = vmax.f32 %v1287, 0.0
        %v1294 = vmax.f32 %v1288, 0.0
        %v1295 = vmax.f32 %v1289, 0.0
        %v1296 = vmax.f32 %v1290, 0.0
        %1303 = vrot.lane.b32.xlu0 %v1291, 96
        %v1304 = vpop.permute.xlu0 %1303
        %1305 = vrot.lane.b32.xlu0 %v1292, 96
        %v1306 = vpop.permute.xlu0 %1305
        %1307 = vrot.lane.b32.xlu0 %v1293, 96
        %v1308 = vpop.permute.xlu0 %1307
        %1309 = vrot.lane.b32.xlu0 %v1294, 96
        %v1310 = vpop.permute.xlu0 %1309
        %1311 = vrot.lane.b32.xlu0 %v1295, 96
        %v1312 = vpop.permute.xlu0 %1311
        %1313 = vrot.lane.b32.xlu0 %v1296, 96
        %v1314 = vpop.permute.xlu0 %1313
        %v1321 = vadd.f32 %v1279, %v1304
        %v1322 = vadd.f32 %v1280, %v1306
        %v1323 = vadd.f32 %v1281, %v1308
        %v1324 = vadd.f32 %v1282, %v1310
        %v1325 = vadd.f32 %v1283, %v1312
        %v1326 = vadd.f32 %v1284, %v1314
        %v1327 = vadd.f32 %v1024, %v1178
        %v1328 = vadd.f32 %v1028, %v1178
        %v1329 = vadd.f32 %v1034, %v1178
        %v1330 = vadd.f32 %v1038, %v1178
        %v1331 = vadd.f32 %v1044, %v1178
        %v1332 = vadd.f32 %v1048, %v1178
        %v1333 = vmax.f32 %v1327, 0.0
        %v1334 = vmax.f32 %v1328, 0.0
        %v1335 = vmax.f32 %v1329, 0.0
        %v1336 = vmax.f32 %v1330, 0.0
        %v1337 = vmax.f32 %v1331, 0.0
        %v1338 = vmax.f32 %v1332, 0.0
        %1345 = vrot.lane.b32.xlu0 %v1333, 64
        %v1346 = vpop.permute.xlu0 %1345
        %1347 = vrot.lane.b32.xlu0 %v1334, 64
        %v1348 = vpop.permute.xlu0 %1347
        %1349 = vrot.lane.b32.xlu0 %v1335, 64
        %v1350 = vpop.permute.xlu0 %1349
        %1351 = vrot.lane.b32.xlu0 %v1336, 64
        %v1352 = vpop.permute.xlu0 %1351
        %1353 = vrot.lane.b32.xlu0 %v1337, 64
        %v1354 = vpop.permute.xlu0 %1353
        %1355 = vrot.lane.b32.xlu0 %v1338, 64
        %v1356 = vpop.permute.xlu0 %1355
        %v1363 = vadd.f32 %v1321, %v1346
        %v1364 = vadd.f32 %v1322, %v1348
        %v1365 = vadd.f32 %v1323, %v1350
        %v1366 = vadd.f32 %v1324, %v1352
        %v1367 = vadd.f32 %v1325, %v1354
        %v1368 = vadd.f32 %v1326, %v1356
        %v1369 = vadd.f32 %v1024, %v1223
        %v1370 = vadd.f32 %v1028, %v1223
        %v1371 = vadd.f32 %v1034, %v1223
        %v1372 = vadd.f32 %v1038, %v1223
        %v1373 = vadd.f32 %v1044, %v1223
        %v1374 = vadd.f32 %v1048, %v1223
        %v1375 = vmax.f32 %v1369, 0.0
        %v1376 = vmax.f32 %v1370, 0.0
        %v1377 = vmax.f32 %v1371, 0.0
        %v1378 = vmax.f32 %v1372, 0.0
        %v1379 = vmax.f32 %v1373, 0.0
        %v1380 = vmax.f32 %v1374, 0.0
        %1387 = vrot.lane.b32.xlu0 %v1375, 32
        %v1388 = vpop.permute.xlu0 %1387
        %1389 = vrot.lane.b32.xlu0 %v1376, 32
        %v1390 = vpop.permute.xlu0 %1389
        %1391 = vrot.lane.b32.xlu0 %v1377, 32
        %v1392 = vpop.permute.xlu0 %1391
        %1393 = vrot.lane.b32.xlu0 %v1378, 32
        %v1394 = vpop.permute.xlu0 %1393
        %1395 = vrot.lane.b32.xlu0 %v1379, 32
        %v1396 = vpop.permute.xlu0 %1395
        %1397 = vrot.lane.b32.xlu0 %v1380, 32
        %v1398 = vpop.permute.xlu0 %1397
        %v1405 = vadd.f32 %v1363, %v1388
        %v1406 = vadd.f32 %v1364, %v1390
        %v1407 = vadd.f32 %v1365, %v1392
        %v1408 = vadd.f32 %v1366, %v1394
        %v1409 = vadd.f32 %v1367, %v1396
        %v1410 = vadd.f32 %v1368, %v1398
        %v1411 = vadd.f32 %v1085, %v1112
        %v1412 = vadd.f32 %v1088, %v1112
        %v1413 = vadd.f32 %v1093, %v1112
        %v1414 = vadd.f32 %v1096, %v1112
        %v1415 = vadd.f32 %v1101, %v1112
        %v1416 = vadd.f32 %v1104, %v1112
        %v1417 = vmax.f32 %v1411, 0.0
        %v1418 = vmax.f32 %v1412, 0.0
        %v1419 = vmax.f32 %v1413, 0.0
        %v1420 = vmax.f32 %v1414, 0.0
        %v1421 = vmax.f32 %v1415, 0.0
        %v1422 = vmax.f32 %v1416, 0.0
        %v1423 = vadd.f32 %v1405, %v1417
        %v1424 = vadd.f32 %v1406, %v1418
        %v1425 = vadd.f32 %v1407, %v1419
        %v1426 = vadd.f32 %v1408, %v1420
        %v1427 = vadd.f32 %v1409, %v1421
        %v1428 = vadd.f32 %v1410, %v1422
        %v1429 = vmul.f32 %v1423, 0.11111111
        %v1430 = vmul.f32 %v1424, 0.11111111
        %v1431 = vmul.f32 %v1425, 0.11111111
        %v1432 = vmul.f32 %v1426, 0.11111111
        %v1433 = vmul.f32 %v1427, 0.11111111
        %v1434 = vmul.f32 %v1428, 0.11111111
        %v1435 = vadd.f32 %v939, %v1429
        %v1436 = vadd.f32 %v942, %v1430
        %v1437 = vadd.f32 %v947, %v1431
        %v1438 = vadd.f32 %v950, %v1432
        %v1439 = vadd.f32 %v955, %v1433
        %v1440 = vadd.f32 %v958, %v1434
        %v1441 = vmul.f32 %v1435, 0.5
        %v1442 = vmul.f32 %v1436, 0.5
        %v1443 = vmul.f32 %v1437, 0.5
        %v1444 = vmul.f32 %v1438, 0.5
        %v1445 = vmul.f32 %v1439, 0.5
        %v1446 = vmul.f32 %v1440, 0.5
        %v1447 = vadd.f32 %v1441, 0.0
        %v1448 = vadd.f32 %v1447, %v1442
        %v1449 = vadd.f32 %v1448, %v1443
        %v1450 = vadd.f32 %v1449, %v1444
        %v1451 = vadd.f32 %v1450, %v1445
        %v1452 = vadd.f32 %v1451, %v1446
        %v1453 = vmul.f32 %v1452, 0.16666667
        %v1454 = vld [vmem:[%s5] sm:$0x1]
        %v1456 = vlaneseq
        %v1457 = vshrl.u32 %v1456, 7
        %v1458 = vsub.s32 0, %v1457
        %v1459 = vrot.slane %v1454, %v1458
        %v1461 = vadd.f32 %v1453, %v1459
        %v1462 = vld [vmem:[%s6] sm:$0xff]
        %v1463 = vadd.f32 %v1461, %v1462
        %vm1464 = vcmask 261120
        %1465 = vst.msk [vmem:[%s858] sm:$0xff] %vm1464, %v1463
      $region108: #{rubik_forward.2} parent=103 // pred_fallthru
        _
      %v1466 = vld [vmem:[%s858] sm:$0xff]
      %v1467 = vpack.c.bf16 %v1466, %v1466
      %v1468 = vld [vmem:[%s815] sm:$0xf]
      %v1469 = vld [vmem:[%s815 + $0x4] sm:$0xf]
      %v1470 = vld [vmem:[%s815 + $0x8] sm:$0xf]
      %v1471 = vld [vmem:[%s815 + $0xc] sm:$0xf]
      %v1472 = vld [vmem:[%s818] sm:$0x1]
      %v1474 = vlaneseq
      %v1475 = vshrl.u32 %v1474, 7
      %v1476 = vsub.s32 0, %v1475
      %v1477 = vrot.slane %v1472, %v1476
      %v1483 = vunpack.c.l.b16 %v1468
      %v1484 = vunpack.c.l.b16 %v1469
      %v1485 = vunpack.c.l.b16 %v1470
      %v1486 = vunpack.c.l.b16 %v1471
      %v1487 = vpack.c.b16 %v1484, %v1483
      %v1488 = vpack.c.b16 %v1486, %v1485
      %vm1491 = vcmask 261120
      %v1493 = vsel %vm1491, %v1467, 0
      %1495 = vmatprep.subr.bf16.mxu0 0
      %1496 = vmatpush1.bf16.msra.mxu0 %v1487
      %1497 = vmatprep.subr.bf16.mxu0 0
      %1498 = vmatpush1.bf16.msra.mxu0 %v1488
      %1499 = vmatprep.subr.bf16.mxu0 0
      %1500 = vmatpush1.bf16.msra.mxu0 0
      %1501 = vmatprep.subr.bf16.mxu0 0
      %1502 = vmatpush1.bf16.msra.mxu0 0
      %1503 = vmatprep.subr.bf16.mxu0 0
      %1504 = vmatpush1.bf16.msra.mxu0 0
      %1505 = vmatprep.subr.bf16.mxu0 0
      %1506 = vmatpush1.bf16.msra.mxu0 0
      %1507 = vmatprep.subr.bf16.mxu0 0
      %1508 = vmatpush1.bf16.msra.mxu0 0
      %1509 = vmatprep.subr.bf16.mxu0 0
      %1510 = vmatpush1.bf16.msra.mxu0 0
      %1511 = vmatprep.subr.bf16.mxu0 0
      %1512 = vmatpush1.bf16.msra.mxu0 0
      %1513 = vmatprep.subr.bf16.mxu0 0
      %1514 = vmatpush1.bf16.msra.mxu0 0
      %1515 = vmatprep.subr.bf16.mxu0 0
      %1516 = vmatpush1.bf16.msra.mxu0 0
      %1517 = vmatprep.subr.bf16.mxu0 0
      %1518 = vmatpush1.bf16.msra.mxu0 0
      %1519 = vmatprep.subr.bf16.mxu0 0
      %1520 = vmatpush1.bf16.msra.mxu0 0
      %1521 = vmatprep.subr.bf16.mxu0 0
      %1522 = vmatpush1.bf16.msra.mxu0 0
      %1523 = vmatprep.subr.bf16.mxu0 0
      %1524 = vmatpush1.bf16.msra.mxu0 0
      %1525 = vmatprep.subr.bf16.mxu0 0
      %1526 = vmatpush1.bf16.msra.mxu0 0
      %1527 = vmatprep.mubr.bf16.mxu0 0
      %1528 = vmatmul.mubr.bf16.gmra.mrb[0].mxu0 %v1493
      %v1529 = vpop.f32.mrb[0].mxu0
      %v1530 = vadd.f32 %v1477, %v1529
      %v1531 = vpop.f32.mrb[0].mxu0
      %v1532 = vpop.f32.mrb[0].mxu0
      %v1533 = vpop.f32.mrb[0].mxu0
      %1534 = vdwg.mxu0
      %v1535 = vld [vmem:[%s823] sm:$0xf]
      %v1536 = vld [vmem:[%s823 + $0x4] sm:$0xf]
      %v1537 = vld [vmem:[%s823 + $0x8] sm:$0xf]
      %v1538 = vld [vmem:[%s823 + $0xc] sm:$0xf]
      %v1539 = vld [vmem:[%s826] sm:$0x1]
      %v1540 = vmul.f32 %v1530, 0.35355338
      %v1541 = vpack.c.bf16 %v1540, %v1540
      %1543 = vrot.lane.b32.xlu0 %v1530, 96
      %v1544 = vpop.permute.xlu0 %1543
      %1546 = vxpose.xlu0.b32.start [1/16] %v1544, 128
      %1547 = vxpose.xlu0.b32.cont [2/16] 0.0, 128
      %1548 = vxpose.xlu0.b32.cont [3/16] 0.0, 128
      %1549 = vxpose.xlu0.b32.cont [4/16] 0.0, 128
      %1550 = vxpose.xlu0.b32.cont [5/16] 0.0, 128
      %1551 = vxpose.xlu0.b32.cont [6/16] 0.0, 128
      %1552 = vxpose.xlu0.b32.cont [7/16] 0.0, 128
      %1553 = vxpose.xlu0.b32.cont [8/16] 0.0, 128
      %1554 = vxpose.xlu0.b32.cont [9/16] 0.0, 128
      %1555 = vxpose.xlu0.b32.cont [10/16] 0.0, 128
      %1556 = vxpose.xlu0.b32.cont [11/16] 0.0, 128
      %1557 = vxpose.xlu0.b32.cont [12/16] 0.0, 128
      %1558 = vxpose.xlu0.b32.cont [13/16] 0.0, 128
      %1559 = vxpose.xlu0.b32.cont [14/16] 0.0, 128
      %1560 = vxpose.xlu0.b32.cont [15/16] 0.0, 128
      %1561 = vxpose.xlu0.b32.end [16/16] 0.0, 128
      %v1562 = vpop.trf.xlu0
      %v1563 = vpop.trf.xlu0
      %v1564 = vpop.trf.xlu0
      %v1565 = vpop.trf.xlu0
      %v1566 = vpop.trf.xlu0
      %v1567 = vpop.trf.xlu0
      %v1568 = vpop.trf.xlu0
      %v1569 = vpop.trf.xlu0
      %v1570 = vpop.trf.xlu0
      %v1571 = vpop.trf.xlu0
      %v1572 = vpop.trf.xlu0
      %v1573 = vpop.trf.xlu0
      %v1574 = vpop.trf.xlu0
      %v1575 = vpop.trf.xlu0
      %v1576 = vpop.trf.xlu0
      %v1577 = vpop.trf.xlu0
      %v1578 = vpack.c.bf16 %v1563, %v1562
      %v1579 = vpack.c.bf16 %v1565, %v1564
      %v1580 = vpack.c.bf16 %v1530, %v1530
      %vm1581 = vcmask 64512
      %v1583 = vsel %vm1581, %v1541, 0
      %vm1585 = vcmask 1043456
      %v1587 = vsel %vm1585, %v1578, 0
      %1589 = vmatprep.subr.bf16.mxu0 0
      %1590 = vmatpush1.bf16.msra.mxu0 %v1587
      %1591 = vmatprep.subr.bf16.mxu0 0
      %1592 = vmatpush1.bf16.msra.mxu0 0
      %1593 = vmatprep.subr.bf16.mxu0 0
      %1594 = vmatpush1.bf16.msra.mxu0 0
      %1595 = vmatprep.subr.bf16.mxu0 0
      %1596 = vmatpush1.bf16.msra.mxu0 0
      %1597 = vmatprep.subr.bf16.mxu0 0
      %1598 = vmatpush1.bf16.msra.mxu0 0
      %1599 = vmatprep.subr.bf16.mxu0 0
      %1600 = vmatpush1.bf16.msra.mxu0 0
      %1601 = vmatprep.subr.bf16.mxu0 0
      %1602 = vmatpush1.bf16.msra.mxu0 0
      %1603 = vmatprep.subr.bf16.mxu0 0
      %1604 = vmatpush1.bf16.msra.mxu0 0
      %1605 = vmatprep.subr.bf16.mxu0 0
      %1606 = vmatpush1.bf16.msra.mxu0 0
      %1607 = vmatprep.subr.bf16.mxu0 0
      %1608 = vmatpush1.bf16.msra.mxu0 0
      %1609 = vmatprep.subr.bf16.mxu0 0
      %1610 = vmatpush1.bf16.msra.mxu0 0
      %1611 = vmatprep.subr.bf16.mxu0 0
      %1612 = vmatpush1.bf16.msra.mxu0 0
      %1613 = vmatprep.subr.bf16.mxu0 0
      %1614 = vmatpush1.bf16.msra.mxu0 0
      %1615 = vmatprep.subr.bf16.mxu0 0
      %1616 = vmatpush1.bf16.msra.mxu0 0
      %1617 = vmatprep.subr.bf16.mxu0 0
      %1618 = vmatpush1.bf16.msra.mxu0 0
      %1619 = vmatprep.subr.bf16.mxu0 0
      %1620 = vmatpush1.bf16.msra.mxu0 0
      %1621 = vmatprep.mubr.bf16.mxu0 0
      %1622 = vmatmul.mubr.bf16.gmra.mrb[0].mxu0 %v1583
      %v1623 = vpop.f32.mrb[0].mxu0
      %v1624 = vadd.f32 0.0, %v1623
      %v1625 = vpop.f32.mrb[0].mxu0
      %v1626 = vpop.f32.mrb[0].mxu0
      %v1627 = vpop.f32.mrb[0].mxu0
      %1628 = vdwg.mxu0
      %v1629 = vsel %vm1581, %v1624, -inf
      %1630 = vmax.xlane.f32.xlu0 %v1629
      %v1631 = vpop.xlane.xlu0 %1630
      %v1632 = vsub.f32 %v1624, %v1631
      %v1633 = vmul.f32 %v1632, 1.442695
      %v1634 = vpow.pop %v1633
      %v1635 = vsel %vm1581, %v1634, 0.0
      %1636 = vadd.xlane.f32.xlu0 %v1635
      %v1637 = vpop.xlane.xlu0 %1636
      %v1638 = vrcp.pop %v1637
      %v1639 = vmul.f32 %v1634, %v1638
      %v1640 = vpack.c.bf16 %v1639, %v1639
      %1642 = vrot.lane.b32.xlu0 %v1580, 64
      %v1643 = vpop.permute.xlu0 %1642
      %v1645 = vsel %vm1581, %v1640, 0
      %v1648 = vsel %vm1585, %v1643, 0
      %1650 = vmatprep.subr.bf16.mxu0 0
      %1651 = vmatpush1.bf16.msra.mxu0 %v1648
      %1652 = vmatprep.subr.bf16.mxu0 0
      %1653 = vmatpush1.bf16.msra.mxu0 0
      %1654 = vmatprep.subr.bf16.mxu0 0
      %1655 = vmatpush1.bf16.msra.mxu0 0
      %1656 = vmatprep.subr.bf16.mxu0 0
      %1657 = vmatpush1.bf16.msra.mxu0 0
      %1658 = vmatprep.subr.bf16.mxu0 0
      %1659 = vmatpush1.bf16.msra.mxu0 0
      %1660 = vmatprep.subr.bf16.mxu0 0
      %1661 = vmatpush1.bf16.msra.mxu0 0
      %1662 = vmatprep.subr.bf16.mxu0 0
      %1663 = vmatpush1.bf16.msra.mxu0 0
      %1664 = vmatprep.subr.bf16.mxu0 0
      %1665 = vmatpush1.bf16.msra.mxu0 0
      %1666 = vmatprep.subr.bf16.mxu0 0
      %1667 = vmatpush1.bf16.msra.mxu0 0
      %1668 = vmatprep.subr.bf16.mxu0 0
      %1669 = vmatpush1.bf16.msra.mxu0 0
      %1670 = vmatprep.subr.bf16.mxu0 0
      %1671 = vmatpush1.bf16.msra.mxu0 0
      %1672 = vmatprep.subr.bf16.mxu0 0
      %1673 = vmatpush1.bf16.msra.mxu0 0
      %1674 = vmatprep.subr.bf16.mxu0 0
      %1675 = vmatpush1.bf16.msra.mxu0 0
      %1676 = vmatprep.subr.bf16.mxu0 0
      %1677 = vmatpush1.bf16.msra.mxu0 0
      %1678 = vmatprep.subr.bf16.mxu0 0
      %1679 = vmatpush1.bf16.msra.mxu0 0
      %1680 = vmatprep.subr.bf16.mxu0 0
      %1681 = vmatpush1.bf16.msra.mxu0 0
      %1682 = vmatprep.mubr.bf16.mxu0 0
      %1683 = vmatmul.mubr.bf16.gmra.mrb[0].mxu0 %v1645
      %v1684 = vpop.f32.mrb[0].mxu0
      %v1685 = vadd.f32 0.0, %v1684
      %v1686 = vpop.f32.mrb[0].mxu0
      %v1687 = vpop.f32.mrb[0].mxu0
      %v1688 = vpop.f32.mrb[0].mxu0
      %1689 = vdwg.mxu0
      %1691 = vrot.lane.b32.xlu0 %v1541, 120
      %v1692 = vpop.permute.xlu0 %1691
      %v1694 = vrot.slane %v1578, 4
      %v1696 = vsel %vm1581, %v1692, 0
      %v1699 = vsel %vm1585, %v1694, 0
      %1701 = vmatprep.subr.bf16.mxu0 0
      %1702 = vmatpush1.bf16.msra.mxu0 %v1699
      %1703 = vmatprep.subr.bf16.mxu0 0
      %1704 = vmatpush1.bf16.msra.mxu0 0
      %1705 = vmatprep.subr.bf16.mxu0 0
      %1706 = vmatpush1.bf16.msra.mxu0 0
      %1707 = vmatprep.subr.bf16.mxu0 0
      %1708 = vmatpush1.bf16.msra.mxu0 0
      %1709 = vmatprep.subr.bf16.mxu0 0
      %1710 = vmatpush1.bf16.msra.mxu0 0
      %1711 = vmatprep.subr.bf16.mxu0 0
      %1712 = vmatpush1.bf16.msra.mxu0 0
      %1713 = vmatprep.subr.bf16.mxu0 0
      %1714 = vmatpush1.bf16.msra.mxu0 0
      %1715 = vmatprep.subr.bf16.mxu0 0
      %1716 = vmatpush1.bf16.msra.mxu0 0
      %1717 = vmatprep.subr.bf16.mxu0 0
      %1718 = vmatpush1.bf16.msra.mxu0 0
      %1719 = vmatprep.subr.bf16.mxu0 0
      %1720 = vmatpush1.bf16.msra.mxu0 0
      %1721 = vmatprep.subr.bf16.mxu0 0
      %1722 = vmatpush1.bf16.msra.mxu0 0
      %1723 = vmatprep.subr.bf16.mxu0 0
      %1724 = vmatpush1.bf16.msra.mxu0 0
      %1725 = vmatprep.subr.bf16.mxu0 0
      %1726 = vmatpush1.bf16.msra.mxu0 0
      %1727 = vmatprep.subr.bf16.mxu0 0
      %1728 = vmatpush1.bf16.msra.mxu0 0
      %1729 = vmatprep.subr.bf16.mxu0 0
      %1730 = vmatpush1.bf16.msra.mxu0 0
      %1731 = vmatprep.subr.bf16.mxu0 0
      %1732 = vmatpush1.bf16.msra.mxu0 0
      %1733 = vmatprep.mubr.bf16.mxu0 0
      %1734 = vmatmul.mubr.bf16.gmra.mrb[0].mxu0 %v1696
      %v1735 = vpop.f32.mrb[0].mxu0
      %v1736 = vadd.f32 0.0, %v1735
      %v1737 = vpop.f32.mrb[0].mxu0
      %v1738 = vpop.f32.mrb[0].mxu0
      %v1739 = vpop.f32.mrb[0].mxu0
      %1740 = vdwg.mxu0
      %v1741 = vsel %vm1581, %v1736, -inf
      %1742 = vmax.xlane.f32.xlu0 %v1741
      %v1743 = vpop.xlane.xlu0 %1742
      %v1744 = vsub.f32 %v1736, %v1743
      %v1745 = vmul.f32 %v1744, 1.442695
      %v1746 = vpow.pop %v1745
      %v1747 = vsel %vm1581, %v1746, 0.0
      %1748 = vadd.xlane.f32.xlu0 %v1747
      %v1749 = vpop.xlane.xlu0 %1748
      %v1750 = vrcp.pop %v1749
      %v1751 = vmul.f32 %v1746, %v1750
      %v1752 = vpack.c.bf16 %v1751, %v1751
      %1753 = vrot.lane.b32.xlu0 %v1580, 56
      %v1754 = vpop.permute.xlu0 %1753
      %v1756 = vsel %vm1581, %v1752, 0
      %v1759 = vsel %vm1585, %v1754, 0
      %1761 = vmatprep.subr.bf16.mxu0 0
      %1762 = vmatpush1.bf16.msra.mxu0 %v1759
      %1763 = vmatprep.subr.bf16.mxu0 0
      %1764 = vmatpush1.bf16.msra.mxu0 0
      %1765 = vmatprep.subr.bf16.mxu0 0
      %1766 = vmatpush1.bf16.msra.mxu0 0
      %1767 = vmatprep.subr.bf16.mxu0 0
      %1768 = vmatpush1.bf16.msra.mxu0 0
      %1769 = vmatprep.subr.bf16.mxu0 0
      %1770 = vmatpush1.bf16.msra.mxu0 0
      %1771 = vmatprep.subr.bf16.mxu0 0
      %1772 = vmatpush1.bf16.msra.mxu0 0
      %1773 = vmatprep.subr.bf16.mxu0 0
      %1774 = vmatpush1.bf16.msra.mxu0 0
      %1775 = vmatprep.subr.bf16.mxu0 0
      %1776 = vmatpush1.bf16.msra.mxu0 0
      %1777 = vmatprep.subr.bf16.mxu0 0
      %1778 = vmatpush1.bf16.msra.mxu0 0
      %1779 = vmatprep.subr.bf16.mxu0 0
      %1780 = vmatpush1.bf16.msra.mxu0 0
      %1781 = vmatprep.subr.bf16.mxu0 0
      %1782 = vmatpush1.bf16.msra.mxu0 0
      %1783 = vmatprep.subr.bf16.mxu0 0
      %1784 = vmatpush1.bf16.msra.mxu0 0
      %1785 = vmatprep.subr.bf16.mxu0 0
      %1786 = vmatpush1.bf16.msra.mxu0 0
      %1787 = vmatprep.subr.bf16.mxu0 0
      %1788 = vmatpush1.bf16.msra.mxu0 0
      %1789 = vmatprep.subr.bf16.mxu0 0
      %1790 = vmatpush1.bf16.msra.mxu0 0
      %1791 = vmatprep.subr.bf16.mxu0 0
      %1792 = vmatpush1.bf16.msra.mxu0 0
      %1793 = vmatprep.mubr.bf16.mxu0 0
      %1794 = vmatmul.mubr.bf16.gmra.mrb[0].mxu0 %v1756
      %v1795 = vpop.f32.mrb[0].mxu0
      %v1796 = vadd.f32 0.0, %v1795
      %v1797 = vpop.f32.mrb[0].mxu0
      %v1798 = vpop.f32.mrb[0].mxu0
      %v1799 = vpop.f32.mrb[0].mxu0
      %1800 = vdwg.mxu0
      %1801 = vrot.lane.b32.xlu0 %v1541, 112
      %v1802 = vpop.permute.xlu0 %1801
      %v1804 = vsel %vm1581, %v1802, 0
      %v1807 = vsel %vm1585, %v1579, 0
      %1809 = vmatprep.subr.bf16.mxu0 0
      %1810 = vmatpush1.bf16.msra.mxu0 %v1807
      %1811 = vmatprep.subr.bf16.mxu0 0
      %1812 = vmatpush1.bf16.msra.mxu0 0
      %1813 = vmatprep.subr.bf16.mxu0 0
      %1814 = vmatpush1.bf16.msra.mxu0 0
      %1815 = vmatprep.subr.bf16.mxu0 0
      %1816 = vmatpush1.bf16.msra.mxu0 0
      %1817 = vmatprep.subr.bf16.mxu0 0
      %1818 = vmatpush1.bf16.msra.mxu0 0
      %1819 = vmatprep.subr.bf16.mxu0 0
      %1820 = vmatpush1.bf16.msra.mxu0 0
      %1821 = vmatprep.subr.bf16.mxu0 0
      %1822 = vmatpush1.bf16.msra.mxu0 0
      %1823 = vmatprep.subr.bf16.mxu0 0
      %1824 = vmatpush1.bf16.msra.mxu0 0
      %1825 = vmatprep.subr.bf16.mxu0 0
      %1826 = vmatpush1.bf16.msra.mxu0 0
      %1827 = vmatprep.subr.bf16.mxu0 0
      %1828 = vmatpush1.bf16.msra.mxu0 0
      %1829 = vmatprep.subr.bf16.mxu0 0
      %1830 = vmatpush1.bf16.msra.mxu0 0
      %1831 = vmatprep.subr.bf16.mxu0 0
      %1832 = vmatpush1.bf16.msra.mxu0 0
      %1833 = vmatprep.subr.bf16.mxu0 0
      %1834 = vmatpush1.bf16.msra.mxu0 0
      %1835 = vmatprep.subr.bf16.mxu0 0
      %1836 = vmatpush1.bf16.msra.mxu0 0
      %1837 = vmatprep.subr.bf16.mxu0 0
      %1838 = vmatpush1.bf16.msra.mxu0 0
      %1839 = vmatprep.subr.bf16.mxu0 0
      %1840 = vmatpush1.bf16.msra.mxu0 0
      %1841 = vmatprep.mubr.bf16.mxu0 0
      %1842 = vmatmul.mubr.bf16.gmra.mrb[0].mxu0 %v1804
      %v1843 = vpop.f32.mrb[0].mxu0
      %v1844 = vadd.f32 0.0, %v1843
      %v1845 = vpop.f32.mrb[0].mxu0
      %v1846 = vpop.f32.mrb[0].mxu0
      %v1847 = vpop.f32.mrb[0].mxu0
      %1848 = vdwg.mxu0
      %v1849 = vsel %vm1581, %v1844, -inf
      %1850 = vmax.xlane.f32.xlu0 %v1849
      %v1851 = vpop.xlane.xlu0 %1850
      %v1852 = vsub.f32 %v1844, %v1851
      %v1853 = vmul.f32 %v1852, 1.442695
      %v1854 = vpow.pop %v1853
      %v1855 = vsel %vm1581, %v1854, 0.0
      %1856 = vadd.xlane.f32.xlu0 %v1855
      %v1857 = vpop.xlane.xlu0 %1856
      %v1858 = vrcp.pop %v1857
      %v1859 = vmul.f32 %v1854, %v1858
      %v1860 = vpack.c.bf16 %v1859, %v1859
      %1861 = vrot.lane.b32.xlu0 %v1580, 48
      %v1862 = vpop.permute.xlu0 %1861
      %v1864 = vsel %vm1581, %v1860, 0
      %v1867 = vsel %vm1585, %v1862, 0
      %1869 = vmatprep.subr.bf16.mxu0 0
      %1870 = vmatpush1.bf16.msra.mxu0 %v1867
      %1871 = vmatprep.subr.bf16.mxu0 0
      %1872 = vmatpush1.bf16.msra.mxu0 0
      %1873 = vmatprep.subr.bf16.mxu0 0
      %1874 = vmatpush1.bf16.msra.mxu0 0
      %1875 = vmatprep.subr.bf16.mxu0 0
      %1876 = vmatpush1.bf16.msra.mxu0 0
      %1877 = vmatprep.subr.bf16.mxu0 0
      %1878 = vmatpush1.bf16.msra.mxu0 0
      %1879 = vmatprep.subr.bf16.mxu0 0
      %1880 = vmatpush1.bf16.msra.mxu0 0
      %1881 = vmatprep.subr.bf16.mxu0 0
      %1882 = vmatpush1.bf16.msra.mxu0 0
      %1883 = vmatprep.subr.bf16.mxu0 0
      %1884 = vmatpush1.bf16.msra.mxu0 0
      %1885 = vmatprep.subr.bf16.mxu0 0
      %1886 = vmatpush1.bf16.msra.mxu0 0
      %1887 = vmatprep.subr.bf16.mxu0 0
      %1888 = vmatpush1.bf16.msra.mxu0 0
      %1889 = vmatprep.subr.bf16.mxu0 0
      %1890 = vmatpush1.bf16.msra.mxu0 0
      %1891 = vmatprep.subr.bf16.mxu0 0
      %1892 = vmatpush1.bf16.msra.mxu0 0
      %1893 = vmatprep.subr.bf16.mxu0 0
      %1894 = vmatpush1.bf16.msra.mxu0 0
      %1895 = vmatprep.subr.bf16.mxu0 0
      %1896 = vmatpush1.bf16.msra.mxu0 0
      %1897 = vmatprep.subr.bf16.mxu0 0
      %1898 = vmatpush1.bf16.msra.mxu0 0
      %1899 = vmatprep.subr.bf16.mxu0 0
      %1900 = vmatpush1.bf16.msra.mxu0 0
      %1901 = vmatprep.mubr.bf16.mxu0 0
      %1902 = vmatmul.mubr.bf16.gmra.mrb[0].mxu0 %v1864
      %v1903 = vpop.f32.mrb[0].mxu0
      %v1904 = vadd.f32 0.0, %v1903
      %v1905 = vpop.f32.mrb[0].mxu0
      %v1906 = vpop.f32.mrb[0].mxu0
      %v1907 = vpop.f32.mrb[0].mxu0
      %1908 = vdwg.mxu0
      %1909 = vrot.lane.b32.xlu0 %v1541, 104
      %v1910 = vpop.permute.xlu0 %1909
      %v1912 = vrot.slane %v1579, 4
      %v1914 = vsel %vm1581, %v1910, 0
      %v1917 = vsel %vm1585, %v1912, 0
      %1919 = vmatprep.subr.bf16.mxu0 0
      %1920 = vmatpush1.bf16.msra.mxu0 %v1917
      %1921 = vmatprep.subr.bf16.mxu0 0
      %1922 = vmatpush1.bf16.msra.mxu0 0
      %1923 = vmatprep.subr.bf16.mxu0 0
      %1924 = vmatpush1.bf16.msra.mxu0 0
      %1925 = vmatprep.subr.bf16.mxu0 0
      %1926 = vmatpush1.bf16.msra.mxu0 0
      %1927 = vmatprep.subr.bf16.mxu0 0
      %1928 = vmatpush1.bf16.msra.mxu0 0
      %1929 = vmatprep.subr.bf16.mxu0 0
      %1930 = vmatpush1.bf16.msra.mxu0 0
      %1931 = vmatprep.subr.bf16.mxu0 0
      %1932 = vmatpush1.bf16.msra.mxu0 0
      %1933 = vmatprep.subr.bf16.mxu0 0
      %1934 = vmatpush1.bf16.msra.mxu0 0
      %1935 = vmatprep.subr.bf16.mxu0 0
      %1936 = vmatpush1.bf16.msra.mxu0 0
      %1937 = vmatprep.subr.bf16.mxu0 0
      %1938 = vmatpush1.bf16.msra.mxu0 0
      %1939 = vmatprep.subr.bf16.mxu0 0
      %1940 = vmatpush1.bf16.msra.mxu0 0
      %1941 = vmatprep.subr.bf16.mxu0 0
      %1942 = vmatpush1.bf16.msra.mxu0 0
      %1943 = vmatprep.subr.bf16.mxu0 0
      %1944 = vmatpush1.bf16.msra.mxu0 0
      %1945 = vmatprep.subr.bf16.mxu0 0
      %1946 = vmatpush1.bf16.msra.mxu0 0
      %1947 = vmatprep.subr.bf16.mxu0 0
      %1948 = vmatpush1.bf16.msra.mxu0 0
      %1949 = vmatprep.subr.bf16.mxu0 0
      %1950 = vmatpush1.bf16.msra.mxu0 0
      %1951 = vmatprep.mubr.bf16.mxu0 0
      %1952 = vmatmul.mubr.bf16.gmra.mrb[0].mxu0 %v1914
      %v1953 = vpop.f32.mrb[0].mxu0
      %v1954 = vadd.f32 0.0, %v1953
      %v1955 = vpop.f32.mrb[0].mxu0
      %v1956 = vpop.f32.mrb[0].mxu0
      %v1957 = vpop.f32.mrb[0].mxu0
      %1958 = vdwg.mxu0
      %v1959 = vsel %vm1581, %v1954, -inf
      %1960 = vmax.xlane.f32.xlu0 %v1959
      %v1961 = vpop.xlane.xlu0 %1960
      %v1962 = vsub.f32 %v1954, %v1961
      %v1963 = vmul.f32 %v1962, 1.442695
      %v1964 = vpow.pop %v1963
      %v1965 = vsel %vm1581, %v1964, 0.0
      %1966 = vadd.xlane.f32.xlu0 %v1965
      %v1967 = vpop.xlane.xlu0 %1966
      %v1968 = vrcp.pop %v1967
      %v1969 = vmul.f32 %v1964, %v1968
      %v1970 = vpack.c.bf16 %v1969, %v1969
      %1971 = vrot.lane.b32.xlu0 %v1580, 40
      %v1972 = vpop.permute.xlu0 %1971
      %v1974 = vsel %vm1581, %v1970, 0
      %v1977 = vsel %vm1585, %v1972, 0
      %1979 = vmatprep.subr.bf16.mxu0 0
      %1980 = vmatpush1.bf16.msra.mxu0 %v1977
      %1981 = vmatprep.subr.bf16.mxu0 0
      %1982 = vmatpush1.bf16.msra.mxu0 0
      %1983 = vmatprep.subr.bf16.mxu0 0
      %1984 = vmatpush1.bf16.msra.mxu0 0
      %1985 = vmatprep.subr.bf16.mxu0 0
      %1986 = vmatpush1.bf16.msra.mxu0 0
      %1987 = vmatprep.subr.bf16.mxu0 0
      %1988 = vmatpush1.bf16.msra.mxu0 0
      %1989 = vmatprep.subr.bf16.mxu0 0
      %1990 = vmatpush1.bf16.msra.mxu0 0
      %1991 = vmatprep.subr.bf16.mxu0 0
      %1992 = vmatpush1.bf16.msra.mxu0 0
      %1993 = vmatprep.subr.bf16.mxu0 0
      %1994 = vmatpush1.bf16.msra.mxu0 0
      %1995 = vmatprep.subr.bf16.mxu0 0
      %1996 = vmatpush1.bf16.msra.mxu0 0
      %1997 = vmatprep.subr.bf16.mxu0 0
      %1998 = vmatpush1.bf16.msra.mxu0 0
      %1999 = vmatprep.subr.bf16.mxu0 0
      %2000 = vmatpush1.bf16.msra.mxu0 0
      %2001 = vmatprep.subr.bf16.mxu0 0
      %2002 = vmatpush1.bf16.msra.mxu0 0
      %2003 = vmatprep.subr.bf16.mxu0 0
      %2004 = vmatpush1.bf16.msra.mxu0 0
      %2005 = vmatprep.subr.bf16.mxu0 0
      %2006 = vmatpush1.bf16.msra.mxu0 0
      %2007 = vmatprep.subr.bf16.mxu0 0
      %2008 = vmatpush1.bf16.msra.mxu0 0
      %2009 = vmatprep.subr.bf16.mxu0 0
      %2010 = vmatpush1.bf16.msra.mxu0 0
      %2011 = vmatprep.mubr.bf16.mxu0 0
      %2012 = vmatmul.mubr.bf16.gmra.mrb[0].mxu0 %v1974
      %v2013 = vpop.f32.mrb[0].mxu0
      %v2014 = vadd.f32 0.0, %v2013
      %v2015 = vpop.f32.mrb[0].mxu0
      %v2016 = vpop.f32.mrb[0].mxu0
      %v2017 = vpop.f32.mrb[0].mxu0
      %2018 = vdwg.mxu0
      %2020 = vrot.lane.b32.xlu0 %v1796, 8
      %v2021 = vpop.permute.xlu0 %2020
      %2024 = vrot.lane.b32.xlu0 %v1904, 16
      %v2025 = vpop.permute.xlu0 %2024
      %2028 = vrot.lane.b32.xlu0 %v2014, 24
      %v2029 = vpop.permute.xlu0 %2028
      %v2031 = vsel %vm1581, %v1685, %v2021
      %vm2032 = vcmask 130048
      %v2033 = vsel %vm2032, %v2031, %v2025
      %vm2034 = vcmask 195584
      %v2035 = vsel %vm2034, %v2033, %v2029
      %v2036 = vpack.c.bf16 %v2035, %v2035
      %v2038 = vlaneseq
      %v2039 = vshrl.u32 %v2038, 7
      %v2040 = vsub.s32 0, %v2039
      %v2041 = vrot.slane %v1539, %v2040
      %v2047 = vunpack.c.l.b16 %v1535
      %v2048 = vunpack.c.l.b16 %v1536
      %v2049 = vunpack.c.l.b16 %v1537
      %v2050 = vunpack.c.l.b16 %v1538
      %v2051 = vpack.c.b16 %v2048, %v2047
      %v2052 = vpack.c.b16 %v2050, %v2049
      %v2056 = vsel %vm1491, %v2036, 0
      %2058 = vmatprep.subr.bf16.mxu0 0
      %2059 = vmatpush1.bf16.msra.mxu0 %v2051
      %2060 = vmatprep.subr.bf16.mxu0 0
      %2061 = vmatpush1.bf16.msra.mxu0 %v2052
      %2062 = vmatprep.subr.bf16.mxu0 0
      %2063 = vmatpush1.bf16.msra.mxu0 0
      %2064 = vmatprep.subr.bf16.mxu0 0
      %2065 = vmatpush1.bf16.msra.mxu0 0
      %2066 = vmatprep.subr.bf16.mxu0 0
      %2067 = vmatpush1.bf16.msra.mxu0 0
      %2068 = vmatprep.subr.bf16.mxu0 0
      %2069 = vmatpush1.bf16.msra.mxu0 0
      %2070 = vmatprep.subr.bf16.mxu0 0
      %2071 = vmatpush1.bf16.msra.mxu0 0
      %2072 = vmatprep.subr.bf16.mxu0 0
      %2073 = vmatpush1.bf16.msra.mxu0 0
      %2074 = vmatprep.subr.bf16.mxu0 0
      %2075 = vmatpush1.bf16.msra.mxu0 0
      %2076 = vmatprep.subr.bf16.mxu0 0
      %2077 = vmatpush1.bf16.msra.mxu0 0
      %2078 = vmatprep.subr.bf16.mxu0 0
      %2079 = vmatpush1.bf16.msra.mxu0 0
      %2080 = vmatprep.subr.bf16.mxu0 0
      %2081 = vmatpush1.bf16.msra.mxu0 0
      %2082 = vmatprep.subr.bf16.mxu0 0
      %2083 = vmatpush1.bf16.msra.mxu0 0
      %2084 = vmatprep.subr.bf16.mxu0 0
      %2085 = vmatpush1.bf16.msra.mxu0 0
      %2086 = vmatprep.subr.bf16.mxu0 0
      %2087 = vmatpush1.bf16.msra.mxu0 0
      %2088 = vmatprep.subr.bf16.mxu0 0
      %2089 = vmatpush1.bf16.msra.mxu0 0
      %2090 = vmatprep.mubr.bf16.mxu0 0
      %2091 = vmatmul.mubr.bf16.gmra.mrb[0].mxu0 %v2056
      %v2092 = vpop.f32.mrb[0].mxu0
      %v2093 = vadd.f32 %v2041, %v2092
      %v2094 = vpop.f32.mrb[0].mxu0
      %v2095 = vpop.f32.mrb[0].mxu0
      %v2096 = vpop.f32.mrb[0].mxu0
      %2097 = vdwg.mxu0
      %v2098 = vadd.f32 %v1466, %v2093
      %v2099 = vld [vmem:[%s829] sm:$0x1]
      %v2100 = vld [vmem:[%s832] sm:$0x1]
      %v2101 = vsel %vm1491, %v2098, 0.0
      %2102 = vadd.xlane.f32.xlu0 %v2101
      %v2103 = vpop.xlane.xlu0 %2102
      %v2104 = vrcp.pop 32.0
      %v2105 = vmul.f32 %v2103, %v2104
      %v2106 = vsub.f32 %v2098, %v2105
      %v2107 = vmul.f32 %v2106, %v2106
      %v2108 = vsel %vm1491, %v2107, 0.0
      %2109 = vadd.xlane.f32.xlu0 %v2108
      %v2110 = vpop.xlane.xlu0 %2109
      %v2111 = vmul.f32 %v2110, %v2104
      %v2112 = vadd.f32 %v2111, 1e-05
      %v2113 = vrsqrt.pop %v2112
      %v2114 = vmul.f32 %v2106, %v2113
      %v2116 = vlaneseq
      %v2117 = vshrl.u32 %v2116, 7
      %v2118 = vsub.s32 0, %v2117
      %v2119 = vrot.slane %v2099, %v2118
      %v2121 = vmul.f32 %v2114, %v2119
      %v2123 = vlaneseq
      %v2124 = vshrl.u32 %v2123, 7
      %v2125 = vsub.s32 0, %v2124
      %v2126 = vrot.slane %v2100, %v2125
      %v2128 = vadd.f32 %v2121, %v2126
      %v2129 = vpack.c.bf16 %v2128, %v2128
      %v2130 = vld [vmem:[%s837] sm:$0xf]
      %v2131 = vld [vmem:[%s837 + $0x4] sm:$0xf]
      %v2132 = vld [vmem:[%s837 + $0x8] sm:$0xf]
      %v2133 = vld [vmem:[%s837 + $0xc] sm:$0xf]
      %v2134 = vld [vmem:[%s840] sm:$0x1]
      %v2136 = vlaneseq
      %v2137 = vshrl.u32 %v2136, 7
      %v2138 = vsub.s32 0, %v2137
      %v2139 = vrot.slane %v2134, %v2138
      %v2145 = vunpack.c.l.b16 %v2130
      %v2146 = vunpack.c.l.b16 %v2131
      %v2147 = vunpack.c.l.b16 %v2132
      %v2148 = vunpack.c.l.b16 %v2133
      %v2149 = vpack.c.b16 %v2146, %v2145
      %v2150 = vpack.c.b16 %v2148, %v2147
      %v2154 = vsel %vm1491, %v2129, 0
      %2156 = vmatprep.subr.bf16.mxu0 0
      %2157 = vmatpush1.bf16.msra.mxu0 %v2149
      %2158 = vmatprep.subr.bf16.mxu0 0
      %2159 = vmatpush1.bf16.msra.mxu0 %v2150
      %2160 = vmatprep.subr.bf16.mxu0 0
      %2161 = vmatpush1.bf16.msra.mxu0 0
      %2162 = vmatprep.subr.bf16.mxu0 0
      %2163 = vmatpush1.bf16.msra.mxu0 0
      %2164 = vmatprep.subr.bf16.mxu0 0
      %2165 = vmatpush1.bf16.msra.mxu0 0
      %2166 = vmatprep.subr.bf16.mxu0 0
      %2167 = vmatpush1.bf16.msra.mxu0 0
      %2168 = vmatprep.subr.bf16.mxu0 0
      %2169 = vmatpush1.bf16.msra.mxu0 0
      %2170 = vmatprep.subr.bf16.mxu0 0
      %2171 = vmatpush1.bf16.msra.mxu0 0
      %2172 = vmatprep.subr.bf16.mxu0 0
      %2173 = vmatpush1.bf16.msra.mxu0 0
      %2174 = vmatprep.subr.bf16.mxu0 0
      %2175 = vmatpush1.bf16.msra.mxu0 0
      %2176 = vmatprep.subr.bf16.mxu0 0
      %2177 = vmatpush1.bf16.msra.mxu0 0
      %2178 = vmatprep.subr.bf16.mxu0 0
      %2179 = vmatpush1.bf16.msra.mxu0 0
      %2180 = vmatprep.subr.bf16.mxu0 0
      %2181 = vmatpush1.bf16.msra.mxu0 0
      %2182 = vmatprep.subr.bf16.mxu0 0
      %2183 = vmatpush1.bf16.msra.mxu0 0
      %2184 = vmatprep.subr.bf16.mxu0 0
      %2185 = vmatpush1.bf16.msra.mxu0 0
      %2186 = vmatprep.subr.bf16.mxu0 0
      %2187 = vmatpush1.bf16.msra.mxu0 0
      %2188 = vmatprep.mubr.bf16.mxu0 0
      %2189 = vmatmul.mubr.bf16.gmra.mrb[0].mxu0 %v2154
      %v2190 = vpop.f32.mrb[0].mxu0
      %v2191 = vadd.f32 %v2139, %v2190
      %v2192 = vpop.f32.mrb[0].mxu0
      %v2193 = vpop.f32.mrb[0].mxu0
      %v2194 = vpop.f32.mrb[0].mxu0
      %2195 = vdwg.mxu0
      %v2196 = vmax.f32 %v2191, 0.0
      %v2197 = vpack.c.bf16 %v2196, %v2196
      %v2198 = vld [vmem:[%s845] sm:$0xf]
      %v2199 = vld [vmem:[%s845 + $0x4] sm:$0xf]
      %v2200 = vld [vmem:[%s845 + $0x8] sm:$0xf]
      %v2201 = vld [vmem:[%s845 + $0xc] sm:$0xf]
      %v2202 = vld [vmem:[%s845 + $0x10] sm:$0xf]
      %v2203 = vld [vmem:[%s845 + $0x14] sm:$0xf]
      %v2204 = vld [vmem:[%s845 + $0x18] sm:$0xf]
      %v2205 = vld [vmem:[%s845 + $0x1c] sm:$0xf]
      %v2206 = vld [vmem:[%s845 + $0x20] sm:$0xf]
      %v2207 = vld [vmem:[%s845 + $0x24] sm:$0xf]
      %v2208 = vld [vmem:[%s845 + $0x28] sm:$0xf]
      %v2209 = vld [vmem:[%s845 + $0x2c] sm:$0xf]
      %v2210 = vld [vmem:[%s845 + $0x30] sm:$0xf]
      %v2211 = vld [vmem:[%s845 + $0x34] sm:$0xf]
      %v2212 = vld [vmem:[%s845 + $0x38] sm:$0xf]
      %v2213 = vld [vmem:[%s845 + $0x3c] sm:$0xf]
      %v2214 = vld [vmem:[%s848] sm:$0x1]
      %v2216 = vlaneseq
      %v2217 = vshrl.u32 %v2216, 7
      %v2218 = vsub.s32 0, %v2217
      %v2219 = vrot.slane %v2214, %v2218
      %v2237 = vunpack.c.l.b16 %v2198
      %v2238 = vunpack.c.l.b16 %v2199
      %v2239 = vunpack.c.l.b16 %v2200
      %v2240 = vunpack.c.l.b16 %v2201
      %v2241 = vunpack.c.l.b16 %v2202
      %v2242 = vunpack.c.l.b16 %v2203
      %v2243 = vunpack.c.l.b16 %v2204
      %v2244 = vunpack.c.l.b16 %v2205
      %v2245 = vunpack.c.l.b16 %v2206
      %v2246 = vunpack.c.l.b16 %v2207
      %v2247 = vunpack.c.l.b16 %v2208
      %v2248 = vunpack.c.l.b16 %v2209
      %v2249 = vunpack.c.l.b16 %v2210
      %v2250 = vunpack.c.l.b16 %v2211
      %v2251 = vunpack.c.l.b16 %v2212
      %v2252 = vunpack.c.l.b16 %v2213
      %v2253 = vpack.c.b16 %v2238, %v2237
      %v2254 = vpack.c.b16 %v2240, %v2239
      %v2255 = vpack.c.b16 %v2242, %v2241
      %v2256 = vpack.c.b16 %v2244, %v2243
      %v2257 = vpack.c.b16 %v2246, %v2245
      %v2258 = vpack.c.b16 %v2248, %v2247
      %v2259 = vpack.c.b16 %v2250, %v2249
      %v2260 = vpack.c.b16 %v2252, %v2251
      %2269 = vmatprep.subr.bf16.mxu0 0
      %2270 = vmatpush1.bf16.msra.mxu0 %v2253
      %2271 = vmatprep.subr.bf16.mxu0 0
      %2272 = vmatpush1.bf16.msra.mxu0 %v2254
      %2273 = vmatprep.subr.bf16.mxu0 0
      %2274 = vmatpush1.bf16.msra.mxu0 %v2255
      %2275 = vmatprep.subr.bf16.mxu0 0
      %2276 = vmatpush1.bf16.msra.mxu0 %v2256
      %2277 = vmatprep.subr.bf16.mxu0 0
      %2278 = vmatpush1.bf16.msra.mxu0 %v2257
      %2279 = vmatprep.subr.bf16.mxu0 0
      %2280 = vmatpush1.bf16.msra.mxu0 %v2258
      %2281 = vmatprep.subr.bf16.mxu0 0
      %2282 = vmatpush1.bf16.msra.mxu0 %v2259
      %2283 = vmatprep.subr.bf16.mxu0 0
      %2284 = vmatpush1.bf16.msra.mxu0 %v2260
      %2285 = vmatprep.subr.bf16.mxu0 0
      %2286 = vmatpush1.bf16.msra.mxu0 0
      %2287 = vmatprep.subr.bf16.mxu0 0
      %2288 = vmatpush1.bf16.msra.mxu0 0
      %2289 = vmatprep.subr.bf16.mxu0 0
      %2290 = vmatpush1.bf16.msra.mxu0 0
      %2291 = vmatprep.subr.bf16.mxu0 0
      %2292 = vmatpush1.bf16.msra.mxu0 0
      %2293 = vmatprep.subr.bf16.mxu0 0
      %2294 = vmatpush1.bf16.msra.mxu0 0
      %2295 = vmatprep.subr.bf16.mxu0 0
      %2296 = vmatpush1.bf16.msra.mxu0 0
      %2297 = vmatprep.subr.bf16.mxu0 0
      %2298 = vmatpush1.bf16.msra.mxu0 0
      %2299 = vmatprep.subr.bf16.mxu0 0
      %2300 = vmatpush1.bf16.msra.mxu0 0
      %2301 = vmatprep.mubr.bf16.mxu0 0
      %2302 = vmatmul.mubr.bf16.gmra.mrb[0].mxu0 %v2197
      %v2303 = vpop.f32.mrb[0].mxu0
      %v2304 = vadd.f32 %v2219, %v2303
      %v2305 = vpop.f32.mrb[0].mxu0
      %v2306 = vpop.f32.mrb[0].mxu0
      %v2307 = vpop.f32.mrb[0].mxu0
      %2308 = vdwg.mxu0
      %v2309 = vadd.f32 %v2128, %v2304
      %v2310 = vld [vmem:[%s851] sm:$0x1]
      %v2311 = vld [vmem:[%s854] sm:$0x1]
      %v2312 = vsel %vm1491, %v2309, 0.0
      %2313 = vadd.xlane.f32.xlu0 %v2312
      %v2314 = vpop.xlane.xlu0 %2313
      %v2315 = vmul.f32 %v2314, %v2104
      %v2316 = vsub.f32 %v2309, %v2315
      %v2317 = vmul.f32 %v2316, %v2316
      %v2318 = vsel %vm1491, %v2317, 0.0
      %2319 = vadd.xlane.f32.xlu0 %v2318
      %v2320 = vpop.xlane.xlu0 %2319
      %v2321 = vmul.f32 %v2320, %v2104
      %v2322 = vadd.f32 %v2321, 1e-05
      %v2323 = vrsqrt.pop %v2322
      %v2324 = vmul.f32 %v2316, %v2323
      %v2326 = vlaneseq
      %v2327 = vshrl.u32 %v2326, 7
      %v2328 = vsub.s32 0, %v2327
      %v2329 = vrot.slane %v2310, %v2328
      %v2331 = vmul.f32 %v2324, %v2329
      %v2333 = vlaneseq
      %v2334 = vshrl.u32 %v2333, 7
      %v2335 = vsub.s32 0, %v2334
      %v2336 = vrot.slane %v2311, %v2335
      %v2338 = vadd.f32 %v2331, %v2336
      %p2339 = scmp.lt.s32.totalorder %s37, 1
      // Predicated region
      $region109: #{rubik_forward.2} parent=103 // pred_check
        %p2340 = pneg %p2339
      $region110: #{rubik_forward.2} parent=103 // pred_check_branch
        %2342 = sbr.rel (%p2340) target = $region112
      $region111: #{rubik_forward.2} parent=103 // pred_region
        %2343 = vst.msk [vmem:[%s858] sm:$0xff] %vm1491, %v2338
      $region112: #{rubik_forward.2} parent=103 // pred_fallthru
        _
      %p2344 = scmp.eq.s32.totalorder %s37, 1
      // Predicated region
      $region113: #{rubik_forward.2} parent=103 // pred_check
        %p2345 = pneg %p2344
      $region114: #{rubik_forward.2} parent=103 // pred_check_branch
        %2347 = sbr.rel (%p2345) target = $region116
      $region115: #{rubik_forward.2} parent=103 // pred_region
        %v2348 = vld [vmem:[%s19] sm:$0x1]
        %v2349 = vld [vmem:[%s20] sm:$0x1]
        %v2350 = vsel %vm1491, %v2338, 0.0
        %2351 = vadd.xlane.f32.xlu0 %v2350
        %v2352 = vpop.xlane.xlu0 %2351
        %v2353 = vmul.f32 %v2352, %v2104
        %v2354 = vsub.f32 %v2338, %v2353
        %v2355 = vmul.f32 %v2354, %v2354
        %v2356 = vsel %vm1491, %v2355, 0.0
        %2357 = vadd.xlane.f32.xlu0 %v2356
        %v2358 = vpop.xlane.xlu0 %2357
        %v2359 = vmul.f32 %v2358, %v2104
        %v2360 = vadd.f32 %v2359, 1e-05
        %v2361 = vrsqrt.pop %v2360
        %v2362 = vmul.f32 %v2354, %v2361
        %v2364 = vlaneseq
        %v2365 = vshrl.u32 %v2364, 7
        %v2366 = vsub.s32 0, %v2365
        %v2367 = vrot.slane %v2348, %v2366
        %v2369 = vmul.f32 %v2362, %v2367
        %v2371 = vlaneseq
        %v2372 = vshrl.u32 %v2371, 7
        %v2373 = vsub.s32 0, %v2372
        %v2374 = vrot.slane %v2349, %v2373
        %v2376 = vadd.f32 %v2369, %v2374
        %2377 = vst.msk [vmem:[%s858] sm:$0xff] %vm1491, %v2376
      $region116: #{rubik_forward.2} parent=103 // pred_fallthru
        _
      %p2378 = scmp.lt.s32.totalorder %s36, 1
      %s2379 = scalar_select %p2378, %s36, 1
      %s2380 = smul.addr %s2379, 8
      %s2381 = scalar_lea.vmem %s21, %s2380
      // Predicated region
      $region117: #{rubik_forward.2} parent=103 // pred_check
        %p2382 = pneg %p568
      $region118: #{rubik_forward.2} parent=103 // pred_check_branch
        %2384 = sbr.rel (%p2382) target = $region120
      $region119: #{rubik_forward.2} parent=103 // pred_region
        _
      $region120: #{rubik_forward.2} parent=103 // pred_fallthru
        _
    $region104: #{rubik_forward.2} parent=5 // pred_fallthru
      _
    %p2385 = scmp.le.s32.totalorder 2, %s27
    // Predicated region
    $region121: #{rubik_forward.2} parent=5 // pred_check
      %p2386 = pneg %p2385
    $region122: #{rubik_forward.2} parent=5 // pred_check_branch
      %2388 = sbr.rel (%p2386) target = $region124
    $region123: #{rubik_forward.2} parent=5 // pred_region
      %s2389 = ssub.s32 %s27, 2
      // Predicated region
      $region125: #{rubik_forward.2} parent=123 // pred_check
        %p2390 = pneg %p574
      $region126: #{rubik_forward.2} parent=123 // pred_check_branch
        %2392 = sbr.rel (%p2390) target = $region128
      $region127: #{rubik_forward.2} parent=123 // pred_region
        %p2393 = scmp.lt.s32.totalorder %s38, 1
        %s2394 = scalar_select %p2393, %s38, 1
        %s2395 = smul.addr %s2394, 8
        %s2396 = scalar_lea.vmem %s21, %s2395
      $region128: #{rubik_forward.2} parent=123 // pred_fallthru
        _
    $region124: #{rubik_forward.2} parent=5 // pred_fallthru
      _
  $region6: #{rubik_forward.2} parent=0 // loop_footer
    %s31 = sadd.s32 1, %s27
  $region7: #{rubik_forward.2} parent=0 // loop_footer_branch
    %26 = sbr.rel target = $region3
  $region8: #{rubik_forward.2} parent=0 // loop_exit
    _

// kernel: rubik_forward.3
$region0: #{rubik_forward.3}
  #allocation0 [shape = 'u32[]', space=smem, size = 0x4, offset = 0x4, fixed_abs, tag = 'smem constant byte address 0x4 - core index']
  #allocation1 [shape = 'u32[144,128]{1,0:T(1,128)}', space=vmem, size = 0x12000, scoped, tag = 'internal scratch']
  #allocation2 [shape = 'f32[7,32]{1,0:T(8,128)}', space=vmem, size = 0x1000, scoped, tag = 'scratch operand']
  %s0 = inlined_call_operand.vmem [shape: f32[2,7,32], index: 0, kind: input, shape index: {}]
  %s1 = inlined_call_operand.vmem [shape: f32[2,8,32], index: 1, kind: input, shape index: {}]
  %s2 = inlined_call_operand.vmem [shape: bf16[2,32,96], index: 2, kind: input, shape index: {}]
  %s3 = inlined_call_operand.vmem [shape: f32[2,1,96], index: 3, kind: input, shape index: {}]
  %s4 = inlined_call_operand.vmem [shape: bf16[2,32,32], index: 4, kind: input, shape index: {}]
  %s5 = inlined_call_operand.vmem [shape: f32[2,1,32], index: 5, kind: input, shape index: {}]
  %s6 = inlined_call_operand.vmem [shape: f32[2,1,32], index: 6, kind: input, shape index: {}]
  %s7 = inlined_call_operand.vmem [shape: f32[2,1,32], index: 7, kind: input, shape index: {}]
  %s8 = inlined_call_operand.vmem [shape: bf16[2,32,32], index: 8, kind: input, shape index: {}]
  %s9 = inlined_call_operand.vmem [shape: f32[2,1,32], index: 9, kind: input, shape index: {}]
  %s10 = inlined_call_operand.vmem [shape: bf16[2,32,64], index: 10, kind: input, shape index: {}]
  %s11 = inlined_call_operand.vmem [shape: f32[2,1,64], index: 11, kind: input, shape index: {}]
  %s12 = inlined_call_operand.vmem [shape: bf16[2,32,32], index: 12, kind: input, shape index: {}]
  %s13 = inlined_call_operand.vmem [shape: f32[2,1,32], index: 13, kind: input, shape index: {}]
  %s14 = inlined_call_operand.vmem [shape: f32[2,1,32], index: 14, kind: input, shape index: {}]
  %s15 = inlined_call_operand.vmem [shape: f32[2,1,32], index: 15, kind: input, shape index: {}]
  %s16 = inlined_call_operand.vmem [shape: bf16[2,32,128], index: 16, kind: input, shape index: {}]
  %s17 = inlined_call_operand.vmem [shape: f32[2,1,128], index: 17, kind: input, shape index: {}]
  %s18 = inlined_call_operand.vmem [shape: bf16[2,128,32], index: 18, kind: input, shape index: {}]
  %s19 = inlined_call_operand.vmem [shape: f32[2,1,32], index: 19, kind: input, shape index: {}]
  %s20 = inlined_call_operand.vmem [shape: f32[2,1,32], index: 20, kind: input, shape index: {}]
  %s21 = inlined_call_operand.vmem [shape: f32[2,1,32], index: 21, kind: input, shape index: {}]
  %s22 = inlined_call_operand.vmem [shape: f32[1,32], index: 22, kind: input, shape index: {}]
  %s23 = inlined_call_operand.vmem [shape: f32[1,32], index: 23, kind: input, shape index: {}]
  %s24 = inlined_call_operand.vmem [shape: bf16[32,128], index: 24, kind: input, shape index: {}]
  %s25 = inlined_call_operand.vmem [shape: f32[1,128], index: 25, kind: input, shape index: {}]
  %s26 = inlined_call_operand.vmem [shape: f32[2,7,128], index: 26, kind: output, shape index: {}]
  %s27 = sld [smem:[#allocation0]]
  $region149: #{rubik_forward.3} parent=0
    _
  %s29 = ssub.s32 1, %s27
  %s30 = scalar_select 0, %s29, %s27
  loop: start=0, step=1, limit=6
  $region2: #{rubik_forward.3} parent=0 // loop_pre_header
    _
  $region3: #{rubik_forward.3} parent=0 // loop_header
    %s32 = sphi 0, %s36
    %p33 = scmp.ge.s32.totalorder %s32, 6
    %s39 = sphi 0, %s51
    %s40 = sphi 0, %s47
    %s41 = sphi 0, %s39
    %s42 = sphi 0, %s40
    %s43 = sphi 0, %s41
    %s44 = sphi 0, %s42
    %s54 = sphi 0, %s56
    %s57 = sphi 0, %s54
    %s58 = sphi 0, %s57
    %s74 = sphi 0, %s58
    %s80 = sphi 0, %s82
    %s83 = sphi 0, %s80
    %s84 = sphi 0, %s83
    %s100 = sphi 0, %s84
    %s106 = sphi 0, %s108
    %s109 = sphi 0, %s106
    %s110 = sphi 0, %s109
    %s126 = sphi 0, %s110
    %s132 = sphi 0, %s134
    %s135 = sphi 0, %s132
    %s136 = sphi 0, %s135
    %s152 = sphi 0, %s136
    %s158 = sphi 0, %s160
    %s161 = sphi 0, %s158
    %s162 = sphi 0, %s161
    %s178 = sphi 0, %s162
    %s184 = sphi 0, %s186
    %s187 = sphi 0, %s184
    %s188 = sphi 0, %s187
    %s204 = sphi 0, %s188
    %s210 = sphi 0, %s212
    %s213 = sphi 0, %s210
    %s214 = sphi 0, %s213
    %s230 = sphi 0, %s214
    %s236 = sphi 0, %s238
    %s239 = sphi 0, %s236
    %s240 = sphi 0, %s239
    %s256 = sphi 0, %s240
    %s262 = sphi 0, %s264
    %s265 = sphi 0, %s262
    %s266 = sphi 0, %s265
    %s282 = sphi 0, %s266
    %s288 = sphi 0, %s290
    %s291 = sphi 0, %s288
    %s292 = sphi 0, %s291
    %s308 = sphi 0, %s292
    %s314 = sphi 0, %s316
    %s317 = sphi 0, %s314
    %s318 = sphi 0, %s317
    %s334 = sphi 0, %s318
    %s340 = sphi 0, %s342
    %s343 = sphi 0, %s340
    %s344 = sphi 0, %s343
    %s360 = sphi 0, %s344
    %s366 = sphi 0, %s368
    %s369 = sphi 0, %s366
    %s370 = sphi 0, %s369
    %s386 = sphi 0, %s370
    %s392 = sphi 0, %s394
    %s395 = sphi 0, %s392
    %s396 = sphi 0, %s395
    %s412 = sphi 0, %s396
    %s418 = sphi 0, %s420
    %s421 = sphi 0, %s418
    %s422 = sphi 0, %s421
    %s438 = sphi 0, %s422
    %s444 = sphi 0, %s446
    %s447 = sphi 0, %s444
    %s448 = sphi 0, %s447
    %s464 = sphi 0, %s448
    %s470 = sphi 0, %s472
    %s473 = sphi 0, %s470
    %s474 = sphi 0, %s473
    %s490 = sphi 0, %s474
    %s496 = sphi 0, %s498
    %s499 = sphi 0, %s496
    %s500 = sphi 0, %s499
    %s516 = sphi 0, %s500
    %s522 = sphi 0, %s524
    %s525 = sphi 0, %s522
    %s526 = sphi 0, %s525
    %s542 = sphi 0, %s526
    %s548 = sphi 0, %s550
    %s551 = sphi 0, %s548
    %s552 = sphi 0, %s551
    %s568 = sphi 0, %s552
    %s574 = sphi 0, %s576
    %s577 = sphi 0, %s574
    %s578 = sphi 0, %s577
    %s594 = sphi 0, %s578
    %s600 = sphi 0, %s602
    %s603 = sphi 0, %s600
    %s604 = sphi 0, %s603
    %s620 = sphi 0, %s604
    %s624 = sphi 0, %s624
    %s626 = sphi 0, %s624
    %s627 = sphi 0, %s626
    %s641 = sphi 0, %s627
    %s645 = sphi 0, %s645
    %s647 = sphi 0, %s645
    %s648 = sphi 0, %s647
    %s662 = sphi 0, %s648
    %s666 = sphi 0, %s666
    %s668 = sphi 0, %s666
    %s669 = sphi 0, %s668
    %s683 = sphi 0, %s669
    %s687 = sphi 0, %s687
    %s689 = sphi 0, %s687
    %s690 = sphi 0, %s689
    %s704 = sphi 0, %s690
    %s710 = sphi 0, %s712
    %s713 = sphi 0, %s710
    %s714 = sphi 0, %s713
    %s730 = sphi 0, %s714
  $region4: #{rubik_forward.3} parent=0 // loop_header_branch
    %35 = sbr.rel (%p33) target = $region8
  $region5: #{rubik_forward.3} parent=0 // loop_body
    %s37 = ssub.s32 %s32, 1
    %s38 = ssub.s32 %s32, 2
    %s45 = sadd.s32 1, %s40
    %p46 = scmp.ge.s32.totalorder %s45, 2
    %s47 = scalar_select %p46, 0, %s45
    %s48 = sadd.s32 1, %s39
    %s49 = scalar_select %p46, %s48, %s39
    %p50 = scmp.ge.s32.totalorder %s49, 2
    %s51 = scalar_select %p50, 0, %s49
    %s52 = ssub.s32 %s39, %s51
    %p53 = scmp.eq.s32.totalorder %s52, 0
    %s55 = sadd.s32 %s54, 1
    %s56 = scalar_select %p53, %s54, %s55
    %p59 = pneg %p53
    %p60 = scmp.eq.s32.totalorder %s32, 3
    %p61 = por %p59, %p60
    %p62 = scmp.ne.s32.totalorder %s54, %s57
    %p63 = scmp.eq.s32.totalorder %s32, 0
    %p64 = por %p62, %p63
    %p65 = scmp.ne.s32.totalorder %s54, %s57
    %p66 = scmp.eq.s32.totalorder %s37, 3
    %p67 = por %p65, %p66
    %p68 = scmp.ne.s32.totalorder %s57, %s58
    %p69 = scmp.eq.s32.totalorder %s37, 0
    %p70 = por %p68, %p69
    %p71 = scmp.ne.s32.totalorder %s57, %s58
    %p72 = scmp.eq.s32.totalorder %s38, 3
    %p73 = por %p71, %p72
    %p75 = scmp.ne.s32.totalorder %s58, %s74
    %p76 = scmp.eq.s32.totalorder %s38, 0
    %p77 = por %p75, %p76
    %s78 = ssub.s32 %s39, %s51
    %p79 = scmp.eq.s32.totalorder %s78, 0
    %s81 = sadd.s32 %s80, 1
    %s82 = scalar_select %p79, %s80, %s81
    %p85 = pneg %p79
    %p86 = scmp.eq.s32.totalorder %s32, 3
    %p87 = por %p85, %p86
    %p88 = scmp.ne.s32.totalorder %s80, %s83
    %p89 = scmp.eq.s32.totalorder %s32, 0
    %p90 = por %p88, %p89
    %p91 = scmp.ne.s32.totalorder %s80, %s83
    %p92 = scmp.eq.s32.totalorder %s37, 3
    %p93 = por %p91, %p92
    %p94 = scmp.ne.s32.totalorder %s83, %s84
    %p95 = scmp.eq.s32.totalorder %s37, 0
    %p96 = por %p94, %p95
    %p97 = scmp.ne.s32.totalorder %s83, %s84
    %p98 = scmp.eq.s32.totalorder %s38, 3
    %p99 = por %p97, %p98
    %p101 = scmp.ne.s32.totalorder %s84, %s100
    %p102 = scmp.eq.s32.totalorder %s38, 0
    %p103 = por %p101, %p102
    %s104 = ssub.s32 %s40, %s47
    %p105 = scmp.eq.s32.totalorder %s104, 0
    %s107 = sadd.s32 %s106, 1
    %s108 = scalar_select %p105, %s106, %s107
    %p111 = pneg %p105
    %p112 = scmp.eq.s32.totalorder %s32, 3
    %p113 = por %p111, %p112
    %p114 = scmp.ne.s32.totalorder %s106, %s109
    %p115 = scmp.eq.s32.totalorder %s32, 0
    %p116 = por %p114, %p115
    %p117 = scmp.ne.s32.totalorder %s106, %s109
    %p118 = scmp.eq.s32.totalorder %s37, 3
    %p119 = por %p117, %p118
    %p120 = scmp.ne.s32.totalorder %s109, %s110
    %p121 = scmp.eq.s32.totalorder %s37, 0
    %p122 = por %p120, %p121
    %p123 = scmp.ne.s32.totalorder %s109, %s110
    %p124 = scmp.eq.s32.totalorder %s38, 3
    %p125 = por %p123, %p124
    %p127 = scmp.ne.s32.totalorder %s110, %s126
    %p128 = scmp.eq.s32.totalorder %s38, 0
    %p129 = por %p127, %p128
    %s130 = ssub.s32 %s40, %s47
    %p131 = scmp.eq.s32.totalorder %s130, 0
    %s133 = sadd.s32 %s132, 1
    %s134 = scalar_select %p131, %s132, %s133
    %p137 = pneg %p131
    %p138 = scmp.eq.s32.totalorder %s32, 3
    %p139 = por %p137, %p138
    %p140 = scmp.ne.s32.totalorder %s132, %s135
    %p141 = scmp.eq.s32.totalorder %s32, 0
    %p142 = por %p140, %p141
    %p143 = scmp.ne.s32.totalorder %s132, %s135
    %p144 = scmp.eq.s32.totalorder %s37, 3
    %p145 = por %p143, %p144
    %p146 = scmp.ne.s32.totalorder %s135, %s136
    %p147 = scmp.eq.s32.totalorder %s37, 0
    %p148 = por %p146, %p147
    %p149 = scmp.ne.s32.totalorder %s135, %s136
    %p150 = scmp.eq.s32.totalorder %s38, 3
    %p151 = por %p149, %p150
    %p153 = scmp.ne.s32.totalorder %s136, %s152
    %p154 = scmp.eq.s32.totalorder %s38, 0
    %p155 = por %p153, %p154
    %s156 = ssub.s32 %s40, %s47
    %p157 = scmp.eq.s32.totalorder %s156, 0
    %s159 = sadd.s32 %s158, 1
    %s160 = scalar_select %p157, %s158, %s159
    %p163 = pneg %p157
    %p164 = scmp.eq.s32.totalorder %s32, 3
    %p165 = por %p163, %p164
    %p166 = scmp.ne.s32.totalorder %s158, %s161
    %p167 = scmp.eq.s32.totalorder %s32, 0
    %p168 = por %p166, %p167
    %p169 = scmp.ne.s32.totalorder %s158, %s161
    %p170 = scmp.eq.s32.totalorder %s37, 3
    %p171 = por %p169, %p170
    %p172 = scmp.ne.s32.totalorder %s161, %s162
    %p173 = scmp.eq.s32.totalorder %s37, 0
    %p174 = por %p172, %p173
    %p175 = scmp.ne.s32.totalorder %s161, %s162
    %p176 = scmp.eq.s32.totalorder %s38, 3
    %p177 = por %p175, %p176
    %p179 = scmp.ne.s32.totalorder %s162, %s178
    %p180 = scmp.eq.s32.totalorder %s38, 0
    %p181 = por %p179, %p180
    %s182 = ssub.s32 %s40, %s47
    %p183 = scmp.eq.s32.totalorder %s182, 0
    %s185 = sadd.s32 %s184, 1
    %s186 = scalar_select %p183, %s184, %s185
    %p189 = pneg %p183
    %p190 = scmp.eq.s32.totalorder %s32, 3
    %p191 = por %p189, %p190
    %p192 = scmp.ne.s32.totalorder %s184, %s187
    %p193 = scmp.eq.s32.totalorder %s32, 0
    %p194 = por %p192, %p193
    %p195 = scmp.ne.s32.totalorder %s184, %s187
    %p196 = scmp.eq.s32.totalorder %s37, 3
    %p197 = por %p195, %p196
    %p198 = scmp.ne.s32.totalorder %s187, %s188
    %p199 = scmp.eq.s32.totalorder %s37, 0
    %p200 = por %p198, %p199
    %p201 = scmp.ne.s32.totalorder %s187, %s188
    %p202 = scmp.eq.s32.totalorder %s38, 3
    %p203 = por %p201, %p202
    %p205 = scmp.ne.s32.totalorder %s188, %s204
    %p206 = scmp.eq.s32.totalorder %s38, 0
    %p207 = por %p205, %p206
    %s208 = ssub.s32 %s40, %s47
    %p209 = scmp.eq.s32.totalorder %s208, 0
    %s211 = sadd.s32 %s210, 1
    %s212 = scalar_select %p209, %s210, %s211
    %p215 = pneg %p209
    %p216 = scmp.eq.s32.totalorder %s32, 3
    %p217 = por %p215, %p216
    %p218 = scmp.ne.s32.totalorder %s210, %s213
    %p219 = scmp.eq.s32.totalorder %s32, 0
    %p220 = por %p218, %p219
    %p221 = scmp.ne.s32.totalorder %s210, %s213
    %p222 = scmp.eq.s32.totalorder %s37, 3
    %p223 = por %p221, %p222
    %p224 = scmp.ne.s32.totalorder %s213, %s214
    %p225 = scmp.eq.s32.totalorder %s37, 0
    %p226 = por %p224, %p225
    %p227 = scmp.ne.s32.totalorder %s213, %s214
    %p228 = scmp.eq.s32.totalorder %s38, 3
    %p229 = por %p227, %p228
    %p231 = scmp.ne.s32.totalorder %s214, %s230
    %p232 = scmp.eq.s32.totalorder %s38, 0
    %p233 = por %p231, %p232
    %s234 = ssub.s32 %s40, %s47
    %p235 = scmp.eq.s32.totalorder %s234, 0
    %s237 = sadd.s32 %s236, 1
    %s238 = scalar_select %p235, %s236, %s237
    %p241 = pneg %p235
    %p242 = scmp.eq.s32.totalorder %s32, 3
    %p243 = por %p241, %p242
    %p244 = scmp.ne.s32.totalorder %s236, %s239
    %p245 = scmp.eq.s32.totalorder %s32, 0
    %p246 = por %p244, %p245
    %p247 = scmp.ne.s32.totalorder %s236, %s239
    %p248 = scmp.eq.s32.totalorder %s37, 3
    %p249 = por %p247, %p248
    %p250 = scmp.ne.s32.totalorder %s239, %s240
    %p251 = scmp.eq.s32.totalorder %s37, 0
    %p252 = por %p250, %p251
    %p253 = scmp.ne.s32.totalorder %s239, %s240
    %p254 = scmp.eq.s32.totalorder %s38, 3
    %p255 = por %p253, %p254
    %p257 = scmp.ne.s32.totalorder %s240, %s256
    %p258 = scmp.eq.s32.totalorder %s38, 0
    %p259 = por %p257, %p258
    %s260 = ssub.s32 %s40, %s47
    %p261 = scmp.eq.s32.totalorder %s260, 0
    %s263 = sadd.s32 %s262, 1
    %s264 = scalar_select %p261, %s262, %s263
    %p267 = pneg %p261
    %p268 = scmp.eq.s32.totalorder %s32, 3
    %p269 = por %p267, %p268
    %p270 = scmp.ne.s32.totalorder %s262, %s265
    %p271 = scmp.eq.s32.totalorder %s32, 0
    %p272 = por %p270, %p271
    %p273 = scmp.ne.s32.totalorder %s262, %s265
    %p274 = scmp.eq.s32.totalorder %s37, 3
    %p275 = por %p273, %p274
    %p276 = scmp.ne.s32.totalorder %s265, %s266
    %p277 = scmp.eq.s32.totalorder %s37, 0
    %p278 = por %p276, %p277
    %p279 = scmp.ne.s32.totalorder %s265, %s266
    %p280 = scmp.eq.s32.totalorder %s38, 3
    %p281 = por %p279, %p280
    %p283 = scmp.ne.s32.totalorder %s266, %s282
    %p284 = scmp.eq.s32.totalorder %s38, 0
    %p285 = por %p283, %p284
    %s286 = ssub.s32 %s40, %s47
    %p287 = scmp.eq.s32.totalorder %s286, 0
    %s289 = sadd.s32 %s288, 1
    %s290 = scalar_select %p287, %s288, %s289
    %p293 = pneg %p287
    %p294 = scmp.eq.s32.totalorder %s32, 3
    %p295 = por %p293, %p294
    %p296 = scmp.ne.s32.totalorder %s288, %s291
    %p297 = scmp.eq.s32.totalorder %s32, 0
    %p298 = por %p296, %p297
    %p299 = scmp.ne.s32.totalorder %s288, %s291
    %p300 = scmp.eq.s32.totalorder %s37, 3
    %p301 = por %p299, %p300
    %p302 = scmp.ne.s32.totalorder %s291, %s292
    %p303 = scmp.eq.s32.totalorder %s37, 0
    %p304 = por %p302, %p303
    %p305 = scmp.ne.s32.totalorder %s291, %s292
    %p306 = scmp.eq.s32.totalorder %s38, 3
    %p307 = por %p305, %p306
    %p309 = scmp.ne.s32.totalorder %s292, %s308
    %p310 = scmp.eq.s32.totalorder %s38, 0
    %p311 = por %p309, %p310
    %s312 = ssub.s32 %s40, %s47
    %p313 = scmp.eq.s32.totalorder %s312, 0
    %s315 = sadd.s32 %s314, 1
    %s316 = scalar_select %p313, %s314, %s315
    %p319 = pneg %p313
    %p320 = scmp.eq.s32.totalorder %s32, 3
    %p321 = por %p319, %p320
    %p322 = scmp.ne.s32.totalorder %s314, %s317
    %p323 = scmp.eq.s32.totalorder %s32, 0
    %p324 = por %p322, %p323
    %p325 = scmp.ne.s32.totalorder %s314, %s317
    %p326 = scmp.eq.s32.totalorder %s37, 3
    %p327 = por %p325, %p326
    %p328 = scmp.ne.s32.totalorder %s317, %s318
    %p329 = scmp.eq.s32.totalorder %s37, 0
    %p330 = por %p328, %p329
    %p331 = scmp.ne.s32.totalorder %s317, %s318
    %p332 = scmp.eq.s32.totalorder %s38, 3
    %p333 = por %p331, %p332
    %p335 = scmp.ne.s32.totalorder %s318, %s334
    %p336 = scmp.eq.s32.totalorder %s38, 0
    %p337 = por %p335, %p336
    %s338 = ssub.s32 %s40, %s47
    %p339 = scmp.eq.s32.totalorder %s338, 0
    %s341 = sadd.s32 %s340, 1
    %s342 = scalar_select %p339, %s340, %s341
    %p345 = pneg %p339
    %p346 = scmp.eq.s32.totalorder %s32, 3
    %p347 = por %p345, %p346
    %p348 = scmp.ne.s32.totalorder %s340, %s343
    %p349 = scmp.eq.s32.totalorder %s32, 0
    %p350 = por %p348, %p349
    %p351 = scmp.ne.s32.totalorder %s340, %s343
    %p352 = scmp.eq.s32.totalorder %s37, 3
    %p353 = por %p351, %p352
    %p354 = scmp.ne.s32.totalorder %s343, %s344
    %p355 = scmp.eq.s32.totalorder %s37, 0
    %p356 = por %p354, %p355
    %p357 = scmp.ne.s32.totalorder %s343, %s344
    %p358 = scmp.eq.s32.totalorder %s38, 3
    %p359 = por %p357, %p358
    %p361 = scmp.ne.s32.totalorder %s344, %s360
    %p362 = scmp.eq.s32.totalorder %s38, 0
    %p363 = por %p361, %p362
    %s364 = ssub.s32 %s40, %s47
    %p365 = scmp.eq.s32.totalorder %s364, 0
    %s367 = sadd.s32 %s366, 1
    %s368 = scalar_select %p365, %s366, %s367
    %p371 = pneg %p365
    %p372 = scmp.eq.s32.totalorder %s32, 3
    %p373 = por %p371, %p372
    %p374 = scmp.ne.s32.totalorder %s366, %s369
    %p375 = scmp.eq.s32.totalorder %s32, 0
    %p376 = por %p374, %p375
    %p377 = scmp.ne.s32.totalorder %s366, %s369
    %p378 = scmp.eq.s32.totalorder %s37, 3
    %p379 = por %p377, %p378
    %p380 = scmp.ne.s32.totalorder %s369, %s370
    %p381 = scmp.eq.s32.totalorder %s37, 0
    %p382 = por %p380, %p381
    %p383 = scmp.ne.s32.totalorder %s369, %s370
    %p384 = scmp.eq.s32.totalorder %s38, 3
    %p385 = por %p383, %p384
    %p387 = scmp.ne.s32.totalorder %s370, %s386
    %p388 = scmp.eq.s32.totalorder %s38, 0
    %p389 = por %p387, %p388
    %s390 = ssub.s32 %s40, %s47
    %p391 = scmp.eq.s32.totalorder %s390, 0
    %s393 = sadd.s32 %s392, 1
    %s394 = scalar_select %p391, %s392, %s393
    %p397 = pneg %p391
    %p398 = scmp.eq.s32.totalorder %s32, 3
    %p399 = por %p397, %p398
    %p400 = scmp.ne.s32.totalorder %s392, %s395
    %p401 = scmp.eq.s32.totalorder %s32, 0
    %p402 = por %p400, %p401
    %p403 = scmp.ne.s32.totalorder %s392, %s395
    %p404 = scmp.eq.s32.totalorder %s37, 3
    %p405 = por %p403, %p404
    %p406 = scmp.ne.s32.totalorder %s395, %s396
    %p407 = scmp.eq.s32.totalorder %s37, 0
    %p408 = por %p406, %p407
    %p409 = scmp.ne.s32.totalorder %s395, %s396
    %p410 = scmp.eq.s32.totalorder %s38, 3
    %p411 = por %p409, %p410
    %p413 = scmp.ne.s32.totalorder %s396, %s412
    %p414 = scmp.eq.s32.totalorder %s38, 0
    %p415 = por %p413, %p414
    %s416 = ssub.s32 %s40, %s47
    %p417 = scmp.eq.s32.totalorder %s416, 0
    %s419 = sadd.s32 %s418, 1
    %s420 = scalar_select %p417, %s418, %s419
    %p423 = pneg %p417
    %p424 = scmp.eq.s32.totalorder %s32, 3
    %p425 = por %p423, %p424
    %p426 = scmp.ne.s32.totalorder %s418, %s421
    %p427 = scmp.eq.s32.totalorder %s32, 0
    %p428 = por %p426, %p427
    %p429 = scmp.ne.s32.totalorder %s418, %s421
    %p430 = scmp.eq.s32.totalorder %s37, 3
    %p431 = por %p429, %p430
    %p432 = scmp.ne.s32.totalorder %s421, %s422
    %p433 = scmp.eq.s32.totalorder %s37, 0
    %p434 = por %p432, %p433
    %p435 = scmp.ne.s32.totalorder %s421, %s422
    %p436 = scmp.eq.s32.totalorder %s38, 3
    %p437 = por %p435, %p436
    %p439 = scmp.ne.s32.totalorder %s422, %s438
    %p440 = scmp.eq.s32.totalorder %s38, 0
    %p441 = por %p439, %p440
    %s442 = ssub.s32 %s40, %s47
    %p443 = scmp.eq.s32.totalorder %s442, 0
    %s445 = sadd.s32 %s444, 1
    %s446 = scalar_select %p443, %s444, %s445
    %p449 = pneg %p443
    %p450 = scmp.eq.s32.totalorder %s32, 3
    %p451 = por %p449, %p450
    %p452 = scmp.ne.s32.totalorder %s444, %s447
    %p453 = scmp.eq.s32.totalorder %s32, 0
    %p454 = por %p452, %p453
    %p455 = scmp.ne.s32.totalorder %s444, %s447
    %p456 = scmp.eq.s32.totalorder %s37, 3
    %p457 = por %p455, %p456
    %p458 = scmp.ne.s32.totalorder %s447, %s448
    %p459 = scmp.eq.s32.totalorder %s37, 0
    %p460 = por %p458, %p459
    %p461 = scmp.ne.s32.totalorder %s447, %s448
    %p462 = scmp.eq.s32.totalorder %s38, 3
    %p463 = por %p461, %p462
    %p465 = scmp.ne.s32.totalorder %s448, %s464
    %p466 = scmp.eq.s32.totalorder %s38, 0
    %p467 = por %p465, %p466
    %s468 = ssub.s32 %s40, %s47
    %p469 = scmp.eq.s32.totalorder %s468, 0
    %s471 = sadd.s32 %s470, 1
    %s472 = scalar_select %p469, %s470, %s471
    %p475 = pneg %p469
    %p476 = scmp.eq.s32.totalorder %s32, 3
    %p477 = por %p475, %p476
    %p478 = scmp.ne.s32.totalorder %s470, %s473
    %p479 = scmp.eq.s32.totalorder %s32, 0
    %p480 = por %p478, %p479
    %p481 = scmp.ne.s32.totalorder %s470, %s473
    %p482 = scmp.eq.s32.totalorder %s37, 3
    %p483 = por %p481, %p482
    %p484 = scmp.ne.s32.totalorder %s473, %s474
    %p485 = scmp.eq.s32.totalorder %s37, 0
    %p486 = por %p484, %p485
    %p487 = scmp.ne.s32.totalorder %s473, %s474
    %p488 = scmp.eq.s32.totalorder %s38, 3
    %p489 = por %p487, %p488
    %p491 = scmp.ne.s32.totalorder %s474, %s490
    %p492 = scmp.eq.s32.totalorder %s38, 0
    %p493 = por %p491, %p492
    %s494 = ssub.s32 %s40, %s47
    %p495 = scmp.eq.s32.totalorder %s494, 0
    %s497 = sadd.s32 %s496, 1
    %s498 = scalar_select %p495, %s496, %s497
    %p501 = pneg %p495
    %p502 = scmp.eq.s32.totalorder %s32, 3
    %p503 = por %p501, %p502
    %p504 = scmp.ne.s32.totalorder %s496, %s499
    %p505 = scmp.eq.s32.totalorder %s32, 0
    %p506 = por %p504, %p505
    %p507 = scmp.ne.s32.totalorder %s496, %s499
    %p508 = scmp.eq.s32.totalorder %s37, 3
    %p509 = por %p507, %p508
    %p510 = scmp.ne.s32.totalorder %s499, %s500
    %p511 = scmp.eq.s32.totalorder %s37, 0
    %p512 = por %p510, %p511
    %p513 = scmp.ne.s32.totalorder %s499, %s500
    %p514 = scmp.eq.s32.totalorder %s38, 3
    %p515 = por %p513, %p514
    %p517 = scmp.ne.s32.totalorder %s500, %s516
    %p518 = scmp.eq.s32.totalorder %s38, 0
    %p519 = por %p517, %p518
    %s520 = ssub.s32 %s40, %s47
    %p521 = scmp.eq.s32.totalorder %s520, 0
    %s523 = sadd.s32 %s522, 1
    %s524 = scalar_select %p521, %s522, %s523
    %p527 = pneg %p521
    %p528 = scmp.eq.s32.totalorder %s32, 3
    %p529 = por %p527, %p528
    %p530 = scmp.ne.s32.totalorder %s522, %s525
    %p531 = scmp.eq.s32.totalorder %s32, 0
    %p532 = por %p530, %p531
    %p533 = scmp.ne.s32.totalorder %s522, %s525
    %p534 = scmp.eq.s32.totalorder %s37, 3
    %p535 = por %p533, %p534
    %p536 = scmp.ne.s32.totalorder %s525, %s526
    %p537 = scmp.eq.s32.totalorder %s37, 0
    %p538 = por %p536, %p537
    %p539 = scmp.ne.s32.totalorder %s525, %s526
    %p540 = scmp.eq.s32.totalorder %s38, 3
    %p541 = por %p539, %p540
    %p543 = scmp.ne.s32.totalorder %s526, %s542
    %p544 = scmp.eq.s32.totalorder %s38, 0
    %p545 = por %p543, %p544
    %s546 = ssub.s32 %s40, %s47
    %p547 = scmp.eq.s32.totalorder %s546, 0
    %s549 = sadd.s32 %s548, 1
    %s550 = scalar_select %p547, %s548, %s549
    %p553 = pneg %p547
    %p554 = scmp.eq.s32.totalorder %s32, 3
    %p555 = por %p553, %p554
    %p556 = scmp.ne.s32.totalorder %s548, %s551
    %p557 = scmp.eq.s32.totalorder %s32, 0
    %p558 = por %p556, %p557
    %p559 = scmp.ne.s32.totalorder %s548, %s551
    %p560 = scmp.eq.s32.totalorder %s37, 3
    %p561 = por %p559, %p560
    %p562 = scmp.ne.s32.totalorder %s551, %s552
    %p563 = scmp.eq.s32.totalorder %s37, 0
    %p564 = por %p562, %p563
    %p565 = scmp.ne.s32.totalorder %s551, %s552
    %p566 = scmp.eq.s32.totalorder %s38, 3
    %p567 = por %p565, %p566
    %p569 = scmp.ne.s32.totalorder %s552, %s568
    %p570 = scmp.eq.s32.totalorder %s38, 0
    %p571 = por %p569, %p570
    %s572 = ssub.s32 %s40, %s47
    %p573 = scmp.eq.s32.totalorder %s572, 0
    %s575 = sadd.s32 %s574, 1
    %s576 = scalar_select %p573, %s574, %s575
    %p579 = pneg %p573
    %p580 = scmp.eq.s32.totalorder %s32, 3
    %p581 = por %p579, %p580
    %p582 = scmp.ne.s32.totalorder %s574, %s577
    %p583 = scmp.eq.s32.totalorder %s32, 0
    %p584 = por %p582, %p583
    %p585 = scmp.ne.s32.totalorder %s574, %s577
    %p586 = scmp.eq.s32.totalorder %s37, 3
    %p587 = por %p585, %p586
    %p588 = scmp.ne.s32.totalorder %s577, %s578
    %p589 = scmp.eq.s32.totalorder %s37, 0
    %p590 = por %p588, %p589
    %p591 = scmp.ne.s32.totalorder %s577, %s578
    %p592 = scmp.eq.s32.totalorder %s38, 3
    %p593 = por %p591, %p592
    %p595 = scmp.ne.s32.totalorder %s578, %s594
    %p596 = scmp.eq.s32.totalorder %s38, 0
    %p597 = por %p595, %p596
    %s598 = ssub.s32 %s40, %s47
    %p599 = scmp.eq.s32.totalorder %s598, 0
    %s601 = sadd.s32 %s600, 1
    %s602 = scalar_select %p599, %s600, %s601
    %p605 = pneg %p599
    %p606 = scmp.eq.s32.totalorder %s32, 3
    %p607 = por %p605, %p606
    %p608 = scmp.ne.s32.totalorder %s600, %s603
    %p609 = scmp.eq.s32.totalorder %s32, 0
    %p610 = por %p608, %p609
    %p611 = scmp.ne.s32.totalorder %s600, %s603
    %p612 = scmp.eq.s32.totalorder %s37, 3
    %p613 = por %p611, %p612
    %p614 = scmp.ne.s32.totalorder %s603, %s604
    %p615 = scmp.eq.s32.totalorder %s37, 0
    %p616 = por %p614, %p615
    %p617 = scmp.ne.s32.totalorder %s603, %s604
    %p618 = scmp.eq.s32.totalorder %s38, 3
    %p619 = por %p617, %p618
    %p621 = scmp.ne.s32.totalorder %s604, %s620
    %p622 = scmp.eq.s32.totalorder %s38, 0
    %p623 = por %p621, %p622
    %s625 = sadd.s32 %s624, 1
    %p628 = scmp.eq.s32.totalorder %s32, 3
    %p629 = scmp.ne.s32.totalorder %s624, %s626
    %p630 = scmp.eq.s32.totalorder %s32, 0
    %p631 = por %p629, %p630
    %p632 = scmp.ne.s32.totalorder %s624, %s626
    %p633 = scmp.eq.s32.totalorder %s37, 3
    %p634 = por %p632, %p633
    %p635 = scmp.ne.s32.totalorder %s626, %s627
    %p636 = scmp.eq.s32.totalorder %s37, 0
    %p637 = por %p635, %p636
    %p638 = scmp.ne.s32.totalorder %s626, %s627
    %p639 = scmp.eq.s32.totalorder %s38, 3
    %p640 = por %p638, %p639
    %p642 = scmp.ne.s32.totalorder %s627, %s641
    %p643 = scmp.eq.s32.totalorder %s38, 0
    %p644 = por %p642, %p643
    %s646 = sadd.s32 %s645, 1
    %p649 = scmp.eq.s32.totalorder %s32, 3
    %p650 = scmp.ne.s32.totalorder %s645, %s647
    %p651 = scmp.eq.s32.totalorder %s32, 0
    %p652 = por %p650, %p651
    %p653 = scmp.ne.s32.totalorder %s645, %s647
    %p654 = scmp.eq.s32.totalorder %s37, 3
    %p655 = por %p653, %p654
    %p656 = scmp.ne.s32.totalorder %s647, %s648
    %p657 = scmp.eq.s32.totalorder %s37, 0
    %p658 = por %p656, %p657
    %p659 = scmp.ne.s32.totalorder %s647, %s648
    %p660 = scmp.eq.s32.totalorder %s38, 3
    %p661 = por %p659, %p660
    %p663 = scmp.ne.s32.totalorder %s648, %s662
    %p664 = scmp.eq.s32.totalorder %s38, 0
    %p665 = por %p663, %p664
    %s667 = sadd.s32 %s666, 1
    %p670 = scmp.eq.s32.totalorder %s32, 3
    %p671 = scmp.ne.s32.totalorder %s666, %s668
    %p672 = scmp.eq.s32.totalorder %s32, 0
    %p673 = por %p671, %p672
    %p674 = scmp.ne.s32.totalorder %s666, %s668
    %p675 = scmp.eq.s32.totalorder %s37, 3
    %p676 = por %p674, %p675
    %p677 = scmp.ne.s32.totalorder %s668, %s669
    %p678 = scmp.eq.s32.totalorder %s37, 0
    %p679 = por %p677, %p678
    %p680 = scmp.ne.s32.totalorder %s668, %s669
    %p681 = scmp.eq.s32.totalorder %s38, 3
    %p682 = por %p680, %p681
    %p684 = scmp.ne.s32.totalorder %s669, %s683
    %p685 = scmp.eq.s32.totalorder %s38, 0
    %p686 = por %p684, %p685
    %s688 = sadd.s32 %s687, 1
    %p691 = scmp.eq.s32.totalorder %s32, 3
    %p692 = scmp.ne.s32.totalorder %s687, %s689
    %p693 = scmp.eq.s32.totalorder %s32, 0
    %p694 = por %p692, %p693
    %p695 = scmp.ne.s32.totalorder %s687, %s689
    %p696 = scmp.eq.s32.totalorder %s37, 3
    %p697 = por %p695, %p696
    %p698 = scmp.ne.s32.totalorder %s689, %s690
    %p699 = scmp.eq.s32.totalorder %s37, 0
    %p700 = por %p698, %p699
    %p701 = scmp.ne.s32.totalorder %s689, %s690
    %p702 = scmp.eq.s32.totalorder %s38, 3
    %p703 = por %p701, %p702
    %p705 = scmp.ne.s32.totalorder %s690, %s704
    %p706 = scmp.eq.s32.totalorder %s38, 0
    %p707 = por %p705, %p706
    %s708 = ssub.s32 %s39, %s51
    %p709 = scmp.eq.s32.totalorder %s708, 0
    %s711 = sadd.s32 %s710, 1
    %s712 = scalar_select %p709, %s710, %s711
    %p715 = pneg %p709
    %p716 = scmp.eq.s32.totalorder %s32, 3
    %p717 = por %p715, %p716
    %p718 = scmp.ne.s32.totalorder %s710, %s713
    %p719 = scmp.eq.s32.totalorder %s32, 0
    %p720 = por %p718, %p719
    %p721 = scmp.ne.s32.totalorder %s710, %s713
    %p722 = scmp.eq.s32.totalorder %s37, 3
    %p723 = por %p721, %p722
    %p724 = scmp.ne.s32.totalorder %s713, %s714
    %p725 = scmp.eq.s32.totalorder %s37, 0
    %p726 = por %p724, %p725
    %p727 = scmp.ne.s32.totalorder %s713, %s714
    %p728 = scmp.eq.s32.totalorder %s38, 3
    %p729 = por %p727, %p728
    %p731 = scmp.ne.s32.totalorder %s714, %s730
    %p732 = scmp.eq.s32.totalorder %s38, 0
    %p733 = por %p731, %p732
    %p734 = scmp.le.s32.totalorder 1, %s32
    %p735 = scmp.lt.s32.totalorder %s32, 5
    %p736 = pnand %p734, %p735
    %p737 = pneg %p736
    // Predicated region
    $region9: #{rubik_forward.3} parent=5 // pred_check
      _
    $region10: #{rubik_forward.3} parent=5 // pred_check_branch
      %739 = sbr.rel (%p736) target = $region12
    $region11: #{rubik_forward.3} parent=5 // pred_region
      %s740 = ssub.s32 %s32, 1
      // Predicated region
      $region13: #{rubik_forward.3} parent=11 // pred_check
        %p741 = pneg %p637
      $region14: #{rubik_forward.3} parent=11 // pred_check_branch
        %743 = sbr.rel (%p741) target = $region16
      $region15: #{rubik_forward.3} parent=11 // pred_region
        _
      $region16: #{rubik_forward.3} parent=11 // pred_fallthru
        _
      // Predicated region
      $region17: #{rubik_forward.3} parent=11 // pred_check
        %p744 = pneg %p658
      $region18: #{rubik_forward.3} parent=11 // pred_check_branch
        %746 = sbr.rel (%p744) target = $region20
      $region19: #{rubik_forward.3} parent=11 // pred_region
        _
      $region20: #{rubik_forward.3} parent=11 // pred_fallthru
        _
      // Predicated region
      $region21: #{rubik_forward.3} parent=11 // pred_check
        %p747 = pneg %p679
      $region22: #{rubik_forward.3} parent=11 // pred_check_branch
        %749 = sbr.rel (%p747) target = $region24
      $region23: #{rubik_forward.3} parent=11 // pred_region
        _
      $region24: #{rubik_forward.3} parent=11 // pred_fallthru
        _
      // Predicated region
      $region25: #{rubik_forward.3} parent=11 // pred_check
        %p750 = pneg %p700
      $region26: #{rubik_forward.3} parent=11 // pred_check_branch
        %752 = sbr.rel (%p750) target = $region28
      $region27: #{rubik_forward.3} parent=11 // pred_region
        _
      $region28: #{rubik_forward.3} parent=11 // pred_fallthru
        _
    $region12: #{rubik_forward.3} parent=5 // pred_fallthru
      _
    %p753 = scmp.lt.s32.totalorder %s32, 4
    // Predicated region
    $region29: #{rubik_forward.3} parent=5 // pred_check
      %p754 = pneg %p753
    $region30: #{rubik_forward.3} parent=5 // pred_check_branch
      %756 = sbr.rel (%p754) target = $region32
    $region31: #{rubik_forward.3} parent=5 // pred_region
      // Predicated region
      $region33: #{rubik_forward.3} parent=31 // pred_check
        %p757 = pneg %p64
      $region34: #{rubik_forward.3} parent=31 // pred_check_branch
        %759 = sbr.rel (%p757) target = $region36
      $region35: #{rubik_forward.3} parent=31 // pred_region
        %p760 = scmp.lt.s32.totalorder %s39, 1
        %s761 = scalar_select %p760, %s39, 1
        %s762 = smul.addr %s761, 8
        %s763 = scalar_lea.vmem %s0, %s762
      $region36: #{rubik_forward.3} parent=31 // pred_fallthru
        _
      // Predicated region
      $region37: #{rubik_forward.3} parent=31 // pred_check
        %p764 = pneg %p90
      $region38: #{rubik_forward.3} parent=31 // pred_check_branch
        %766 = sbr.rel (%p764) target = $region40
      $region39: #{rubik_forward.3} parent=31 // pred_region
        %p767 = scmp.lt.s32.totalorder %s39, 1
        %s768 = scalar_select %p767, %s39, 1
        %s769 = smul.addr %s768, 8
        %s770 = scalar_lea.vmem %s1, %s769
      $region40: #{rubik_forward.3} parent=31 // pred_fallthru
        _
      // Predicated region
      $region41: #{rubik_forward.3} parent=31 // pred_check
        %p771 = pneg %p116
      $region42: #{rubik_forward.3} parent=31 // pred_check_branch
        %773 = sbr.rel (%p771) target = $region44
      $region43: #{rubik_forward.3} parent=31 // pred_region
        %p774 = scmp.lt.s32.totalorder %s40, 1
        %s775 = scalar_select %p774, %s40, 1
        %s776 = smul.addr %s775, 4
        %s777 = smul.addr %s776, 4
        %s778 = scalar_lea.vmem %s2, %s777
      $region44: #{rubik_forward.3} parent=31 // pred_fallthru
        _
      // Predicated region
      $region45: #{rubik_forward.3} parent=31 // pred_check
        %p779 = pneg %p142
      $region46: #{rubik_forward.3} parent=31 // pred_check_branch
        %781 = sbr.rel (%p779) target = $region48
      $region47: #{rubik_forward.3} parent=31 // pred_region
        %p782 = scmp.lt.s32.totalorder %s40, 1
        %s783 = scalar_select %p782, %s40, 1
        %s784 = scalar_lea.vmem %s3, %s783
      $region48: #{rubik_forward.3} parent=31 // pred_fallthru
        _
      // Predicated region
      $region49: #{rubik_forward.3} parent=31 // pred_check
        %p785 = pneg %p168
      $region50: #{rubik_forward.3} parent=31 // pred_check_branch
        %787 = sbr.rel (%p785) target = $region52
      $region51: #{rubik_forward.3} parent=31 // pred_region
        %p788 = scmp.lt.s32.totalorder %s40, 1
        %s789 = scalar_select %p788, %s40, 1
        %s790 = smul.addr %s789, 4
        %s791 = smul.addr %s790, 4
        %s792 = scalar_lea.vmem %s4, %s791
      $region52: #{rubik_forward.3} parent=31 // pred_fallthru
        _
      // Predicated region
      $region53: #{rubik_forward.3} parent=31 // pred_check
        %p793 = pneg %p194
      $region54: #{rubik_forward.3} parent=31 // pred_check_branch
        %795 = sbr.rel (%p793) target = $region56
      $region55: #{rubik_forward.3} parent=31 // pred_region
        %p796 = scmp.lt.s32.totalorder %s40, 1
        %s797 = scalar_select %p796, %s40, 1
        %s798 = scalar_lea.vmem %s5, %s797
      $region56: #{rubik_forward.3} parent=31 // pred_fallthru
        _
      // Predicated region
      $region57: #{rubik_forward.3} parent=31 // pred_check
        %p799 = pneg %p220
      $region58: #{rubik_forward.3} parent=31 // pred_check_branch
        %801 = sbr.rel (%p799) target = $region60
      $region59: #{rubik_forward.3} parent=31 // pred_region
        %p802 = scmp.lt.s32.totalorder %s40, 1
        %s803 = scalar_select %p802, %s40, 1
        %s804 = scalar_lea.vmem %s6, %s803
      $region60: #{rubik_forward.3} parent=31 // pred_fallthru
        _
      // Predicated region
      $region61: #{rubik_forward.3} parent=31 // pred_check
        %p805 = pneg %p246
      $region62: #{rubik_forward.3} parent=31 // pred_check_branch
        %807 = sbr.rel (%p805) target = $region64
      $region63: #{rubik_forward.3} parent=31 // pred_region
        %p808 = scmp.lt.s32.totalorder %s40, 1
        %s809 = scalar_select %p808, %s40, 1
        %s810 = scalar_lea.vmem %s7, %s809
      $region64: #{rubik_forward.3} parent=31 // pred_fallthru
        _
      // Predicated region
      $region65: #{rubik_forward.3} parent=31 // pred_check
        %p811 = pneg %p272
      $region66: #{rubik_forward.3} parent=31 // pred_check_branch
        %813 = sbr.rel (%p811) target = $region68
      $region67: #{rubik_forward.3} parent=31 // pred_region
        %p814 = scmp.lt.s32.totalorder %s40, 1
        %s815 = scalar_select %p814, %s40, 1
        %s816 = smul.addr %s815, 4
        %s817 = smul.addr %s816, 4
        %s818 = scalar_lea.vmem %s8, %s817
      $region68: #{rubik_forward.3} parent=31 // pred_fallthru
        _
      // Predicated region
      $region69: #{rubik_forward.3} parent=31 // pred_check
        %p819 = pneg %p298
      $region70: #{rubik_forward.3} parent=31 // pred_check_branch
        %821 = sbr.rel (%p819) target = $region72
      $region71: #{rubik_forward.3} parent=31 // pred_region
        %p822 = scmp.lt.s32.totalorder %s40, 1
        %s823 = scalar_select %p822, %s40, 1
        %s824 = scalar_lea.vmem %s9, %s823
      $region72: #{rubik_forward.3} parent=31 // pred_fallthru
        _
      // Predicated region
      $region73: #{rubik_forward.3} parent=31 // pred_check
        %p825 = pneg %p324
      $region74: #{rubik_forward.3} parent=31 // pred_check_branch
        %827 = sbr.rel (%p825) target = $region76
      $region75: #{rubik_forward.3} parent=31 // pred_region
        %p828 = scmp.lt.s32.totalorder %s40, 1
        %s829 = scalar_select %p828, %s40, 1
        %s830 = smul.addr %s829, 4
        %s831 = smul.addr %s830, 4
        %s832 = scalar_lea.vmem %s10, %s831
      $region76: #{rubik_forward.3} parent=31 // pred_fallthru
        _
      // Predicated region
      $region77: #{rubik_forward.3} parent=31 // pred_check
        %p833 = pneg %p350
      $region78: #{rubik_forward.3} parent=31 // pred_check_branch
        %835 = sbr.rel (%p833) target = $region80
      $region79: #{rubik_forward.3} parent=31 // pred_region
        %p836 = scmp.lt.s32.totalorder %s40, 1
        %s837 = scalar_select %p836, %s40, 1
        %s838 = scalar_lea.vmem %s11, %s837
      $region80: #{rubik_forward.3} parent=31 // pred_fallthru
        _
      // Predicated region
      $region81: #{rubik_forward.3} parent=31 // pred_check
        %p839 = pneg %p376
      $region82: #{rubik_forward.3} parent=31 // pred_check_branch
        %841 = sbr.rel (%p839) target = $region84
      $region83: #{rubik_forward.3} parent=31 // pred_region
        %p842 = scmp.lt.s32.totalorder %s40, 1
        %s843 = scalar_select %p842, %s40, 1
        %s844 = smul.addr %s843, 4
        %s845 = smul.addr %s844, 4
        %s846 = scalar_lea.vmem %s12, %s845
      $region84: #{rubik_forward.3} parent=31 // pred_fallthru
        _
      // Predicated region
      $region85: #{rubik_forward.3} parent=31 // pred_check
        %p847 = pneg %p402
      $region86: #{rubik_forward.3} parent=31 // pred_check_branch
        %849 = sbr.rel (%p847) target = $region88
      $region87: #{rubik_forward.3} parent=31 // pred_region
        %p850 = scmp.lt.s32.totalorder %s40, 1
        %s851 = scalar_select %p850, %s40, 1
        %s852 = scalar_lea.vmem %s13, %s851
      $region88: #{rubik_forward.3} parent=31 // pred_fallthru
        _
      // Predicated region
      $region89: #{rubik_forward.3} parent=31 // pred_check
        %p853 = pneg %p428
      $region90: #{rubik_forward.3} parent=31 // pred_check_branch
        %855 = sbr.rel (%p853) target = $region92
      $region91: #{rubik_forward.3} parent=31 // pred_region
        %p856 = scmp.lt.s32.totalorder %s40, 1
        %s857 = scalar_select %p856, %s40, 1
        %s858 = scalar_lea.vmem %s14, %s857
      $region92: #{rubik_forward.3} parent=31 // pred_fallthru
        _
      // Predicated region
      $region93: #{rubik_forward.3} parent=31 // pred_check
        %p859 = pneg %p454
      $region94: #{rubik_forward.3} parent=31 // pred_check_branch
        %861 = sbr.rel (%p859) target = $region96
      $region95: #{rubik_forward.3} parent=31 // pred_region
        %p862 = scmp.lt.s32.totalorder %s40, 1
        %s863 = scalar_select %p862, %s40, 1
        %s864 = scalar_lea.vmem %s15, %s863
      $region96: #{rubik_forward.3} parent=31 // pred_fallthru
        _
      // Predicated region
      $region97: #{rubik_forward.3} parent=31 // pred_check
        %p865 = pneg %p480
      $region98: #{rubik_forward.3} parent=31 // pred_check_branch
        %867 = sbr.rel (%p865) target = $region100
      $region99: #{rubik_forward.3} parent=31 // pred_region
        %p868 = scmp.lt.s32.totalorder %s40, 1
        %s869 = scalar_select %p868, %s40, 1
        %s870 = smul.addr %s869, 4
        %s871 = smul.addr %s870, 4
        %s872 = scalar_lea.vmem %s16, %s871
      $region100: #{rubik_forward.3} parent=31 // pred_fallthru
        _
      // Predicated region
      $region101: #{rubik_forward.3} parent=31 // pred_check
        %p873 = pneg %p506
      $region102: #{rubik_forward.3} parent=31 // pred_check_branch
        %875 = sbr.rel (%p873) target = $region104
      $region103: #{rubik_forward.3} parent=31 // pred_region
        %p876 = scmp.lt.s32.totalorder %s40, 1
        %s877 = scalar_select %p876, %s40, 1
        %s878 = scalar_lea.vmem %s17, %s877
      $region104: #{rubik_forward.3} parent=31 // pred_fallthru
        _
      // Predicated region
      $region105: #{rubik_forward.3} parent=31 // pred_check
        %p879 = pneg %p532
      $region106: #{rubik_forward.3} parent=31 // pred_check_branch
        %881 = sbr.rel (%p879) target = $region108
      $region107: #{rubik_forward.3} parent=31 // pred_region
        %p882 = scmp.lt.s32.totalorder %s40, 1
        %s883 = scalar_select %p882, %s40, 1
        %s884 = smul.addr %s883, 16
        %s885 = smul.addr %s884, 4
        %s886 = scalar_lea.vmem %s18, %s885
      $region108: #{rubik_forward.3} parent=31 // pred_fallthru
        _
      // Predicated region
      $region109: #{rubik_forward.3} parent=31 // pred_check
        %p887 = pneg %p558
      $region110: #{rubik_forward.3} parent=31 // pred_check_branch
        %889 = sbr.rel (%p887) target = $region112
      $region111: #{rubik_forward.3} parent=31 // pred_region
        %p890 = scmp.lt.s32.totalorder %s40, 1
        %s891 = scalar_select %p890, %s40, 1
        %s892 = scalar_lea.vmem %s19, %s891
      $region112: #{rubik_forward.3} parent=31 // pred_fallthru
        _
      // Predicated region
      $region113: #{rubik_forward.3} parent=31 // pred_check
        %p893 = pneg %p584
      $region114: #{rubik_forward.3} parent=31 // pred_check_branch
        %895 = sbr.rel (%p893) target = $region116
      $region115: #{rubik_forward.3} parent=31 // pred_region
        %p896 = scmp.lt.s32.totalorder %s40, 1
        %s897 = scalar_select %p896, %s40, 1
        %s898 = scalar_lea.vmem %s20, %s897
      $region116: #{rubik_forward.3} parent=31 // pred_fallthru
        _
      // Predicated region
      $region117: #{rubik_forward.3} parent=31 // pred_check
        %p899 = pneg %p610
      $region118: #{rubik_forward.3} parent=31 // pred_check_branch
        %901 = sbr.rel (%p899) target = $region120
      $region119: #{rubik_forward.3} parent=31 // pred_region
        %p902 = scmp.lt.s32.totalorder %s40, 1
        %s903 = scalar_select %p902, %s40, 1
        %s904 = scalar_lea.vmem %s21, %s903
      $region120: #{rubik_forward.3} parent=31 // pred_fallthru
        _
    $region32: #{rubik_forward.3} parent=5 // pred_fallthru
      _
    %p905 = scmp.le.s32.totalorder 1, %s32
    %p906 = scmp.lt.s32.totalorder %s32, 5
    %p907 = pnand %p905, %p906
    %p908 = pneg %p907
    // Predicated region
    $region121: #{rubik_forward.3} parent=5 // pred_check
      _
    $region122: #{rubik_forward.3} parent=5 // pred_check_branch
      %910 = sbr.rel (%p907) target = $region124
    $region123: #{rubik_forward.3} parent=5 // pred_region
      %s911 = ssub.s32 %s32, 1
      %p912 = scmp.lt.s32.totalorder %s41, 1
      %s913 = scalar_select %p912, %s41, 1
      %s914 = smul.addr %s913, 8
      %s915 = scalar_lea.vmem %s0, %s914
      %p916 = pneg %p70
      %p917 = pneg %p67
      %p918 = scmp.lt.s32.totalorder %s41, 1
      %s919 = scalar_select %p918, %s41, 1
      %s920 = smul.addr %s919, 8
      %s921 = scalar_lea.vmem %s1, %s920
      %p922 = pneg %p96
      %p923 = pneg %p93
      %p924 = scmp.lt.s32.totalorder %s42, 1
      %s925 = scalar_select %p924, %s42, 1
      %s926 = smul.addr %s925, 4
      %s927 = smul.addr %s926, 4
      %s928 = scalar_lea.vmem %s2, %s927
      %p929 = pneg %p122
      %p930 = pneg %p119
      %p931 = scmp.lt.s32.totalorder %s42, 1
      %s932 = scalar_select %p931, %s42, 1
      %s933 = scalar_lea.vmem %s3, %s932
      %p934 = pneg %p148
      %p935 = pneg %p145
      %p936 = scmp.lt.s32.totalorder %s42, 1
      %s937 = scalar_select %p936, %s42, 1
      %s938 = smul.addr %s937, 4
      %s939 = smul.addr %s938, 4
      %s940 = scalar_lea.vmem %s4, %s939
      %p941 = pneg %p174
      %p942 = pneg %p171
      %p943 = scmp.lt.s32.totalorder %s42, 1
      %s944 = scalar_select %p943, %s42, 1
      %s945 = scalar_lea.vmem %s5, %s944
      %p946 = pneg %p200
      %p947 = pneg %p197
      %p948 = scmp.lt.s32.totalorder %s42, 1
      %s949 = scalar_select %p948, %s42, 1
      %s950 = scalar_lea.vmem %s6, %s949
      %p951 = pneg %p226
      %p952 = pneg %p223
      %p953 = scmp.lt.s32.totalorder %s42, 1
      %s954 = scalar_select %p953, %s42, 1
      %s955 = scalar_lea.vmem %s7, %s954
      %p956 = pneg %p252
      %p957 = pneg %p249
      %p958 = scmp.lt.s32.totalorder %s42, 1
      %s959 = scalar_select %p958, %s42, 1
      %s960 = smul.addr %s959, 4
      %s961 = smul.addr %s960, 4
      %s962 = scalar_lea.vmem %s8, %s961
      %p963 = pneg %p278
      %p964 = pneg %p275
      %p965 = scmp.lt.s32.totalorder %s42, 1
      %s966 = scalar_select %p965, %s42, 1
      %s967 = scalar_lea.vmem %s9, %s966
      %p968 = pneg %p304
      %p969 = pneg %p301
      %p970 = scmp.lt.s32.totalorder %s42, 1
      %s971 = scalar_select %p970, %s42, 1
      %s972 = smul.addr %s971, 4
      %s973 = smul.addr %s972, 4
      %s974 = scalar_lea.vmem %s10, %s973
      %p975 = pneg %p330
      %p976 = pneg %p327
      %p977 = scmp.lt.s32.totalorder %s42, 1
      %s978 = scalar_select %p977, %s42, 1
      %s979 = scalar_lea.vmem %s11, %s978
      %p980 = pneg %p356
      %p981 = pneg %p353
      %p982 = scmp.lt.s32.totalorder %s42, 1
      %s983 = scalar_select %p982, %s42, 1
      %s984 = smul.addr %s983, 4
      %s985 = smul.addr %s984, 4
      %s986 = scalar_lea.vmem %s12, %s985
      %p987 = pneg %p382
      %p988 = pneg %p379
      %p989 = scmp.lt.s32.totalorder %s42, 1
      %s990 = scalar_select %p989, %s42, 1
      %s991 = scalar_lea.vmem %s13, %s990
      %p992 = pneg %p408
      %p993 = pneg %p405
      %p994 = scmp.lt.s32.totalorder %s42, 1
      %s995 = scalar_select %p994, %s42, 1
      %s996 = scalar_lea.vmem %s14, %s995
      %p997 = pneg %p434
      %p998 = pneg %p431
      %p999 = scmp.lt.s32.totalorder %s42, 1
      %s1000 = scalar_select %p999, %s42, 1
      %s1001 = scalar_lea.vmem %s15, %s1000
      %p1002 = pneg %p460
      %p1003 = pneg %p457
      %p1004 = scmp.lt.s32.totalorder %s42, 1
      %s1005 = scalar_select %p1004, %s42, 1
      %s1006 = smul.addr %s1005, 4
      %s1007 = smul.addr %s1006, 4
      %s1008 = scalar_lea.vmem %s16, %s1007
      %p1009 = pneg %p486
      %p1010 = pneg %p483
      %p1011 = scmp.lt.s32.totalorder %s42, 1
      %s1012 = scalar_select %p1011, %s42, 1
      %s1013 = scalar_lea.vmem %s17, %s1012
      %p1014 = pneg %p512
      %p1015 = pneg %p509
      %p1016 = scmp.lt.s32.totalorder %s42, 1
      %s1017 = scalar_select %p1016, %s42, 1
      %s1018 = smul.addr %s1017, 16
      %s1019 = smul.addr %s1018, 4
      %s1020 = scalar_lea.vmem %s18, %s1019
      %p1021 = pneg %p538
      %p1022 = pneg %p535
      %p1023 = scmp.lt.s32.totalorder %s42, 1
      %s1024 = scalar_select %p1023, %s42, 1
      %s1025 = scalar_lea.vmem %s19, %s1024
      %p1026 = pneg %p564
      %p1027 = pneg %p561
      %p1028 = scmp.lt.s32.totalorder %s42, 1
      %s1029 = scalar_select %p1028, %s42, 1
      %s1030 = scalar_lea.vmem %s20, %s1029
      %p1031 = pneg %p590
      %p1032 = pneg %p587
      %p1033 = scmp.lt.s32.totalorder %s42, 1
      %s1034 = scalar_select %p1033, %s42, 1
      %s1035 = scalar_lea.vmem %s21, %s1034
      %p1036 = pneg %p616
      %p1037 = pneg %p613
      %p1038 = pneg %p637
      %p1039 = pneg %p634
      %p1040 = pneg %p658
      %p1041 = pneg %p655
      %p1042 = pneg %p679
      %p1043 = pneg %p676
      %p1044 = pneg %p700
      %p1045 = pneg %p697
      %p1046 = pneg %p726
      %p1047 = pneg %p723
      %p1048 = scmp.lt.s32.totalorder %s41, 1
      %s1049 = scalar_select %p1048, %s41, 1
      %s1050 = smul.addr %s1049, 8
      %s1051 = scalar_lea.vmem %s26, %s1050
      %p1052 = scmp.lt.s32.totalorder %s41, 1
      %s1053 = scalar_select %p1052, %s41, 1
      %s1054 = smul.addr %s1053, 8
      %s1055 = scalar_lea.vmem %s0, %s1054
      %p1056 = scmp.lt.s32.totalorder %s41, 1
      %s1057 = scalar_select %p1056, %s41, 1
      %s1058 = smul.addr %s1057, 8
      %s1059 = scalar_lea.vmem %s1, %s1058
      %p1060 = scmp.lt.s32.totalorder %s42, 1
      %s1061 = scalar_select %p1060, %s42, 1
      %s1062 = smul.addr %s1061, 4
      %s1063 = smul.addr %s1062, 4
      %s1064 = scalar_lea.vmem %s2, %s1063
      %p1065 = scmp.lt.s32.totalorder %s42, 1
      %s1066 = scalar_select %p1065, %s42, 1
      %s1067 = scalar_lea.vmem %s3, %s1066
      %p1068 = scmp.lt.s32.totalorder %s42, 1
      %s1069 = scalar_select %p1068, %s42, 1
      %s1070 = smul.addr %s1069, 4
      %s1071 = smul.addr %s1070, 4
      %s1072 = scalar_lea.vmem %s4, %s1071
      %p1073 = scmp.lt.s32.totalorder %s42, 1
      %s1074 = scalar_select %p1073, %s42, 1
      %s1075 = scalar_lea.vmem %s5, %s1074
      %p1076 = scmp.lt.s32.totalorder %s42, 1
      %s1077 = scalar_select %p1076, %s42, 1
      %s1078 = scalar_lea.vmem %s6, %s1077
      %p1079 = scmp.lt.s32.totalorder %s42, 1
      %s1080 = scalar_select %p1079, %s42, 1
      %s1081 = scalar_lea.vmem %s7, %s1080
      %p1082 = scmp.lt.s32.totalorder %s42, 1
      %s1083 = scalar_select %p1082, %s42, 1
      %s1084 = smul.addr %s1083, 4
      %s1085 = smul.addr %s1084, 4
      %s1086 = scalar_lea.vmem %s8, %s1085
      %p1087 = scmp.lt.s32.totalorder %s42, 1
      %s1088 = scalar_select %p1087, %s42, 1
      %s1089 = scalar_lea.vmem %s9, %s1088
      %p1090 = scmp.lt.s32.totalorder %s42, 1
      %s1091 = scalar_select %p1090, %s42, 1
      %s1092 = smul.addr %s1091, 4
      %s1093 = smul.addr %s1092, 4
      %s1094 = scalar_lea.vmem %s10, %s1093
      %p1095 = scmp.lt.s32.totalorder %s42, 1
      %s1096 = scalar_select %p1095, %s42, 1
      %s1097 = scalar_lea.vmem %s11, %s1096
      %p1098 = scmp.lt.s32.totalorder %s42, 1
      %s1099 = scalar_select %p1098, %s42, 1
      %s1100 = smul.addr %s1099, 4
      %s1101 = smul.addr %s1100, 4
      %s1102 = scalar_lea.vmem %s12, %s1101
      %p1103 = scmp.lt.s32.totalorder %s42, 1
      %s1104 = scalar_select %p1103, %s42, 1
      %s1105 = scalar_lea.vmem %s13, %s1104
      %p1106 = scmp.lt.s32.totalorder %s42, 1
      %s1107 = scalar_select %p1106, %s42, 1
      %s1108 = scalar_lea.vmem %s14, %s1107
      %p1109 = scmp.lt.s32.totalorder %s42, 1
      %s1110 = scalar_select %p1109, %s42, 1
      %s1111 = scalar_lea.vmem %s15, %s1110
      %p1112 = scmp.lt.s32.totalorder %s42, 1
      %s1113 = scalar_select %p1112, %s42, 1
      %s1114 = smul.addr %s1113, 4
      %s1115 = smul.addr %s1114, 4
      %s1116 = scalar_lea.vmem %s16, %s1115
      %p1117 = scmp.lt.s32.totalorder %s42, 1
      %s1118 = scalar_select %p1117, %s42, 1
      %s1119 = scalar_lea.vmem %s17, %s1118
      %p1120 = scmp.lt.s32.totalorder %s42, 1
      %s1121 = scalar_select %p1120, %s42, 1
      %s1122 = smul.addr %s1121, 16
      %s1123 = smul.addr %s1122, 4
      %s1124 = scalar_lea.vmem %s18, %s1123
      %p1125 = scmp.lt.s32.totalorder %s42, 1
      %s1126 = scalar_select %p1125, %s42, 1
      %s1127 = scalar_lea.vmem %s19, %s1126
      %p1128 = scmp.lt.s32.totalorder %s42, 1
      %s1129 = scalar_select %p1128, %s42, 1
      %s1130 = scalar_lea.vmem %s20, %s1129
      %p1131 = scmp.lt.s32.totalorder %s42, 1
      %s1132 = scalar_select %p1131, %s42, 1
      %s1133 = scalar_lea.vmem %s21, %s1132
      %p1134 = scmp.lt.s32.totalorder %s41, 1
      %s1135 = scalar_select %p1134, %s41, 1
      %s1136 = smul.addr %s1135, 8
      %s1137 = scalar_lea.vmem %s26, %s1136
      %p1139 = scmp.eq.s32.totalorder %s42, 0
      // Predicated region
      $region125: #{rubik_forward.3} parent=123 // pred_check
        %p1140 = pneg %p1139
      $region126: #{rubik_forward.3} parent=123 // pred_check_branch
        %1142 = sbr.rel (%p1140) target = $region128
      $region127: #{rubik_forward.3} parent=123 // pred_region
        %v1143 = vld [vmem:[%s1055] sm:$0x7f]
        %vm1144 = vcmask 260096
        %1145 = vst.msk [vmem:[#allocation2] sm:$0x7f] %vm1144, %v1143
      $region128: #{rubik_forward.3} parent=123 // pred_fallthru
        _
      %v1146 = vld [vmem:[#allocation2] sm:$0x7f]
      %v1147 = vld [vmem:[%s1059] sm:$0xff]
      %v1148 = vlaneseq
      %v1149 = vshrl.u32 %v1148, 7
      %v1150 = vlaneseq
      %v1151 = vand.u32 %v1150, 127
      %vm1152 = vcmp.le.s32.totalorder %v1151, %v1149
      %v1153 = vsel %vm1152, 0.0, -1e+30
      %v1154 = vpack.c.bf16 %v1146, %v1146
      %v1155 = vld [vmem:[%s1064] sm:$0xf]
      %v1156 = vld [vmem:[%s1064 + $0x4] sm:$0xf]
      %v1157 = vld [vmem:[%s1064 + $0x8] sm:$0xf]
      %v1158 = vld [vmem:[%s1064 + $0xc] sm:$0xf]
      %v1159 = vld [vmem:[%s1067] sm:$0x1]
      %v1161 = vlaneseq
      %v1162 = vshrl.u32 %v1161, 7
      %v1163 = vsub.s32 0, %v1162
      %v1164 = vrot.slane %v1159, %v1163
      %v1170 = vunpack.c.l.b16 %v1155
      %v1171 = vunpack.c.l.b16 %v1156
      %v1172 = vunpack.c.l.b16 %v1157
      %v1173 = vunpack.c.l.b16 %v1158
      %v1174 = vpack.c.b16 %v1171, %v1170
      %v1175 = vpack.c.b16 %v1173, %v1172
      %vm1178 = vcmask 261120
      %v1180 = vsel %vm1178, %v1154, 0
      %1182 = vmatprep.subr.bf16.mxu0 0
      %1183 = vmatpush1.bf16.msra.mxu0 %v1174
      %1184 = vmatprep.subr.bf16.mxu0 0
      %1185 = vmatpush1.bf16.msra.mxu0 %v1175
      %1186 = vmatprep.subr.bf16.mxu0 0
      %1187 = vmatpush1.bf16.msra.mxu0 0
      %1188 = vmatprep.subr.bf16.mxu0 0
      %1189 = vmatpush1.bf16.msra.mxu0 0
      %1190 = vmatprep.subr.bf16.mxu0 0
      %1191 = vmatpush1.bf16.msra.mxu0 0
      %1192 = vmatprep.subr.bf16.mxu0 0
      %1193 = vmatpush1.bf16.msra.mxu0 0
      %1194 = vmatprep.subr.bf16.mxu0 0
      %1195 = vmatpush1.bf16.msra.mxu0 0
      %1196 = vmatprep.subr.bf16.mxu0 0
      %1197 = vmatpush1.bf16.msra.mxu0 0
      %1198 = vmatprep.subr.bf16.mxu0 0
      %1199 = vmatpush1.bf16.msra.mxu0 0
      %1200 = vmatprep.subr.bf16.mxu0 0
      %1201 = vmatpush1.bf16.msra.mxu0 0
      %1202 = vmatprep.subr.bf16.mxu0 0
      %1203 = vmatpush1.bf16.msra.mxu0 0
      %1204 = vmatprep.subr.bf16.mxu0 0
      %1205 = vmatpush1.bf16.msra.mxu0 0
      %1206 = vmatprep.subr.bf16.mxu0 0
      %1207 = vmatpush1.bf16.msra.mxu0 0
      %1208 = vmatprep.subr.bf16.mxu0 0
      %1209 = vmatpush1.bf16.msra.mxu0 0
      %1210 = vmatprep.subr.bf16.mxu0 0
      %1211 = vmatpush1.bf16.msra.mxu0 0
      %1212 = vmatprep.subr.bf16.mxu0 0
      %1213 = vmatpush1.bf16.msra.mxu0 0
      %1214 = vmatprep.mubr.bf16.mxu0 0
      %1215 = vmatmul.mubr.bf16.gmra.mrb[0].mxu0 %v1180
      %v1216 = vpop.f32.mrb[0].mxu0
      %v1217 = vadd.f32 %v1164, %v1216
      %v1218 = vpop.f32.mrb[0].mxu0
      %v1219 = vpop.f32.mrb[0].mxu0
      %v1220 = vpop.f32.mrb[0].mxu0
      %1221 = vdwg.mxu0
      %v1222 = vld [vmem:[%s1072] sm:$0xf]
      %v1223 = vld [vmem:[%s1072 + $0x4] sm:$0xf]
      %v1224 = vld [vmem:[%s1072 + $0x8] sm:$0xf]
      %v1225 = vld [vmem:[%s1072 + $0xc] sm:$0xf]
      %v1226 = vld [vmem:[%s1075] sm:$0x1]
      %v1227 = vmul.f32 %v1217, 0.35355338
      %v1228 = vpack.c.bf16 %v1227, %v1227
      %1230 = vrot.lane.b32.xlu0 %v1217, 96
      %v1231 = vpop.permute.xlu0 %1230
      %1233 = vxpose.xlu0.b32.start [1/16] %v1231, 128
      %1234 = vxpose.xlu0.b32.cont [2/16] 0.0, 128
      %1235 = vxpose.xlu0.b32.cont [3/16] 0.0, 128
      %1236 = vxpose.xlu0.b32.cont [4/16] 0.0, 128
      %1237 = vxpose.xlu0.b32.cont [5/16] 0.0, 128
      %1238 = vxpose.xlu0.b32.cont [6/16] 0.0, 128
      %1239 = vxpose.xlu0.b32.cont [7/16] 0.0, 128
      %1240 = vxpose.xlu0.b32.cont [8/16] 0.0, 128
      %1241 = vxpose.xlu0.b32.cont [9/16] 0.0, 128
      %1242 = vxpose.xlu0.b32.cont [10/16] 0.0, 128
      %1243 = vxpose.xlu0.b32.cont [11/16] 0.0, 128
      %1244 = vxpose.xlu0.b32.cont [12/16] 0.0, 128
      %1245 = vxpose.xlu0.b32.cont [13/16] 0.0, 128
      %1246 = vxpose.xlu0.b32.cont [14/16] 0.0, 128
      %1247 = vxpose.xlu0.b32.cont [15/16] 0.0, 128
      %1248 = vxpose.xlu0.b32.end [16/16] 0.0, 128
      %v1249 = vpop.trf.xlu0
      %v1250 = vpop.trf.xlu0
      %v1251 = vpop.trf.xlu0
      %v1252 = vpop.trf.xlu0
      %v1253 = vpop.trf.xlu0
      %v1254 = vpop.trf.xlu0
      %v1255 = vpop.trf.xlu0
      %v1256 = vpop.trf.xlu0
      %v1257 = vpop.trf.xlu0
      %v1258 = vpop.trf.xlu0
      %v1259 = vpop.trf.xlu0
      %v1260 = vpop.trf.xlu0
      %v1261 = vpop.trf.xlu0
      %v1262 = vpop.trf.xlu0
      %v1263 = vpop.trf.xlu0
      %v1264 = vpop.trf.xlu0
      %v1265 = vpack.c.bf16 %v1250, %v1249
      %v1266 = vpack.c.bf16 %v1252, %v1251
      %v1267 = vpack.c.bf16 %v1217, %v1217
      %vm1268 = vcmask 64512
      %v1270 = vsel %vm1268, %v1228, 0
      %vm1272 = vcmask 1043456
      %v1274 = vsel %vm1272, %v1265, 0
      %1276 = vmatprep.subr.bf16.mxu0 0
      %1277 = vmatpush1.bf16.msra.mxu0 %v1274
      %1278 = vmatprep.subr.bf16.mxu0 0
      %1279 = vmatpush1.bf16.msra.mxu0 0
      %1280 = vmatprep.subr.bf16.mxu0 0
      %1281 = vmatpush1.bf16.msra.mxu0 0
      %1282 = vmatprep.subr.bf16.mxu0 0
      %1283 = vmatpush1.bf16.msra.mxu0 0
      %1284 = vmatprep.subr.bf16.mxu0 0
      %1285 = vmatpush1.bf16.msra.mxu0 0
      %1286 = vmatprep.subr.bf16.mxu0 0
      %1287 = vmatpush1.bf16.msra.mxu0 0
      %1288 = vmatprep.subr.bf16.mxu0 0
      %1289 = vmatpush1.bf16.msra.mxu0 0
      %1290 = vmatprep.subr.bf16.mxu0 0
      %1291 = vmatpush1.bf16.msra.mxu0 0
      %1292 = vmatprep.subr.bf16.mxu0 0
      %1293 = vmatpush1.bf16.msra.mxu0 0
      %1294 = vmatprep.subr.bf16.mxu0 0
      %1295 = vmatpush1.bf16.msra.mxu0 0
      %1296 = vmatprep.subr.bf16.mxu0 0
      %1297 = vmatpush1.bf16.msra.mxu0 0
      %1298 = vmatprep.subr.bf16.mxu0 0
      %1299 = vmatpush1.bf16.msra.mxu0 0
      %1300 = vmatprep.subr.bf16.mxu0 0
      %1301 = vmatpush1.bf16.msra.mxu0 0
      %1302 = vmatprep.subr.bf16.mxu0 0
      %1303 = vmatpush1.bf16.msra.mxu0 0
      %1304 = vmatprep.subr.bf16.mxu0 0
      %1305 = vmatpush1.bf16.msra.mxu0 0
      %1306 = vmatprep.subr.bf16.mxu0 0
      %1307 = vmatpush1.bf16.msra.mxu0 0
      %1308 = vmatprep.mubr.bf16.mxu0 0
      %1309 = vmatmul.mubr.bf16.gmra.mrb[0].mxu0 %v1270
      %v1310 = vpop.f32.mrb[0].mxu0
      %v1311 = vadd.f32 %v1153, %v1310
      %v1312 = vpop.f32.mrb[0].mxu0
      %v1313 = vpop.f32.mrb[0].mxu0
      %v1314 = vpop.f32.mrb[0].mxu0
      %1315 = vdwg.mxu0
      %vm1316 = vcmask 55296
      %v1317 = vsel %vm1316, %v1311, -inf
      %1318 = vmax.xlane.f32.xlu0 %v1317
      %v1319 = vpop.xlane.xlu0 %1318
      %v1320 = vsub.f32 %v1311, %v1319
      %v1321 = vmul.f32 %v1320, 1.442695
      %v1322 = vpow.pop %v1321
      %v1323 = vsel %vm1316, %v1322, 0.0
      %1324 = vadd.xlane.f32.xlu0 %v1323
      %v1325 = vpop.xlane.xlu0 %1324
      %v1326 = vrcp.pop %v1325
      %v1327 = vmul.f32 %v1322, %v1326
      %v1328 = vpack.c.bf16 %v1327, %v1327
      %1330 = vrot.lane.b32.xlu0 %v1267, 64
      %v1331 = vpop.permute.xlu0 %1330
      %vm1332 = vcmask 56320
      %v1334 = vsel %vm1332, %v1328, 0
      %vm1336 = vcmask 1042432
      %v1337 = vsel %vm1336, 4294967295, 65535
      %v1338 = vsel %vm1272, %v1337, 0
      %v1340 = vand.u32 %v1331, %v1338
      %1342 = vmatprep.subr.bf16.mxu0 0
      %1343 = vmatpush1.bf16.msra.mxu0 %v1340
      %1344 = vmatprep.subr.bf16.mxu0 0
      %1345 = vmatpush1.bf16.msra.mxu0 0
      %1346 = vmatprep.subr.bf16.mxu0 0
      %1347 = vmatpush1.bf16.msra.mxu0 0
      %1348 = vmatprep.subr.bf16.mxu0 0
      %1349 = vmatpush1.bf16.msra.mxu0 0
      %1350 = vmatprep.subr.bf16.mxu0 0
      %1351 = vmatpush1.bf16.msra.mxu0 0
      %1352 = vmatprep.subr.bf16.mxu0 0
      %1353 = vmatpush1.bf16.msra.mxu0 0
      %1354 = vmatprep.subr.bf16.mxu0 0
      %1355 = vmatpush1.bf16.msra.mxu0 0
      %1356 = vmatprep.subr.bf16.mxu0 0
      %1357 = vmatpush1.bf16.msra.mxu0 0
      %1358 = vmatprep.subr.bf16.mxu0 0
      %1359 = vmatpush1.bf16.msra.mxu0 0
      %1360 = vmatprep.subr.bf16.mxu0 0
      %1361 = vmatpush1.bf16.msra.mxu0 0
      %1362 = vmatprep.subr.bf16.mxu0 0
      %1363 = vmatpush1.bf16.msra.mxu0 0
      %1364 = vmatprep.subr.bf16.mxu0 0
      %1365 = vmatpush1.bf16.msra.mxu0 0
      %1366 = vmatprep.subr.bf16.mxu0 0
      %1367 = vmatpush1.bf16.msra.mxu0 0
      %1368 = vmatprep.subr.bf16.mxu0 0
      %1369 = vmatpush1.bf16.msra.mxu0 0
      %1370 = vmatprep.subr.bf16.mxu0 0
      %1371 = vmatpush1.bf16.msra.mxu0 0
      %1372 = vmatprep.subr.bf16.mxu0 0
      %1373 = vmatpush1.bf16.msra.mxu0 0
      %1374 = vmatprep.mubr.bf16.mxu0 0
      %1375 = vmatmul.mubr.bf16.gmra.mrb[0].mxu0 %v1334
      %v1376 = vpop.f32.mrb[0].mxu0
      %v1377 = vadd.f32 0.0, %v1376
      %v1378 = vpop.f32.mrb[0].mxu0
      %v1379 = vpop.f32.mrb[0].mxu0
      %v1380 = vpop.f32.mrb[0].mxu0
      %1381 = vdwg.mxu0
      %1383 = vrot.lane.b32.xlu0 %v1228, 120
      %v1384 = vpop.permute.xlu0 %1383
      %v1386 = vrot.slane %v1265, 4
      %v1388 = vsel %vm1268, %v1384, 0
      %v1391 = vsel %vm1272, %v1386, 0
      %1393 = vmatprep.subr.bf16.mxu0 0
      %1394 = vmatpush1.bf16.msra.mxu0 %v1391
      %1395 = vmatprep.subr.bf16.mxu0 0
      %1396 = vmatpush1.bf16.msra.mxu0 0
      %1397 = vmatprep.subr.bf16.mxu0 0
      %1398 = vmatpush1.bf16.msra.mxu0 0
      %1399 = vmatprep.subr.bf16.mxu0 0
      %1400 = vmatpush1.bf16.msra.mxu0 0
      %1401 = vmatprep.subr.bf16.mxu0 0
      %1402 = vmatpush1.bf16.msra.mxu0 0
      %1403 = vmatprep.subr.bf16.mxu0 0
      %1404 = vmatpush1.bf16.msra.mxu0 0
      %1405 = vmatprep.subr.bf16.mxu0 0
      %1406 = vmatpush1.bf16.msra.mxu0 0
      %1407 = vmatprep.subr.bf16.mxu0 0
      %1408 = vmatpush1.bf16.msra.mxu0 0
      %1409 = vmatprep.subr.bf16.mxu0 0
      %1410 = vmatpush1.bf16.msra.mxu0 0
      %1411 = vmatprep.subr.bf16.mxu0 0
      %1412 = vmatpush1.bf16.msra.mxu0 0
      %1413 = vmatprep.subr.bf16.mxu0 0
      %1414 = vmatpush1.bf16.msra.mxu0 0
      %1415 = vmatprep.subr.bf16.mxu0 0
      %1416 = vmatpush1.bf16.msra.mxu0 0
      %1417 = vmatprep.subr.bf16.mxu0 0
      %1418 = vmatpush1.bf16.msra.mxu0 0
      %1419 = vmatprep.subr.bf16.mxu0 0
      %1420 = vmatpush1.bf16.msra.mxu0 0
      %1421 = vmatprep.subr.bf16.mxu0 0
      %1422 = vmatpush1.bf16.msra.mxu0 0
      %1423 = vmatprep.subr.bf16.mxu0 0
      %1424 = vmatpush1.bf16.msra.mxu0 0
      %1425 = vmatprep.mubr.bf16.mxu0 0
      %1426 = vmatmul.mubr.bf16.gmra.mrb[0].mxu0 %v1388
      %v1427 = vpop.f32.mrb[0].mxu0
      %v1428 = vadd.f32 %v1153, %v1427
      %v1429 = vpop.f32.mrb[0].mxu0
      %v1430 = vpop.f32.mrb[0].mxu0
      %v1431 = vpop.f32.mrb[0].mxu0
      %1432 = vdwg.mxu0
      %v1433 = vsel %vm1316, %v1428, -inf
      %1434 = vmax.xlane.f32.xlu0 %v1433
      %v1435 = vpop.xlane.xlu0 %1434
      %v1436 = vsub.f32 %v1428, %v1435
      %v1437 = vmul.f32 %v1436, 1.442695
      %v1438 = vpow.pop %v1437
      %v1439 = vsel %vm1316, %v1438, 0.0
      %1440 = vadd.xlane.f32.xlu0 %v1439
      %v1441 = vpop.xlane.xlu0 %1440
      %v1442 = vrcp.pop %v1441
      %v1443 = vmul.f32 %v1438, %v1442
      %v1444 = vpack.c.bf16 %v1443, %v1443
      %1445 = vrot.lane.b32.xlu0 %v1267, 56
      %v1446 = vpop.permute.xlu0 %1445
      %v1448 = vsel %vm1332, %v1444, 0
      %v1451 = vand.u32 %v1446, %v1338
      %1453 = vmatprep.subr.bf16.mxu0 0
      %1454 = vmatpush1.bf16.msra.mxu0 %v1451
      %1455 = vmatprep.subr.bf16.mxu0 0
      %1456 = vmatpush1.bf16.msra.mxu0 0
      %1457 = vmatprep.subr.bf16.mxu0 0
      %1458 = vmatpush1.bf16.msra.mxu0 0
      %1459 = vmatprep.subr.bf16.mxu0 0
      %1460 = vmatpush1.bf16.msra.mxu0 0
      %1461 = vmatprep.subr.bf16.mxu0 0
      %1462 = vmatpush1.bf16.msra.mxu0 0
      %1463 = vmatprep.subr.bf16.mxu0 0
      %1464 = vmatpush1.bf16.msra.mxu0 0
      %1465 = vmatprep.subr.bf16.mxu0 0
      %1466 = vmatpush1.bf16.msra.mxu0 0
      %1467 = vmatprep.subr.bf16.mxu0 0
      %1468 = vmatpush1.bf16.msra.mxu0 0
      %1469 = vmatprep.subr.bf16.mxu0 0
      %1470 = vmatpush1.bf16.msra.mxu0 0
      %1471 = vmatprep.subr.bf16.mxu0 0
      %1472 = vmatpush1.bf16.msra.mxu0 0
      %1473 = vmatprep.subr.bf16.mxu0 0
      %1474 = vmatpush1.bf16.msra.mxu0 0
      %1475 = vmatprep.subr.bf16.mxu0 0
      %1476 = vmatpush1.bf16.msra.mxu0 0
      %1477 = vmatprep.subr.bf16.mxu0 0
      %1478 = vmatpush1.bf16.msra.mxu0 0
      %1479 = vmatprep.subr.bf16.mxu0 0
      %1480 = vmatpush1.bf16.msra.mxu0 0
      %1481 = vmatprep.subr.bf16.mxu0 0
      %1482 = vmatpush1.bf16.msra.mxu0 0
      %1483 = vmatprep.subr.bf16.mxu0 0
      %1484 = vmatpush1.bf16.msra.mxu0 0
      %1485 = vmatprep.mubr.bf16.mxu0 0
      %1486 = vmatmul.mubr.bf16.gmra.mrb[0].mxu0 %v1448
      %v1487 = vpop.f32.mrb[0].mxu0
      %v1488 = vadd.f32 0.0, %v1487
      %v1489 = vpop.f32.mrb[0].mxu0
      %v1490 = vpop.f32.mrb[0].mxu0
      %v1491 = vpop.f32.mrb[0].mxu0
      %1492 = vdwg.mxu0
      %1493 = vrot.lane.b32.xlu0 %v1228, 112
      %v1494 = vpop.permute.xlu0 %1493
      %v1496 = vsel %vm1268, %v1494, 0
      %v1499 = vsel %vm1272, %v1266, 0
      %1501 = vmatprep.subr.bf16.mxu0 0
      %1502 = vmatpush1.bf16.msra.mxu0 %v1499
      %1503 = vmatprep.subr.bf16.mxu0 0
      %1504 = vmatpush1.bf16.msra.mxu0 0
      %1505 = vmatprep.subr.bf16.mxu0 0
      %1506 = vmatpush1.bf16.msra.mxu0 0
      %1507 = vmatprep.subr.bf16.mxu0 0
      %1508 = vmatpush1.bf16.msra.mxu0 0
      %1509 = vmatprep.subr.bf16.mxu0 0
      %1510 = vmatpush1.bf16.msra.mxu0 0
      %1511 = vmatprep.subr.bf16.mxu0 0
      %1512 = vmatpush1.bf16.msra.mxu0 0
      %1513 = vmatprep.subr.bf16.mxu0 0
      %1514 = vmatpush1.bf16.msra.mxu0 0
      %1515 = vmatprep.subr.bf16.mxu0 0
      %1516 = vmatpush1.bf16.msra.mxu0 0
      %1517 = vmatprep.subr.bf16.mxu0 0
      %1518 = vmatpush1.bf16.msra.mxu0 0
      %1519 = vmatprep.subr.bf16.mxu0 0
      %1520 = vmatpush1.bf16.msra.mxu0 0
      %1521 = vmatprep.subr.bf16.mxu0 0
      %1522 = vmatpush1.bf16.msra.mxu0 0
      %1523 = vmatprep.subr.bf16.mxu0 0
      %1524 = vmatpush1.bf16.msra.mxu0 0
      %1525 = vmatprep.subr.bf16.mxu0 0
      %1526 = vmatpush1.bf16.msra.mxu0 0
      %1527 = vmatprep.subr.bf16.mxu0 0
      %1528 = vmatpush1.bf16.msra.mxu0 0
      %1529 = vmatprep.subr.bf16.mxu0 0
      %1530 = vmatpush1.bf16.msra.mxu0 0
      %1531 = vmatprep.subr.bf16.mxu0 0
      %1532 = vmatpush1.bf16.msra.mxu0 0
      %1533 = vmatprep.mubr.bf16.mxu0 0
      %1534 = vmatmul.mubr.bf16.gmra.mrb[0].mxu0 %v1496
      %v1535 = vpop.f32.mrb[0].mxu0
      %v1536 = vadd.f32 %v1153, %v1535
      %v1537 = vpop.f32.mrb[0].mxu0
      %v1538 = vpop.f32.mrb[0].mxu0
      %v1539 = vpop.f32.mrb[0].mxu0
      %1540 = vdwg.mxu0
      %v1541 = vsel %vm1316, %v1536, -inf
      %1542 = vmax.xlane.f32.xlu0 %v1541
      %v1543 = vpop.xlane.xlu0 %1542
      %v1544 = vsub.f32 %v1536, %v1543
      %v1545 = vmul.f32 %v1544, 1.442695
      %v1546 = vpow.pop %v1545
      %v1547 = vsel %vm1316, %v1546, 0.0
      %1548 = vadd.xlane.f32.xlu0 %v1547
      %v1549 = vpop.xlane.xlu0 %1548
      %v1550 = vrcp.pop %v1549
      %v1551 = vmul.f32 %v1546, %v1550
      %v1552 = vpack.c.bf16 %v1551, %v1551
      %1553 = vrot.lane.b32.xlu0 %v1267, 48
      %v1554 = vpop.permute.xlu0 %1553
      %v1556 = vsel %vm1332, %v1552, 0
      %v1559 = vand.u32 %v1554, %v1338
      %1561 = vmatprep.subr.bf16.mxu0 0
      %1562 = vmatpush1.bf16.msra.mxu0 %v1559
      %1563 = vmatprep.subr.bf16.mxu0 0
      %1564 = vmatpush1.bf16.msra.mxu0 0
      %1565 = vmatprep.subr.bf16.mxu0 0
      %1566 = vmatpush1.bf16.msra.mxu0 0
      %1567 = vmatprep.subr.bf16.mxu0 0
      %1568 = vmatpush1.bf16.msra.mxu0 0
      %1569 = vmatprep.subr.bf16.mxu0 0
      %1570 = vmatpush1.bf16.msra.mxu0 0
      %1571 = vmatprep.subr.bf16.mxu0 0
      %1572 = vmatpush1.bf16.msra.mxu0 0
      %1573 = vmatprep.subr.bf16.mxu0 0
      %1574 = vmatpush1.bf16.msra.mxu0 0
      %1575 = vmatprep.subr.bf16.mxu0 0
      %1576 = vmatpush1.bf16.msra.mxu0 0
      %1577 = vmatprep.subr.bf16.mxu0 0
      %1578 = vmatpush1.bf16.msra.mxu0 0
      %1579 = vmatprep.subr.bf16.mxu0 0
      %1580 = vmatpush1.bf16.msra.mxu0 0
      %1581 = vmatprep.subr.bf16.mxu0 0
      %1582 = vmatpush1.bf16.msra.mxu0 0
      %1583 = vmatprep.subr.bf16.mxu0 0
      %1584 = vmatpush1.bf16.msra.mxu0 0
      %1585 = vmatprep.subr.bf16.mxu0 0
      %1586 = vmatpush1.bf16.msra.mxu0 0
      %1587 = vmatprep.subr.bf16.mxu0 0
      %1588 = vmatpush1.bf16.msra.mxu0 0
      %1589 = vmatprep.subr.bf16.mxu0 0
      %1590 = vmatpush1.bf16.msra.mxu0 0
      %1591 = vmatprep.subr.bf16.mxu0 0
      %1592 = vmatpush1.bf16.msra.mxu0 0
      %1593 = vmatprep.mubr.bf16.mxu0 0
      %1594 = vmatmul.mubr.bf16.gmra.mrb[0].mxu0 %v1556
      %v1595 = vpop.f32.mrb[0].mxu0
      %v1596 = vadd.f32 0.0, %v1595
      %v1597 = vpop.f32.mrb[0].mxu0
      %v1598 = vpop.f32.mrb[0].mxu0
      %v1599 = vpop.f32.mrb[0].mxu0
      %1600 = vdwg.mxu0
      %1601 = vrot.lane.b32.xlu0 %v1228, 104
      %v1602 = vpop.permute.xlu0 %1601
      %v1604 = vrot.slane %v1266, 4
      %v1606 = vsel %vm1268, %v1602, 0
      %v1609 = vsel %vm1272, %v1604, 0
      %1611 = vmatprep.subr.bf16.mxu0 0
      %1612 = vmatpush1.bf16.msra.mxu0 %v1609
      %1613 = vmatprep.subr.bf16.mxu0 0
      %1614 = vmatpush1.bf16.msra.mxu0 0
      %1615 = vmatprep.subr.bf16.mxu0 0
      %1616 = vmatpush1.bf16.msra.mxu0 0
      %1617 = vmatprep.subr.bf16.mxu0 0
      %1618 = vmatpush1.bf16.msra.mxu0 0
      %1619 = vmatprep.subr.bf16.mxu0 0
      %1620 = vmatpush1.bf16.msra.mxu0 0
      %1621 = vmatprep.subr.bf16.mxu0 0
      %1622 = vmatpush1.bf16.msra.mxu0 0
      %1623 = vmatprep.subr.bf16.mxu0 0
      %1624 = vmatpush1.bf16.msra.mxu0 0
      %1625 = vmatprep.subr.bf16.mxu0 0
      %1626 = vmatpush1.bf16.msra.mxu0 0
      %1627 = vmatprep.subr.bf16.mxu0 0
      %1628 = vmatpush1.bf16.msra.mxu0 0
      %1629 = vmatprep.subr.bf16.mxu0 0
      %1630 = vmatpush1.bf16.msra.mxu0 0
      %1631 = vmatprep.subr.bf16.mxu0 0
      %1632 = vmatpush1.bf16.msra.mxu0 0
      %1633 = vmatprep.subr.bf16.mxu0 0
      %1634 = vmatpush1.bf16.msra.mxu0 0
      %1635 = vmatprep.subr.bf16.mxu0 0
      %1636 = vmatpush1.bf16.msra.mxu0 0
      %1637 = vmatprep.subr.bf16.mxu0 0
      %1638 = vmatpush1.bf16.msra.mxu0 0
      %1639 = vmatprep.subr.bf16.mxu0 0
      %1640 = vmatpush1.bf16.msra.mxu0 0
      %1641 = vmatprep.subr.bf16.mxu0 0
      %1642 = vmatpush1.bf16.msra.mxu0 0
      %1643 = vmatprep.mubr.bf16.mxu0 0
      %1644 = vmatmul.mubr.bf16.gmra.mrb[0].mxu0 %v1606
      %v1645 = vpop.f32.mrb[0].mxu0
      %v1646 = vadd.f32 %v1153, %v1645
      %v1647 = vpop.f32.mrb[0].mxu0
      %v1648 = vpop.f32.mrb[0].mxu0
      %v1649 = vpop.f32.mrb[0].mxu0
      %1650 = vdwg.mxu0
      %v1651 = vsel %vm1316, %v1646, -inf
      %1652 = vmax.xlane.f32.xlu0 %v1651
      %v1653 = vpop.xlane.xlu0 %1652
      %v1654 = vsub.f32 %v1646, %v1653
      %v1655 = vmul.f32 %v1654, 1.442695
      %v1656 = vpow.pop %v1655
      %v1657 = vsel %vm1316, %v1656, 0.0
      %1658 = vadd.xlane.f32.xlu0 %v1657
      %v1659 = vpop.xlane.xlu0 %1658
      %v1660 = vrcp.pop %v1659
      %v1661 = vmul.f32 %v1656, %v1660
      %v1662 = vpack.c.bf16 %v1661, %v1661
      %1663 = vrot.lane.b32.xlu0 %v1267, 40
      %v1664 = vpop.permute.xlu0 %1663
      %v1666 = vsel %vm1332, %v1662, 0
      %v1669 = vand.u32 %v1664, %v1338
      %1671 = vmatprep.subr.bf16.mxu0 0
      %1672 = vmatpush1.bf16.msra.mxu0 %v1669
      %1673 = vmatprep.subr.bf16.mxu0 0
      %1674 = vmatpush1.bf16.msra.mxu0 0
      %1675 = vmatprep.subr.bf16.mxu0 0
      %1676 = vmatpush1.bf16.msra.mxu0 0
      %1677 = vmatprep.subr.bf16.mxu0 0
      %1678 = vmatpush1.bf16.msra.mxu0 0
      %1679 = vmatprep.subr.bf16.mxu0 0
      %1680 = vmatpush1.bf16.msra.mxu0 0
      %1681 = vmatprep.subr.bf16.mxu0 0
      %1682 = vmatpush1.bf16.msra.mxu0 0
      %1683 = vmatprep.subr.bf16.mxu0 0
      %1684 = vmatpush1.bf16.msra.mxu0 0
      %1685 = vmatprep.subr.bf16.mxu0 0
      %1686 = vmatpush1.bf16.msra.mxu0 0
      %1687 = vmatprep.subr.bf16.mxu0 0
      %1688 = vmatpush1.bf16.msra.mxu0 0
      %1689 = vmatprep.subr.bf16.mxu0 0
      %1690 = vmatpush1.bf16.msra.mxu0 0
      %1691 = vmatprep.subr.bf16.mxu0 0
      %1692 = vmatpush1.bf16.msra.mxu0 0
      %1693 = vmatprep.subr.bf16.mxu0 0
      %1694 = vmatpush1.bf16.msra.mxu0 0
      %1695 = vmatprep.subr.bf16.mxu0 0
      %1696 = vmatpush1.bf16.msra.mxu0 0
      %1697 = vmatprep.subr.bf16.mxu0 0
      %1698 = vmatpush1.bf16.msra.mxu0 0
      %1699 = vmatprep.subr.bf16.mxu0 0
      %1700 = vmatpush1.bf16.msra.mxu0 0
      %1701 = vmatprep.subr.bf16.mxu0 0
      %1702 = vmatpush1.bf16.msra.mxu0 0
      %1703 = vmatprep.mubr.bf16.mxu0 0
      %1704 = vmatmul.mubr.bf16.gmra.mrb[0].mxu0 %v1666
      %v1705 = vpop.f32.mrb[0].mxu0
      %v1706 = vadd.f32 0.0, %v1705
      %v1707 = vpop.f32.mrb[0].mxu0
      %v1708 = vpop.f32.mrb[0].mxu0
      %v1709 = vpop.f32.mrb[0].mxu0
      %1710 = vdwg.mxu0
      %1712 = vrot.lane.b32.xlu0 %v1488, 8
      %v1713 = vpop.permute.xlu0 %1712
      %1716 = vrot.lane.b32.xlu0 %v1596, 16
      %v1717 = vpop.permute.xlu0 %1716
      %1720 = vrot.lane.b32.xlu0 %v1706, 24
      %v1721 = vpop.permute.xlu0 %1720
      %v1723 = vsel %vm1268, %v1377, %v1713
      %vm1724 = vcmask 130048
      %v1725 = vsel %vm1724, %v1723, %v1717
      %vm1726 = vcmask 195584
      %v1727 = vsel %vm1726, %v1725, %v1721
      %v1728 = vpack.c.bf16 %v1727, %v1727
      %v1730 = vlaneseq
      %v1731 = vshrl.u32 %v1730, 7
      %v1732 = vsub.s32 0, %v1731
      %v1733 = vrot.slane %v1226, %v1732
      %v1739 = vunpack.c.l.b16 %v1222
      %v1740 = vunpack.c.l.b16 %v1223
      %v1741 = vunpack.c.l.b16 %v1224
      %v1742 = vunpack.c.l.b16 %v1225
      %v1743 = vpack.c.b16 %v1740, %v1739
      %v1744 = vpack.c.b16 %v1742, %v1741
      %v1748 = vsel %vm1178, %v1728, 0
      %1750 = vmatprep.subr.bf16.mxu0 0
      %1751 = vmatpush1.bf16.msra.mxu0 %v1743
      %1752 = vmatprep.subr.bf16.mxu0 0
      %1753 = vmatpush1.bf16.msra.mxu0 %v1744
      %1754 = vmatprep.subr.bf16.mxu0 0
      %1755 = vmatpush1.bf16.msra.mxu0 0
      %1756 = vmatprep.subr.bf16.mxu0 0
      %1757 = vmatpush1.bf16.msra.mxu0 0
      %1758 = vmatprep.subr.bf16.mxu0 0
      %1759 = vmatpush1.bf16.msra.mxu0 0
      %1760 = vmatprep.subr.bf16.mxu0 0
      %1761 = vmatpush1.bf16.msra.mxu0 0
      %1762 = vmatprep.subr.bf16.mxu0 0
      %1763 = vmatpush1.bf16.msra.mxu0 0
      %1764 = vmatprep.subr.bf16.mxu0 0
      %1765 = vmatpush1.bf16.msra.mxu0 0
      %1766 = vmatprep.subr.bf16.mxu0 0
      %1767 = vmatpush1.bf16.msra.mxu0 0
      %1768 = vmatprep.subr.bf16.mxu0 0
      %1769 = vmatpush1.bf16.msra.mxu0 0
      %1770 = vmatprep.subr.bf16.mxu0 0
      %1771 = vmatpush1.bf16.msra.mxu0 0
      %1772 = vmatprep.subr.bf16.mxu0 0
      %1773 = vmatpush1.bf16.msra.mxu0 0
      %1774 = vmatprep.subr.bf16.mxu0 0
      %1775 = vmatpush1.bf16.msra.mxu0 0
      %1776 = vmatprep.subr.bf16.mxu0 0
      %1777 = vmatpush1.bf16.msra.mxu0 0
      %1778 = vmatprep.subr.bf16.mxu0 0
      %1779 = vmatpush1.bf16.msra.mxu0 0
      %1780 = vmatprep.subr.bf16.mxu0 0
      %1781 = vmatpush1.bf16.msra.mxu0 0
      %1782 = vmatprep.mubr.bf16.mxu0 0
      %1783 = vmatmul.mubr.bf16.gmra.mrb[0].mxu0 %v1748
      %v1784 = vpop.f32.mrb[0].mxu0
      %v1785 = vadd.f32 %v1733, %v1784
      %v1786 = vpop.f32.mrb[0].mxu0
      %v1787 = vpop.f32.mrb[0].mxu0
      %v1788 = vpop.f32.mrb[0].mxu0
      %1789 = vdwg.mxu0
      %v1790 = vadd.f32 %v1146, %v1785
      %v1791 = vld [vmem:[%s1078] sm:$0x1]
      %v1792 = vld [vmem:[%s1081] sm:$0x1]
      %vm1793 = vcmask 260096
      %v1794 = vsel %vm1793, %v1790, 0.0
      %1795 = vadd.xlane.f32.xlu0 %v1794
      %v1796 = vpop.xlane.xlu0 %1795
      %v1797 = vrcp.pop 32.0
      %v1798 = vmul.f32 %v1796, %v1797
      %v1799 = vsub.f32 %v1790, %v1798
      %v1800 = vmul.f32 %v1799, %v1799
      %v1801 = vsel %vm1793, %v1800, 0.0
      %1802 = vadd.xlane.f32.xlu0 %v1801
      %v1803 = vpop.xlane.xlu0 %1802
      %v1804 = vmul.f32 %v1803, %v1797
      %v1805 = vadd.f32 %v1804, 1e-05
      %v1806 = vrsqrt.pop %v1805
      %v1807 = vmul.f32 %v1799, %v1806
      %v1809 = vlaneseq
      %v1810 = vshrl.u32 %v1809, 7
      %v1811 = vsub.s32 0, %v1810
      %v1812 = vrot.slane %v1791, %v1811
      %v1814 = vmul.f32 %v1807, %v1812
      %v1816 = vlaneseq
      %v1817 = vshrl.u32 %v1816, 7
      %v1818 = vsub.s32 0, %v1817
      %v1819 = vrot.slane %v1792, %v1818
      %v1821 = vadd.f32 %v1814, %v1819
      %v1822 = vpack.c.bf16 %v1821, %v1821
      %v1823 = vld [vmem:[%s1086] sm:$0xf]
      %v1824 = vld [vmem:[%s1086 + $0x4] sm:$0xf]
      %v1825 = vld [vmem:[%s1086 + $0x8] sm:$0xf]
      %v1826 = vld [vmem:[%s1086 + $0xc] sm:$0xf]
      %v1827 = vld [vmem:[%s1089] sm:$0x1]
      %v1829 = vlaneseq
      %v1830 = vshrl.u32 %v1829, 7
      %v1831 = vsub.s32 0, %v1830
      %v1832 = vrot.slane %v1827, %v1831
      %v1838 = vunpack.c.l.b16 %v1823
      %v1839 = vunpack.c.l.b16 %v1824
      %v1840 = vunpack.c.l.b16 %v1825
      %v1841 = vunpack.c.l.b16 %v1826
      %v1842 = vpack.c.b16 %v1839, %v1838
      %v1843 = vpack.c.b16 %v1841, %v1840
      %v1847 = vsel %vm1178, %v1822, 0
      %1849 = vmatprep.subr.bf16.mxu0 0
      %1850 = vmatpush1.bf16.msra.mxu0 %v1842
      %1851 = vmatprep.subr.bf16.mxu0 0
      %1852 = vmatpush1.bf16.msra.mxu0 %v1843
      %1853 = vmatprep.subr.bf16.mxu0 0
      %1854 = vmatpush1.bf16.msra.mxu0 0
      %1855 = vmatprep.subr.bf16.mxu0 0
      %1856 = vmatpush1.bf16.msra.mxu0 0
      %1857 = vmatprep.subr.bf16.mxu0 0
      %1858 = vmatpush1.bf16.msra.mxu0 0
      %1859 = vmatprep.subr.bf16.mxu0 0
      %1860 = vmatpush1.bf16.msra.mxu0 0
      %1861 = vmatprep.subr.bf16.mxu0 0
      %1862 = vmatpush1.bf16.msra.mxu0 0
      %1863 = vmatprep.subr.bf16.mxu0 0
      %1864 = vmatpush1.bf16.msra.mxu0 0
      %1865 = vmatprep.subr.bf16.mxu0 0
      %1866 = vmatpush1.bf16.msra.mxu0 0
      %1867 = vmatprep.subr.bf16.mxu0 0
      %1868 = vmatpush1.bf16.msra.mxu0 0
      %1869 = vmatprep.subr.bf16.mxu0 0
      %1870 = vmatpush1.bf16.msra.mxu0 0
      %1871 = vmatprep.subr.bf16.mxu0 0
      %1872 = vmatpush1.bf16.msra.mxu0 0
      %1873 = vmatprep.subr.bf16.mxu0 0
      %1874 = vmatpush1.bf16.msra.mxu0 0
      %1875 = vmatprep.subr.bf16.mxu0 0
      %1876 = vmatpush1.bf16.msra.mxu0 0
      %1877 = vmatprep.subr.bf16.mxu0 0
      %1878 = vmatpush1.bf16.msra.mxu0 0
      %1879 = vmatprep.subr.bf16.mxu0 0
      %1880 = vmatpush1.bf16.msra.mxu0 0
      %1881 = vmatprep.mubr.bf16.mxu0 0
      %1882 = vmatmul.mubr.bf16.gmra.mrb[0].mxu0 %v1847
      %v1883 = vpop.f32.mrb[0].mxu0
      %v1884 = vadd.f32 %v1832, %v1883
      %v1885 = vpop.f32.mrb[0].mxu0
      %v1886 = vpop.f32.mrb[0].mxu0
      %v1887 = vpop.f32.mrb[0].mxu0
      %1888 = vdwg.mxu0
      %v1889 = vpack.c.bf16 %v1147, %v1147
      %v1890 = vld [vmem:[%s1094] sm:$0xf]
      %v1891 = vld [vmem:[%s1094 + $0x4] sm:$0xf]
      %v1892 = vld [vmem:[%s1094 + $0x8] sm:$0xf]
      %v1893 = vld [vmem:[%s1094 + $0xc] sm:$0xf]
      %v1894 = vld [vmem:[%s1097] sm:$0x1]
      %v1896 = vlaneseq
      %v1897 = vshrl.u32 %v1896, 7
      %v1898 = vsub.s32 0, %v1897
      %v1899 = vrot.slane %v1894, %v1898
      %v1905 = vunpack.c.l.b16 %v1890
      %v1906 = vunpack.c.l.b16 %v1891
      %v1907 = vunpack.c.l.b16 %v1892
      %v1908 = vunpack.c.l.b16 %v1893
      %v1909 = vpack.c.b16 %v1906, %v1905
      %v1910 = vpack.c.b16 %v1908, %v1907
      %v1914 = vsel %vm1178, %v1889, 0
      %1916 = vmatprep.subr.bf16.mxu0 0
      %1917 = vmatpush1.bf16.msra.mxu0 %v1909
      %1918 = vmatprep.subr.bf16.mxu0 0
      %1919 = vmatpush1.bf16.msra.mxu0 %v1910
      %1920 = vmatprep.subr.bf16.mxu0 0
      %1921 = vmatpush1.bf16.msra.mxu0 0
      %1922 = vmatprep.subr.bf16.mxu0 0
      %1923 = vmatpush1.bf16.msra.mxu0 0
      %1924 = vmatprep.subr.bf16.mxu0 0
      %1925 = vmatpush1.bf16.msra.mxu0 0
      %1926 = vmatprep.subr.bf16.mxu0 0
      %1927 = vmatpush1.bf16.msra.mxu0 0
      %1928 = vmatprep.subr.bf16.mxu0 0
      %1929 = vmatpush1.bf16.msra.mxu0 0
      %1930 = vmatprep.subr.bf16.mxu0 0
      %1931 = vmatpush1.bf16.msra.mxu0 0
      %1932 = vmatprep.subr.bf16.mxu0 0
      %1933 = vmatpush1.bf16.msra.mxu0 0
      %1934 = vmatprep.subr.bf16.mxu0 0
      %1935 = vmatpush1.bf16.msra.mxu0 0
      %1936 = vmatprep.subr.bf16.mxu0 0
      %1937 = vmatpush1.bf16.msra.mxu0 0
      %1938 = vmatprep.subr.bf16.mxu0 0
      %1939 = vmatpush1.bf16.msra.mxu0 0
      %1940 = vmatprep.subr.bf16.mxu0 0
      %1941 = vmatpush1.bf16.msra.mxu0 0
      %1942 = vmatprep.subr.bf16.mxu0 0
      %1943 = vmatpush1.bf16.msra.mxu0 0
      %1944 = vmatprep.subr.bf16.mxu0 0
      %1945 = vmatpush1.bf16.msra.mxu0 0
      %1946 = vmatprep.subr.bf16.mxu0 0
      %1947 = vmatpush1.bf16.msra.mxu0 0
      %1948 = vmatprep.mubr.bf16.mxu0 0
      %1949 = vmatmul.mubr.bf16.gmra.mrb[0].mxu0 %v1914
      %v1950 = vpop.f32.mrb[0].mxu0
      %v1951 = vadd.f32 %v1899, %v1950
      %v1952 = vpop.f32.mrb[0].mxu0
      %v1953 = vpop.f32.mrb[0].mxu0
      %v1954 = vpop.f32.mrb[0].mxu0
      %1955 = vdwg.mxu0
      %v1956 = vld [vmem:[%s1102] sm:$0xf]
      %v1957 = vld [vmem:[%s1102 + $0x4] sm:$0xf]
      %v1958 = vld [vmem:[%s1102 + $0x8] sm:$0xf]
      %v1959 = vld [vmem:[%s1102 + $0xc] sm:$0xf]
      %v1960 = vld [vmem:[%s1105] sm:$0x1]
      %v1961 = vmul.f32 %v1884, 0.35355338
      %v1962 = vpack.c.bf16 %v1961, %v1961
      %1963 = vxpose.xlu0.b32.start [1/16] %v1951, 128
      %1964 = vxpose.xlu0.b32.cont [2/16] 0.0, 128
      %1965 = vxpose.xlu0.b32.cont [3/16] 0.0, 128
      %1966 = vxpose.xlu0.b32.cont [4/16] 0.0, 128
      %1967 = vxpose.xlu0.b32.cont [5/16] 0.0, 128
      %1968 = vxpose.xlu0.b32.cont [6/16] 0.0, 128
      %1969 = vxpose.xlu0.b32.cont [7/16] 0.0, 128
      %1970 = vxpose.xlu0.b32.cont [8/16] 0.0, 128
      %1971 = vxpose.xlu0.b32.cont [9/16] 0.0, 128
      %1972 = vxpose.xlu0.b32.cont [10/16] 0.0, 128
      %1973 = vxpose.xlu0.b32.cont [11/16] 0.0, 128
      %1974 = vxpose.xlu0.b32.cont [12/16] 0.0, 128
      %1975 = vxpose.xlu0.b32.cont [13/16] 0.0, 128
      %1976 = vxpose.xlu0.b32.cont [14/16] 0.0, 128
      %1977 = vxpose.xlu0.b32.cont [15/16] 0.0, 128
      %1978 = vxpose.xlu0.b32.end [16/16] 0.0, 128
      %v1979 = vpop.trf.xlu0
      %v1980 = vpop.trf.xlu0
      %v1981 = vpop.trf.xlu0
      %v1982 = vpop.trf.xlu0
      %v1983 = vpop.trf.xlu0
      %v1984 = vpop.trf.xlu0
      %v1985 = vpop.trf.xlu0
      %v1986 = vpop.trf.xlu0
      %v1987 = vpop.trf.xlu0
      %v1988 = vpop.trf.xlu0
      %v1989 = vpop.trf.xlu0
      %v1990 = vpop.trf.xlu0
      %v1991 = vpop.trf.xlu0
      %v1992 = vpop.trf.xlu0
      %v1993 = vpop.trf.xlu0
      %v1994 = vpop.trf.xlu0
      %v1995 = vpack.c.bf16 %v1980, %v1979
      %v1996 = vpack.c.bf16 %v1982, %v1981
      %v1997 = vpack.c.bf16 %v1951, %v1951
      %v1999 = vsel %vm1268, %v1962, 0
      %v2002 = vsel %vm1272, %v1995, 0
      %2004 = vmatprep.subr.bf16.mxu0 0
      %2005 = vmatpush1.bf16.msra.mxu0 %v2002
      %2006 = vmatprep.subr.bf16.mxu0 0
      %2007 = vmatpush1.bf16.msra.mxu0 0
      %2008 = vmatprep.subr.bf16.mxu0 0
      %2009 = vmatpush1.bf16.msra.mxu0 0
      %2010 = vmatprep.subr.bf16.mxu0 0
      %2011 = vmatpush1.bf16.msra.mxu0 0
      %2012 = vmatprep.subr.bf16.mxu0 0
      %2013 = vmatpush1.bf16.msra.mxu0 0
      %2014 = vmatprep.subr.bf16.mxu0 0
      %2015 = vmatpush1.bf16.msra.mxu0 0
      %2016 = vmatprep.subr.bf16.mxu0 0
      %2017 = vmatpush1.bf16.msra.mxu0 0
      %2018 = vmatprep.subr.bf16.mxu0 0
      %2019 = vmatpush1.bf16.msra.mxu0 0
      %2020 = vmatprep.subr.bf16.mxu0 0
      %2021 = vmatpush1.bf16.msra.mxu0 0
      %2022 = vmatprep.subr.bf16.mxu0 0
      %2023 = vmatpush1.bf16.msra.mxu0 0
      %2024 = vmatprep.subr.bf16.mxu0 0
      %2025 = vmatpush1.bf16.msra.mxu0 0
      %2026 = vmatprep.subr.bf16.mxu0 0
      %2027 = vmatpush1.bf16.msra.mxu0 0
      %2028 = vmatprep.subr.bf16.mxu0 0
      %2029 = vmatpush1.bf16.msra.mxu0 0
      %2030 = vmatprep.subr.bf16.mxu0 0
      %2031 = vmatpush1.bf16.msra.mxu0 0
      %2032 = vmatprep.subr.bf16.mxu0 0
      %2033 = vmatpush1.bf16.msra.mxu0 0
      %2034 = vmatprep.subr.bf16.mxu0 0
      %2035 = vmatpush1.bf16.msra.mxu0 0
      %2036 = vmatprep.mubr.bf16.mxu0 0
      %2037 = vmatmul.mubr.bf16.gmra.mrb[0].mxu0 %v1999
      %v2038 = vpop.f32.mrb[0].mxu0
      %v2039 = vadd.f32 0.0, %v2038
      %v2040 = vpop.f32.mrb[0].mxu0
      %v2041 = vpop.f32.mrb[0].mxu0
      %v2042 = vpop.f32.mrb[0].mxu0
      %2043 = vdwg.mxu0
      %vm2044 = vcmask 63488
      %v2045 = vsel %vm2044, %v2039, -inf
      %2046 = vmax.xlane.f32.xlu0 %v2045
      %v2047 = vpop.xlane.xlu0 %2046
      %v2048 = vsub.f32 %v2039, %v2047
      %v2049 = vmul.f32 %v2048, 1.442695
      %v2050 = vpow.pop %v2049
      %v2051 = vsel %vm2044, %v2050, 0.0
      %2052 = vadd.xlane.f32.xlu0 %v2051
      %v2053 = vpop.xlane.xlu0 %2052
      %v2054 = vrcp.pop %v2053
      %v2055 = vmul.f32 %v2050, %v2054
      %v2056 = vpack.c.bf16 %v2055, %v2055
      %2058 = vrot.lane.b32.xlu0 %v1997, 96
      %v2059 = vpop.permute.xlu0 %2058
      %v2061 = vsel %vm1268, %v2056, 0
      %v2064 = vsel %vm1272, %v2059, 0
      %2066 = vmatprep.subr.bf16.mxu0 0
      %2067 = vmatpush1.bf16.msra.mxu0 %v2064
      %2068 = vmatprep.subr.bf16.mxu0 0
      %2069 = vmatpush1.bf16.msra.mxu0 0
      %2070 = vmatprep.subr.bf16.mxu0 0
      %2071 = vmatpush1.bf16.msra.mxu0 0
      %2072 = vmatprep.subr.bf16.mxu0 0
      %2073 = vmatpush1.bf16.msra.mxu0 0
      %2074 = vmatprep.subr.bf16.mxu0 0
      %2075 = vmatpush1.bf16.msra.mxu0 0
      %2076 = vmatprep.subr.bf16.mxu0 0
      %2077 = vmatpush1.bf16.msra.mxu0 0
      %2078 = vmatprep.subr.bf16.mxu0 0
      %2079 = vmatpush1.bf16.msra.mxu0 0
      %2080 = vmatprep.subr.bf16.mxu0 0
      %2081 = vmatpush1.bf16.msra.mxu0 0
      %2082 = vmatprep.subr.bf16.mxu0 0
      %2083 = vmatpush1.bf16.msra.mxu0 0
      %2084 = vmatprep.subr.bf16.mxu0 0
      %2085 = vmatpush1.bf16.msra.mxu0 0
      %2086 = vmatprep.subr.bf16.mxu0 0
      %2087 = vmatpush1.bf16.msra.mxu0 0
      %2088 = vmatprep.subr.bf16.mxu0 0
      %2089 = vmatpush1.bf16.msra.mxu0 0
      %2090 = vmatprep.subr.bf16.mxu0 0
      %2091 = vmatpush1.bf16.msra.mxu0 0
      %2092 = vmatprep.subr.bf16.mxu0 0
      %2093 = vmatpush1.bf16.msra.mxu0 0
      %2094 = vmatprep.subr.bf16.mxu0 0
      %2095 = vmatpush1.bf16.msra.mxu0 0
      %2096 = vmatprep.subr.bf16.mxu0 0
      %2097 = vmatpush1.bf16.msra.mxu0 0
      %2098 = vmatprep.mubr.bf16.mxu0 0
      %2099 = vmatmul.mubr.bf16.gmra.mrb[0].mxu0 %v2061
      %v2100 = vpop.f32.mrb[0].mxu0
      %v2101 = vadd.f32 0.0, %v2100
      %v2102 = vpop.f32.mrb[0].mxu0
      %v2103 = vpop.f32.mrb[0].mxu0
      %v2104 = vpop.f32.mrb[0].mxu0
      %2105 = vdwg.mxu0
      %2107 = vrot.lane.b32.xlu0 %v1962, 120
      %v2108 = vpop.permute.xlu0 %2107
      %v2110 = vrot.slane %v1995, 4
      %v2112 = vsel %vm1268, %v2108, 0
      %v2115 = vsel %vm1272, %v2110, 0
      %2117 = vmatprep.subr.bf16.mxu0 0
      %2118 = vmatpush1.bf16.msra.mxu0 %v2115
      %2119 = vmatprep.subr.bf16.mxu0 0
      %2120 = vmatpush1.bf16.msra.mxu0 0
      %2121 = vmatprep.subr.bf16.mxu0 0
      %2122 = vmatpush1.bf16.msra.mxu0 0
      %2123 = vmatprep.subr.bf16.mxu0 0
      %2124 = vmatpush1.bf16.msra.mxu0 0
      %2125 = vmatprep.subr.bf16.mxu0 0
      %2126 = vmatpush1.bf16.msra.mxu0 0
      %2127 = vmatprep.subr.bf16.mxu0 0
      %2128 = vmatpush1.bf16.msra.mxu0 0
      %2129 = vmatprep.subr.bf16.mxu0 0
      %2130 = vmatpush1.bf16.msra.mxu0 0
      %2131 = vmatprep.subr.bf16.mxu0 0
      %2132 = vmatpush1.bf16.msra.mxu0 0
      %2133 = vmatprep.subr.bf16.mxu0 0
      %2134 = vmatpush1.bf16.msra.mxu0 0
      %2135 = vmatprep.subr.bf16.mxu0 0
      %2136 = vmatpush1.bf16.msra.mxu0 0
      %2137 = vmatprep.subr.bf16.mxu0 0
      %2138 = vmatpush1.bf16.msra.mxu0 0
      %2139 = vmatprep.subr.bf16.mxu0 0
      %2140 = vmatpush1.bf16.msra.mxu0 0
      %2141 = vmatprep.subr.bf16.mxu0 0
      %2142 = vmatpush1.bf16.msra.mxu0 0
      %2143 = vmatprep.subr.bf16.mxu0 0
      %2144 = vmatpush1.bf16.msra.mxu0 0
      %2145 = vmatprep.subr.bf16.mxu0 0
      %2146 = vmatpush1.bf16.msra.mxu0 0
      %2147 = vmatprep.subr.bf16.mxu0 0
      %2148 = vmatpush1.bf16.msra.mxu0 0
      %2149 = vmatprep.mubr.bf16.mxu0 0
      %2150 = vmatmul.mubr.bf16.gmra.mrb[0].mxu0 %v2112
      %v2151 = vpop.f32.mrb[0].mxu0
      %v2152 = vadd.f32 0.0, %v2151
      %v2153 = vpop.f32.mrb[0].mxu0
      %v2154 = vpop.f32.mrb[0].mxu0
      %v2155 = vpop.f32.mrb[0].mxu0
      %2156 = vdwg.mxu0
      %v2157 = vsel %vm2044, %v2152, -inf
      %2158 = vmax.xlane.f32.xlu0 %v2157
      %v2159 = vpop.xlane.xlu0 %2158
      %v2160 = vsub.f32 %v2152, %v2159
      %v2161 = vmul.f32 %v2160, 1.442695
      %v2162 = vpow.pop %v2161
      %v2163 = vsel %vm2044, %v2162, 0.0
      %2164 = vadd.xlane.f32.xlu0 %v2163
      %v2165 = vpop.xlane.xlu0 %2164
      %v2166 = vrcp.pop %v2165
      %v2167 = vmul.f32 %v2162, %v2166
      %v2168 = vpack.c.bf16 %v2167, %v2167
      %2169 = vrot.lane.b32.xlu0 %v1997, 88
      %v2170 = vpop.permute.xlu0 %2169
      %v2172 = vsel %vm1268, %v2168, 0
      %v2175 = vsel %vm1272, %v2170, 0
      %2177 = vmatprep.subr.bf16.mxu0 0
      %2178 = vmatpush1.bf16.msra.mxu0 %v2175
      %2179 = vmatprep.subr.bf16.mxu0 0
      %2180 = vmatpush1.bf16.msra.mxu0 0
      %2181 = vmatprep.subr.bf16.mxu0 0
      %2182 = vmatpush1.bf16.msra.mxu0 0
      %2183 = vmatprep.subr.bf16.mxu0 0
      %2184 = vmatpush1.bf16.msra.mxu0 0
      %2185 = vmatprep.subr.bf16.mxu0 0
      %2186 = vmatpush1.bf16.msra.mxu0 0
      %2187 = vmatprep.subr.bf16.mxu0 0
      %2188 = vmatpush1.bf16.msra.mxu0 0
      %2189 = vmatprep.subr.bf16.mxu0 0
      %2190 = vmatpush1.bf16.msra.mxu0 0
      %2191 = vmatprep.subr.bf16.mxu0 0
      %2192 = vmatpush1.bf16.msra.mxu0 0
      %2193 = vmatprep.subr.bf16.mxu0 0
      %2194 = vmatpush1.bf16.msra.mxu0 0
      %2195 = vmatprep.subr.bf16.mxu0 0
      %2196 = vmatpush1.bf16.msra.mxu0 0
      %2197 = vmatprep.subr.bf16.mxu0 0
      %2198 = vmatpush1.bf16.msra.mxu0 0
      %2199 = vmatprep.subr.bf16.mxu0 0
      %2200 = vmatpush1.bf16.msra.mxu0 0
      %2201 = vmatprep.subr.bf16.mxu0 0
      %2202 = vmatpush1.bf16.msra.mxu0 0
      %2203 = vmatprep.subr.bf16.mxu0 0
      %2204 = vmatpush1.bf16.msra.mxu0 0
      %2205 = vmatprep.subr.bf16.mxu0 0
      %2206 = vmatpush1.bf16.msra.mxu0 0
      %2207 = vmatprep.subr.bf16.mxu0 0
      %2208 = vmatpush1.bf16.msra.mxu0 0
      %2209 = vmatprep.mubr.bf16.mxu0 0
      %2210 = vmatmul.mubr.bf16.gmra.mrb[0].mxu0 %v2172
      %v2211 = vpop.f32.mrb[0].mxu0
      %v2212 = vadd.f32 0.0, %v2211
      %v2213 = vpop.f32.mrb[0].mxu0
      %v2214 = vpop.f32.mrb[0].mxu0
      %v2215 = vpop.f32.mrb[0].mxu0
      %2216 = vdwg.mxu0
      %2217 = vrot.lane.b32.xlu0 %v1962, 112
      %v2218 = vpop.permute.xlu0 %2217
      %v2220 = vsel %vm1268, %v2218, 0
      %v2223 = vsel %vm1272, %v1996, 0
      %2225 = vmatprep.subr.bf16.mxu0 0
      %2226 = vmatpush1.bf16.msra.mxu0 %v2223
      %2227 = vmatprep.subr.bf16.mxu0 0
      %2228 = vmatpush1.bf16.msra.mxu0 0
      %2229 = vmatprep.subr.bf16.mxu0 0
      %2230 = vmatpush1.bf16.msra.mxu0 0
      %2231 = vmatprep.subr.bf16.mxu0 0
      %2232 = vmatpush1.bf16.msra.mxu0 0
      %2233 = vmatprep.subr.bf16.mxu0 0
      %2234 = vmatpush1.bf16.msra.mxu0 0
      %2235 = vmatprep.subr.bf16.mxu0 0
      %2236 = vmatpush1.bf16.msra.mxu0 0
      %2237 = vmatprep.subr.bf16.mxu0 0
      %2238 = vmatpush1.bf16.msra.mxu0 0
      %2239 = vmatprep.subr.bf16.mxu0 0
      %2240 = vmatpush1.bf16.msra.mxu0 0
      %2241 = vmatprep.subr.bf16.mxu0 0
      %2242 = vmatpush1.bf16.msra.mxu0 0
      %2243 = vmatprep.subr.bf16.mxu0 0
      %2244 = vmatpush1.bf16.msra.mxu0 0
      %2245 = vmatprep.subr.bf16.mxu0 0
      %2246 = vmatpush1.bf16.msra.mxu0 0
      %2247 = vmatprep.subr.bf16.mxu0 0
      %2248 = vmatpush1.bf16.msra.mxu0 0
      %2249 = vmatprep.subr.bf16.mxu0 0
      %2250 = vmatpush1.bf16.msra.mxu0 0
      %2251 = vmatprep.subr.bf16.mxu0 0
      %2252 = vmatpush1.bf16.msra.mxu0 0
      %2253 = vmatprep.subr.bf16.mxu0 0
      %2254 = vmatpush1.bf16.msra.mxu0 0
      %2255 = vmatprep.subr.bf16.mxu0 0
      %2256 = vmatpush1.bf16.msra.mxu0 0
      %2257 = vmatprep.mubr.bf16.mxu0 0
      %2258 = vmatmul.mubr.bf16.gmra.mrb[0].mxu0 %v2220
      %v2259 = vpop.f32.mrb[0].mxu0
      %v2260 = vadd.f32 0.0, %v2259
      %v2261 = vpop.f32.mrb[0].mxu0
      %v2262 = vpop.f32.mrb[0].mxu0
      %v2263 = vpop.f32.mrb[0].mxu0
      %2264 = vdwg.mxu0
      %v2265 = vsel %vm2044, %v2260, -inf
      %2266 = vmax.xlane.f32.xlu0 %v2265
      %v2267 = vpop.xlane.xlu0 %2266
      %v2268 = vsub.f32 %v2260, %v2267
      %v2269 = vmul.f32 %v2268, 1.442695
      %v2270 = vpow.pop %v2269
      %v2271 = vsel %vm2044, %v2270, 0.0
      %2272 = vadd.xlane.f32.xlu0 %v2271
      %v2273 = vpop.xlane.xlu0 %2272
      %v2274 = vrcp.pop %v2273
      %v2275 = vmul.f32 %v2270, %v2274
      %v2276 = vpack.c.bf16 %v2275, %v2275
      %2277 = vrot.lane.b32.xlu0 %v1997, 80
      %v2278 = vpop.permute.xlu0 %2277
      %v2280 = vsel %vm1268, %v2276, 0
      %v2283 = vsel %vm1272, %v2278, 0
      %2285 = vmatprep.subr.bf16.mxu0 0
      %2286 = vmatpush1.bf16.msra.mxu0 %v2283
      %2287 = vmatprep.subr.bf16.mxu0 0
      %2288 = vmatpush1.bf16.msra.mxu0 0
      %2289 = vmatprep.subr.bf16.mxu0 0
      %2290 = vmatpush1.bf16.msra.mxu0 0
      %2291 = vmatprep.subr.bf16.mxu0 0
      %2292 = vmatpush1.bf16.msra.mxu0 0
      %2293 = vmatprep.subr.bf16.mxu0 0
      %2294 = vmatpush1.bf16.msra.mxu0 0
      %2295 = vmatprep.subr.bf16.mxu0 0
      %2296 = vmatpush1.bf16.msra.mxu0 0
      %2297 = vmatprep.subr.bf16.mxu0 0
      %2298 = vmatpush1.bf16.msra.mxu0 0
      %2299 = vmatprep.subr.bf16.mxu0 0
      %2300 = vmatpush1.bf16.msra.mxu0 0
      %2301 = vmatprep.subr.bf16.mxu0 0
      %2302 = vmatpush1.bf16.msra.mxu0 0
      %2303 = vmatprep.subr.bf16.mxu0 0
      %2304 = vmatpush1.bf16.msra.mxu0 0
      %2305 = vmatprep.subr.bf16.mxu0 0
      %2306 = vmatpush1.bf16.msra.mxu0 0
      %2307 = vmatprep.subr.bf16.mxu0 0
      %2308 = vmatpush1.bf16.msra.mxu0 0
      %2309 = vmatprep.subr.bf16.mxu0 0
      %2310 = vmatpush1.bf16.msra.mxu0 0
      %2311 = vmatprep.subr.bf16.mxu0 0
      %2312 = vmatpush1.bf16.msra.mxu0 0
      %2313 = vmatprep.subr.bf16.mxu0 0
      %2314 = vmatpush1.bf16.msra.mxu0 0
      %2315 = vmatprep.subr.bf16.mxu0 0
      %2316 = vmatpush1.bf16.msra.mxu0 0
      %2317 = vmatprep.mubr.bf16.mxu0 0
      %2318 = vmatmul.mubr.bf16.gmra.mrb[0].mxu0 %v2280
      %v2319 = vpop.f32.mrb[0].mxu0
      %v2320 = vadd.f32 0.0, %v2319
      %v2321 = vpop.f32.mrb[0].mxu0
      %v2322 = vpop.f32.mrb[0].mxu0
      %v2323 = vpop.f32.mrb[0].mxu0
      %2324 = vdwg.mxu0
      %2325 = vrot.lane.b32.xlu0 %v1962, 104
      %v2326 = vpop.permute.xlu0 %2325
      %v2328 = vrot.slane %v1996, 4
      %v2330 = vsel %vm1268, %v2326, 0
      %v2333 = vsel %vm1272, %v2328, 0
      %2335 = vmatprep.subr.bf16.mxu0 0
      %2336 = vmatpush1.bf16.msra.mxu0 %v2333
      %2337 = vmatprep.subr.bf16.mxu0 0
      %2338 = vmatpush1.bf16.msra.mxu0 0
      %2339 = vmatprep.subr.bf16.mxu0 0
      %2340 = vmatpush1.bf16.msra.mxu0 0
      %2341 = vmatprep.subr.bf16.mxu0 0
      %2342 = vmatpush1.bf16.msra.mxu0 0
      %2343 = vmatprep.subr.bf16.mxu0 0
      %2344 = vmatpush1.bf16.msra.mxu0 0
      %2345 = vmatprep.subr.bf16.mxu0 0
      %2346 = vmatpush1.bf16.msra.mxu0 0
      %2347 = vmatprep.subr.bf16.mxu0 0
      %2348 = vmatpush1.bf16.msra.mxu0 0
      %2349 = vmatprep.subr.bf16.mxu0 0
      %2350 = vmatpush1.bf16.msra.mxu0 0
      %2351 = vmatprep.subr.bf16.mxu0 0
      %2352 = vmatpush1.bf16.msra.mxu0 0
      %2353 = vmatprep.subr.bf16.mxu0 0
      %2354 = vmatpush1.bf16.msra.mxu0 0
      %2355 = vmatprep.subr.bf16.mxu0 0
      %2356 = vmatpush1.bf16.msra.mxu0 0
      %2357 = vmatprep.subr.bf16.mxu0 0
      %2358 = vmatpush1.bf16.msra.mxu0 0
      %2359 = vmatprep.subr.bf16.mxu0 0
      %2360 = vmatpush1.bf16.msra.mxu0 0
      %2361 = vmatprep.subr.bf16.mxu0 0
      %2362 = vmatpush1.bf16.msra.mxu0 0
      %2363 = vmatprep.subr.bf16.mxu0 0
      %2364 = vmatpush1.bf16.msra.mxu0 0
      %2365 = vmatprep.subr.bf16.mxu0 0
      %2366 = vmatpush1.bf16.msra.mxu0 0
      %2367 = vmatprep.mubr.bf16.mxu0 0
      %2368 = vmatmul.mubr.bf16.gmra.mrb[0].mxu0 %v2330
      %v2369 = vpop.f32.mrb[0].mxu0
      %v2370 = vadd.f32 0.0, %v2369
      %v2371 = vpop.f32.mrb[0].mxu0
      %v2372 = vpop.f32.mrb[0].mxu0
      %v2373 = vpop.f32.mrb[0].mxu0
      %2374 = vdwg.mxu0
      %v2375 = vsel %vm2044, %v2370, -inf
      %2376 = vmax.xlane.f32.xlu0 %v2375
      %v2377 = vpop.xlane.xlu0 %2376
      %v2378 = vsub.f32 %v2370, %v2377
      %v2379 = vmul.f32 %v2378, 1.442695
      %v2380 = vpow.pop %v2379
      %v2381 = vsel %vm2044, %v2380, 0.0
      %2382 = vadd.xlane.f32.xlu0 %v2381
      %v2383 = vpop.xlane.xlu0 %2382
      %v2384 = vrcp.pop %v2383
      %v2385 = vmul.f32 %v2380, %v2384
      %v2386 = vpack.c.bf16 %v2385, %v2385
      %2387 = vrot.lane.b32.xlu0 %v1997, 72
      %v2388 = vpop.permute.xlu0 %2387
      %v2390 = vsel %vm1268, %v2386, 0
      %v2393 = vsel %vm1272, %v2388, 0
      %2395 = vmatprep.subr.bf16.mxu0 0
      %2396 = vmatpush1.bf16.msra.mxu0 %v2393
      %2397 = vmatprep.subr.bf16.mxu0 0
      %2398 = vmatpush1.bf16.msra.mxu0 0
      %2399 = vmatprep.subr.bf16.mxu0 0
      %2400 = vmatpush1.bf16.msra.mxu0 0
      %2401 = vmatprep.subr.bf16.mxu0 0
      %2402 = vmatpush1.bf16.msra.mxu0 0
      %2403 = vmatprep.subr.bf16.mxu0 0
      %2404 = vmatpush1.bf16.msra.mxu0 0
      %2405 = vmatprep.subr.bf16.mxu0 0
      %2406 = vmatpush1.bf16.msra.mxu0 0
      %2407 = vmatprep.subr.bf16.mxu0 0
      %2408 = vmatpush1.bf16.msra.mxu0 0
      %2409 = vmatprep.subr.bf16.mxu0 0
      %2410 = vmatpush1.bf16.msra.mxu0 0
      %2411 = vmatprep.subr.bf16.mxu0 0
      %2412 = vmatpush1.bf16.msra.mxu0 0
      %2413 = vmatprep.subr.bf16.mxu0 0
      %2414 = vmatpush1.bf16.msra.mxu0 0
      %2415 = vmatprep.subr.bf16.mxu0 0
      %2416 = vmatpush1.bf16.msra.mxu0 0
      %2417 = vmatprep.subr.bf16.mxu0 0
      %2418 = vmatpush1.bf16.msra.mxu0 0
      %2419 = vmatprep.subr.bf16.mxu0 0
      %2420 = vmatpush1.bf16.msra.mxu0 0
      %2421 = vmatprep.subr.bf16.mxu0 0
      %2422 = vmatpush1.bf16.msra.mxu0 0
      %2423 = vmatprep.subr.bf16.mxu0 0
      %2424 = vmatpush1.bf16.msra.mxu0 0
      %2425 = vmatprep.subr.bf16.mxu0 0
      %2426 = vmatpush1.bf16.msra.mxu0 0
      %2427 = vmatprep.mubr.bf16.mxu0 0
      %2428 = vmatmul.mubr.bf16.gmra.mrb[0].mxu0 %v2390
      %v2429 = vpop.f32.mrb[0].mxu0
      %v2430 = vadd.f32 0.0, %v2429
      %v2431 = vpop.f32.mrb[0].mxu0
      %v2432 = vpop.f32.mrb[0].mxu0
      %v2433 = vpop.f32.mrb[0].mxu0
      %2434 = vdwg.mxu0
      %2436 = vrot.lane.b32.xlu0 %v2212, 8
      %v2437 = vpop.permute.xlu0 %2436
      %2440 = vrot.lane.b32.xlu0 %v2320, 16
      %v2441 = vpop.permute.xlu0 %2440
      %2444 = vrot.lane.b32.xlu0 %v2430, 24
      %v2445 = vpop.permute.xlu0 %2444
      %v2447 = vsel %vm1268, %v2101, %v2437
      %v2448 = vsel %vm1724, %v2447, %v2441
      %v2449 = vsel %vm1726, %v2448, %v2445
      %v2450 = vpack.c.bf16 %v2449, %v2449
      %v2452 = vlaneseq
      %v2453 = vshrl.u32 %v2452, 7
      %v2454 = vsub.s32 0, %v2453
      %v2455 = vrot.slane %v1960, %v2454
      %v2461 = vunpack.c.l.b16 %v1956
      %v2462 = vunpack.c.l.b16 %v1957
      %v2463 = vunpack.c.l.b16 %v1958
      %v2464 = vunpack.c.l.b16 %v1959
      %v2465 = vpack.c.b16 %v2462, %v2461
      %v2466 = vpack.c.b16 %v2464, %v2463
      %v2470 = vsel %vm1178, %v2450, 0
      %2472 = vmatprep.subr.bf16.mxu0 0
      %2473 = vmatpush1.bf16.msra.mxu0 %v2465
      %2474 = vmatprep.subr.bf16.mxu0 0
      %2475 = vmatpush1.bf16.msra.mxu0 %v2466
      %2476 = vmatprep.subr.bf16.mxu0 0
      %2477 = vmatpush1.bf16.msra.mxu0 0
      %2478 = vmatprep.subr.bf16.mxu0 0
      %2479 = vmatpush1.bf16.msra.mxu0 0
      %2480 = vmatprep.subr.bf16.mxu0 0
      %2481 = vmatpush1.bf16.msra.mxu0 0
      %2482 = vmatprep.subr.bf16.mxu0 0
      %2483 = vmatpush1.bf16.msra.mxu0 0
      %2484 = vmatprep.subr.bf16.mxu0 0
      %2485 = vmatpush1.bf16.msra.mxu0 0
      %2486 = vmatprep.subr.bf16.mxu0 0
      %2487 = vmatpush1.bf16.msra.mxu0 0
      %2488 = vmatprep.subr.bf16.mxu0 0
      %2489 = vmatpush1.bf16.msra.mxu0 0
      %2490 = vmatprep.subr.bf16.mxu0 0
      %2491 = vmatpush1.bf16.msra.mxu0 0
      %2492 = vmatprep.subr.bf16.mxu0 0
      %2493 = vmatpush1.bf16.msra.mxu0 0
      %2494 = vmatprep.subr.bf16.mxu0 0
      %2495 = vmatpush1.bf16.msra.mxu0 0
      %2496 = vmatprep.subr.bf16.mxu0 0
      %2497 = vmatpush1.bf16.msra.mxu0 0
      %2498 = vmatprep.subr.bf16.mxu0 0
      %2499 = vmatpush1.bf16.msra.mxu0 0
      %2500 = vmatprep.subr.bf16.mxu0 0
      %2501 = vmatpush1.bf16.msra.mxu0 0
      %2502 = vmatprep.subr.bf16.mxu0 0
      %2503 = vmatpush1.bf16.msra.mxu0 0
      %2504 = vmatprep.mubr.bf16.mxu0 0
      %2505 = vmatmul.mubr.bf16.gmra.mrb[0].mxu0 %v2470
      %v2506 = vpop.f32.mrb[0].mxu0
      %v2507 = vadd.f32 %v2455, %v2506
      %v2508 = vpop.f32.mrb[0].mxu0
      %v2509 = vpop.f32.mrb[0].mxu0
      %v2510 = vpop.f32.mrb[0].mxu0
      %2511 = vdwg.mxu0
      %v2512 = vadd.f32 %v1821, %v2507
      %v2513 = vld [vmem:[%s1108] sm:$0x1]
      %v2514 = vld [vmem:[%s1111] sm:$0x1]
      %v2515 = vsel %vm1793, %v2512, 0.0
      %2516 = vadd.xlane.f32.xlu0 %v2515
      %v2517 = vpop.xlane.xlu0 %2516
      %v2518 = vmul.f32 %v2517, %v1797
      %v2519 = vsub.f32 %v2512, %v2518
      %v2520 = vmul.f32 %v2519, %v2519
      %v2521 = vsel %vm1793, %v2520, 0.0
      %2522 = vadd.xlane.f32.xlu0 %v2521
      %v2523 = vpop.xlane.xlu0 %2522
      %v2524 = vmul.f32 %v2523, %v1797
      %v2525 = vadd.f32 %v2524, 1e-05
      %v2526 = vrsqrt.pop %v2525
      %v2527 = vmul.f32 %v2519, %v2526
      %v2529 = vlaneseq
      %v2530 = vshrl.u32 %v2529, 7
      %v2531 = vsub.s32 0, %v2530
      %v2532 = vrot.slane %v2513, %v2531
      %v2534 = vmul.f32 %v2527, %v2532
      %v2536 = vlaneseq
      %v2537 = vshrl.u32 %v2536, 7
      %v2538 = vsub.s32 0, %v2537
      %v2539 = vrot.slane %v2514, %v2538
      %v2541 = vadd.f32 %v2534, %v2539
      %v2542 = vpack.c.bf16 %v2541, %v2541
      %v2543 = vld [vmem:[%s1116] sm:$0xf]
      %v2544 = vld [vmem:[%s1116 + $0x4] sm:$0xf]
      %v2545 = vld [vmem:[%s1116 + $0x8] sm:$0xf]
      %v2546 = vld [vmem:[%s1116 + $0xc] sm:$0xf]
      %v2547 = vld [vmem:[%s1119] sm:$0x1]
      %v2549 = vlaneseq
      %v2550 = vshrl.u32 %v2549, 7
      %v2551 = vsub.s32 0, %v2550
      %v2552 = vrot.slane %v2547, %v2551
      %v2558 = vunpack.c.l.b16 %v2543
      %v2559 = vunpack.c.l.b16 %v2544
      %v2560 = vunpack.c.l.b16 %v2545
      %v2561 = vunpack.c.l.b16 %v2546
      %v2562 = vpack.c.b16 %v2559, %v2558
      %v2563 = vpack.c.b16 %v2561, %v2560
      %v2567 = vsel %vm1178, %v2542, 0
      %2569 = vmatprep.subr.bf16.mxu0 0
      %2570 = vmatpush1.bf16.msra.mxu0 %v2562
      %2571 = vmatprep.subr.bf16.mxu0 0
      %2572 = vmatpush1.bf16.msra.mxu0 %v2563
      %2573 = vmatprep.subr.bf16.mxu0 0
      %2574 = vmatpush1.bf16.msra.mxu0 0
      %2575 = vmatprep.subr.bf16.mxu0 0
      %2576 = vmatpush1.bf16.msra.mxu0 0
      %2577 = vmatprep.subr.bf16.mxu0 0
      %2578 = vmatpush1.bf16.msra.mxu0 0
      %2579 = vmatprep.subr.bf16.mxu0 0
      %2580 = vmatpush1.bf16.msra.mxu0 0
      %2581 = vmatprep.subr.bf16.mxu0 0
      %2582 = vmatpush1.bf16.msra.mxu0 0
      %2583 = vmatprep.subr.bf16.mxu0 0
      %2584 = vmatpush1.bf16.msra.mxu0 0
      %2585 = vmatprep.subr.bf16.mxu0 0
      %2586 = vmatpush1.bf16.msra.mxu0 0
      %2587 = vmatprep.subr.bf16.mxu0 0
      %2588 = vmatpush1.bf16.msra.mxu0 0
      %2589 = vmatprep.subr.bf16.mxu0 0
      %2590 = vmatpush1.bf16.msra.mxu0 0
      %2591 = vmatprep.subr.bf16.mxu0 0
      %2592 = vmatpush1.bf16.msra.mxu0 0
      %2593 = vmatprep.subr.bf16.mxu0 0
      %2594 = vmatpush1.bf16.msra.mxu0 0
      %2595 = vmatprep.subr.bf16.mxu0 0
      %2596 = vmatpush1.bf16.msra.mxu0 0
      %2597 = vmatprep.subr.bf16.mxu0 0
      %2598 = vmatpush1.bf16.msra.mxu0 0
      %2599 = vmatprep.subr.bf16.mxu0 0
      %2600 = vmatpush1.bf16.msra.mxu0 0
      %2601 = vmatprep.mubr.bf16.mxu0 0
      %2602 = vmatmul.mubr.bf16.gmra.mrb[0].mxu0 %v2567
      %v2603 = vpop.f32.mrb[0].mxu0
      %v2604 = vadd.f32 %v2552, %v2603
      %v2605 = vpop.f32.mrb[0].mxu0
      %v2606 = vpop.f32.mrb[0].mxu0
      %v2607 = vpop.f32.mrb[0].mxu0
      %2608 = vdwg.mxu0
      %v2609 = vmax.f32 %v2604, 0.0
      %v2610 = vpack.c.bf16 %v2609, %v2609
      %v2611 = vld [vmem:[%s1124] sm:$0xf]
      %v2612 = vld [vmem:[%s1124 + $0x4] sm:$0xf]
      %v2613 = vld [vmem:[%s1124 + $0x8] sm:$0xf]
      %v2614 = vld [vmem:[%s1124 + $0xc] sm:$0xf]
      %v2615 = vld [vmem:[%s1124 + $0x10] sm:$0xf]
      %v2616 = vld [vmem:[%s1124 + $0x14] sm:$0xf]
      %v2617 = vld [vmem:[%s1124 + $0x18] sm:$0xf]
      %v2618 = vld [vmem:[%s1124 + $0x1c] sm:$0xf]
      %v2619 = vld [vmem:[%s1124 + $0x20] sm:$0xf]
      %v2620 = vld [vmem:[%s1124 + $0x24] sm:$0xf]
      %v2621 = vld [vmem:[%s1124 + $0x28] sm:$0xf]
      %v2622 = vld [vmem:[%s1124 + $0x2c] sm:$0xf]
      %v2623 = vld [vmem:[%s1124 + $0x30] sm:$0xf]
      %v2624 = vld [vmem:[%s1124 + $0x34] sm:$0xf]
      %v2625 = vld [vmem:[%s1124 + $0x38] sm:$0xf]
      %v2626 = vld [vmem:[%s1124 + $0x3c] sm:$0xf]
      %v2627 = vld [vmem:[%s1127] sm:$0x1]
      %v2629 = vlaneseq
      %v2630 = vshrl.u32 %v2629, 7
      %v2631 = vsub.s32 0, %v2630
      %v2632 = vrot.slane %v2627, %v2631
      %v2650 = vunpack.c.l.b16 %v2611
      %v2651 = vunpack.c.l.b16 %v2612
      %v2652 = vunpack.c.l.b16 %v2613
      %v2653 = vunpack.c.l.b16 %v2614
      %v2654 = vunpack.c.l.b16 %v2615
      %v2655 = vunpack.c.l.b16 %v2616
      %v2656 = vunpack.c.l.b16 %v2617
      %v2657 = vunpack.c.l.b16 %v2618
      %v2658 = vunpack.c.l.b16 %v2619
      %v2659 = vunpack.c.l.b16 %v2620
      %v2660 = vunpack.c.l.b16 %v2621
      %v2661 = vunpack.c.l.b16 %v2622
      %v2662 = vunpack.c.l.b16 %v2623
      %v2663 = vunpack.c.l.b16 %v2624
      %v2664 = vunpack.c.l.b16 %v2625
      %v2665 = vunpack.c.l.b16 %v2626
      %v2666 = vpack.c.b16 %v2651, %v2650
      %v2667 = vpack.c.b16 %v2653, %v2652
      %v2668 = vpack.c.b16 %v2655, %v2654
      %v2669 = vpack.c.b16 %v2657, %v2656
      %v2670 = vpack.c.b16 %v2659, %v2658
      %v2671 = vpack.c.b16 %v2661, %v2660
      %v2672 = vpack.c.b16 %v2663, %v2662
      %v2673 = vpack.c.b16 %v2665, %v2664
      %2682 = vmatprep.subr.bf16.mxu0 0
      %2683 = vmatpush1.bf16.msra.mxu0 %v2666
      %2684 = vmatprep.subr.bf16.mxu0 0
      %2685 = vmatpush1.bf16.msra.mxu0 %v2667
      %2686 = vmatprep.subr.bf16.mxu0 0
      %2687 = vmatpush1.bf16.msra.mxu0 %v2668
      %2688 = vmatprep.subr.bf16.mxu0 0
      %2689 = vmatpush1.bf16.msra.mxu0 %v2669
      %2690 = vmatprep.subr.bf16.mxu0 0
      %2691 = vmatpush1.bf16.msra.mxu0 %v2670
      %2692 = vmatprep.subr.bf16.mxu0 0
      %2693 = vmatpush1.bf16.msra.mxu0 %v2671
      %2694 = vmatprep.subr.bf16.mxu0 0
      %2695 = vmatpush1.bf16.msra.mxu0 %v2672
      %2696 = vmatprep.subr.bf16.mxu0 0
      %2697 = vmatpush1.bf16.msra.mxu0 %v2673
      %2698 = vmatprep.subr.bf16.mxu0 0
      %2699 = vmatpush1.bf16.msra.mxu0 0
      %2700 = vmatprep.subr.bf16.mxu0 0
      %2701 = vmatpush1.bf16.msra.mxu0 0
      %2702 = vmatprep.subr.bf16.mxu0 0
      %2703 = vmatpush1.bf16.msra.mxu0 0
      %2704 = vmatprep.subr.bf16.mxu0 0
      %2705 = vmatpush1.bf16.msra.mxu0 0
      %2706 = vmatprep.subr.bf16.mxu0 0
      %2707 = vmatpush1.bf16.msra.mxu0 0
      %2708 = vmatprep.subr.bf16.mxu0 0
      %2709 = vmatpush1.bf16.msra.mxu0 0
      %2710 = vmatprep.subr.bf16.mxu0 0
      %2711 = vmatpush1.bf16.msra.mxu0 0
      %2712 = vmatprep.subr.bf16.mxu0 0
      %2713 = vmatpush1.bf16.msra.mxu0 0
      %2714 = vmatprep.mubr.bf16.mxu0 0
      %2715 = vmatmul.mubr.bf16.gmra.mrb[0].mxu0 %v2610
      %v2716 = vpop.f32.mrb[0].mxu0
      %v2717 = vadd.f32 %v2632, %v2716
      %v2718 = vpop.f32.mrb[0].mxu0
      %v2719 = vpop.f32.mrb[0].mxu0
      %v2720 = vpop.f32.mrb[0].mxu0
      %2721 = vdwg.mxu0
      %v2722 = vadd.f32 %v2541, %v2717
      %v2723 = vld [vmem:[%s1130] sm:$0x1]
      %v2724 = vld [vmem:[%s1133] sm:$0x1]
      %v2725 = vsel %vm1793, %v2722, 0.0
      %2726 = vadd.xlane.f32.xlu0 %v2725
      %v2727 = vpop.xlane.xlu0 %2726
      %v2728 = vmul.f32 %v2727, %v1797
      %v2729 = vsub.f32 %v2722, %v2728
      %v2730 = vmul.f32 %v2729, %v2729
      %v2731 = vsel %vm1793, %v2730, 0.0
      %2732 = vadd.xlane.f32.xlu0 %v2731
      %v2733 = vpop.xlane.xlu0 %2732
      %v2734 = vmul.f32 %v2733, %v1797
      %v2735 = vadd.f32 %v2734, 1e-05
      %v2736 = vrsqrt.pop %v2735
      %v2737 = vmul.f32 %v2729, %v2736
      %v2739 = vlaneseq
      %v2740 = vshrl.u32 %v2739, 7
      %v2741 = vsub.s32 0, %v2740
      %v2742 = vrot.slane %v2723, %v2741
      %v2744 = vmul.f32 %v2737, %v2742
      %v2746 = vlaneseq
      %v2747 = vshrl.u32 %v2746, 7
      %v2748 = vsub.s32 0, %v2747
      %v2749 = vrot.slane %v2724, %v2748
      %v2751 = vadd.f32 %v2744, %v2749
      %p2752 = scmp.lt.s32.totalorder %s42, 1
      // Predicated region
      $region129: #{rubik_forward.3} parent=123 // pred_check
        %p2753 = pneg %p2752
      $region130: #{rubik_forward.3} parent=123 // pred_check_branch
        %2755 = sbr.rel (%p2753) target = $region132
      $region131: #{rubik_forward.3} parent=123 // pred_region
        %2756 = vst.msk [vmem:[#allocation2] sm:$0x7f] %vm1793, %v2751
      $region132: #{rubik_forward.3} parent=123 // pred_fallthru
        _
      %p2757 = scmp.eq.s32.totalorder %s42, 1
      // Predicated region
      $region133: #{rubik_forward.3} parent=123 // pred_check
        %p2758 = pneg %p2757
      $region134: #{rubik_forward.3} parent=123 // pred_check_branch
        %2760 = sbr.rel (%p2758) target = $region136
      $region135: #{rubik_forward.3} parent=123 // pred_region
        %v2761 = vld [vmem:[%s22] sm:$0x1]
        %v2762 = vld [vmem:[%s23] sm:$0x1]
        %v2763 = vsel %vm1793, %v2751, 0.0
        %2764 = vadd.xlane.f32.xlu0 %v2763
        %v2765 = vpop.xlane.xlu0 %2764
        %v2766 = vmul.f32 %v2765, %v1797
        %v2767 = vsub.f32 %v2751, %v2766
        %v2768 = vmul.f32 %v2767, %v2767
        %v2769 = vsel %vm1793, %v2768, 0.0
        %2770 = vadd.xlane.f32.xlu0 %v2769
        %v2771 = vpop.xlane.xlu0 %2770
        %v2772 = vmul.f32 %v2771, %v1797
        %v2773 = vadd.f32 %v2772, 1e-05
        %v2774 = vrsqrt.pop %v2773
        %v2775 = vmul.f32 %v2767, %v2774
        %v2777 = vlaneseq
        %v2778 = vshrl.u32 %v2777, 7
        %v2779 = vsub.s32 0, %v2778
        %v2780 = vrot.slane %v2761, %v2779
        %v2782 = vmul.f32 %v2775, %v2780
        %v2784 = vlaneseq
        %v2785 = vshrl.u32 %v2784, 7
        %v2786 = vsub.s32 0, %v2785
        %v2787 = vrot.slane %v2762, %v2786
        %v2789 = vadd.f32 %v2782, %v2787
        %v2790 = vpack.c.bf16 %v2789, %v2789
        %v2791 = vld [vmem:[%s24] sm:$0xf]
        %v2792 = vld [vmem:[%s24 + $0x4] sm:$0xf]
        %v2793 = vld [vmem:[%s24 + $0x8] sm:$0xf]
        %v2794 = vld [vmem:[%s24 + $0xc] sm:$0xf]
        %v2795 = vld [vmem:[%s25] sm:$0x1]
        %v2797 = vlaneseq
        %v2798 = vshrl.u32 %v2797, 7
        %v2799 = vsub.s32 0, %v2798
        %v2800 = vrot.slane %v2795, %v2799
        %v2806 = vunpack.c.l.b16 %v2791
        %v2807 = vunpack.c.l.b16 %v2792
        %v2808 = vunpack.c.l.b16 %v2793
        %v2809 = vunpack.c.l.b16 %v2794
        %v2810 = vpack.c.b16 %v2807, %v2806
        %v2811 = vpack.c.b16 %v2809, %v2808
        %v2815 = vsel %vm1178, %v2790, 0
        %2817 = vmatprep.subr.bf16.mxu0 0
        %2818 = vmatpush1.bf16.msra.mxu0 %v2810
        %2819 = vmatprep.subr.bf16.mxu0 0
        %2820 = vmatpush1.bf16.msra.mxu0 %v2811
        %2821 = vmatprep.subr.bf16.mxu0 0
        %2822 = vmatpush1.bf16.msra.mxu0 0
        %2823 = vmatprep.subr.bf16.mxu0 0
        %2824 = vmatpush1.bf16.msra.mxu0 0
        %2825 = vmatprep.subr.bf16.mxu0 0
        %2826 = vmatpush1.bf16.msra.mxu0 0
        %2827 = vmatprep.subr.bf16.mxu0 0
        %2828 = vmatpush1.bf16.msra.mxu0 0
        %2829 = vmatprep.subr.bf16.mxu0 0
        %2830 = vmatpush1.bf16.msra.mxu0 0
        %2831 = vmatprep.subr.bf16.mxu0 0
        %2832 = vmatpush1.bf16.msra.mxu0 0
        %2833 = vmatprep.subr.bf16.mxu0 0
        %2834 = vmatpush1.bf16.msra.mxu0 0
        %2835 = vmatprep.subr.bf16.mxu0 0
        %2836 = vmatpush1.bf16.msra.mxu0 0
        %2837 = vmatprep.subr.bf16.mxu0 0
        %2838 = vmatpush1.bf16.msra.mxu0 0
        %2839 = vmatprep.subr.bf16.mxu0 0
        %2840 = vmatpush1.bf16.msra.mxu0 0
        %2841 = vmatprep.subr.bf16.mxu0 0
        %2842 = vmatpush1.bf16.msra.mxu0 0
        %2843 = vmatprep.subr.bf16.mxu0 0
        %2844 = vmatpush1.bf16.msra.mxu0 0
        %2845 = vmatprep.subr.bf16.mxu0 0
        %2846 = vmatpush1.bf16.msra.mxu0 0
        %2847 = vmatprep.subr.bf16.mxu0 0
        %2848 = vmatpush1.bf16.msra.mxu0 0
        %2849 = vmatprep.mubr.bf16.mxu0 0
        %2850 = vmatmul.mubr.bf16.gmra.mrb[0].mxu0 %v2815
        %v2851 = vpop.f32.mrb[0].mxu0
        %v2852 = vadd.f32 %v2800, %v2851
        %v2853 = vpop.f32.mrb[0].mxu0
        %v2854 = vpop.f32.mrb[0].mxu0
        %v2855 = vpop.f32.mrb[0].mxu0
        %2856 = vdwg.mxu0
        %2857 = vst [vmem:[%s1137] sm:$0x7f] %v2852
      $region136: #{rubik_forward.3} parent=123 // pred_fallthru
        _
      %p2858 = scmp.lt.s32.totalorder %s41, 1
      %s2859 = scalar_select %p2858, %s41, 1
      %s2860 = smul.addr %s2859, 8
      %s2861 = scalar_lea.vmem %s26, %s2860
      // Predicated region
      $region137: #{rubik_forward.3} parent=123 // pred_check
        %p2862 = pneg %p723
      $region138: #{rubik_forward.3} parent=123 // pred_check_branch
        %2864 = sbr.rel (%p2862) target = $region140
      $region139: #{rubik_forward.3} parent=123 // pred_region
        _
      $region140: #{rubik_forward.3} parent=123 // pred_fallthru
        _
    $region124: #{rubik_forward.3} parent=5 // pred_fallthru
      _
    %p2865 = scmp.le.s32.totalorder 2, %s32
    // Predicated region
    $region141: #{rubik_forward.3} parent=5 // pred_check
      %p2866 = pneg %p2865
    $region142: #{rubik_forward.3} parent=5 // pred_check_branch
      %2868 = sbr.rel (%p2866) target = $region144
    $region143: #{rubik_forward.3} parent=5 // pred_region
      %s2869 = ssub.s32 %s32, 2
      // Predicated region
      $region145: #{rubik_forward.3} parent=143 // pred_check
        %p2870 = pneg %p729
      $region146: #{rubik_forward.3} parent=143 // pred_check_branch
        %2872 = sbr.rel (%p2870) target = $region148
      $region147: #{rubik_forward.3} parent=143 // pred_region
        %p2873 = scmp.lt.s32.totalorder %s43, 1
        %s2874 = scalar_select %p2873, %s43, 1
        %s2875 = smul.addr %s2874, 8
        %s2876 = scalar_lea.vmem %s26, %s2875
      $region148: #{rubik_forward.3} parent=143 // pred_fallthru
        _
    $region144: #{rubik_forward.3} parent=5 // pred_fallthru
      _
  $region6: #{rubik_forward.3} parent=0 // loop_footer
    %s36 = sadd.s32 1, %s32
  $region7: #{rubik_forward.3} parent=0 // loop_footer_branch
    %31 = sbr.rel target = $region3
  $region8: #{rubik_forward.3} parent=0 // loop_exit
    _

</llo_original>
